<compile_context>
chip_gen: v5e
topology: v5e:2x2
jax: 0.10.0
libtpu: 0.0.40
codegen_flags: <defaults>
</compile_context>

<pallas_src>
import functools

import numpy as np
import jax
import jax.numpy as jnp
from jax.experimental import pallas as pl
from jax.experimental.pallas import tpu as pltpu

BN_EPS = 1e-5


# ------------------------------ helpers -------------------------------------

def _bilinear_matrix(n_in, n_out):
    """align_corners=True 1-D linear interpolation matrix (n_out, n_in)."""
    A = np.zeros((n_out, n_in), np.float32)
    for i in range(n_out):
        src = i * (n_in - 1) / (n_out - 1) if n_out > 1 else 0.0
        i0 = int(np.floor(src))
        i1 = min(i0 + 1, n_in - 1)
        w = src - i0
        A[i, i0] += 1.0 - w
        A[i, i1] += w
    return jnp.asarray(A)


def _fold_bn(gamma, beta, mean, var):
    s = gamma / jnp.sqrt(var + BN_EPS)
    return s, beta - mean * s


# ----------------------------- Pallas kernel --------------------------------

def _make_up_kernel(*, C1, C2, H1, W1, H2, W2, off_y, off_x, mid, cout):
    """Fused Up kernel for one batch element (everything stays in VMEM).

    Inputs per grid step:
      x2_ref : (1, H2, W2, C2)  NHWC skip connection
      x1_ref : (1, C1, H1, W1)  NCHW decoder path (pre-upsample; no transpose)
      awt_ref: (W1, 2*W1)  width-interp matrix (AwT),  aht_ref: (H1, 2*H1) (AhT)
      w1_ref : (9, C1+C2, mid), b1_ref: (1, mid)   -- conv1 taps (BN1 folded)
      w2_ref : (9, mid, cout),  b2_ref: (1, cout)  -- conv2 taps (BN2 folded)
    Scratch: xp_ref (H2+2, W2+2, C1+C2), hp_ref (H2+2, W2+2, mid)
    """
    Cin = C1 + C2
    H1u, W1u = 2 * H1, 2 * W1

    def kernel(x2_ref, x1_ref, awt_ref, aht_ref, w1_ref, b1_ref, w2_ref, b2_ref,
               o_ref, xp_ref, hp_ref):
        cdt = xp_ref.dtype

        # ---- halo-only zeroing (interior is fully overwritten every step) ----
        xp_ref[pl.ds(0, 1)] = jnp.zeros((1, W2 + 2, Cin), cdt)
        xp_ref[pl.ds(H2 + 1, 1)] = jnp.zeros((1, W2 + 2, Cin), cdt)
        xp_ref[:, pl.ds(0, 1), :] = jnp.zeros((H2 + 2, 1, Cin), cdt)
        xp_ref[:, pl.ds(W2 + 1, 1), :] = jnp.zeros((H2 + 2, 1, Cin), cdt)
        hp_ref[pl.ds(0, 1)] = jnp.zeros((1, W2 + 2, mid), cdt)
        hp_ref[pl.ds(H2 + 1, 1)] = jnp.zeros((1, W2 + 2, mid), cdt)
        hp_ref[:, pl.ds(0, 1), :] = jnp.zeros((H2 + 2, 1, mid), cdt)
        hp_ref[:, pl.ds(W2 + 1, 1), :] = jnp.zeros((H2 + 2, 1, mid), cdt)

        # F.pad interior zeros only needed when x2 is spatially larger than 2*x1
        # (static Python condition -> no cost in the common diff==0 case).
        if off_y or off_x or H1u != H2 or W1u != W2:
            xp_ref[pl.ds(1, H2), pl.ds(1, W2), pl.ds(C2, C1)] = (
                jnp.zeros((H2, W2, C1), cdt))

        # ---- skip connection x2 -> channels [0:C2] of the padded scratch ----
        xp_ref[pl.ds(1, H2), pl.ds(1, W2), pl.ds(0, C2)] = x2_ref[0].astype(cdt)

        # ---- fused bilinear x2 upsample (align_corners=True) of x1, in VMEM ----
        # Width then height interpolation as plain 2D MXU matmuls (f32; tiny
        # FLOP count).  No broadcast_to / batched einsum, no HBM intermediate.
        x1 = x1_ref[0]                                              # (C1, H1, W1)
        xw = jnp.dot(x1.reshape(C1 * H1, W1), awt_ref[...],
                     preferred_element_type=jnp.float32)            # (C1*H1, W1u)
        xw = xw.reshape(C1, H1, W1u)
        xh = jnp.dot(jnp.transpose(xw, (0, 2, 1)).reshape(C1 * W1u, H1),
                     aht_ref[...],
                     preferred_element_type=jnp.float32)            # (C1*W1u, H1u)
        u = jnp.transpose(xh.reshape(C1, W1u, H1u), (0, 2, 1))      # (C1, H1u, W1u)
        # CHW -> HWC: one small 2D (C1, W1u) transpose per output row, written
        # straight into channels [C2:] of the padded scratch (fused concat).
        for h in range(H1u):
            xp_ref[1 + off_y + h, pl.ds(1 + off_x, W1u), pl.ds(C2, C1)] = (
                jnp.transpose(u[:, h, :]).astype(cdt))

        # ---- conv1 (3x3, pad=1, no bias) + folded BN1 + ReLU ----------------
        # One merged weight / one merged scratch: 9 matmuls, K = C1 + C2.
        # (H2,W2,Cin)->(H2*W2,Cin) is a vreg relabeling since W2 % 8 == 0.
        acc = jnp.zeros((H2 * W2, mid), jnp.float32)
        for tap in range(9):
            dy, dx = tap // 3, tap % 3
            p = xp_ref[pl.ds(dy, H2), pl.ds(dx, W2), :].reshape(H2 * W2, Cin)
            acc = acc + jnp.dot(p, w1_ref[tap], preferred_element_type=jnp.float32)
        h1 = jnp.maximum(acc + b1_ref[...], 0.0)                    # f32 epilogue

        # Intermediate stays in VMEM (zero-haloed scratch); no HBM round trip.
        hp_ref[pl.ds(1, H2), pl.ds(1, W2), :] = h1.reshape(H2, W2, mid).astype(cdt)

        # ---- conv2 (3x3, pad=1, no bias) + folded BN2 + ReLU ----------------
        acc2 = jnp.zeros((H2 * W2, cout), jnp.float32)
        for tap in range(9):
            dy, dx = tap // 3, tap % 3
            p = hp_ref[pl.ds(dy, H2), pl.ds(dx, W2), :].reshape(H2 * W2, mid)
            acc2 = acc2 + jnp.dot(p, w2_ref[tap], preferred_element_type=jnp.float32)
        o_ref[0] = (jnp.maximum(acc2 + b2_ref[...], 0.0)
                    .reshape(H2, W2, cout).astype(o_ref.dtype))
        # NOTE: cout=4 in the toy config -> lane-sparse store; real UNet channel
        # counts (>=128) make this lane-dense automatically.

    return kernel


# ------------------------------ JAX wrapper ----------------------------------

def up_forward(x1, x2, params, *, compute_dtype=jnp.float32):
    """Pallas forward of Up(in_channels, out_channels, bilinear=True, relu=True).

    x1: (B, C1, H, W) NCHW decoder path, x2: (B, C2, 2H, 2W) NCHW skip, with
    C1 + C2 = in_channels.  Returns (B, out_channels, 2H, 2W) NCHW.
    compute_dtype: dtype of conv matmul operands (f32 or bf16); accumulation
    and the bias+ReLU epilogue are always f32.
    """
    B, C1, H1, W1 = x1.shape
    _, C2, H2, W2 = x2.shape
    H1u, W1u = 2 * H1, 2 * W1
    diffY, diffX = H2 - H1u, W2 - W1u
    off_y, off_x = diffY // 2, diffX // 2

    mid = params["w1"].shape[0]
    cout = params["w2"].shape[0]
    cin = params["w1"].shape[1]
    assert cin == C1 + C2, (cin, C1, C2)

    # align_corners=True interpolation matrices (tiny, f32).
    aht = _bilinear_matrix(H1, H1u).T        # (H1, H1u)
    awt = _bilinear_matrix(W1, W1u).T        # (W1, W1u)

    # Fold eval-mode BatchNorm scale into the conv weights; keep the bias.
    s1, b1 = _fold_bn(params["gamma1"], params["beta1"], params["mean1"], params["var1"])
    s2, b2 = _fold_bn(params["gamma2"], params["beta2"], params["mean2"], params["var2"])
    # (O, I, 3, 3) -> (9, I, O) tap-major, BN scale folded along O, merged weight.
    w1m = (jnp.transpose(params["w1"], (2, 3, 1, 0)).reshape(9, cin, mid)
           * s1[None, None, :]).astype(compute_dtype)
    w2m = (jnp.transpose(params["w2"], (2, 3, 1, 0)).reshape(9, mid, cout)
           * s2[None, None, :]).astype(compute_dtype)

    # Module-boundary layout change for x2 only (NCHW -> NHWC).  x1 goes in as
    # NCHW at LOW resolution; the upsample + layout fix happen inside the kernel.
    # TODO(synk): keep NHWC end-to-end across the UNet to drop this transpose.
    x2n = jnp.transpose(x2, (0, 2, 3, 1))

    kernel = _make_up_kernel(C1=C1, C2=C2, H1=H1, W1=W1, H2=H2, W2=W2,
                             off_y=off_y, off_x=off_x, mid=mid, cout=cout)

    out_nhwc = pl.pallas_call(
        kernel,
        out_shape=jax.ShapeDtypeStruct((B, H2, W2, cout), jnp.float32),
        grid=(B,),
        in_specs=[
            pl.BlockSpec((1, H2, W2, C2), lambda b: (b, 0, 0, 0)),
            pl.BlockSpec((1, C1, H1, W1), lambda b: (b, 0, 0, 0)),
            pl.BlockSpec((W1, W1u), lambda b: (0, 0)),
            pl.BlockSpec((H1, H1u), lambda b: (0, 0)),
            pl.BlockSpec((9, cin, mid), lambda b: (0, 0, 0)),
            pl.BlockSpec((1, mid), lambda b: (0, 0)),
            pl.BlockSpec((9, mid, cout), lambda b: (0, 0, 0)),
            pl.BlockSpec((1, cout), lambda b: (0, 0)),
        ],
        out_specs=pl.BlockSpec((1, H2, W2, cout), lambda b: (b, 0, 0, 0)),
        scratch_shapes=[
            pltpu.VMEM((H2 + 2, W2 + 2, cin), compute_dtype),
            pltpu.VMEM((H2 + 2, W2 + 2, mid), compute_dtype),
        ],
        compiler_params=pltpu.CompilerParams(
            dimension_semantics=("parallel",),
            vmem_limit_bytes=64 * 1024 * 1024),
    )(x2n, x1, awt, aht, w1m, b1.reshape(1, mid).astype(jnp.float32),
      w2m, b2.reshape(1, cout).astype(jnp.float32))

    # module boundary: back to NCHW.
    return jnp.transpose(out_nhwc, (0, 3, 1, 2))


# --------------------------- pure-JAX reference -------------------------------

def _ref_forward(x1, x2, params):
    B, C1, H, W = x1.shape
    Ah = _bilinear_matrix(H, 2 * H)
    Aw = _bilinear_matrix(W, 2 * W)
    x1u = jnp.einsum("bchw,Hh,Ww->bcHW", x1, Ah, Aw)
    diffY = x2.shape[2] - x1u.shape[2]
    diffX = x2.shape[3] - x1u.shape[3]
    x1u = jnp.pad(x1u, ((0, 0), (0, 0),
                        (diffY // 2, diffY - diffY // 2),
                        (diffX // 2, diffX - diffX // 2)))
    x = jnp.concatenate([x2, x1u], axis=1)

    def conv_bn_relu(x, w, gamma, beta, mean, var):
        y = jax.lax.conv_general_dilated(
            x, w, (1, 1), ((1, 1), (1, 1)),
            dimension_numbers=("NCHW", "OIHW", "NCHW"))
        s = gamma / jnp.sqrt(var + BN_EPS)
        b = beta - mean * s
        return jnp.maximum(y * s[None, :, None, None] + b[None, :, None, None], 0.0)

    h = conv_bn_relu(x, params["w1"], params["gamma1"], params["beta1"],
                     params["mean1"], params["var1"])
    return conv_bn_relu(h, params["w2"], params["gamma2"], params["beta2"],
                        params["mean2"], params["var2"])


# ----------------------------------- main -------------------------------------

if __name__ == "__main__":
    key = jax.random.PRNGKey(0)
    ks = jax.random.split(key, 12)

    # Up(in_channels=8, out_channels=4, bilinear=True, relu=True)
    in_channels, out_channels = 8, 4
    mid = in_channels // 2                       # DoubleConv mid_channels
    B = 2
    C1 = in_channels // 2                        # x1 channels (decoder path)
    C2 = in_channels - C1                        # x2 channels (skip connection)
    H1 = W1 = 8                                  # x1 spatial; x2 is 2x

    x1 = jax.random.normal(ks[0], (B, C1, H1, W1), jnp.float32)
    x2 = jax.random.normal(ks[1], (B, C2, 2 * H1, 2 * W1), jnp.float32)

    # Deterministic synthetic parameters (BatchNorm in eval mode, running stats).
    params = dict(
        w1=0.2 * jax.random.normal(ks[2], (mid, in_channels, 3, 3), jnp.float32),
        gamma1=1.0 + 0.1 * jax.random.normal(ks[3], (mid,), jnp.float32),
        beta1=0.1 * jax.random.normal(ks[4], (mid,), jnp.float32),
        mean1=0.1 * jax.random.normal(ks[5], (mid,), jnp.float32),
        var1=0.5 + jax.random.uniform(ks[6], (mid,), jnp.float32),
        w2=0.2 * jax.random.normal(ks[7], (out_channels, mid, 3, 3), jnp.float32),
        gamma2=1.0 + 0.1 * jax.random.normal(ks[8], (out_channels,), jnp.float32),
        beta2=0.1 * jax.random.normal(ks[9], (out_channels,), jnp.float32),
        mean2=0.1 * jax.random.normal(ks[10], (out_channels,), jnp.float32),
        var2=0.5 + jax.random.uniform(ks[11], (out_channels,), jnp.float32),
    )

    ref = jax.block_until_ready(_ref_forward(x1, x2, params))

    # f32 path: strict check against the pure-JAX reference.
    out = jax.block_until_ready(jax.jit(up_forward)(x1, x2, params))
    assert out.shape == (B, out_channels, 2 * H1, 2 * W1), out.shape
    assert jnp.allclose(out, ref, atol=1e-4, rtol=1e-4), \
        float(jnp.max(jnp.abs(out - ref)))

    # bf16 matmul-operand path (f32 accumulation / epilogue): loose check.
    bf16_fwd = jax.jit(functools.partial(up_forward, compute_dtype=jnp.bfloat16))
    out_bf16 = jax.block_until_ready(bf16_fwd(x1, x2, params))
    assert out_bf16.shape == out.shape
    assert jnp.allclose(out_bf16, ref, atol=0.15, rtol=0.15), \
        float(jnp.max(jnp.abs(out_bf16 - ref)))

    print("KERNEL_OK")
</pallas_src>

<mosaic_0001>
module attributes {stable_mosaic.version = 11 : i64} {
  func.func @kernel(%arg0: i32, %arg1: memref<1x16x16x4xf32, #tpu.memory_space<vmem>>, %arg2: memref<1x4x8x8xf32, #tpu.memory_space<vmem>>, %arg3: memref<8x16xf32, #tpu.memory_space<vmem>>, %arg4: memref<8x16xf32, #tpu.memory_space<vmem>>, %arg5: memref<9x8x4xf32, #tpu.memory_space<vmem>>, %arg6: memref<1x4xf32, #tpu.memory_space<vmem>>, %arg7: memref<9x4x4xf32, #tpu.memory_space<vmem>>, %arg8: memref<1x4xf32, #tpu.memory_space<vmem>>, %arg9: memref<1x16x16x4xf32, #tpu.memory_space<vmem>>, %arg10: memref<18x18x8xf32, #tpu.memory_space<vmem>>, %arg11: memref<18x18x4xf32, #tpu.memory_space<vmem>>) attributes {dimension_semantics = [#tpu.dimension_semantics<parallel>], iteration_bounds = array<i64: 2>, scalar_prefetch = 0 : i64, scratch_operands = 2 : i64, tpu.core_type = #tpu.core_type<tc>, window_params = [{transform_indices = @transform_0, window_bounds = array<i64: 1, 16, 16, 4>}, {transform_indices = @transform_1, window_bounds = array<i64: 1, 4, 8, 8>}, {pipeline_mode = #tpu.pipeline_mode<synchronous>, transform_indices = @transform_2, window_bounds = array<i64: 8, 16>}, {pipeline_mode = #tpu.pipeline_mode<synchronous>, transform_indices = @transform_3, window_bounds = array<i64: 8, 16>}, {pipeline_mode = #tpu.pipeline_mode<synchronous>, transform_indices = @transform_4, window_bounds = array<i64: 9, 8, 4>}, {pipeline_mode = #tpu.pipeline_mode<synchronous>, transform_indices = @transform_5, window_bounds = array<i64: 1, 4>}, {pipeline_mode = #tpu.pipeline_mode<synchronous>, transform_indices = @transform_6, window_bounds = array<i64: 9, 4, 4>}, {pipeline_mode = #tpu.pipeline_mode<synchronous>, transform_indices = @transform_7, window_bounds = array<i64: 1, 4>}, {transform_indices = @transform_8, window_bounds = array<i64: 1, 16, 16, 4>}]} {
    %cst = arith.constant 0.000000e+00 : f32
    %0 = vector.broadcast %cst : f32 to vector<1x18x8xf32>
    %c0 = arith.constant 0 : index
    %c0_0 = arith.constant 0 : index
    %c0_1 = arith.constant 0 : index
    %1 = vector.load %arg10[%c0, %c0_0, %c0_1] : memref<18x18x8xf32, #tpu.memory_space<vmem>>, vector<1x18x8xf32>
    tpu.vector_store %arg10[%c0, %c0_0, %c0_1], %0 {strides = array<i32>} : memref<18x18x8xf32, #tpu.memory_space<vmem>>, vector<1x18x8xf32>,
    %cst_2 = arith.constant 0.000000e+00 : f32
    %2 = vector.broadcast %cst_2 : f32 to vector<1x18x8xf32>
    %c17 = arith.constant 17 : index
    %c0_3 = arith.constant 0 : index
    %c0_4 = arith.constant 0 : index
    %3 = vector.load %arg10[%c17, %c0_3, %c0_4] : memref<18x18x8xf32, #tpu.memory_space<vmem>>, vector<1x18x8xf32>
    tpu.vector_store %arg10[%c17, %c0_3, %c0_4], %2 {strides = array<i32>} : memref<18x18x8xf32, #tpu.memory_space<vmem>>, vector<1x18x8xf32>,
    %cst_5 = arith.constant 0.000000e+00 : f32
    %4 = vector.broadcast %cst_5 : f32 to vector<18x1x8xf32>
    %c0_6 = arith.constant 0 : index
    %c0_7 = arith.constant 0 : index
    %c0_8 = arith.constant 0 : index
    %5 = vector.load %arg10[%c0_6, %c0_7, %c0_8] : memref<18x18x8xf32, #tpu.memory_space<vmem>>, vector<18x1x8xf32>
    tpu.vector_store %arg10[%c0_6, %c0_7, %c0_8], %4 {strides = array<i32>} : memref<18x18x8xf32, #tpu.memory_space<vmem>>, vector<18x1x8xf32>,
    %cst_9 = arith.constant 0.000000e+00 : f32
    %6 = vector.broadcast %cst_9 : f32 to vector<18x1x8xf32>
    %c0_10 = arith.constant 0 : index
    %c17_11 = arith.constant 17 : index
    %c0_12 = arith.constant 0 : index
    %7 = vector.load %arg10[%c0_10, %c17_11, %c0_12] : memref<18x18x8xf32, #tpu.memory_space<vmem>>, vector<18x1x8xf32>
    tpu.vector_store %arg10[%c0_10, %c17_11, %c0_12], %6 {strides = array<i32>} : memref<18x18x8xf32, #tpu.memory_space<vmem>>, vector<18x1x8xf32>,
    %cst_13 = arith.constant 0.000000e+00 : f32
    %8 = vector.broadcast %cst_13 : f32 to vector<1x18x4xf32>
    %c0_14 = arith.constant 0 : index
    %c0_15 = arith.constant 0 : index
    %c0_16 = arith.constant 0 : index
    %9 = vector.load %arg11[%c0_14, %c0_15, %c0_16] : memref<18x18x4xf32, #tpu.memory_space<vmem>>, vector<1x18x4xf32>
    tpu.vector_store %arg11[%c0_14, %c0_15, %c0_16], %8 {strides = array<i32>} : memref<18x18x4xf32, #tpu.memory_space<vmem>>, vector<1x18x4xf32>,
    %cst_17 = arith.constant 0.000000e+00 : f32
    %10 = vector.broadcast %cst_17 : f32 to vector<1x18x4xf32>
    %c17_18 = arith.constant 17 : index
    %c0_19 = arith.constant 0 : index
    %c0_20 = arith.constant 0 : index
    %11 = vector.load %arg11[%c17_18, %c0_19, %c0_20] : memref<18x18x4xf32, #tpu.memory_space<vmem>>, vector<1x18x4xf32>
    tpu.vector_store %arg11[%c17_18, %c0_19, %c0_20], %10 {strides = array<i32>} : memref<18x18x4xf32, #tpu.memory_space<vmem>>, vector<1x18x4xf32>,
    %cst_21 = arith.constant 0.000000e+00 : f32
    %12 = vector.broadcast %cst_21 : f32 to vector<18x1x4xf32>
    %c0_22 = arith.constant 0 : index
    %c0_23 = arith.constant 0 : index
    %c0_24 = arith.constant 0 : index
    %13 = vector.load %arg11[%c0_22, %c0_23, %c0_24] : memref<18x18x4xf32, #tpu.memory_space<vmem>>, vector<18x1x4xf32>
    tpu.vector_store %arg11[%c0_22, %c0_23, %c0_24], %12 {strides = array<i32>} : memref<18x18x4xf32, #tpu.memory_space<vmem>>, vector<18x1x4xf32>,
    %cst_25 = arith.constant 0.000000e+00 : f32
    %14 = vector.broadcast %cst_25 : f32 to vector<18x1x4xf32>
    %c0_26 = arith.constant 0 : index
    %c17_27 = arith.constant 17 : index
    %c0_28 = arith.constant 0 : index
    %15 = vector.load %arg11[%c0_26, %c17_27, %c0_28] : memref<18x18x4xf32, #tpu.memory_space<vmem>>, vector<18x1x4xf32>
    tpu.vector_store %arg11[%c0_26, %c17_27, %c0_28], %14 {strides = array<i32>} : memref<18x18x4xf32, #tpu.memory_space<vmem>>, vector<18x1x4xf32>,
    %c0_29 = arith.constant 0 : index
    %c0_30 = arith.constant 0 : index
    %c0_31 = arith.constant 0 : index
    %c0_32 = arith.constant 0 : index
    %16 = vector.load %arg1[%c0_29, %c0_30, %c0_31, %c0_32] : memref<1x16x16x4xf32, #tpu.memory_space<vmem>>, vector<1x16x16x4xf32>
    %17 = vector.shape_cast %16 : vector<1x16x16x4xf32> to vector<16x16x4xf32>
    %c1 = arith.constant 1 : index
    %c1_33 = arith.constant 1 : index
    %c0_34 = arith.constant 0 : index
    %18 = vector.load %arg10[%c1, %c1_33, %c0_34] : memref<18x18x8xf32, #tpu.memory_space<vmem>>, vector<16x16x4xf32>
    tpu.vector_store %arg10[%c1, %c1_33, %c0_34], %17 {strides = array<i32>} : memref<18x18x8xf32, #tpu.memory_space<vmem>>, vector<16x16x4xf32>,
    %c0_35 = arith.constant 0 : index
    %c0_36 = arith.constant 0 : index
    %c0_37 = arith.constant 0 : index
    %c0_38 = arith.constant 0 : index
    %19 = vector.load %arg2[%c0_35, %c0_36, %c0_37, %c0_38] : memref<1x4x8x8xf32, #tpu.memory_space<vmem>>, vector<1x4x8x8xf32>
    %20 = vector.shape_cast %19 : vector<1x4x8x8xf32> to vector<4x8x8xf32>
    %21 = vector.shape_cast %20 : vector<4x8x8xf32> to vector<32x8xf32>
    %c0_39 = arith.constant 0 : index
    %c0_40 = arith.constant 0 : index
    %22 = vector.load %arg3[%c0_39, %c0_40] : memref<8x16xf32, #tpu.memory_space<vmem>>, vector<8x16xf32>
    %cst_41 = arith.constant dense<0.000000e+00> : vector<32x16xf32>
    %23 = tpu.matmul %21, %22, %cst_41 {dimension_numbers = #tpu.dot_dimension_numbers<[1], [0], [0], [1], [0, 0, 1, 1], [], []>} : vector<32x8xf32>, vector<8x16xf32>, vector<32x16xf32> -> vector<32x16xf32>
    %24 = vector.shape_cast %23 : vector<32x16xf32> to vector<4x8x16xf32>
    %25 = tpu.transpose %24, [0, 2, 1] : vector<4x8x16xf32> -> vector<4x16x8xf32>
    %26 = vector.shape_cast %25 : vector<4x16x8xf32> to vector<64x8xf32>
    %c0_42 = arith.constant 0 : index
    %c0_43 = arith.constant 0 : index
    %27 = vector.load %arg4[%c0_42, %c0_43] : memref<8x16xf32, #tpu.memory_space<vmem>>, vector<8x16xf32>
    %cst_44 = arith.constant dense<0.000000e+00> : vector<64x16xf32>
    %28 = tpu.matmul %26, %27, %cst_44 {dimension_numbers = #tpu.dot_dimension_numbers<[1], [0], [0], [1], [0, 0, 1, 1], [], []>} : vector<64x8xf32>, vector<8x16xf32>, vector<64x16xf32> -> vector<64x16xf32>
    %29 = vector.shape_cast %28 : vector<64x16xf32> to vector<4x16x16xf32>
    %30 = tpu.transpose %29, [0, 2, 1] : vector<4x16x16xf32> -> vector<4x16x16xf32>
    %31 = vector.extract_strided_slice %30 {offsets = [0, 0, 0], sizes = [4, 1, 16], strides = [1, 1, 1]} : vector<4x16x16xf32> to vector<4x1x16xf32>
    %32 = vector.shape_cast %31 : vector<4x1x16xf32> to vector<4x16xf32>
    %33 = tpu.transpose %32, [1, 0] : vector<4x16xf32> -> vector<16x4xf32>
    %c1_45 = arith.constant 1 : index
    %c1_46 = arith.constant 1 : index
    %c4 = arith.constant 4 : index
    %34 = vector.load %arg10[%c1_45, %c1_46, %c4] : memref<18x18x8xf32, #tpu.memory_space<vmem>>, vector<1x16x4xf32>
    %35 = vector.shape_cast %34 : vector<1x16x4xf32> to vector<16x4xf32>
    %36 = vector.shape_cast %33 : vector<16x4xf32> to vector<1x16x4xf32>
    tpu.vector_store %arg10[%c1_45, %c1_46, %c4], %36 {strides = array<i32>} : memref<18x18x8xf32, #tpu.memory_space<vmem>>, vector<1x16x4xf32>,
    %37 = vector.extract_strided_slice %30 {offsets = [0, 1, 0], sizes = [4, 1, 16], strides = [1, 1, 1]} : vector<4x16x16xf32> to vector<4x1x16xf32>
    %38 = vector.shape_cast %37 : vector<4x1x16xf32> to vector<4x16xf32>
    %39 = tpu.transpose %38, [1, 0] : vector<4x16xf32> -> vector<16x4xf32>
    %c2 = arith.constant 2 : index
    %c1_47 = arith.constant 1 : index
    %c4_48 = arith.constant 4 : index
    %40 = vector.load %arg10[%c2, %c1_47, %c4_48] : memref<18x18x8xf32, #tpu.memory_space<vmem>>, vector<1x16x4xf32>
    %41 = vector.shape_cast %40 : vector<1x16x4xf32> to vector<16x4xf32>
    %42 = vector.shape_cast %39 : vector<16x4xf32> to vector<1x16x4xf32>
    tpu.vector_store %arg10[%c2, %c1_47, %c4_48], %42 {strides = array<i32>} : memref<18x18x8xf32, #tpu.memory_space<vmem>>, vector<1x16x4xf32>,
    %43 = vector.extract_strided_slice %30 {offsets = [0, 2, 0], sizes = [4, 1, 16], strides = [1, 1, 1]} : vector<4x16x16xf32> to vector<4x1x16xf32>
    %44 = vector.shape_cast %43 : vector<4x1x16xf32> to vector<4x16xf32>
    %45 = tpu.transpose %44, [1, 0] : vector<4x16xf32> -> vector<16x4xf32>
    %c3 = arith.constant 3 : index
    %c1_49 = arith.constant 1 : index
    %c4_50 = arith.constant 4 : index
    %46 = vector.load %arg10[%c3, %c1_49, %c4_50] : memref<18x18x8xf32, #tpu.memory_space<vmem>>, vector<1x16x4xf32>
    %47 = vector.shape_cast %46 : vector<1x16x4xf32> to vector<16x4xf32>
    %48 = vector.shape_cast %45 : vector<16x4xf32> to vector<1x16x4xf32>
    tpu.vector_store %arg10[%c3, %c1_49, %c4_50], %48 {strides = array<i32>} : memref<18x18x8xf32, #tpu.memory_space<vmem>>, vector<1x16x4xf32>,
    %49 = vector.extract_strided_slice %30 {offsets = [0, 3, 0], sizes = [4, 1, 16], strides = [1, 1, 1]} : vector<4x16x16xf32> to vector<4x1x16xf32>
    %50 = vector.shape_cast %49 : vector<4x1x16xf32> to vector<4x16xf32>
    %51 = tpu.transpose %50, [1, 0] : vector<4x16xf32> -> vector<16x4xf32>
    %c4_51 = arith.constant 4 : index
    %c1_52 = arith.constant 1 : index
    %c4_53 = arith.constant 4 : index
    %52 = vector.load %arg10[%c4_51, %c1_52, %c4_53] : memref<18x18x8xf32, #tpu.memory_space<vmem>>, vector<1x16x4xf32>
    %53 = vector.shape_cast %52 : vector<1x16x4xf32> to vector<16x4xf32>
    %54 = vector.shape_cast %51 : vector<16x4xf32> to vector<1x16x4xf32>
    tpu.vector_store %arg10[%c4_51, %c1_52, %c4_53], %54 {strides = array<i32>} : memref<18x18x8xf32, #tpu.memory_space<vmem>>, vector<1x16x4xf32>,
    %55 = vector.extract_strided_slice %30 {offsets = [0, 4, 0], sizes = [4, 1, 16], strides = [1, 1, 1]} : vector<4x16x16xf32> to vector<4x1x16xf32>
    %56 = vector.shape_cast %55 : vector<4x1x16xf32> to vector<4x16xf32>
    %57 = tpu.transpose %56, [1, 0] : vector<4x16xf32> -> vector<16x4xf32>
    %c5 = arith.constant 5 : index
    %c1_54 = arith.constant 1 : index
    %c4_55 = arith.constant 4 : index
    %58 = vector.load %arg10[%c5, %c1_54, %c4_55] : memref<18x18x8xf32, #tpu.memory_space<vmem>>, vector<1x16x4xf32>
    %59 = vector.shape_cast %58 : vector<1x16x4xf32> to vector<16x4xf32>
    %60 = vector.shape_cast %57 : vector<16x4xf32> to vector<1x16x4xf32>
    tpu.vector_store %arg10[%c5, %c1_54, %c4_55], %60 {strides = array<i32>} : memref<18x18x8xf32, #tpu.memory_space<vmem>>, vector<1x16x4xf32>,
    %61 = vector.extract_strided_slice %30 {offsets = [0, 5, 0], sizes = [4, 1, 16], strides = [1, 1, 1]} : vector<4x16x16xf32> to vector<4x1x16xf32>
    %62 = vector.shape_cast %61 : vector<4x1x16xf32> to vector<4x16xf32>
    %63 = tpu.transpose %62, [1, 0] : vector<4x16xf32> -> vector<16x4xf32>
    %c6 = arith.constant 6 : index
    %c1_56 = arith.constant 1 : index
    %c4_57 = arith.constant 4 : index
    %64 = vector.load %arg10[%c6, %c1_56, %c4_57] : memref<18x18x8xf32, #tpu.memory_space<vmem>>, vector<1x16x4xf32>
    %65 = vector.shape_cast %64 : vector<1x16x4xf32> to vector<16x4xf32>
    %66 = vector.shape_cast %63 : vector<16x4xf32> to vector<1x16x4xf32>
    tpu.vector_store %arg10[%c6, %c1_56, %c4_57], %66 {strides = array<i32>} : memref<18x18x8xf32, #tpu.memory_space<vmem>>, vector<1x16x4xf32>,
    %67 = vector.extract_strided_slice %30 {offsets = [0, 6, 0], sizes = [4, 1, 16], strides = [1, 1, 1]} : vector<4x16x16xf32> to vector<4x1x16xf32>
    %68 = vector.shape_cast %67 : vector<4x1x16xf32> to vector<4x16xf32>
    %69 = tpu.transpose %68, [1, 0] : vector<4x16xf32> -> vector<16x4xf32>
    %c7 = arith.constant 7 : index
    %c1_58 = arith.constant 1 : index
    %c4_59 = arith.constant 4 : index
    %70 = vector.load %arg10[%c7, %c1_58, %c4_59] : memref<18x18x8xf32, #tpu.memory_space<vmem>>, vector<1x16x4xf32>
    %71 = vector.shape_cast %70 : vector<1x16x4xf32> to vector<16x4xf32>
    %72 = vector.shape_cast %69 : vector<16x4xf32> to vector<1x16x4xf32>
    tpu.vector_store %arg10[%c7, %c1_58, %c4_59], %72 {strides = array<i32>} : memref<18x18x8xf32, #tpu.memory_space<vmem>>, vector<1x16x4xf32>,
    %73 = vector.extract_strided_slice %30 {offsets = [0, 7, 0], sizes = [4, 1, 16], strides = [1, 1, 1]} : vector<4x16x16xf32> to vector<4x1x16xf32>
    %74 = vector.shape_cast %73 : vector<4x1x16xf32> to vector<4x16xf32>
    %75 = tpu.transpose %74, [1, 0] : vector<4x16xf32> -> vector<16x4xf32>
    %c8 = arith.constant 8 : index
    %c1_60 = arith.constant 1 : index
    %c4_61 = arith.constant 4 : index
    %76 = vector.load %arg10[%c8, %c1_60, %c4_61] : memref<18x18x8xf32, #tpu.memory_space<vmem>>, vector<1x16x4xf32>
    %77 = vector.shape_cast %76 : vector<1x16x4xf32> to vector<16x4xf32>
    %78 = vector.shape_cast %75 : vector<16x4xf32> to vector<1x16x4xf32>
    tpu.vector_store %arg10[%c8, %c1_60, %c4_61], %78 {strides = array<i32>} : memref<18x18x8xf32, #tpu.memory_space<vmem>>, vector<1x16x4xf32>,
    %79 = vector.extract_strided_slice %30 {offsets = [0, 8, 0], sizes = [4, 1, 16], strides = [1, 1, 1]} : vector<4x16x16xf32> to vector<4x1x16xf32>
    %80 = vector.shape_cast %79 : vector<4x1x16xf32> to vector<4x16xf32>
    %81 = tpu.transpose %80, [1, 0] : vector<4x16xf32> -> vector<16x4xf32>
    %c9 = arith.constant 9 : index
    %c1_62 = arith.constant 1 : index
    %c4_63 = arith.constant 4 : index
    %82 = vector.load %arg10[%c9, %c1_62, %c4_63] : memref<18x18x8xf32, #tpu.memory_space<vmem>>, vector<1x16x4xf32>
    %83 = vector.shape_cast %82 : vector<1x16x4xf32> to vector<16x4xf32>
    %84 = vector.shape_cast %81 : vector<16x4xf32> to vector<1x16x4xf32>
    tpu.vector_store %arg10[%c9, %c1_62, %c4_63], %84 {strides = array<i32>} : memref<18x18x8xf32, #tpu.memory_space<vmem>>, vector<1x16x4xf32>,
    %85 = vector.extract_strided_slice %30 {offsets = [0, 9, 0], sizes = [4, 1, 16], strides = [1, 1, 1]} : vector<4x16x16xf32> to vector<4x1x16xf32>
    %86 = vector.shape_cast %85 : vector<4x1x16xf32> to vector<4x16xf32>
    %87 = tpu.transpose %86, [1, 0] : vector<4x16xf32> -> vector<16x4xf32>
    %c10 = arith.constant 10 : index
    %c1_64 = arith.constant 1 : index
    %c4_65 = arith.constant 4 : index
    %88 = vector.load %arg10[%c10, %c1_64, %c4_65] : memref<18x18x8xf32, #tpu.memory_space<vmem>>, vector<1x16x4xf32>
    %89 = vector.shape_cast %88 : vector<1x16x4xf32> to vector<16x4xf32>
    %90 = vector.shape_cast %87 : vector<16x4xf32> to vector<1x16x4xf32>
    tpu.vector_store %arg10[%c10, %c1_64, %c4_65], %90 {strides = array<i32>} : memref<18x18x8xf32, #tpu.memory_space<vmem>>, vector<1x16x4xf32>,
    %91 = vector.extract_strided_slice %30 {offsets = [0, 10, 0], sizes = [4, 1, 16], strides = [1, 1, 1]} : vector<4x16x16xf32> to vector<4x1x16xf32>
    %92 = vector.shape_cast %91 : vector<4x1x16xf32> to vector<4x16xf32>
    %93 = tpu.transpose %92, [1, 0] : vector<4x16xf32> -> vector<16x4xf32>
    %c11 = arith.constant 11 : index
    %c1_66 = arith.constant 1 : index
    %c4_67 = arith.constant 4 : index
    %94 = vector.load %arg10[%c11, %c1_66, %c4_67] : memref<18x18x8xf32, #tpu.memory_space<vmem>>, vector<1x16x4xf32>
    %95 = vector.shape_cast %94 : vector<1x16x4xf32> to vector<16x4xf32>
    %96 = vector.shape_cast %93 : vector<16x4xf32> to vector<1x16x4xf32>
    tpu.vector_store %arg10[%c11, %c1_66, %c4_67], %96 {strides = array<i32>} : memref<18x18x8xf32, #tpu.memory_space<vmem>>, vector<1x16x4xf32>,
    %97 = vector.extract_strided_slice %30 {offsets = [0, 11, 0], sizes = [4, 1, 16], strides = [1, 1, 1]} : vector<4x16x16xf32> to vector<4x1x16xf32>
    %98 = vector.shape_cast %97 : vector<4x1x16xf32> to vector<4x16xf32>
    %99 = tpu.transpose %98, [1, 0] : vector<4x16xf32> -> vector<16x4xf32>
    %c12 = arith.constant 12 : index
    %c1_68 = arith.constant 1 : index
    %c4_69 = arith.constant 4 : index
    %100 = vector.load %arg10[%c12, %c1_68, %c4_69] : memref<18x18x8xf32, #tpu.memory_space<vmem>>, vector<1x16x4xf32>
    %101 = vector.shape_cast %100 : vector<1x16x4xf32> to vector<16x4xf32>
    %102 = vector.shape_cast %99 : vector<16x4xf32> to vector<1x16x4xf32>
    tpu.vector_store %arg10[%c12, %c1_68, %c4_69], %102 {strides = array<i32>} : memref<18x18x8xf32, #tpu.memory_space<vmem>>, vector<1x16x4xf32>,
    %103 = vector.extract_strided_slice %30 {offsets = [0, 12, 0], sizes = [4, 1, 16], strides = [1, 1, 1]} : vector<4x16x16xf32> to vector<4x1x16xf32>
    %104 = vector.shape_cast %103 : vector<4x1x16xf32> to vector<4x16xf32>
    %105 = tpu.transpose %104, [1, 0] : vector<4x16xf32> -> vector<16x4xf32>
    %c13 = arith.constant 13 : index
    %c1_70 = arith.constant 1 : index
    %c4_71 = arith.constant 4 : index
    %106 = vector.load %arg10[%c13, %c1_70, %c4_71] : memref<18x18x8xf32, #tpu.memory_space<vmem>>, vector<1x16x4xf32>
    %107 = vector.shape_cast %106 : vector<1x16x4xf32> to vector<16x4xf32>
    %108 = vector.shape_cast %105 : vector<16x4xf32> to vector<1x16x4xf32>
    tpu.vector_store %arg10[%c13, %c1_70, %c4_71], %108 {strides = array<i32>} : memref<18x18x8xf32, #tpu.memory_space<vmem>>, vector<1x16x4xf32>,
    %109 = vector.extract_strided_slice %30 {offsets = [0, 13, 0], sizes = [4, 1, 16], strides = [1, 1, 1]} : vector<4x16x16xf32> to vector<4x1x16xf32>
    %110 = vector.shape_cast %109 : vector<4x1x16xf32> to vector<4x16xf32>
    %111 = tpu.transpose %110, [1, 0] : vector<4x16xf32> -> vector<16x4xf32>
    %c14 = arith.constant 14 : index
    %c1_72 = arith.constant 1 : index
    %c4_73 = arith.constant 4 : index
    %112 = vector.load %arg10[%c14, %c1_72, %c4_73] : memref<18x18x8xf32, #tpu.memory_space<vmem>>, vector<1x16x4xf32>
    %113 = vector.shape_cast %112 : vector<1x16x4xf32> to vector<16x4xf32>
    %114 = vector.shape_cast %111 : vector<16x4xf32> to vector<1x16x4xf32>
    tpu.vector_store %arg10[%c14, %c1_72, %c4_73], %114 {strides = array<i32>} : memref<18x18x8xf32, #tpu.memory_space<vmem>>, vector<1x16x4xf32>,
    %115 = vector.extract_strided_slice %30 {offsets = [0, 14, 0], sizes = [4, 1, 16], strides = [1, 1, 1]} : vector<4x16x16xf32> to vector<4x1x16xf32>
    %116 = vector.shape_cast %115 : vector<4x1x16xf32> to vector<4x16xf32>
    %117 = tpu.transpose %116, [1, 0] : vector<4x16xf32> -> vector<16x4xf32>
    %c15 = arith.constant 15 : index
    %c1_74 = arith.constant 1 : index
    %c4_75 = arith.constant 4 : index
    %118 = vector.load %arg10[%c15, %c1_74, %c4_75] : memref<18x18x8xf32, #tpu.memory_space<vmem>>, vector<1x16x4xf32>
    %119 = vector.shape_cast %118 : vector<1x16x4xf32> to vector<16x4xf32>
    %120 = vector.shape_cast %117 : vector<16x4xf32> to vector<1x16x4xf32>
    tpu.vector_store %arg10[%c15, %c1_74, %c4_75], %120 {strides = array<i32>} : memref<18x18x8xf32, #tpu.memory_space<vmem>>, vector<1x16x4xf32>,
    %121 = vector.extract_strided_slice %30 {offsets = [0, 15, 0], sizes = [4, 1, 16], strides = [1, 1, 1]} : vector<4x16x16xf32> to vector<4x1x16xf32>
    %122 = vector.shape_cast %121 : vector<4x1x16xf32> to vector<4x16xf32>
    %123 = tpu.transpose %122, [1, 0] : vector<4x16xf32> -> vector<16x4xf32>
    %c16 = arith.constant 16 : index
    %c1_76 = arith.constant 1 : index
    %c4_77 = arith.constant 4 : index
    %124 = vector.load %arg10[%c16, %c1_76, %c4_77] : memref<18x18x8xf32, #tpu.memory_space<vmem>>, vector<1x16x4xf32>
    %125 = vector.shape_cast %124 : vector<1x16x4xf32> to vector<16x4xf32>
    %126 = vector.shape_cast %123 : vector<16x4xf32> to vector<1x16x4xf32>
    tpu.vector_store %arg10[%c16, %c1_76, %c4_77], %126 {strides = array<i32>} : memref<18x18x8xf32, #tpu.memory_space<vmem>>, vector<1x16x4xf32>,
    %cst_78 = arith.constant 0.000000e+00 : f32
    %127 = vector.broadcast %cst_78 : f32 to vector<256x4xf32>
    %c0_79 = arith.constant 0 : index
    %c0_80 = arith.constant 0 : index
    %c0_81 = arith.constant 0 : index
    %128 = vector.load %arg10[%c0_79, %c0_80, %c0_81] : memref<18x18x8xf32, #tpu.memory_space<vmem>>, vector<16x16x8xf32>
    %129 = vector.shape_cast %128 : vector<16x16x8xf32> to vector<256x8xf32>
    %c0_82 = arith.constant 0 : index
    %c0_83 = arith.constant 0 : index
    %c0_84 = arith.constant 0 : index
    %130 = vector.load %arg5[%c0_82, %c0_83, %c0_84] : memref<9x8x4xf32, #tpu.memory_space<vmem>>, vector<1x8x4xf32>
    %131 = vector.shape_cast %130 : vector<1x8x4xf32> to vector<8x4xf32>
    %cst_85 = arith.constant dense<0.000000e+00> : vector<256x4xf32>
    %132 = tpu.matmul %129, %131, %cst_85 {dimension_numbers = #tpu.dot_dimension_numbers<[1], [0], [0], [1], [0, 0, 1, 1], [], []>} : vector<256x8xf32>, vector<8x4xf32>, vector<256x4xf32> -> vector<256x4xf32>
    %133 = arith.addf %127, %132 : vector<256x4xf32>
    %c0_86 = arith.constant 0 : index
    %c1_87 = arith.constant 1 : index
    %c0_88 = arith.constant 0 : index
    %134 = vector.load %arg10[%c0_86, %c1_87, %c0_88] : memref<18x18x8xf32, #tpu.memory_space<vmem>>, vector<16x16x8xf32>
    %135 = vector.shape_cast %134 : vector<16x16x8xf32> to vector<256x8xf32>
    %c1_89 = arith.constant 1 : index
    %c0_90 = arith.constant 0 : index
    %c0_91 = arith.constant 0 : index
    %136 = vector.load %arg5[%c1_89, %c0_90, %c0_91] : memref<9x8x4xf32, #tpu.memory_space<vmem>>, vector<1x8x4xf32>
    %137 = vector.shape_cast %136 : vector<1x8x4xf32> to vector<8x4xf32>
    %cst_92 = arith.constant dense<0.000000e+00> : vector<256x4xf32>
    %138 = tpu.matmul %135, %137, %cst_92 {dimension_numbers = #tpu.dot_dimension_numbers<[1], [0], [0], [1], [0, 0, 1, 1], [], []>} : vector<256x8xf32>, vector<8x4xf32>, vector<256x4xf32> -> vector<256x4xf32>
    %139 = arith.addf %133, %138 : vector<256x4xf32>
    %c0_93 = arith.constant 0 : index
    %c2_94 = arith.constant 2 : index
    %c0_95 = arith.constant 0 : index
    %140 = vector.load %arg10[%c0_93, %c2_94, %c0_95] : memref<18x18x8xf32, #tpu.memory_space<vmem>>, vector<16x16x8xf32>
    %141 = vector.shape_cast %140 : vector<16x16x8xf32> to vector<256x8xf32>
    %c2_96 = arith.constant 2 : index
    %c0_97 = arith.constant 0 : index
    %c0_98 = arith.constant 0 : index
    %142 = vector.load %arg5[%c2_96, %c0_97, %c0_98] : memref<9x8x4xf32, #tpu.memory_space<vmem>>, vector<1x8x4xf32>
    %143 = vector.shape_cast %142 : vector<1x8x4xf32> to vector<8x4xf32>
    %cst_99 = arith.constant dense<0.000000e+00> : vector<256x4xf32>
    %144 = tpu.matmul %141, %143, %cst_99 {dimension_numbers = #tpu.dot_dimension_numbers<[1], [0], [0], [1], [0, 0, 1, 1], [], []>} : vector<256x8xf32>, vector<8x4xf32>, vector<256x4xf32> -> vector<256x4xf32>
    %145 = arith.addf %139, %144 : vector<256x4xf32>
    %c1_100 = arith.constant 1 : index
    %c0_101 = arith.constant 0 : index
    %c0_102 = arith.constant 0 : index
    %146 = vector.load %arg10[%c1_100, %c0_101, %c0_102] : memref<18x18x8xf32, #tpu.memory_space<vmem>>, vector<16x16x8xf32>
    %147 = vector.shape_cast %146 : vector<16x16x8xf32> to vector<256x8xf32>
    %c3_103 = arith.constant 3 : index
    %c0_104 = arith.constant 0 : index
    %c0_105 = arith.constant 0 : index
    %148 = vector.load %arg5[%c3_103, %c0_104, %c0_105] : memref<9x8x4xf32, #tpu.memory_space<vmem>>, vector<1x8x4xf32>
    %149 = vector.shape_cast %148 : vector<1x8x4xf32> to vector<8x4xf32>
    %cst_106 = arith.constant dense<0.000000e+00> : vector<256x4xf32>
    %150 = tpu.matmul %147, %149, %cst_106 {dimension_numbers = #tpu.dot_dimension_numbers<[1], [0], [0], [1], [0, 0, 1, 1], [], []>} : vector<256x8xf32>, vector<8x4xf32>, vector<256x4xf32> -> vector<256x4xf32>
    %151 = arith.addf %145, %150 : vector<256x4xf32>
    %c1_107 = arith.constant 1 : index
    %c1_108 = arith.constant 1 : index
    %c0_109 = arith.constant 0 : index
    %152 = vector.load %arg10[%c1_107, %c1_108, %c0_109] : memref<18x18x8xf32, #tpu.memory_space<vmem>>, vector<16x16x8xf32>
    %153 = vector.shape_cast %152 : vector<16x16x8xf32> to vector<256x8xf32>
    %c4_110 = arith.constant 4 : index
    %c0_111 = arith.constant 0 : index
    %c0_112 = arith.constant 0 : index
    %154 = vector.load %arg5[%c4_110, %c0_111, %c0_112] : memref<9x8x4xf32, #tpu.memory_space<vmem>>, vector<1x8x4xf32>
    %155 = vector.shape_cast %154 : vector<1x8x4xf32> to vector<8x4xf32>
    %cst_113 = arith.constant dense<0.000000e+00> : vector<256x4xf32>
    %156 = tpu.matmul %153, %155, %cst_113 {dimension_numbers = #tpu.dot_dimension_numbers<[1], [0], [0], [1], [0, 0, 1, 1], [], []>} : vector<256x8xf32>, vector<8x4xf32>, vector<256x4xf32> -> vector<256x4xf32>
    %157 = arith.addf %151, %156 : vector<256x4xf32>
    %c1_114 = arith.constant 1 : index
    %c2_115 = arith.constant 2 : index
    %c0_116 = arith.constant 0 : index
    %158 = vector.load %arg10[%c1_114, %c2_115, %c0_116] : memref<18x18x8xf32, #tpu.memory_space<vmem>>, vector<16x16x8xf32>
    %159 = vector.shape_cast %158 : vector<16x16x8xf32> to vector<256x8xf32>
    %c5_117 = arith.constant 5 : index
    %c0_118 = arith.constant 0 : index
    %c0_119 = arith.constant 0 : index
    %160 = vector.load %arg5[%c5_117, %c0_118, %c0_119] : memref<9x8x4xf32, #tpu.memory_space<vmem>>, vector<1x8x4xf32>
    %161 = vector.shape_cast %160 : vector<1x8x4xf32> to vector<8x4xf32>
    %cst_120 = arith.constant dense<0.000000e+00> : vector<256x4xf32>
    %162 = tpu.matmul %159, %161, %cst_120 {dimension_numbers = #tpu.dot_dimension_numbers<[1], [0], [0], [1], [0, 0, 1, 1], [], []>} : vector<256x8xf32>, vector<8x4xf32>, vector<256x4xf32> -> vector<256x4xf32>
    %163 = arith.addf %157, %162 : vector<256x4xf32>
    %c2_121 = arith.constant 2 : index
    %c0_122 = arith.constant 0 : index
    %c0_123 = arith.constant 0 : index
    %164 = vector.load %arg10[%c2_121, %c0_122, %c0_123] : memref<18x18x8xf32, #tpu.memory_space<vmem>>, vector<16x16x8xf32>
    %165 = vector.shape_cast %164 : vector<16x16x8xf32> to vector<256x8xf32>
    %c6_124 = arith.constant 6 : index
    %c0_125 = arith.constant 0 : index
    %c0_126 = arith.constant 0 : index
    %166 = vector.load %arg5[%c6_124, %c0_125, %c0_126] : memref<9x8x4xf32, #tpu.memory_space<vmem>>, vector<1x8x4xf32>
    %167 = vector.shape_cast %166 : vector<1x8x4xf32> to vector<8x4xf32>
    %cst_127 = arith.constant dense<0.000000e+00> : vector<256x4xf32>
    %168 = tpu.matmul %165, %167, %cst_127 {dimension_numbers = #tpu.dot_dimension_numbers<[1], [0], [0], [1], [0, 0, 1, 1], [], []>} : vector<256x8xf32>, vector<8x4xf32>, vector<256x4xf32> -> vector<256x4xf32>
    %169 = arith.addf %163, %168 : vector<256x4xf32>
    %c2_128 = arith.constant 2 : index
    %c1_129 = arith.constant 1 : index
    %c0_130 = arith.constant 0 : index
    %170 = vector.load %arg10[%c2_128, %c1_129, %c0_130] : memref<18x18x8xf32, #tpu.memory_space<vmem>>, vector<16x16x8xf32>
    %171 = vector.shape_cast %170 : vector<16x16x8xf32> to vector<256x8xf32>
    %c7_131 = arith.constant 7 : index
    %c0_132 = arith.constant 0 : index
    %c0_133 = arith.constant 0 : index
    %172 = vector.load %arg5[%c7_131, %c0_132, %c0_133] : memref<9x8x4xf32, #tpu.memory_space<vmem>>, vector<1x8x4xf32>
    %173 = vector.shape_cast %172 : vector<1x8x4xf32> to vector<8x4xf32>
    %cst_134 = arith.constant dense<0.000000e+00> : vector<256x4xf32>
    %174 = tpu.matmul %171, %173, %cst_134 {dimension_numbers = #tpu.dot_dimension_numbers<[1], [0], [0], [1], [0, 0, 1, 1], [], []>} : vector<256x8xf32>, vector<8x4xf32>, vector<256x4xf32> -> vector<256x4xf32>
    %175 = arith.addf %169, %174 : vector<256x4xf32>
    %c2_135 = arith.constant 2 : index
    %c2_136 = arith.constant 2 : index
    %c0_137 = arith.constant 0 : index
    %176 = vector.load %arg10[%c2_135, %c2_136, %c0_137] : memref<18x18x8xf32, #tpu.memory_space<vmem>>, vector<16x16x8xf32>
    %177 = vector.shape_cast %176 : vector<16x16x8xf32> to vector<256x8xf32>
    %c8_138 = arith.constant 8 : index
    %c0_139 = arith.constant 0 : index
    %c0_140 = arith.constant 0 : index
    %178 = vector.load %arg5[%c8_138, %c0_139, %c0_140] : memref<9x8x4xf32, #tpu.memory_space<vmem>>, vector<1x8x4xf32>
    %179 = vector.shape_cast %178 : vector<1x8x4xf32> to vector<8x4xf32>
    %cst_141 = arith.constant dense<0.000000e+00> : vector<256x4xf32>
    %180 = tpu.matmul %177, %179, %cst_141 {dimension_numbers = #tpu.dot_dimension_numbers<[1], [0], [0], [1], [0, 0, 1, 1], [], []>} : vector<256x8xf32>, vector<8x4xf32>, vector<256x4xf32> -> vector<256x4xf32>
    %181 = arith.addf %175, %180 : vector<256x4xf32>
    %c0_142 = arith.constant 0 : index
    %c0_143 = arith.constant 0 : index
    %182 = vector.load %arg6[%c0_142, %c0_143] : memref<1x4xf32, #tpu.memory_space<vmem>>, vector<1x4xf32>
    %183 = vector.broadcast %182 : vector<1x4xf32> to vector<256x4xf32>
    %184 = arith.addf %181, %183 : vector<256x4xf32>
    %cst_144 = arith.constant 0.000000e+00 : f32
    %185 = vector.broadcast %cst_144 : f32 to vector<256x4xf32>
    %186 = arith.maximumf %184, %185 : vector<256x4xf32>
    %187 = vector.shape_cast %186 : vector<256x4xf32> to vector<16x16x4xf32>
    %c1_145 = arith.constant 1 : index
    %c1_146 = arith.constant 1 : index
    %c0_147 = arith.constant 0 : index
    %188 = vector.load %arg11[%c1_145, %c1_146, %c0_147] : memref<18x18x4xf32, #tpu.memory_space<vmem>>, vector<16x16x4xf32>
    tpu.vector_store %arg11[%c1_145, %c1_146, %c0_147], %187 {strides = array<i32>} : memref<18x18x4xf32, #tpu.memory_space<vmem>>, vector<16x16x4xf32>,
    %cst_148 = arith.constant 0.000000e+00 : f32
    %189 = vector.broadcast %cst_148 : f32 to vector<256x4xf32>
    %c0_149 = arith.constant 0 : index
    %c0_150 = arith.constant 0 : index
    %c0_151 = arith.constant 0 : index
    %190 = vector.load %arg11[%c0_149, %c0_150, %c0_151] : memref<18x18x4xf32, #tpu.memory_space<vmem>>, vector<16x16x4xf32>
    %191 = vector.shape_cast %190 : vector<16x16x4xf32> to vector<256x4xf32>
    %c0_152 = arith.constant 0 : index
    %c0_153 = arith.constant 0 : index
    %c0_154 = arith.constant 0 : index
    %192 = vector.load %arg7[%c0_152, %c0_153, %c0_154] : memref<9x4x4xf32, #tpu.memory_space<vmem>>, vector<1x4x4xf32>
    %193 = vector.shape_cast %192 : vector<1x4x4xf32> to vector<4x4xf32>
    %cst_155 = arith.constant dense<0.000000e+00> : vector<256x4xf32>
    %194 = tpu.matmul %191, %193, %cst_155 {dimension_numbers = #tpu.dot_dimension_numbers<[1], [0], [0], [1], [0, 0, 1, 1], [], []>} : vector<256x4xf32>, vector<4x4xf32>, vector<256x4xf32> -> vector<256x4xf32>
    %195 = arith.addf %189, %194 : vector<256x4xf32>
    %c0_156 = arith.constant 0 : index
    %c1_157 = arith.constant 1 : index
    %c0_158 = arith.constant 0 : index
    %196 = vector.load %arg11[%c0_156, %c1_157, %c0_158] : memref<18x18x4xf32, #tpu.memory_space<vmem>>, vector<16x16x4xf32>
    %197 = vector.shape_cast %196 : vector<16x16x4xf32> to vector<256x4xf32>
    %c1_159 = arith.constant 1 : index
    %c0_160 = arith.constant 0 : index
    %c0_161 = arith.constant 0 : index
    %198 = vector.load %arg7[%c1_159, %c0_160, %c0_161] : memref<9x4x4xf32, #tpu.memory_space<vmem>>, vector<1x4x4xf32>
    %199 = vector.shape_cast %198 : vector<1x4x4xf32> to vector<4x4xf32>
    %cst_162 = arith.constant dense<0.000000e+00> : vector<256x4xf32>
    %200 = tpu.matmul %197, %199, %cst_162 {dimension_numbers = #tpu.dot_dimension_numbers<[1], [0], [0], [1], [0, 0, 1, 1], [], []>} : vector<256x4xf32>, vector<4x4xf32>, vector<256x4xf32> -> vector<256x4xf32>
    %201 = arith.addf %195, %200 : vector<256x4xf32>
    %c0_163 = arith.constant 0 : index
    %c2_164 = arith.constant 2 : index
    %c0_165 = arith.constant 0 : index
    %202 = vector.load %arg11[%c0_163, %c2_164, %c0_165] : memref<18x18x4xf32, #tpu.memory_space<vmem>>, vector<16x16x4xf32>
    %203 = vector.shape_cast %202 : vector<16x16x4xf32> to vector<256x4xf32>
    %c2_166 = arith.constant 2 : index
    %c0_167 = arith.constant 0 : index
    %c0_168 = arith.constant 0 : index
    %204 = vector.load %arg7[%c2_166, %c0_167, %c0_168] : memref<9x4x4xf32, #tpu.memory_space<vmem>>, vector<1x4x4xf32>
    %205 = vector.shape_cast %204 : vector<1x4x4xf32> to vector<4x4xf32>
    %cst_169 = arith.constant dense<0.000000e+00> : vector<256x4xf32>
    %206 = tpu.matmul %203, %205, %cst_169 {dimension_numbers = #tpu.dot_dimension_numbers<[1], [0], [0], [1], [0, 0, 1, 1], [], []>} : vector<256x4xf32>, vector<4x4xf32>, vector<256x4xf32> -> vector<256x4xf32>
    %207 = arith.addf %201, %206 : vector<256x4xf32>
    %c1_170 = arith.constant 1 : index
    %c0_171 = arith.constant 0 : index
    %c0_172 = arith.constant 0 : index
    %208 = vector.load %arg11[%c1_170, %c0_171, %c0_172] : memref<18x18x4xf32, #tpu.memory_space<vmem>>, vector<16x16x4xf32>
    %209 = vector.shape_cast %208 : vector<16x16x4xf32> to vector<256x4xf32>
    %c3_173 = arith.constant 3 : index
    %c0_174 = arith.constant 0 : index
    %c0_175 = arith.constant 0 : index
    %210 = vector.load %arg7[%c3_173, %c0_174, %c0_175] : memref<9x4x4xf32, #tpu.memory_space<vmem>>, vector<1x4x4xf32>
    %211 = vector.shape_cast %210 : vector<1x4x4xf32> to vector<4x4xf32>
    %cst_176 = arith.constant dense<0.000000e+00> : vector<256x4xf32>
    %212 = tpu.matmul %209, %211, %cst_176 {dimension_numbers = #tpu.dot_dimension_numbers<[1], [0], [0], [1], [0, 0, 1, 1], [], []>} : vector<256x4xf32>, vector<4x4xf32>, vector<256x4xf32> -> vector<256x4xf32>
    %213 = arith.addf %207, %212 : vector<256x4xf32>
    %c1_177 = arith.constant 1 : index
    %c1_178 = arith.constant 1 : index
    %c0_179 = arith.constant 0 : index
    %214 = vector.load %arg11[%c1_177, %c1_178, %c0_179] : memref<18x18x4xf32, #tpu.memory_space<vmem>>, vector<16x16x4xf32>
    %215 = vector.shape_cast %214 : vector<16x16x4xf32> to vector<256x4xf32>
    %c4_180 = arith.constant 4 : index
    %c0_181 = arith.constant 0 : index
    %c0_182 = arith.constant 0 : index
    %216 = vector.load %arg7[%c4_180, %c0_181, %c0_182] : memref<9x4x4xf32, #tpu.memory_space<vmem>>, vector<1x4x4xf32>
    %217 = vector.shape_cast %216 : vector<1x4x4xf32> to vector<4x4xf32>
    %cst_183 = arith.constant dense<0.000000e+00> : vector<256x4xf32>
    %218 = tpu.matmul %215, %217, %cst_183 {dimension_numbers = #tpu.dot_dimension_numbers<[1], [0], [0], [1], [0, 0, 1, 1], [], []>} : vector<256x4xf32>, vector<4x4xf32>, vector<256x4xf32> -> vector<256x4xf32>
    %219 = arith.addf %213, %218 : vector<256x4xf32>
    %c1_184 = arith.constant 1 : index
    %c2_185 = arith.constant 2 : index
    %c0_186 = arith.constant 0 : index
    %220 = vector.load %arg11[%c1_184, %c2_185, %c0_186] : memref<18x18x4xf32, #tpu.memory_space<vmem>>, vector<16x16x4xf32>
    %221 = vector.shape_cast %220 : vector<16x16x4xf32> to vector<256x4xf32>
    %c5_187 = arith.constant 5 : index
    %c0_188 = arith.constant 0 : index
    %c0_189 = arith.constant 0 : index
    %222 = vector.load %arg7[%c5_187, %c0_188, %c0_189] : memref<9x4x4xf32, #tpu.memory_space<vmem>>, vector<1x4x4xf32>
    %223 = vector.shape_cast %222 : vector<1x4x4xf32> to vector<4x4xf32>
    %cst_190 = arith.constant dense<0.000000e+00> : vector<256x4xf32>
    %224 = tpu.matmul %221, %223, %cst_190 {dimension_numbers = #tpu.dot_dimension_numbers<[1], [0], [0], [1], [0, 0, 1, 1], [], []>} : vector<256x4xf32>, vector<4x4xf32>, vector<256x4xf32> -> vector<256x4xf32>
    %225 = arith.addf %219, %224 : vector<256x4xf32>
    %c2_191 = arith.constant 2 : index
    %c0_192 = arith.constant 0 : index
    %c0_193 = arith.constant 0 : index
    %226 = vector.load %arg11[%c2_191, %c0_192, %c0_193] : memref<18x18x4xf32, #tpu.memory_space<vmem>>, vector<16x16x4xf32>
    %227 = vector.shape_cast %226 : vector<16x16x4xf32> to vector<256x4xf32>
    %c6_194 = arith.constant 6 : index
    %c0_195 = arith.constant 0 : index
    %c0_196 = arith.constant 0 : index
    %228 = vector.load %arg7[%c6_194, %c0_195, %c0_196] : memref<9x4x4xf32, #tpu.memory_space<vmem>>, vector<1x4x4xf32>
    %229 = vector.shape_cast %228 : vector<1x4x4xf32> to vector<4x4xf32>
    %cst_197 = arith.constant dense<0.000000e+00> : vector<256x4xf32>
    %230 = tpu.matmul %227, %229, %cst_197 {dimension_numbers = #tpu.dot_dimension_numbers<[1], [0], [0], [1], [0, 0, 1, 1], [], []>} : vector<256x4xf32>, vector<4x4xf32>, vector<256x4xf32> -> vector<256x4xf32>
    %231 = arith.addf %225, %230 : vector<256x4xf32>
    %c2_198 = arith.constant 2 : index
    %c1_199 = arith.constant 1 : index
    %c0_200 = arith.constant 0 : index
    %232 = vector.load %arg11[%c2_198, %c1_199, %c0_200] : memref<18x18x4xf32, #tpu.memory_space<vmem>>, vector<16x16x4xf32>
    %233 = vector.shape_cast %232 : vector<16x16x4xf32> to vector<256x4xf32>
    %c7_201 = arith.constant 7 : index
    %c0_202 = arith.constant 0 : index
    %c0_203 = arith.constant 0 : index
    %234 = vector.load %arg7[%c7_201, %c0_202, %c0_203] : memref<9x4x4xf32, #tpu.memory_space<vmem>>, vector<1x4x4xf32>
    %235 = vector.shape_cast %234 : vector<1x4x4xf32> to vector<4x4xf32>
    %cst_204 = arith.constant dense<0.000000e+00> : vector<256x4xf32>
    %236 = tpu.matmul %233, %235, %cst_204 {dimension_numbers = #tpu.dot_dimension_numbers<[1], [0], [0], [1], [0, 0, 1, 1], [], []>} : vector<256x4xf32>, vector<4x4xf32>, vector<256x4xf32> -> vector<256x4xf32>
    %237 = arith.addf %231, %236 : vector<256x4xf32>
    %c2_205 = arith.constant 2 : index
    %c2_206 = arith.constant 2 : index
    %c0_207 = arith.constant 0 : index
    %238 = vector.load %arg11[%c2_205, %c2_206, %c0_207] : memref<18x18x4xf32, #tpu.memory_space<vmem>>, vector<16x16x4xf32>
    %239 = vector.shape_cast %238 : vector<16x16x4xf32> to vector<256x4xf32>
    %c8_208 = arith.constant 8 : index
    %c0_209 = arith.constant 0 : index
    %c0_210 = arith.constant 0 : index
    %240 = vector.load %arg7[%c8_208, %c0_209, %c0_210] : memref<9x4x4xf32, #tpu.memory_space<vmem>>, vector<1x4x4xf32>
    %241 = vector.shape_cast %240 : vector<1x4x4xf32> to vector<4x4xf32>
    %cst_211 = arith.constant dense<0.000000e+00> : vector<256x4xf32>
    %242 = tpu.matmul %239, %241, %cst_211 {dimension_numbers = #tpu.dot_dimension_numbers<[1], [0], [0], [1], [0, 0, 1, 1], [], []>} : vector<256x4xf32>, vector<4x4xf32>, vector<256x4xf32> -> vector<256x4xf32>
    %243 = arith.addf %237, %242 : vector<256x4xf32>
    %c0_212 = arith.constant 0 : index
    %c0_213 = arith.constant 0 : index
    %244 = vector.load %arg8[%c0_212, %c0_213] : memref<1x4xf32, #tpu.memory_space<vmem>>, vector<1x4xf32>
    %245 = vector.broadcast %244 : vector<1x4xf32> to vector<256x4xf32>
    %246 = arith.addf %243, %245 : vector<256x4xf32>
    %cst_214 = arith.constant 0.000000e+00 : f32
    %247 = vector.broadcast %cst_214 : f32 to vector<256x4xf32>
    %248 = arith.maximumf %246, %247 : vector<256x4xf32>
    %249 = vector.shape_cast %248 : vector<256x4xf32> to vector<16x16x4xf32>
    %c0_215 = arith.constant 0 : index
    %c0_216 = arith.constant 0 : index
    %c0_217 = arith.constant 0 : index
    %c0_218 = arith.constant 0 : index
    %250 = vector.load %arg9[%c0_215, %c0_216, %c0_217, %c0_218] : memref<1x16x16x4xf32, #tpu.memory_space<vmem>>, vector<1x16x16x4xf32>
    %251 = vector.shape_cast %250 : vector<1x16x16x4xf32> to vector<16x16x4xf32>
    %252 = vector.shape_cast %249 : vector<16x16x4xf32> to vector<1x16x16x4xf32>
    tpu.vector_store %arg9[%c0_215, %c0_216, %c0_217, %c0_218], %252 {strides = array<i32>} : memref<1x16x16x4xf32, #tpu.memory_space<vmem>>, vector<1x16x16x4xf32>,
    return
  }
  func.func @transform_0(%arg0: i32) -> (i32, i32, i32, i32) {
    %c0_i32 = arith.constant 0 : i32
    %c0_i32_0 = arith.constant 0 : i32
    %c0_i32_1 = arith.constant 0 : i32
    %c0_i32_2 = arith.constant 0 : i32
    return %arg0, %c0_i32, %c0_i32_0, %c0_i32_1 : i32, i32, i32, i32
  }
  func.func @transform_1(%arg0: i32) -> (i32, i32, i32, i32) {
    %c0_i32 = arith.constant 0 : i32
    %c0_i32_0 = arith.constant 0 : i32
    %c0_i32_1 = arith.constant 0 : i32
    %c0_i32_2 = arith.constant 0 : i32
    return %arg0, %c0_i32, %c0_i32_0, %c0_i32_1 : i32, i32, i32, i32
  }
  func.func @transform_2(%arg0: i32) -> (i32, i32) {
    %c0_i32 = arith.constant 0 : i32
    %c0_i32_0 = arith.constant 0 : i32
    %c0_i32_1 = arith.constant 0 : i32
    return %c0_i32, %c0_i32_0 : i32, i32
  }
  func.func @transform_3(%arg0: i32) -> (i32, i32) {
    %c0_i32 = arith.constant 0 : i32
    %c0_i32_0 = arith.constant 0 : i32
    %c0_i32_1 = arith.constant 0 : i32
    return %c0_i32, %c0_i32_0 : i32, i32
  }
  func.func @transform_4(%arg0: i32) -> (i32, i32, i32) {
    %c0_i32 = arith.constant 0 : i32
    %c0_i32_0 = arith.constant 0 : i32
    %c0_i32_1 = arith.constant 0 : i32
    %c0_i32_2 = arith.constant 0 : i32
    return %c0_i32, %c0_i32_0, %c0_i32_1 : i32, i32, i32
  }
  func.func @transform_5(%arg0: i32) -> (i32, i32) {
    %c0_i32 = arith.constant 0 : i32
    %c0_i32_0 = arith.constant 0 : i32
    %c0_i32_1 = arith.constant 0 : i32
    return %c0_i32, %c0_i32_0 : i32, i32
  }
  func.func @transform_6(%arg0: i32) -> (i32, i32, i32) {
    %c0_i32 = arith.constant 0 : i32
    %c0_i32_0 = arith.constant 0 : i32
    %c0_i32_1 = arith.constant 0 : i32
    %c0_i32_2 = arith.constant 0 : i32
    return %c0_i32, %c0_i32_0, %c0_i32_1 : i32, i32, i32
  }
  func.func @transform_7(%arg0: i32) -> (i32, i32) {
    %c0_i32 = arith.constant 0 : i32
    %c0_i32_0 = arith.constant 0 : i32
    %c0_i32_1 = arith.constant 0 : i32
    return %c0_i32, %c0_i32_0 : i32, i32
  }
  func.func @transform_8(%arg0: i32) -> (i32, i32, i32, i32) {
    %c0_i32 = arith.constant 0 : i32
    %c0_i32_0 = arith.constant 0 : i32
    %c0_i32_1 = arith.constant 0 : i32
    %c0_i32_2 = arith.constant 0 : i32
    return %arg0, %c0_i32, %c0_i32_0, %c0_i32_1 : i32, i32, i32, i32
  }
}

</mosaic_0001>

<llo_original>
// kernel: up_forward.1
$region0: #{up_forward.1}
  #allocation0 [shape = 'u32[]', space=smem, size = 0x4, offset = 0x4, fixed_abs, tag = 'smem constant byte address 0x4 - core index']
  #allocation1 [shape = 'u32[72,128]{1,0:T(1,128)}', space=vmem, size = 0x9000, scoped, tag = 'internal scratch']
  #allocation2 [shape = 'f32[18,18,8]{2,1,0:T(8,128)}', space=vmem, size = 0x36000, scoped, tag = 'scratch operand']
  #allocation3 [shape = 'f32[18,18,4]{2,1,0:T(8,128)}', space=vmem, size = 0x36000, scoped, tag = 'scratch operand']
  %s0 = inlined_call_operand.vmem [shape: f32[2,16,16,4], index: 0, kind: input, shape index: {}]
  %s1 = inlined_call_operand.vmem [shape: f32[2,4,8,8], index: 1, kind: input, shape index: {}]
  %s2 = inlined_call_operand.vmem [shape: f32[8,16], index: 2, kind: input, shape index: {}, may-alias: {2,3}]
  %s3 = inlined_call_operand.vmem [shape: f32[8,16], index: 3, kind: input, shape index: {}, may-alias: {2,3}]
  %s4 = inlined_call_operand.vmem [shape: f32[9,8,4], index: 4, kind: input, shape index: {}]
  %s5 = inlined_call_operand.vmem [shape: f32[1,4], index: 5, kind: input, shape index: {}]
  %s6 = inlined_call_operand.vmem [shape: f32[9,4,4], index: 6, kind: input, shape index: {}]
  %s7 = inlined_call_operand.vmem [shape: f32[1,4], index: 7, kind: input, shape index: {}]
  %s8 = inlined_call_operand.vmem [shape: f32[2,16,16,4], index: 8, kind: output, shape index: {}]
  %s9 = sld [smem:[#allocation0]]
  $region65: #{up_forward.1} parent=0
    _
  %s11 = ssub.s32 1, %s9
  %s12 = scalar_select 0, %s11, %s9
  loop: start=0, step=1, limit=4
  $region2: #{up_forward.1} parent=0 // loop_pre_header
    _
  $region3: #{up_forward.1} parent=0 // loop_header
    %s14 = sphi 0, %s18
    %p15 = scmp.ge.s32.totalorder %s14, 4
    %s24 = sphi 0, %s26
    %s27 = sphi 0, %s24
    %s28 = sphi 0, %s27
    %s44 = sphi 0, %s28
    %s50 = sphi 0, %s52
    %s53 = sphi 0, %s50
    %s54 = sphi 0, %s53
    %s70 = sphi 0, %s54
    %s74 = sphi 0, %s74
    %s76 = sphi 0, %s74
    %s77 = sphi 0, %s76
    %s91 = sphi 0, %s77
    %s95 = sphi 0, %s95
    %s97 = sphi 0, %s95
    %s98 = sphi 0, %s97
    %s112 = sphi 0, %s98
    %s116 = sphi 0, %s116
    %s118 = sphi 0, %s116
    %s119 = sphi 0, %s118
    %s133 = sphi 0, %s119
    %s137 = sphi 0, %s137
    %s139 = sphi 0, %s137
    %s140 = sphi 0, %s139
    %s154 = sphi 0, %s140
    %s158 = sphi 0, %s158
    %s160 = sphi 0, %s158
    %s161 = sphi 0, %s160
    %s175 = sphi 0, %s161
    %s179 = sphi 0, %s179
    %s181 = sphi 0, %s179
    %s182 = sphi 0, %s181
    %s196 = sphi 0, %s182
    %s202 = sphi 0, %s204
    %s205 = sphi 0, %s202
    %s206 = sphi 0, %s205
    %s222 = sphi 0, %s206
  $region4: #{up_forward.1} parent=0 // loop_header_branch
    %17 = sbr.rel (%p15) target = $region8
  $region5: #{up_forward.1} parent=0 // loop_body
    %s19 = ssub.s32 %s14, 1
    %s20 = ssub.s32 %s14, 2
    %s21 = sadd.s32 %s14, 1
    %s22 = ssub.s32 %s14, %s21
    %p23 = scmp.eq.s32.totalorder %s22, 0
    %s25 = sadd.s32 %s24, 1
    %s26 = scalar_select %p23, %s24, %s25
    %p29 = pneg %p23
    %p30 = scmp.eq.s32.totalorder %s14, 1
    %p31 = por %p29, %p30
    %p32 = scmp.ne.s32.totalorder %s24, %s27
    %p33 = scmp.eq.s32.totalorder %s14, 0
    %p34 = por %p32, %p33
    %p35 = scmp.ne.s32.totalorder %s24, %s27
    %p36 = scmp.eq.s32.totalorder %s19, 1
    %p37 = por %p35, %p36
    %p38 = scmp.ne.s32.totalorder %s27, %s28
    %p39 = scmp.eq.s32.totalorder %s19, 0
    %p40 = por %p38, %p39
    %p41 = scmp.ne.s32.totalorder %s27, %s28
    %p42 = scmp.eq.s32.totalorder %s20, 1
    %p43 = por %p41, %p42
    %p45 = scmp.ne.s32.totalorder %s28, %s44
    %p46 = scmp.eq.s32.totalorder %s20, 0
    %p47 = por %p45, %p46
    %s48 = ssub.s32 %s14, %s21
    %p49 = scmp.eq.s32.totalorder %s48, 0
    %s51 = sadd.s32 %s50, 1
    %s52 = scalar_select %p49, %s50, %s51
    %p55 = pneg %p49
    %p56 = scmp.eq.s32.totalorder %s14, 1
    %p57 = por %p55, %p56
    %p58 = scmp.ne.s32.totalorder %s50, %s53
    %p59 = scmp.eq.s32.totalorder %s14, 0
    %p60 = por %p58, %p59
    %p61 = scmp.ne.s32.totalorder %s50, %s53
    %p62 = scmp.eq.s32.totalorder %s19, 1
    %p63 = por %p61, %p62
    %p64 = scmp.ne.s32.totalorder %s53, %s54
    %p65 = scmp.eq.s32.totalorder %s19, 0
    %p66 = por %p64, %p65
    %p67 = scmp.ne.s32.totalorder %s53, %s54
    %p68 = scmp.eq.s32.totalorder %s20, 1
    %p69 = por %p67, %p68
    %p71 = scmp.ne.s32.totalorder %s54, %s70
    %p72 = scmp.eq.s32.totalorder %s20, 0
    %p73 = por %p71, %p72
    %s75 = sadd.s32 %s74, 1
    %p78 = scmp.eq.s32.totalorder %s14, 1
    %p79 = scmp.ne.s32.totalorder %s74, %s76
    %p80 = scmp.eq.s32.totalorder %s14, 0
    %p81 = por %p79, %p80
    %p82 = scmp.ne.s32.totalorder %s74, %s76
    %p83 = scmp.eq.s32.totalorder %s19, 1
    %p84 = por %p82, %p83
    %p85 = scmp.ne.s32.totalorder %s76, %s77
    %p86 = scmp.eq.s32.totalorder %s19, 0
    %p87 = por %p85, %p86
    %p88 = scmp.ne.s32.totalorder %s76, %s77
    %p89 = scmp.eq.s32.totalorder %s20, 1
    %p90 = por %p88, %p89
    %p92 = scmp.ne.s32.totalorder %s77, %s91
    %p93 = scmp.eq.s32.totalorder %s20, 0
    %p94 = por %p92, %p93
    %s96 = sadd.s32 %s95, 1
    %p99 = scmp.eq.s32.totalorder %s14, 1
    %p100 = scmp.ne.s32.totalorder %s95, %s97
    %p101 = scmp.eq.s32.totalorder %s14, 0
    %p102 = por %p100, %p101
    %p103 = scmp.ne.s32.totalorder %s95, %s97
    %p104 = scmp.eq.s32.totalorder %s19, 1
    %p105 = por %p103, %p104
    %p106 = scmp.ne.s32.totalorder %s97, %s98
    %p107 = scmp.eq.s32.totalorder %s19, 0
    %p108 = por %p106, %p107
    %p109 = scmp.ne.s32.totalorder %s97, %s98
    %p110 = scmp.eq.s32.totalorder %s20, 1
    %p111 = por %p109, %p110
    %p113 = scmp.ne.s32.totalorder %s98, %s112
    %p114 = scmp.eq.s32.totalorder %s20, 0
    %p115 = por %p113, %p114
    %s117 = sadd.s32 %s116, 1
    %p120 = scmp.eq.s32.totalorder %s14, 1
    %p121 = scmp.ne.s32.totalorder %s116, %s118
    %p122 = scmp.eq.s32.totalorder %s14, 0
    %p123 = por %p121, %p122
    %p124 = scmp.ne.s32.totalorder %s116, %s118
    %p125 = scmp.eq.s32.totalorder %s19, 1
    %p126 = por %p124, %p125
    %p127 = scmp.ne.s32.totalorder %s118, %s119
    %p128 = scmp.eq.s32.totalorder %s19, 0
    %p129 = por %p127, %p128
    %p130 = scmp.ne.s32.totalorder %s118, %s119
    %p131 = scmp.eq.s32.totalorder %s20, 1
    %p132 = por %p130, %p131
    %p134 = scmp.ne.s32.totalorder %s119, %s133
    %p135 = scmp.eq.s32.totalorder %s20, 0
    %p136 = por %p134, %p135
    %s138 = sadd.s32 %s137, 1
    %p141 = scmp.eq.s32.totalorder %s14, 1
    %p142 = scmp.ne.s32.totalorder %s137, %s139
    %p143 = scmp.eq.s32.totalorder %s14, 0
    %p144 = por %p142, %p143
    %p145 = scmp.ne.s32.totalorder %s137, %s139
    %p146 = scmp.eq.s32.totalorder %s19, 1
    %p147 = por %p145, %p146
    %p148 = scmp.ne.s32.totalorder %s139, %s140
    %p149 = scmp.eq.s32.totalorder %s19, 0
    %p150 = por %p148, %p149
    %p151 = scmp.ne.s32.totalorder %s139, %s140
    %p152 = scmp.eq.s32.totalorder %s20, 1
    %p153 = por %p151, %p152
    %p155 = scmp.ne.s32.totalorder %s140, %s154
    %p156 = scmp.eq.s32.totalorder %s20, 0
    %p157 = por %p155, %p156
    %s159 = sadd.s32 %s158, 1
    %p162 = scmp.eq.s32.totalorder %s14, 1
    %p163 = scmp.ne.s32.totalorder %s158, %s160
    %p164 = scmp.eq.s32.totalorder %s14, 0
    %p165 = por %p163, %p164
    %p166 = scmp.ne.s32.totalorder %s158, %s160
    %p167 = scmp.eq.s32.totalorder %s19, 1
    %p168 = por %p166, %p167
    %p169 = scmp.ne.s32.totalorder %s160, %s161
    %p170 = scmp.eq.s32.totalorder %s19, 0
    %p171 = por %p169, %p170
    %p172 = scmp.ne.s32.totalorder %s160, %s161
    %p173 = scmp.eq.s32.totalorder %s20, 1
    %p174 = por %p172, %p173
    %p176 = scmp.ne.s32.totalorder %s161, %s175
    %p177 = scmp.eq.s32.totalorder %s20, 0
    %p178 = por %p176, %p177
    %s180 = sadd.s32 %s179, 1
    %p183 = scmp.eq.s32.totalorder %s14, 1
    %p184 = scmp.ne.s32.totalorder %s179, %s181
    %p185 = scmp.eq.s32.totalorder %s14, 0
    %p186 = por %p184, %p185
    %p187 = scmp.ne.s32.totalorder %s179, %s181
    %p188 = scmp.eq.s32.totalorder %s19, 1
    %p189 = por %p187, %p188
    %p190 = scmp.ne.s32.totalorder %s181, %s182
    %p191 = scmp.eq.s32.totalorder %s19, 0
    %p192 = por %p190, %p191
    %p193 = scmp.ne.s32.totalorder %s181, %s182
    %p194 = scmp.eq.s32.totalorder %s20, 1
    %p195 = por %p193, %p194
    %p197 = scmp.ne.s32.totalorder %s182, %s196
    %p198 = scmp.eq.s32.totalorder %s20, 0
    %p199 = por %p197, %p198
    %s200 = ssub.s32 %s14, %s21
    %p201 = scmp.eq.s32.totalorder %s200, 0
    %s203 = sadd.s32 %s202, 1
    %s204 = scalar_select %p201, %s202, %s203
    %p207 = pneg %p201
    %p208 = scmp.eq.s32.totalorder %s14, 1
    %p209 = por %p207, %p208
    %p210 = scmp.ne.s32.totalorder %s202, %s205
    %p211 = scmp.eq.s32.totalorder %s14, 0
    %p212 = por %p210, %p211
    %p213 = scmp.ne.s32.totalorder %s202, %s205
    %p214 = scmp.eq.s32.totalorder %s19, 1
    %p215 = por %p213, %p214
    %p216 = scmp.ne.s32.totalorder %s205, %s206
    %p217 = scmp.eq.s32.totalorder %s19, 0
    %p218 = por %p216, %p217
    %p219 = scmp.ne.s32.totalorder %s205, %s206
    %p220 = scmp.eq.s32.totalorder %s20, 1
    %p221 = por %p219, %p220
    %p223 = scmp.ne.s32.totalorder %s206, %s222
    %p224 = scmp.eq.s32.totalorder %s20, 0
    %p225 = por %p223, %p224
    %p226 = scmp.le.s32.totalorder 1, %s14
    %p227 = scmp.lt.s32.totalorder %s14, 3
    %p228 = pnand %p226, %p227
    %p229 = pneg %p228
    // Predicated region
    $region9: #{up_forward.1} parent=5 // pred_check
      _
    $region10: #{up_forward.1} parent=5 // pred_check_branch
      %231 = sbr.rel (%p228) target = $region12
    $region11: #{up_forward.1} parent=5 // pred_region
      %s232 = ssub.s32 %s14, 1
      // Predicated region
      $region13: #{up_forward.1} parent=11 // pred_check
        %p233 = pneg %p87
      $region14: #{up_forward.1} parent=11 // pred_check_branch
        %235 = sbr.rel (%p233) target = $region16
      $region15: #{up_forward.1} parent=11 // pred_region
        _
      $region16: #{up_forward.1} parent=11 // pred_fallthru
        _
      // Predicated region
      $region17: #{up_forward.1} parent=11 // pred_check
        %p236 = pneg %p108
      $region18: #{up_forward.1} parent=11 // pred_check_branch
        %238 = sbr.rel (%p236) target = $region20
      $region19: #{up_forward.1} parent=11 // pred_region
        _
      $region20: #{up_forward.1} parent=11 // pred_fallthru
        _
      // Predicated region
      $region21: #{up_forward.1} parent=11 // pred_check
        %p239 = pneg %p129
      $region22: #{up_forward.1} parent=11 // pred_check_branch
        %241 = sbr.rel (%p239) target = $region24
      $region23: #{up_forward.1} parent=11 // pred_region
        _
      $region24: #{up_forward.1} parent=11 // pred_fallthru
        _
      // Predicated region
      $region25: #{up_forward.1} parent=11 // pred_check
        %p242 = pneg %p150
      $region26: #{up_forward.1} parent=11 // pred_check_branch
        %244 = sbr.rel (%p242) target = $region28
      $region27: #{up_forward.1} parent=11 // pred_region
        _
      $region28: #{up_forward.1} parent=11 // pred_fallthru
        _
      // Predicated region
      $region29: #{up_forward.1} parent=11 // pred_check
        %p245 = pneg %p171
      $region30: #{up_forward.1} parent=11 // pred_check_branch
        %247 = sbr.rel (%p245) target = $region32
      $region31: #{up_forward.1} parent=11 // pred_region
        _
      $region32: #{up_forward.1} parent=11 // pred_fallthru
        _
      // Predicated region
      $region33: #{up_forward.1} parent=11 // pred_check
        %p248 = pneg %p192
      $region34: #{up_forward.1} parent=11 // pred_check_branch
        %250 = sbr.rel (%p248) target = $region36
      $region35: #{up_forward.1} parent=11 // pred_region
        _
      $region36: #{up_forward.1} parent=11 // pred_fallthru
        _
    $region12: #{up_forward.1} parent=5 // pred_fallthru
      _
    %p251 = scmp.lt.s32.totalorder %s14, 2
    // Predicated region
    $region37: #{up_forward.1} parent=5 // pred_check
      %p252 = pneg %p251
    $region38: #{up_forward.1} parent=5 // pred_check_branch
      %254 = sbr.rel (%p252) target = $region40
    $region39: #{up_forward.1} parent=5 // pred_region
      // Predicated region
      $region41: #{up_forward.1} parent=39 // pred_check
        %p255 = pneg %p34
      $region42: #{up_forward.1} parent=39 // pred_check_branch
        %257 = sbr.rel (%p255) target = $region44
      $region43: #{up_forward.1} parent=39 // pred_region
        %p258 = scmp.lt.s32.totalorder %s14, 1
        %s259 = scalar_select %p258, %s14, 1
        %s260 = smul.addr %s259, 32
        %s261 = smul.addr %s260, 8
        %s262 = scalar_lea.vmem %s0, %s261
      $region44: #{up_forward.1} parent=39 // pred_fallthru
        _
      // Predicated region
      $region45: #{up_forward.1} parent=39 // pred_check
        %p263 = pneg %p60
      $region46: #{up_forward.1} parent=39 // pred_check_branch
        %265 = sbr.rel (%p263) target = $region48
      $region47: #{up_forward.1} parent=39 // pred_region
        %p266 = scmp.lt.s32.totalorder %s14, 1
        %s267 = scalar_select %p266, %s14, 1
        %s268 = smul.addr %s267, 4
        %s269 = smul.addr %s268, 8
        %s270 = scalar_lea.vmem %s1, %s269
      $region48: #{up_forward.1} parent=39 // pred_fallthru
        _
    $region40: #{up_forward.1} parent=5 // pred_fallthru
      _
    %p271 = scmp.le.s32.totalorder 1, %s14
    %p272 = scmp.lt.s32.totalorder %s14, 3
    %p273 = pnand %p271, %p272
    %p274 = pneg %p273
    // Predicated region
    $region49: #{up_forward.1} parent=5 // pred_check
      _
    $region50: #{up_forward.1} parent=5 // pred_check_branch
      %276 = sbr.rel (%p273) target = $region52
    $region51: #{up_forward.1} parent=5 // pred_region
      %s277 = ssub.s32 %s14, 1
      %p278 = scmp.lt.s32.totalorder %s19, 1
      %s279 = scalar_select %p278, %s19, 1
      %s280 = smul.addr %s279, 32
      %s281 = smul.addr %s280, 8
      %s282 = scalar_lea.vmem %s0, %s281
      %p283 = pneg %p40
      %p284 = pneg %p37
      %p285 = scmp.lt.s32.totalorder %s19, 1
      %s286 = scalar_select %p285, %s19, 1
      %s287 = smul.addr %s286, 4
      %s288 = smul.addr %s287, 8
      %s289 = scalar_lea.vmem %s1, %s288
      %p290 = pneg %p66
      %p291 = pneg %p63
      %p292 = pneg %p87
      %p293 = pneg %p84
      %p294 = pneg %p108
      %p295 = pneg %p105
      %p296 = pneg %p129
      %p297 = pneg %p126
      %p298 = pneg %p150
      %p299 = pneg %p147
      %p300 = pneg %p171
      %p301 = pneg %p168
      %p302 = pneg %p192
      %p303 = pneg %p189
      %p304 = pneg %p218
      %p305 = pneg %p215
      %p306 = scmp.lt.s32.totalorder %s19, 1
      %s307 = scalar_select %p306, %s19, 1
      %s308 = smul.addr %s307, 32
      %s309 = smul.addr %s308, 8
      %s310 = scalar_lea.vmem %s8, %s309
      %p311 = scmp.lt.s32.totalorder %s19, 1
      %s312 = scalar_select %p311, %s19, 1
      %s313 = smul.addr %s312, 32
      %s314 = smul.addr %s313, 8
      %s315 = scalar_lea.vmem %s0, %s314
      %p316 = scmp.lt.s32.totalorder %s19, 1
      %s317 = scalar_select %p316, %s19, 1
      %s318 = smul.addr %s317, 4
      %s319 = smul.addr %s318, 8
      %s320 = scalar_lea.vmem %s1, %s319
      %p321 = scmp.lt.s32.totalorder %s19, 1
      %s322 = scalar_select %p321, %s19, 1
      %s323 = smul.addr %s322, 32
      %s324 = smul.addr %s323, 8
      %s325 = scalar_lea.vmem %s8, %s324
      %vm326 = vcmask 64512
      %327 = vst.msk [vmem:[#allocation2] sm:$0xff] %vm326, 0.0
      %328 = vst.msk [vmem:[#allocation2 + $0x8] sm:$0xff] %vm326, 0.0
      %vm329 = vcmask 58368
      %330 = vst.msk [vmem:[#allocation2 + $0x10] sm:$0x3] %vm329, 0.0
      %s331 = scalar_lea.vmem [#allocation2], 408
      %332 = vst.msk [vmem:[%s331] sm:$0xff] %vm326, 0.0
      %333 = vst.msk [vmem:[%s331 + $0x8] sm:$0xff] %vm326, 0.0
      %334 = vst.msk [vmem:[%s331 + $0x10] sm:$0x3] %vm329, 0.0
      %vm335 = vcmask 57344
      %336 = vst.msk [vmem:[#allocation2] sm:$0x1] %vm335, 0.0
      %337 = vst.msk [vmem:[#allocation2 + $0x18] sm:$0x1] %vm335, 0.0
      %338 = vst.msk [vmem:[#allocation2 + $0x30] sm:$0x1] %vm335, 0.0
      %339 = vst.msk [vmem:[#allocation2 + $0x48] sm:$0x1] %vm335, 0.0
      %340 = vst.msk [vmem:[#allocation2 + $0x60] sm:$0x1] %vm335, 0.0
      %341 = vst.msk [vmem:[#allocation2 + $0x78] sm:$0x1] %vm335, 0.0
      %342 = vst.msk [vmem:[#allocation2 + $0x90] sm:$0x1] %vm335, 0.0
      %343 = vst.msk [vmem:[#allocation2 + $0xa8] sm:$0x1] %vm335, 0.0
      %344 = vst.msk [vmem:[#allocation2 + $0xc0] sm:$0x1] %vm335, 0.0
      %345 = vst.msk [vmem:[#allocation2 + $0xd8] sm:$0x1] %vm335, 0.0
      %346 = vst.msk [vmem:[#allocation2 + $0xf0] sm:$0x1] %vm335, 0.0
      %347 = vst.msk [vmem:[#allocation2 + $0x108] sm:$0x1] %vm335, 0.0
      %348 = vst.msk [vmem:[#allocation2 + $0x120] sm:$0x1] %vm335, 0.0
      %349 = vst.msk [vmem:[#allocation2 + $0x138] sm:$0x1] %vm335, 0.0
      %350 = vst.msk [vmem:[#allocation2 + $0x150] sm:$0x1] %vm335, 0.0
      %351 = vst.msk [vmem:[#allocation2 + $0x168] sm:$0x1] %vm335, 0.0
      %352 = vst.msk [vmem:[#allocation2 + $0x180] sm:$0x1] %vm335, 0.0
      %353 = vst.msk [vmem:[#allocation2 + $0x198] sm:$0x1] %vm335, 0.0
      %354 = vst.msk [vmem:[#allocation2 + $0x11] sm:$0x1] %vm335, 0.0
      %355 = vst.msk [vmem:[#allocation2 + $0x29] sm:$0x1] %vm335, 0.0
      %356 = vst.msk [vmem:[#allocation2 + $0x41] sm:$0x1] %vm335, 0.0
      %357 = vst.msk [vmem:[#allocation2 + $0x59] sm:$0x1] %vm335, 0.0
      %358 = vst.msk [vmem:[#allocation2 + $0x71] sm:$0x1] %vm335, 0.0
      %359 = vst.msk [vmem:[#allocation2 + $0x89] sm:$0x1] %vm335, 0.0
      %360 = vst.msk [vmem:[#allocation2 + $0xa1] sm:$0x1] %vm335, 0.0
      %361 = vst.msk [vmem:[#allocation2 + $0xb9] sm:$0x1] %vm335, 0.0
      %362 = vst.msk [vmem:[#allocation2 + $0xd1] sm:$0x1] %vm335, 0.0
      %363 = vst.msk [vmem:[#allocation2 + $0xe9] sm:$0x1] %vm335, 0.0
      %364 = vst.msk [vmem:[#allocation2 + $0x101] sm:$0x1] %vm335, 0.0
      %365 = vst.msk [vmem:[#allocation2 + $0x119] sm:$0x1] %vm335, 0.0
      %366 = vst.msk [vmem:[#allocation2 + $0x131] sm:$0x1] %vm335, 0.0
      %367 = vst.msk [vmem:[#allocation2 + $0x149] sm:$0x1] %vm335, 0.0
      %368 = vst.msk [vmem:[#allocation2 + $0x161] sm:$0x1] %vm335, 0.0
      %369 = vst.msk [vmem:[#allocation2 + $0x179] sm:$0x1] %vm335, 0.0
      %370 = vst.msk [vmem:[#allocation2 + $0x191] sm:$0x1] %vm335, 0.0
      %371 = vst.msk [vmem:[#allocation2 + $0x1a9] sm:$0x1] %vm335, 0.0
      %vm372 = vcmask 31744
      %373 = vst.msk [vmem:[#allocation3] sm:$0xff] %vm372, 0.0
      %374 = vst.msk [vmem:[#allocation3 + $0x8] sm:$0xff] %vm372, 0.0
      %vm375 = vcmask 25600
      %376 = vst.msk [vmem:[#allocation3 + $0x10] sm:$0x3] %vm375, 0.0
      %s377 = scalar_lea.vmem [#allocation3], 408
      %378 = vst.msk [vmem:[%s377] sm:$0xff] %vm372, 0.0
      %379 = vst.msk [vmem:[%s377 + $0x8] sm:$0xff] %vm372, 0.0
      %380 = vst.msk [vmem:[%s377 + $0x10] sm:$0x3] %vm375, 0.0
      %vm381 = vcmask 24576
      %382 = vst.msk [vmem:[#allocation3] sm:$0x1] %vm381, 0.0
      %383 = vst.msk [vmem:[#allocation3 + $0x18] sm:$0x1] %vm381, 0.0
      %384 = vst.msk [vmem:[#allocation3 + $0x30] sm:$0x1] %vm381, 0.0
      %385 = vst.msk [vmem:[#allocation3 + $0x48] sm:$0x1] %vm381, 0.0
      %386 = vst.msk [vmem:[#allocation3 + $0x60] sm:$0x1] %vm381, 0.0
      %387 = vst.msk [vmem:[#allocation3 + $0x78] sm:$0x1] %vm381, 0.0
      %388 = vst.msk [vmem:[#allocation3 + $0x90] sm:$0x1] %vm381, 0.0
      %389 = vst.msk [vmem:[#allocation3 + $0xa8] sm:$0x1] %vm381, 0.0
      %390 = vst.msk [vmem:[#allocation3 + $0xc0] sm:$0x1] %vm381, 0.0
      %391 = vst.msk [vmem:[#allocation3 + $0xd8] sm:$0x1] %vm381, 0.0
      %392 = vst.msk [vmem:[#allocation3 + $0xf0] sm:$0x1] %vm381, 0.0
      %393 = vst.msk [vmem:[#allocation3 + $0x108] sm:$0x1] %vm381, 0.0
      %394 = vst.msk [vmem:[#allocation3 + $0x120] sm:$0x1] %vm381, 0.0
      %395 = vst.msk [vmem:[#allocation3 + $0x138] sm:$0x1] %vm381, 0.0
      %396 = vst.msk [vmem:[#allocation3 + $0x150] sm:$0x1] %vm381, 0.0
      %397 = vst.msk [vmem:[#allocation3 + $0x168] sm:$0x1] %vm381, 0.0
      %398 = vst.msk [vmem:[#allocation3 + $0x180] sm:$0x1] %vm381, 0.0
      %399 = vst.msk [vmem:[#allocation3 + $0x198] sm:$0x1] %vm381, 0.0
      %400 = vst.msk [vmem:[#allocation3 + $0x11] sm:$0x1] %vm381, 0.0
      %401 = vst.msk [vmem:[#allocation3 + $0x29] sm:$0x1] %vm381, 0.0
      %402 = vst.msk [vmem:[#allocation3 + $0x41] sm:$0x1] %vm381, 0.0
      %403 = vst.msk [vmem:[#allocation3 + $0x59] sm:$0x1] %vm381, 0.0
      %404 = vst.msk [vmem:[#allocation3 + $0x71] sm:$0x1] %vm381, 0.0
      %405 = vst.msk [vmem:[#allocation3 + $0x89] sm:$0x1] %vm381, 0.0
      %406 = vst.msk [vmem:[#allocation3 + $0xa1] sm:$0x1] %vm381, 0.0
      %407 = vst.msk [vmem:[#allocation3 + $0xb9] sm:$0x1] %vm381, 0.0
      %408 = vst.msk [vmem:[#allocation3 + $0xd1] sm:$0x1] %vm381, 0.0
      %409 = vst.msk [vmem:[#allocation3 + $0xe9] sm:$0x1] %vm381, 0.0
      %410 = vst.msk [vmem:[#allocation3 + $0x101] sm:$0x1] %vm381, 0.0
      %411 = vst.msk [vmem:[#allocation3 + $0x119] sm:$0x1] %vm381, 0.0
      %412 = vst.msk [vmem:[#allocation3 + $0x131] sm:$0x1] %vm381, 0.0
      %413 = vst.msk [vmem:[#allocation3 + $0x149] sm:$0x1] %vm381, 0.0
      %414 = vst.msk [vmem:[#allocation3 + $0x161] sm:$0x1] %vm381, 0.0
      %415 = vst.msk [vmem:[#allocation3 + $0x179] sm:$0x1] %vm381, 0.0
      %416 = vst.msk [vmem:[#allocation3 + $0x191] sm:$0x1] %vm381, 0.0
      %417 = vst.msk [vmem:[#allocation3 + $0x1a9] sm:$0x1] %vm381, 0.0
      %v418 = vld [vmem:[%s315] sm:$0xff]
      %v419 = vld [vmem:[%s315 + $0x8] sm:$0xff]
      %v420 = vld [vmem:[%s315 + $0x10] sm:$0xff]
      %v421 = vld [vmem:[%s315 + $0x18] sm:$0xff]
      %v422 = vld [vmem:[%s315 + $0x20] sm:$0xff]
      %v423 = vld [vmem:[%s315 + $0x28] sm:$0xff]
      %v424 = vld [vmem:[%s315 + $0x30] sm:$0xff]
      %v425 = vld [vmem:[%s315 + $0x38] sm:$0xff]
      %v426 = vld [vmem:[%s315 + $0x40] sm:$0xff]
      %v427 = vld [vmem:[%s315 + $0x48] sm:$0xff]
      %v428 = vld [vmem:[%s315 + $0x50] sm:$0xff]
      %v429 = vld [vmem:[%s315 + $0x58] sm:$0xff]
      %v430 = vld [vmem:[%s315 + $0x60] sm:$0xff]
      %v431 = vld [vmem:[%s315 + $0x68] sm:$0xff]
      %v432 = vld [vmem:[%s315 + $0x70] sm:$0xff]
      %v433 = vld [vmem:[%s315 + $0x78] sm:$0xff]
      %v434 = vld [vmem:[%s315 + $0x80] sm:$0xff]
      %v435 = vld [vmem:[%s315 + $0x88] sm:$0xff]
      %v436 = vld [vmem:[%s315 + $0x90] sm:$0xff]
      %v437 = vld [vmem:[%s315 + $0x98] sm:$0xff]
      %v438 = vld [vmem:[%s315 + $0xa0] sm:$0xff]
      %v439 = vld [vmem:[%s315 + $0xa8] sm:$0xff]
      %v440 = vld [vmem:[%s315 + $0xb0] sm:$0xff]
      %v441 = vld [vmem:[%s315 + $0xb8] sm:$0xff]
      %v442 = vld [vmem:[%s315 + $0xc0] sm:$0xff]
      %v443 = vld [vmem:[%s315 + $0xc8] sm:$0xff]
      %v444 = vld [vmem:[%s315 + $0xd0] sm:$0xff]
      %v445 = vld [vmem:[%s315 + $0xd8] sm:$0xff]
      %v446 = vld [vmem:[%s315 + $0xe0] sm:$0xff]
      %v447 = vld [vmem:[%s315 + $0xe8] sm:$0xff]
      %v448 = vld [vmem:[%s315 + $0xf0] sm:$0xff]
      %v449 = vld [vmem:[%s315 + $0xf8] sm:$0xff]
      %s450 = scalar_lea.vmem [#allocation2], 24
      %451 = vst.msk [vmem:[%s450 + $0x1] sm:$0xff] %vm372, %v418
      %452 = vst.msk [vmem:[%s450 + $0x9] sm:$0xff] %vm372, %v419
      %453 = vst.msk [vmem:[%s450 + $0x19] sm:$0xff] %vm372, %v420
      %454 = vst.msk [vmem:[%s450 + $0x21] sm:$0xff] %vm372, %v421
      %455 = vst.msk [vmem:[%s450 + $0x31] sm:$0xff] %vm372, %v422
      %456 = vst.msk [vmem:[%s450 + $0x39] sm:$0xff] %vm372, %v423
      %457 = vst.msk [vmem:[%s450 + $0x49] sm:$0xff] %vm372, %v424
      %458 = vst.msk [vmem:[%s450 + $0x51] sm:$0xff] %vm372, %v425
      %459 = vst.msk [vmem:[%s450 + $0x61] sm:$0xff] %vm372, %v426
      %460 = vst.msk [vmem:[%s450 + $0x69] sm:$0xff] %vm372, %v427
      %461 = vst.msk [vmem:[%s450 + $0x79] sm:$0xff] %vm372, %v428
      %462 = vst.msk [vmem:[%s450 + $0x81] sm:$0xff] %vm372, %v429
      %463 = vst.msk [vmem:[%s450 + $0x91] sm:$0xff] %vm372, %v430
      %464 = vst.msk [vmem:[%s450 + $0x99] sm:$0xff] %vm372, %v431
      %465 = vst.msk [vmem:[%s450 + $0xa9] sm:$0xff] %vm372, %v432
      %466 = vst.msk [vmem:[%s450 + $0xb1] sm:$0xff] %vm372, %v433
      %467 = vst.msk [vmem:[%s450 + $0xc1] sm:$0xff] %vm372, %v434
      %468 = vst.msk [vmem:[%s450 + $0xc9] sm:$0xff] %vm372, %v435
      %469 = vst.msk [vmem:[%s450 + $0xd9] sm:$0xff] %vm372, %v436
      %470 = vst.msk [vmem:[%s450 + $0xe1] sm:$0xff] %vm372, %v437
      %471 = vst.msk [vmem:[%s450 + $0xf1] sm:$0xff] %vm372, %v438
      %472 = vst.msk [vmem:[%s450 + $0xf9] sm:$0xff] %vm372, %v439
      %473 = vst.msk [vmem:[%s450 + $0x109] sm:$0xff] %vm372, %v440
      %474 = vst.msk [vmem:[%s450 + $0x111] sm:$0xff] %vm372, %v441
      %475 = vst.msk [vmem:[%s450 + $0x121] sm:$0xff] %vm372, %v442
      %476 = vst.msk [vmem:[%s450 + $0x129] sm:$0xff] %vm372, %v443
      %477 = vst.msk [vmem:[%s450 + $0x139] sm:$0xff] %vm372, %v444
      %478 = vst.msk [vmem:[%s450 + $0x141] sm:$0xff] %vm372, %v445
      %479 = vst.msk [vmem:[%s450 + $0x151] sm:$0xff] %vm372, %v446
      %480 = vst.msk [vmem:[%s450 + $0x159] sm:$0xff] %vm372, %v447
      %481 = vst.msk [vmem:[%s450 + $0x169] sm:$0xff] %vm372, %v448
      %482 = vst.msk [vmem:[%s450 + $0x171] sm:$0xff] %vm372, %v449
      %v483 = vld [vmem:[%s320] sm:$0xff]
      %v484 = vld [vmem:[%s320 + $0x8] sm:$0xff]
      %v485 = vld [vmem:[%s320 + $0x10] sm:$0xff]
      %v486 = vld [vmem:[%s320 + $0x18] sm:$0xff]
      %v487 = vld [vmem:[%s2] sm:$0xff]
      %v489 = vsel %vm326, %v483, 0
      %v492 = vsel %vm326, %v484, 0
      %v495 = vsel %vm326, %v485, 0
      %v498 = vsel %vm326, %v486, 0
      %500 = vmatpush.msra.mxu0 0.0
      %501 = vmatpush.msra.mxu0 0.0
      %502 = vmatpush.msra.mxu0 0.0
      %503 = vmatpush.msra.mxu0 0.0
      %504 = vmatpush.msra.mxu0 0.0
      %505 = vmatpush.msra.mxu0 0.0
      %506 = vmatpush.msra.mxu0 0.0
      %507 = vmatpush.msra.mxu0 0.0
      %508 = vmatpush.msra.mxu0 0.0
      %509 = vmatpush.msra.mxu0 0.0
      %510 = vmatpush.msra.mxu0 0.0
      %511 = vmatpush.msra.mxu0 0.0
      %512 = vmatpush.msra.mxu0 0.0
      %513 = vmatpush.msra.mxu0 0.0
      %514 = vmatpush.msra.mxu0 0.0
      %515 = vmatpush.msra.mxu0 %v487
      %516 = vmatmul.f32.gmra.mxu0 %v489
      %v517 = vpop.f32.mrf.mxu0
      %v518 = vadd.f32 0.0, %v517
      %519 = vmatmul.f32.gmra.mxu0 %v492
      %v520 = vpop.f32.mrf.mxu0
      %v521 = vadd.f32 0.0, %v520
      %522 = vmatmul.f32.gmra.mxu0 %v495
      %v523 = vpop.f32.mrf.mxu0
      %v524 = vadd.f32 0.0, %v523
      %525 = vmatmul.f32.gmra.mxu0 %v498
      %v526 = vpop.f32.mrf.mxu0
      %v527 = vadd.f32 0.0, %v526
      %528 = vdwg.mxu0
      %529 = vxpose.xlu0.b32.start [1/16] %v518, 128
      %530 = vxpose.xlu0.b32.cont [2/16] 0.0, 128
      %531 = vxpose.xlu0.b32.cont [3/16] 0.0, 128
      %532 = vxpose.xlu0.b32.cont [4/16] 0.0, 128
      %533 = vxpose.xlu0.b32.cont [5/16] 0.0, 128
      %534 = vxpose.xlu0.b32.cont [6/16] 0.0, 128
      %535 = vxpose.xlu0.b32.cont [7/16] 0.0, 128
      %536 = vxpose.xlu0.b32.cont [8/16] 0.0, 128
      %537 = vxpose.xlu0.b32.cont [9/16] 0.0, 128
      %538 = vxpose.xlu0.b32.cont [10/16] 0.0, 128
      %539 = vxpose.xlu0.b32.cont [11/16] 0.0, 128
      %540 = vxpose.xlu0.b32.cont [12/16] 0.0, 128
      %541 = vxpose.xlu0.b32.cont [13/16] 0.0, 128
      %542 = vxpose.xlu0.b32.cont [14/16] 0.0, 128
      %543 = vxpose.xlu0.b32.cont [15/16] 0.0, 128
      %544 = vxpose.xlu0.b32.end [16/16] 0.0, 128
      %v545 = vpop.trf.xlu0
      %v546 = vpop.trf.xlu0
      %v547 = vpop.trf.xlu0
      %v548 = vpop.trf.xlu0
      %v549 = vpop.trf.xlu0
      %v550 = vpop.trf.xlu0
      %v551 = vpop.trf.xlu0
      %v552 = vpop.trf.xlu0
      %v553 = vpop.trf.xlu0
      %v554 = vpop.trf.xlu0
      %v555 = vpop.trf.xlu0
      %v556 = vpop.trf.xlu0
      %v557 = vpop.trf.xlu0
      %v558 = vpop.trf.xlu0
      %v559 = vpop.trf.xlu0
      %v560 = vpop.trf.xlu0
      %561 = vxpose.xlu0.b32.start [1/16] %v521, 128
      %562 = vxpose.xlu0.b32.cont [2/16] 0.0, 128
      %563 = vxpose.xlu0.b32.cont [3/16] 0.0, 128
      %564 = vxpose.xlu0.b32.cont [4/16] 0.0, 128
      %565 = vxpose.xlu0.b32.cont [5/16] 0.0, 128
      %566 = vxpose.xlu0.b32.cont [6/16] 0.0, 128
      %567 = vxpose.xlu0.b32.cont [7/16] 0.0, 128
      %568 = vxpose.xlu0.b32.cont [8/16] 0.0, 128
      %569 = vxpose.xlu0.b32.cont [9/16] 0.0, 128
      %570 = vxpose.xlu0.b32.cont [10/16] 0.0, 128
      %571 = vxpose.xlu0.b32.cont [11/16] 0.0, 128
      %572 = vxpose.xlu0.b32.cont [12/16] 0.0, 128
      %573 = vxpose.xlu0.b32.cont [13/16] 0.0, 128
      %574 = vxpose.xlu0.b32.cont [14/16] 0.0, 128
      %575 = vxpose.xlu0.b32.cont [15/16] 0.0, 128
      %576 = vxpose.xlu0.b32.end [16/16] 0.0, 128
      %v577 = vpop.trf.xlu0
      %v578 = vpop.trf.xlu0
      %v579 = vpop.trf.xlu0
      %v580 = vpop.trf.xlu0
      %v581 = vpop.trf.xlu0
      %v582 = vpop.trf.xlu0
      %v583 = vpop.trf.xlu0
      %v584 = vpop.trf.xlu0
      %v585 = vpop.trf.xlu0
      %v586 = vpop.trf.xlu0
      %v587 = vpop.trf.xlu0
      %v588 = vpop.trf.xlu0
      %v589 = vpop.trf.xlu0
      %v590 = vpop.trf.xlu0
      %v591 = vpop.trf.xlu0
      %v592 = vpop.trf.xlu0
      %593 = vxpose.xlu0.b32.start [1/16] %v524, 128
      %594 = vxpose.xlu0.b32.cont [2/16] 0.0, 128
      %595 = vxpose.xlu0.b32.cont [3/16] 0.0, 128
      %596 = vxpose.xlu0.b32.cont [4/16] 0.0, 128
      %597 = vxpose.xlu0.b32.cont [5/16] 0.0, 128
      %598 = vxpose.xlu0.b32.cont [6/16] 0.0, 128
      %599 = vxpose.xlu0.b32.cont [7/16] 0.0, 128
      %600 = vxpose.xlu0.b32.cont [8/16] 0.0, 128
      %601 = vxpose.xlu0.b32.cont [9/16] 0.0, 128
      %602 = vxpose.xlu0.b32.cont [10/16] 0.0, 128
      %603 = vxpose.xlu0.b32.cont [11/16] 0.0, 128
      %604 = vxpose.xlu0.b32.cont [12/16] 0.0, 128
      %605 = vxpose.xlu0.b32.cont [13/16] 0.0, 128
      %606 = vxpose.xlu0.b32.cont [14/16] 0.0, 128
      %607 = vxpose.xlu0.b32.cont [15/16] 0.0, 128
      %608 = vxpose.xlu0.b32.end [16/16] 0.0, 128
      %v609 = vpop.trf.xlu0
      %v610 = vpop.trf.xlu0
      %v611 = vpop.trf.xlu0
      %v612 = vpop.trf.xlu0
      %v613 = vpop.trf.xlu0
      %v614 = vpop.trf.xlu0
      %v615 = vpop.trf.xlu0
      %v616 = vpop.trf.xlu0
      %v617 = vpop.trf.xlu0
      %v618 = vpop.trf.xlu0
      %v619 = vpop.trf.xlu0
      %v620 = vpop.trf.xlu0
      %v621 = vpop.trf.xlu0
      %v622 = vpop.trf.xlu0
      %v623 = vpop.trf.xlu0
      %v624 = vpop.trf.xlu0
      %625 = vxpose.xlu0.b32.start [1/16] %v527, 128
      %626 = vxpose.xlu0.b32.cont [2/16] 0.0, 128
      %627 = vxpose.xlu0.b32.cont [3/16] 0.0, 128
      %628 = vxpose.xlu0.b32.cont [4/16] 0.0, 128
      %629 = vxpose.xlu0.b32.cont [5/16] 0.0, 128
      %630 = vxpose.xlu0.b32.cont [6/16] 0.0, 128
      %631 = vxpose.xlu0.b32.cont [7/16] 0.0, 128
      %632 = vxpose.xlu0.b32.cont [8/16] 0.0, 128
      %633 = vxpose.xlu0.b32.cont [9/16] 0.0, 128
      %634 = vxpose.xlu0.b32.cont [10/16] 0.0, 128
      %635 = vxpose.xlu0.b32.cont [11/16] 0.0, 128
      %636 = vxpose.xlu0.b32.cont [12/16] 0.0, 128
      %637 = vxpose.xlu0.b32.cont [13/16] 0.0, 128
      %638 = vxpose.xlu0.b32.cont [14/16] 0.0, 128
      %639 = vxpose.xlu0.b32.cont [15/16] 0.0, 128
      %640 = vxpose.xlu0.b32.end [16/16] 0.0, 128
      %v641 = vpop.trf.xlu0
      %v642 = vpop.trf.xlu0
      %v643 = vpop.trf.xlu0
      %v644 = vpop.trf.xlu0
      %v645 = vpop.trf.xlu0
      %v646 = vpop.trf.xlu0
      %v647 = vpop.trf.xlu0
      %v648 = vpop.trf.xlu0
      %v649 = vpop.trf.xlu0
      %v650 = vpop.trf.xlu0
      %v651 = vpop.trf.xlu0
      %v652 = vpop.trf.xlu0
      %v653 = vpop.trf.xlu0
      %v654 = vpop.trf.xlu0
      %v655 = vpop.trf.xlu0
      %v656 = vpop.trf.xlu0
      %v657 = vld [vmem:[%s3] sm:$0xff]
      %v659 = vsel %vm326, %v545, 0
      %v662 = vsel %vm326, %v546, 0
      %v665 = vsel %vm326, %v577, 0
      %v668 = vsel %vm326, %v578, 0
      %v671 = vsel %vm326, %v609, 0
      %v674 = vsel %vm326, %v610, 0
      %v677 = vsel %vm326, %v641, 0
      %v680 = vsel %vm326, %v642, 0
      %682 = vmatpush.msra.mxu0 0.0
      %683 = vmatpush.msra.mxu0 0.0
      %684 = vmatpush.msra.mxu0 0.0
      %685 = vmatpush.msra.mxu0 0.0
      %686 = vmatpush.msra.mxu0 0.0
      %687 = vmatpush.msra.mxu0 0.0
      %688 = vmatpush.msra.mxu0 0.0
      %689 = vmatpush.msra.mxu0 0.0
      %690 = vmatpush.msra.mxu0 0.0
      %691 = vmatpush.msra.mxu0 0.0
      %692 = vmatpush.msra.mxu0 0.0
      %693 = vmatpush.msra.mxu0 0.0
      %694 = vmatpush.msra.mxu0 0.0
      %695 = vmatpush.msra.mxu0 0.0
      %696 = vmatpush.msra.mxu0 0.0
      %697 = vmatpush.msra.mxu0 %v657
      %698 = vmatmul.f32.gmra.mxu0 %v659
      %v699 = vpop.f32.mrf.mxu0
      %v700 = vadd.f32 0.0, %v699
      %701 = vmatmul.f32.gmra.mxu0 %v662
      %v702 = vpop.f32.mrf.mxu0
      %v703 = vadd.f32 0.0, %v702
      %704 = vmatmul.f32.gmra.mxu0 %v665
      %v705 = vpop.f32.mrf.mxu0
      %v706 = vadd.f32 0.0, %v705
      %707 = vmatmul.f32.gmra.mxu0 %v668
      %v708 = vpop.f32.mrf.mxu0
      %v709 = vadd.f32 0.0, %v708
      %710 = vmatmul.f32.gmra.mxu0 %v671
      %v711 = vpop.f32.mrf.mxu0
      %v712 = vadd.f32 0.0, %v711
      %713 = vmatmul.f32.gmra.mxu0 %v674
      %v714 = vpop.f32.mrf.mxu0
      %v715 = vadd.f32 0.0, %v714
      %716 = vmatmul.f32.gmra.mxu0 %v677
      %v717 = vpop.f32.mrf.mxu0
      %v718 = vadd.f32 0.0, %v717
      %719 = vmatmul.f32.gmra.mxu0 %v680
      %v720 = vpop.f32.mrf.mxu0
      %v721 = vadd.f32 0.0, %v720
      %722 = vdwg.mxu0
      %723 = vxpose.xlu0.b32.start [1/16] %v700, 128
      %724 = vxpose.xlu0.b32.cont [2/16] %v703, 128
      %725 = vxpose.xlu0.b32.cont [3/16] 0.0, 128
      %726 = vxpose.xlu0.b32.cont [4/16] 0.0, 128
      %727 = vxpose.xlu0.b32.cont [5/16] 0.0, 128
      %728 = vxpose.xlu0.b32.cont [6/16] 0.0, 128
      %729 = vxpose.xlu0.b32.cont [7/16] 0.0, 128
      %730 = vxpose.xlu0.b32.cont [8/16] 0.0, 128
      %731 = vxpose.xlu0.b32.cont [9/16] 0.0, 128
      %732 = vxpose.xlu0.b32.cont [10/16] 0.0, 128
      %733 = vxpose.xlu0.b32.cont [11/16] 0.0, 128
      %734 = vxpose.xlu0.b32.cont [12/16] 0.0, 128
      %735 = vxpose.xlu0.b32.cont [13/16] 0.0, 128
      %736 = vxpose.xlu0.b32.cont [14/16] 0.0, 128
      %737 = vxpose.xlu0.b32.cont [15/16] 0.0, 128
      %738 = vxpose.xlu0.b32.end [16/16] 0.0, 128
      %v739 = vpop.trf.xlu0
      %v740 = vpop.trf.xlu0
      %v741 = vpop.trf.xlu0
      %v742 = vpop.trf.xlu0
      %v743 = vpop.trf.xlu0
      %v744 = vpop.trf.xlu0
      %v745 = vpop.trf.xlu0
      %v746 = vpop.trf.xlu0
      %v747 = vpop.trf.xlu0
      %v748 = vpop.trf.xlu0
      %v749 = vpop.trf.xlu0
      %v750 = vpop.trf.xlu0
      %v751 = vpop.trf.xlu0
      %v752 = vpop.trf.xlu0
      %v753 = vpop.trf.xlu0
      %v754 = vpop.trf.xlu0
      %755 = vxpose.xlu0.b32.start [1/16] %v706, 128
      %756 = vxpose.xlu0.b32.cont [2/16] %v709, 128
      %757 = vxpose.xlu0.b32.cont [3/16] 0.0, 128
      %758 = vxpose.xlu0.b32.cont [4/16] 0.0, 128
      %759 = vxpose.xlu0.b32.cont [5/16] 0.0, 128
      %760 = vxpose.xlu0.b32.cont [6/16] 0.0, 128
      %761 = vxpose.xlu0.b32.cont [7/16] 0.0, 128
      %762 = vxpose.xlu0.b32.cont [8/16] 0.0, 128
      %763 = vxpose.xlu0.b32.cont [9/16] 0.0, 128
      %764 = vxpose.xlu0.b32.cont [10/16] 0.0, 128
      %765 = vxpose.xlu0.b32.cont [11/16] 0.0, 128
      %766 = vxpose.xlu0.b32.cont [12/16] 0.0, 128
      %767 = vxpose.xlu0.b32.cont [13/16] 0.0, 128
      %768 = vxpose.xlu0.b32.cont [14/16] 0.0, 128
      %769 = vxpose.xlu0.b32.cont [15/16] 0.0, 128
      %770 = vxpose.xlu0.b32.end [16/16] 0.0, 128
      %v771 = vpop.trf.xlu0
      %v772 = vpop.trf.xlu0
      %v773 = vpop.trf.xlu0
      %v774 = vpop.trf.xlu0
      %v775 = vpop.trf.xlu0
      %v776 = vpop.trf.xlu0
      %v777 = vpop.trf.xlu0
      %v778 = vpop.trf.xlu0
      %v779 = vpop.trf.xlu0
      %v780 = vpop.trf.xlu0
      %v781 = vpop.trf.xlu0
      %v782 = vpop.trf.xlu0
      %v783 = vpop.trf.xlu0
      %v784 = vpop.trf.xlu0
      %v785 = vpop.trf.xlu0
      %v786 = vpop.trf.xlu0
      %787 = vxpose.xlu0.b32.start [1/16] %v712, 128
      %788 = vxpose.xlu0.b32.cont [2/16] %v715, 128
      %789 = vxpose.xlu0.b32.cont [3/16] 0.0, 128
      %790 = vxpose.xlu0.b32.cont [4/16] 0.0, 128
      %791 = vxpose.xlu0.b32.cont [5/16] 0.0, 128
      %792 = vxpose.xlu0.b32.cont [6/16] 0.0, 128
      %793 = vxpose.xlu0.b32.cont [7/16] 0.0, 128
      %794 = vxpose.xlu0.b32.cont [8/16] 0.0, 128
      %795 = vxpose.xlu0.b32.cont [9/16] 0.0, 128
      %796 = vxpose.xlu0.b32.cont [10/16] 0.0, 128
      %797 = vxpose.xlu0.b32.cont [11/16] 0.0, 128
      %798 = vxpose.xlu0.b32.cont [12/16] 0.0, 128
      %799 = vxpose.xlu0.b32.cont [13/16] 0.0, 128
      %800 = vxpose.xlu0.b32.cont [14/16] 0.0, 128
      %801 = vxpose.xlu0.b32.cont [15/16] 0.0, 128
      %802 = vxpose.xlu0.b32.end [16/16] 0.0, 128
      %v803 = vpop.trf.xlu0
      %v804 = vpop.trf.xlu0
      %v805 = vpop.trf.xlu0
      %v806 = vpop.trf.xlu0
      %v807 = vpop.trf.xlu0
      %v808 = vpop.trf.xlu0
      %v809 = vpop.trf.xlu0
      %v810 = vpop.trf.xlu0
      %v811 = vpop.trf.xlu0
      %v812 = vpop.trf.xlu0
      %v813 = vpop.trf.xlu0
      %v814 = vpop.trf.xlu0
      %v815 = vpop.trf.xlu0
      %v816 = vpop.trf.xlu0
      %v817 = vpop.trf.xlu0
      %v818 = vpop.trf.xlu0
      %819 = vxpose.xlu0.b32.start [1/16] %v718, 128
      %820 = vxpose.xlu0.b32.cont [2/16] %v721, 128
      %821 = vxpose.xlu0.b32.cont [3/16] 0.0, 128
      %822 = vxpose.xlu0.b32.cont [4/16] 0.0, 128
      %823 = vxpose.xlu0.b32.cont [5/16] 0.0, 128
      %824 = vxpose.xlu0.b32.cont [6/16] 0.0, 128
      %825 = vxpose.xlu0.b32.cont [7/16] 0.0, 128
      %826 = vxpose.xlu0.b32.cont [8/16] 0.0, 128
      %827 = vxpose.xlu0.b32.cont [9/16] 0.0, 128
      %828 = vxpose.xlu0.b32.cont [10/16] 0.0, 128
      %829 = vxpose.xlu0.b32.cont [11/16] 0.0, 128
      %830 = vxpose.xlu0.b32.cont [12/16] 0.0, 128
      %831 = vxpose.xlu0.b32.cont [13/16] 0.0, 128
      %832 = vxpose.xlu0.b32.cont [14/16] 0.0, 128
      %833 = vxpose.xlu0.b32.cont [15/16] 0.0, 128
      %834 = vxpose.xlu0.b32.end [16/16] 0.0, 128
      %v835 = vpop.trf.xlu0
      %v836 = vpop.trf.xlu0
      %v837 = vpop.trf.xlu0
      %v838 = vpop.trf.xlu0
      %v839 = vpop.trf.xlu0
      %v840 = vpop.trf.xlu0
      %v841 = vpop.trf.xlu0
      %v842 = vpop.trf.xlu0
      %v843 = vpop.trf.xlu0
      %v844 = vpop.trf.xlu0
      %v845 = vpop.trf.xlu0
      %v846 = vpop.trf.xlu0
      %v847 = vpop.trf.xlu0
      %v848 = vpop.trf.xlu0
      %v849 = vpop.trf.xlu0
      %v850 = vpop.trf.xlu0
      %v855 = vrot.slane %v771, 7
      %vm856 = vcmask 1041409
      %v857 = vsel %vm856, %v855, %v739
      %v858 = vrot.slane %v803, 6
      %vm859 = vcmask 1042434
      %v860 = vsel %vm859, %v858, %v857
      %v861 = vrot.slane %v835, 5
      %vm862 = vcmask 1043459
      %v863 = vsel %vm862, %v861, %v860
      %865 = vxpose.xlu0.b32.start [1/16] %v863, 128
      %866 = vxpose.xlu0.b32.cont [2/16] 0.0, 128
      %867 = vxpose.xlu0.b32.cont [3/16] 0.0, 128
      %868 = vxpose.xlu0.b32.cont [4/16] 0.0, 128
      %869 = vxpose.xlu0.b32.cont [5/16] 0.0, 128
      %870 = vxpose.xlu0.b32.cont [6/16] 0.0, 128
      %871 = vxpose.xlu0.b32.cont [7/16] 0.0, 128
      %872 = vxpose.xlu0.b32.cont [8/16] 0.0, 128
      %873 = vxpose.xlu0.b32.cont [9/16] 0.0, 128
      %874 = vxpose.xlu0.b32.cont [10/16] 0.0, 128
      %875 = vxpose.xlu0.b32.cont [11/16] 0.0, 128
      %876 = vxpose.xlu0.b32.cont [12/16] 0.0, 128
      %877 = vxpose.xlu0.b32.cont [13/16] 0.0, 128
      %878 = vxpose.xlu0.b32.cont [14/16] 0.0, 128
      %879 = vxpose.xlu0.b32.cont [15/16] 0.0, 128
      %880 = vxpose.xlu0.b32.end [16/16] 0.0, 128
      %v881 = vpop.trf.xlu0
      %v882 = vpop.trf.xlu0
      %v883 = vpop.trf.xlu0
      %v884 = vpop.trf.xlu0
      %v885 = vpop.trf.xlu0
      %v886 = vpop.trf.xlu0
      %v887 = vpop.trf.xlu0
      %v888 = vpop.trf.xlu0
      %v889 = vpop.trf.xlu0
      %v890 = vpop.trf.xlu0
      %v891 = vpop.trf.xlu0
      %v892 = vpop.trf.xlu0
      %v893 = vpop.trf.xlu0
      %v894 = vpop.trf.xlu0
      %v895 = vpop.trf.xlu0
      %v896 = vpop.trf.xlu0
      %899 = vrot.lane.b32.xlu0 %v881, 4
      %v900 = vpop.permute.xlu0 %899
      %901 = vrot.lane.b32.xlu0 %v882, 4
      %v902 = vpop.permute.xlu0 %901
      %vm905 = vcmask 64544
      %906 = vst.msk [vmem:[%s450 + $0x1] sm:$0xff] %vm905, %v900
      %907 = vst.msk [vmem:[%s450 + $0x9] sm:$0xff] %vm905, %v902
      %v908 = vrot.slane %v739, 1
      %v909 = vsel %vm856, %v771, %v908
      %v910 = vrot.slane %v803, 7
      %v911 = vsel %vm859, %v910, %v909
      %v912 = vrot.slane %v835, 6
      %v913 = vsel %vm862, %v912, %v911
      %915 = vxpose.xlu0.b32.start [1/16] %v913, 128
      %916 = vxpose.xlu0.b32.cont [2/16] 0.0, 128
      %917 = vxpose.xlu0.b32.cont [3/16] 0.0, 128
      %918 = vxpose.xlu0.b32.cont [4/16] 0.0, 128
      %919 = vxpose.xlu0.b32.cont [5/16] 0.0, 128
      %920 = vxpose.xlu0.b32.cont [6/16] 0.0, 128
      %921 = vxpose.xlu0.b32.cont [7/16] 0.0, 128
      %922 = vxpose.xlu0.b32.cont [8/16] 0.0, 128
      %923 = vxpose.xlu0.b32.cont [9/16] 0.0, 128
      %924 = vxpose.xlu0.b32.cont [10/16] 0.0, 128
      %925 = vxpose.xlu0.b32.cont [11/16] 0.0, 128
      %926 = vxpose.xlu0.b32.cont [12/16] 0.0, 128
      %927 = vxpose.xlu0.b32.cont [13/16] 0.0, 128
      %928 = vxpose.xlu0.b32.cont [14/16] 0.0, 128
      %929 = vxpose.xlu0.b32.cont [15/16] 0.0, 128
      %930 = vxpose.xlu0.b32.end [16/16] 0.0, 128
      %v931 = vpop.trf.xlu0
      %v932 = vpop.trf.xlu0
      %v933 = vpop.trf.xlu0
      %v934 = vpop.trf.xlu0
      %v935 = vpop.trf.xlu0
      %v936 = vpop.trf.xlu0
      %v937 = vpop.trf.xlu0
      %v938 = vpop.trf.xlu0
      %v939 = vpop.trf.xlu0
      %v940 = vpop.trf.xlu0
      %v941 = vpop.trf.xlu0
      %v942 = vpop.trf.xlu0
      %v943 = vpop.trf.xlu0
      %v944 = vpop.trf.xlu0
      %v945 = vpop.trf.xlu0
      %v946 = vpop.trf.xlu0
      %949 = vrot.lane.b32.xlu0 %v931, 4
      %v950 = vpop.permute.xlu0 %949
      %951 = vrot.lane.b32.xlu0 %v932, 4
      %v952 = vpop.permute.xlu0 %951
      %s955 = scalar_lea.vmem [#allocation2], 48
      %956 = vst.msk [vmem:[%s955 + $0x1] sm:$0xff] %vm905, %v950
      %957 = vst.msk [vmem:[%s955 + $0x9] sm:$0xff] %vm905, %v952
      %v958 = vrot.slane %v739, 2
      %v959 = vrot.slane %v771, 1
      %v960 = vsel %vm856, %v959, %v958
      %v961 = vsel %vm859, %v803, %v960
      %v962 = vrot.slane %v835, 7
      %v963 = vsel %vm862, %v962, %v961
      %965 = vxpose.xlu0.b32.start [1/16] %v963, 128
      %966 = vxpose.xlu0.b32.cont [2/16] 0.0, 128
      %967 = vxpose.xlu0.b32.cont [3/16] 0.0, 128
      %968 = vxpose.xlu0.b32.cont [4/16] 0.0, 128
      %969 = vxpose.xlu0.b32.cont [5/16] 0.0, 128
      %970 = vxpose.xlu0.b32.cont [6/16] 0.0, 128
      %971 = vxpose.xlu0.b32.cont [7/16] 0.0, 128
      %972 = vxpose.xlu0.b32.cont [8/16] 0.0, 128
      %973 = vxpose.xlu0.b32.cont [9/16] 0.0, 128
      %974 = vxpose.xlu0.b32.cont [10/16] 0.0, 128
      %975 = vxpose.xlu0.b32.cont [11/16] 0.0, 128
      %976 = vxpose.xlu0.b32.cont [12/16] 0.0, 128
      %977 = vxpose.xlu0.b32.cont [13/16] 0.0, 128
      %978 = vxpose.xlu0.b32.cont [14/16] 0.0, 128
      %979 = vxpose.xlu0.b32.cont [15/16] 0.0, 128
      %980 = vxpose.xlu0.b32.end [16/16] 0.0, 128
      %v981 = vpop.trf.xlu0
      %v982 = vpop.trf.xlu0
      %v983 = vpop.trf.xlu0
      %v984 = vpop.trf.xlu0
      %v985 = vpop.trf.xlu0
      %v986 = vpop.trf.xlu0
      %v987 = vpop.trf.xlu0
      %v988 = vpop.trf.xlu0
      %v989 = vpop.trf.xlu0
      %v990 = vpop.trf.xlu0
      %v991 = vpop.trf.xlu0
      %v992 = vpop.trf.xlu0
      %v993 = vpop.trf.xlu0
      %v994 = vpop.trf.xlu0
      %v995 = vpop.trf.xlu0
      %v996 = vpop.trf.xlu0
      %999 = vrot.lane.b32.xlu0 %v981, 4
      %v1000 = vpop.permute.xlu0 %999
      %1001 = vrot.lane.b32.xlu0 %v982, 4
      %v1002 = vpop.permute.xlu0 %1001
      %s1005 = scalar_lea.vmem [#allocation2], 72
      %1006 = vst.msk [vmem:[%s1005 + $0x1] sm:$0xff] %vm905, %v1000
      %1007 = vst.msk [vmem:[%s1005 + $0x9] sm:$0xff] %vm905, %v1002
      %v1008 = vrot.slane %v739, 3
      %v1009 = vrot.slane %v771, 2
      %v1010 = vsel %vm856, %v1009, %v1008
      %v1011 = vrot.slane %v803, 1
      %v1012 = vsel %vm859, %v1011, %v1010
      %v1013 = vsel %vm862, %v835, %v1012
      %1015 = vxpose.xlu0.b32.start [1/16] %v1013, 128
      %1016 = vxpose.xlu0.b32.cont [2/16] 0.0, 128
      %1017 = vxpose.xlu0.b32.cont [3/16] 0.0, 128
      %1018 = vxpose.xlu0.b32.cont [4/16] 0.0, 128
      %1019 = vxpose.xlu0.b32.cont [5/16] 0.0, 128
      %1020 = vxpose.xlu0.b32.cont [6/16] 0.0, 128
      %1021 = vxpose.xlu0.b32.cont [7/16] 0.0, 128
      %1022 = vxpose.xlu0.b32.cont [8/16] 0.0, 128
      %1023 = vxpose.xlu0.b32.cont [9/16] 0.0, 128
      %1024 = vxpose.xlu0.b32.cont [10/16] 0.0, 128
      %1025 = vxpose.xlu0.b32.cont [11/16] 0.0, 128
      %1026 = vxpose.xlu0.b32.cont [12/16] 0.0, 128
      %1027 = vxpose.xlu0.b32.cont [13/16] 0.0, 128
      %1028 = vxpose.xlu0.b32.cont [14/16] 0.0, 128
      %1029 = vxpose.xlu0.b32.cont [15/16] 0.0, 128
      %1030 = vxpose.xlu0.b32.end [16/16] 0.0, 128
      %v1031 = vpop.trf.xlu0
      %v1032 = vpop.trf.xlu0
      %v1033 = vpop.trf.xlu0
      %v1034 = vpop.trf.xlu0
      %v1035 = vpop.trf.xlu0
      %v1036 = vpop.trf.xlu0
      %v1037 = vpop.trf.xlu0
      %v1038 = vpop.trf.xlu0
      %v1039 = vpop.trf.xlu0
      %v1040 = vpop.trf.xlu0
      %v1041 = vpop.trf.xlu0
      %v1042 = vpop.trf.xlu0
      %v1043 = vpop.trf.xlu0
      %v1044 = vpop.trf.xlu0
      %v1045 = vpop.trf.xlu0
      %v1046 = vpop.trf.xlu0
      %1049 = vrot.lane.b32.xlu0 %v1031, 4
      %v1050 = vpop.permute.xlu0 %1049
      %1051 = vrot.lane.b32.xlu0 %v1032, 4
      %v1052 = vpop.permute.xlu0 %1051
      %s1055 = scalar_lea.vmem [#allocation2], 96
      %1056 = vst.msk [vmem:[%s1055 + $0x1] sm:$0xff] %vm905, %v1050
      %1057 = vst.msk [vmem:[%s1055 + $0x9] sm:$0xff] %vm905, %v1052
      %v1058 = vrot.slane %v739, 4
      %v1059 = vrot.slane %v771, 3
      %v1060 = vsel %vm856, %v1059, %v1058
      %v1061 = vrot.slane %v803, 2
      %v1062 = vsel %vm859, %v1061, %v1060
      %v1063 = vrot.slane %v835, 1
      %v1064 = vsel %vm862, %v1063, %v1062
      %1066 = vxpose.xlu0.b32.start [1/16] %v1064, 128
      %1067 = vxpose.xlu0.b32.cont [2/16] 0.0, 128
      %1068 = vxpose.xlu0.b32.cont [3/16] 0.0, 128
      %1069 = vxpose.xlu0.b32.cont [4/16] 0.0, 128
      %1070 = vxpose.xlu0.b32.cont [5/16] 0.0, 128
      %1071 = vxpose.xlu0.b32.cont [6/16] 0.0, 128
      %1072 = vxpose.xlu0.b32.cont [7/16] 0.0, 128
      %1073 = vxpose.xlu0.b32.cont [8/16] 0.0, 128
      %1074 = vxpose.xlu0.b32.cont [9/16] 0.0, 128
      %1075 = vxpose.xlu0.b32.cont [10/16] 0.0, 128
      %1076 = vxpose.xlu0.b32.cont [11/16] 0.0, 128
      %1077 = vxpose.xlu0.b32.cont [12/16] 0.0, 128
      %1078 = vxpose.xlu0.b32.cont [13/16] 0.0, 128
      %1079 = vxpose.xlu0.b32.cont [14/16] 0.0, 128
      %1080 = vxpose.xlu0.b32.cont [15/16] 0.0, 128
      %1081 = vxpose.xlu0.b32.end [16/16] 0.0, 128
      %v1082 = vpop.trf.xlu0
      %v1083 = vpop.trf.xlu0
      %v1084 = vpop.trf.xlu0
      %v1085 = vpop.trf.xlu0
      %v1086 = vpop.trf.xlu0
      %v1087 = vpop.trf.xlu0
      %v1088 = vpop.trf.xlu0
      %v1089 = vpop.trf.xlu0
      %v1090 = vpop.trf.xlu0
      %v1091 = vpop.trf.xlu0
      %v1092 = vpop.trf.xlu0
      %v1093 = vpop.trf.xlu0
      %v1094 = vpop.trf.xlu0
      %v1095 = vpop.trf.xlu0
      %v1096 = vpop.trf.xlu0
      %v1097 = vpop.trf.xlu0
      %1100 = vrot.lane.b32.xlu0 %v1082, 4
      %v1101 = vpop.permute.xlu0 %1100
      %1102 = vrot.lane.b32.xlu0 %v1083, 4
      %v1103 = vpop.permute.xlu0 %1102
      %s1106 = scalar_lea.vmem [#allocation2], 120
      %1107 = vst.msk [vmem:[%s1106 + $0x1] sm:$0xff] %vm905, %v1101
      %1108 = vst.msk [vmem:[%s1106 + $0x9] sm:$0xff] %vm905, %v1103
      %v1109 = vrot.slane %v739, 5
      %v1110 = vrot.slane %v771, 4
      %v1111 = vsel %vm856, %v1110, %v1109
      %v1112 = vrot.slane %v803, 3
      %v1113 = vsel %vm859, %v1112, %v1111
      %v1114 = vrot.slane %v835, 2
      %v1115 = vsel %vm862, %v1114, %v1113
      %1117 = vxpose.xlu0.b32.start [1/16] %v1115, 128
      %1118 = vxpose.xlu0.b32.cont [2/16] 0.0, 128
      %1119 = vxpose.xlu0.b32.cont [3/16] 0.0, 128
      %1120 = vxpose.xlu0.b32.cont [4/16] 0.0, 128
      %1121 = vxpose.xlu0.b32.cont [5/16] 0.0, 128
      %1122 = vxpose.xlu0.b32.cont [6/16] 0.0, 128
      %1123 = vxpose.xlu0.b32.cont [7/16] 0.0, 128
      %1124 = vxpose.xlu0.b32.cont [8/16] 0.0, 128
      %1125 = vxpose.xlu0.b32.cont [9/16] 0.0, 128
      %1126 = vxpose.xlu0.b32.cont [10/16] 0.0, 128
      %1127 = vxpose.xlu0.b32.cont [11/16] 0.0, 128
      %1128 = vxpose.xlu0.b32.cont [12/16] 0.0, 128
      %1129 = vxpose.xlu0.b32.cont [13/16] 0.0, 128
      %1130 = vxpose.xlu0.b32.cont [14/16] 0.0, 128
      %1131 = vxpose.xlu0.b32.cont [15/16] 0.0, 128
      %1132 = vxpose.xlu0.b32.end [16/16] 0.0, 128
      %v1133 = vpop.trf.xlu0
      %v1134 = vpop.trf.xlu0
      %v1135 = vpop.trf.xlu0
      %v1136 = vpop.trf.xlu0
      %v1137 = vpop.trf.xlu0
      %v1138 = vpop.trf.xlu0
      %v1139 = vpop.trf.xlu0
      %v1140 = vpop.trf.xlu0
      %v1141 = vpop.trf.xlu0
      %v1142 = vpop.trf.xlu0
      %v1143 = vpop.trf.xlu0
      %v1144 = vpop.trf.xlu0
      %v1145 = vpop.trf.xlu0
      %v1146 = vpop.trf.xlu0
      %v1147 = vpop.trf.xlu0
      %v1148 = vpop.trf.xlu0
      %1151 = vrot.lane.b32.xlu0 %v1133, 4
      %v1152 = vpop.permute.xlu0 %1151
      %1153 = vrot.lane.b32.xlu0 %v1134, 4
      %v1154 = vpop.permute.xlu0 %1153
      %s1157 = scalar_lea.vmem [#allocation2], 144
      %1158 = vst.msk [vmem:[%s1157 + $0x1] sm:$0xff] %vm905, %v1152
      %1159 = vst.msk [vmem:[%s1157 + $0x9] sm:$0xff] %vm905, %v1154
      %v1160 = vrot.slane %v739, 6
      %v1161 = vrot.slane %v771, 5
      %v1162 = vsel %vm856, %v1161, %v1160
      %v1163 = vrot.slane %v803, 4
      %v1164 = vsel %vm859, %v1163, %v1162
      %v1165 = vrot.slane %v835, 3
      %v1166 = vsel %vm862, %v1165, %v1164
      %1168 = vxpose.xlu0.b32.start [1/16] %v1166, 128
      %1169 = vxpose.xlu0.b32.cont [2/16] 0.0, 128
      %1170 = vxpose.xlu0.b32.cont [3/16] 0.0, 128
      %1171 = vxpose.xlu0.b32.cont [4/16] 0.0, 128
      %1172 = vxpose.xlu0.b32.cont [5/16] 0.0, 128
      %1173 = vxpose.xlu0.b32.cont [6/16] 0.0, 128
      %1174 = vxpose.xlu0.b32.cont [7/16] 0.0, 128
      %1175 = vxpose.xlu0.b32.cont [8/16] 0.0, 128
      %1176 = vxpose.xlu0.b32.cont [9/16] 0.0, 128
      %1177 = vxpose.xlu0.b32.cont [10/16] 0.0, 128
      %1178 = vxpose.xlu0.b32.cont [11/16] 0.0, 128
      %1179 = vxpose.xlu0.b32.cont [12/16] 0.0, 128
      %1180 = vxpose.xlu0.b32.cont [13/16] 0.0, 128
      %1181 = vxpose.xlu0.b32.cont [14/16] 0.0, 128
      %1182 = vxpose.xlu0.b32.cont [15/16] 0.0, 128
      %1183 = vxpose.xlu0.b32.end [16/16] 0.0, 128
      %v1184 = vpop.trf.xlu0
      %v1185 = vpop.trf.xlu0
      %v1186 = vpop.trf.xlu0
      %v1187 = vpop.trf.xlu0
      %v1188 = vpop.trf.xlu0
      %v1189 = vpop.trf.xlu0
      %v1190 = vpop.trf.xlu0
      %v1191 = vpop.trf.xlu0
      %v1192 = vpop.trf.xlu0
      %v1193 = vpop.trf.xlu0
      %v1194 = vpop.trf.xlu0
      %v1195 = vpop.trf.xlu0
      %v1196 = vpop.trf.xlu0
      %v1197 = vpop.trf.xlu0
      %v1198 = vpop.trf.xlu0
      %v1199 = vpop.trf.xlu0
      %1202 = vrot.lane.b32.xlu0 %v1184, 4
      %v1203 = vpop.permute.xlu0 %1202
      %1204 = vrot.lane.b32.xlu0 %v1185, 4
      %v1205 = vpop.permute.xlu0 %1204
      %s1208 = scalar_lea.vmem [#allocation2], 168
      %1209 = vst.msk [vmem:[%s1208 + $0x1] sm:$0xff] %vm905, %v1203
      %1210 = vst.msk [vmem:[%s1208 + $0x9] sm:$0xff] %vm905, %v1205
      %v1211 = vrot.slane %v739, 7
      %v1212 = vrot.slane %v771, 6
      %v1213 = vsel %vm856, %v1212, %v1211
      %v1214 = vrot.slane %v803, 5
      %v1215 = vsel %vm859, %v1214, %v1213
      %v1216 = vrot.slane %v835, 4
      %v1217 = vsel %vm862, %v1216, %v1215
      %1219 = vxpose.xlu0.b32.start [1/16] %v1217, 128
      %1220 = vxpose.xlu0.b32.cont [2/16] 0.0, 128
      %1221 = vxpose.xlu0.b32.cont [3/16] 0.0, 128
      %1222 = vxpose.xlu0.b32.cont [4/16] 0.0, 128
      %1223 = vxpose.xlu0.b32.cont [5/16] 0.0, 128
      %1224 = vxpose.xlu0.b32.cont [6/16] 0.0, 128
      %1225 = vxpose.xlu0.b32.cont [7/16] 0.0, 128
      %1226 = vxpose.xlu0.b32.cont [8/16] 0.0, 128
      %1227 = vxpose.xlu0.b32.cont [9/16] 0.0, 128
      %1228 = vxpose.xlu0.b32.cont [10/16] 0.0, 128
      %1229 = vxpose.xlu0.b32.cont [11/16] 0.0, 128
      %1230 = vxpose.xlu0.b32.cont [12/16] 0.0, 128
      %1231 = vxpose.xlu0.b32.cont [13/16] 0.0, 128
      %1232 = vxpose.xlu0.b32.cont [14/16] 0.0, 128
      %1233 = vxpose.xlu0.b32.cont [15/16] 0.0, 128
      %1234 = vxpose.xlu0.b32.end [16/16] 0.0, 128
      %v1235 = vpop.trf.xlu0
      %v1236 = vpop.trf.xlu0
      %v1237 = vpop.trf.xlu0
      %v1238 = vpop.trf.xlu0
      %v1239 = vpop.trf.xlu0
      %v1240 = vpop.trf.xlu0
      %v1241 = vpop.trf.xlu0
      %v1242 = vpop.trf.xlu0
      %v1243 = vpop.trf.xlu0
      %v1244 = vpop.trf.xlu0
      %v1245 = vpop.trf.xlu0
      %v1246 = vpop.trf.xlu0
      %v1247 = vpop.trf.xlu0
      %v1248 = vpop.trf.xlu0
      %v1249 = vpop.trf.xlu0
      %v1250 = vpop.trf.xlu0
      %1253 = vrot.lane.b32.xlu0 %v1235, 4
      %v1254 = vpop.permute.xlu0 %1253
      %1255 = vrot.lane.b32.xlu0 %v1236, 4
      %v1256 = vpop.permute.xlu0 %1255
      %s1259 = scalar_lea.vmem [#allocation2], 192
      %1260 = vst.msk [vmem:[%s1259 + $0x1] sm:$0xff] %vm905, %v1254
      %1261 = vst.msk [vmem:[%s1259 + $0x9] sm:$0xff] %vm905, %v1256
      %v1266 = vrot.slane %v772, 7
      %v1267 = vsel %vm856, %v1266, %v740
      %v1268 = vrot.slane %v804, 6
      %v1269 = vsel %vm859, %v1268, %v1267
      %v1270 = vrot.slane %v836, 5
      %v1271 = vsel %vm862, %v1270, %v1269
      %1273 = vxpose.xlu0.b32.start [1/16] %v1271, 128
      %1274 = vxpose.xlu0.b32.cont [2/16] 0.0, 128
      %1275 = vxpose.xlu0.b32.cont [3/16] 0.0, 128
      %1276 = vxpose.xlu0.b32.cont [4/16] 0.0, 128
      %1277 = vxpose.xlu0.b32.cont [5/16] 0.0, 128
      %1278 = vxpose.xlu0.b32.cont [6/16] 0.0, 128
      %1279 = vxpose.xlu0.b32.cont [7/16] 0.0, 128
      %1280 = vxpose.xlu0.b32.cont [8/16] 0.0, 128
      %1281 = vxpose.xlu0.b32.cont [9/16] 0.0, 128
      %1282 = vxpose.xlu0.b32.cont [10/16] 0.0, 128
      %1283 = vxpose.xlu0.b32.cont [11/16] 0.0, 128
      %1284 = vxpose.xlu0.b32.cont [12/16] 0.0, 128
      %1285 = vxpose.xlu0.b32.cont [13/16] 0.0, 128
      %1286 = vxpose.xlu0.b32.cont [14/16] 0.0, 128
      %1287 = vxpose.xlu0.b32.cont [15/16] 0.0, 128
      %1288 = vxpose.xlu0.b32.end [16/16] 0.0, 128
      %v1289 = vpop.trf.xlu0
      %v1290 = vpop.trf.xlu0
      %v1291 = vpop.trf.xlu0
      %v1292 = vpop.trf.xlu0
      %v1293 = vpop.trf.xlu0
      %v1294 = vpop.trf.xlu0
      %v1295 = vpop.trf.xlu0
      %v1296 = vpop.trf.xlu0
      %v1297 = vpop.trf.xlu0
      %v1298 = vpop.trf.xlu0
      %v1299 = vpop.trf.xlu0
      %v1300 = vpop.trf.xlu0
      %v1301 = vpop.trf.xlu0
      %v1302 = vpop.trf.xlu0
      %v1303 = vpop.trf.xlu0
      %v1304 = vpop.trf.xlu0
      %1307 = vrot.lane.b32.xlu0 %v1289, 4
      %v1308 = vpop.permute.xlu0 %1307
      %1309 = vrot.lane.b32.xlu0 %v1290, 4
      %v1310 = vpop.permute.xlu0 %1309
      %s1313 = scalar_lea.vmem [#allocation2], 216
      %1314 = vst.msk [vmem:[%s1313 + $0x1] sm:$0xff] %vm905, %v1308
      %1315 = vst.msk [vmem:[%s1313 + $0x9] sm:$0xff] %vm905, %v1310
      %v1316 = vrot.slane %v740, 1
      %v1317 = vsel %vm856, %v772, %v1316
      %v1318 = vrot.slane %v804, 7
      %v1319 = vsel %vm859, %v1318, %v1317
      %v1320 = vrot.slane %v836, 6
      %v1321 = vsel %vm862, %v1320, %v1319
      %1323 = vxpose.xlu0.b32.start [1/16] %v1321, 128
      %1324 = vxpose.xlu0.b32.cont [2/16] 0.0, 128
      %1325 = vxpose.xlu0.b32.cont [3/16] 0.0, 128
      %1326 = vxpose.xlu0.b32.cont [4/16] 0.0, 128
      %1327 = vxpose.xlu0.b32.cont [5/16] 0.0, 128
      %1328 = vxpose.xlu0.b32.cont [6/16] 0.0, 128
      %1329 = vxpose.xlu0.b32.cont [7/16] 0.0, 128
      %1330 = vxpose.xlu0.b32.cont [8/16] 0.0, 128
      %1331 = vxpose.xlu0.b32.cont [9/16] 0.0, 128
      %1332 = vxpose.xlu0.b32.cont [10/16] 0.0, 128
      %1333 = vxpose.xlu0.b32.cont [11/16] 0.0, 128
      %1334 = vxpose.xlu0.b32.cont [12/16] 0.0, 128
      %1335 = vxpose.xlu0.b32.cont [13/16] 0.0, 128
      %1336 = vxpose.xlu0.b32.cont [14/16] 0.0, 128
      %1337 = vxpose.xlu0.b32.cont [15/16] 0.0, 128
      %1338 = vxpose.xlu0.b32.end [16/16] 0.0, 128
      %v1339 = vpop.trf.xlu0
      %v1340 = vpop.trf.xlu0
      %v1341 = vpop.trf.xlu0
      %v1342 = vpop.trf.xlu0
      %v1343 = vpop.trf.xlu0
      %v1344 = vpop.trf.xlu0
      %v1345 = vpop.trf.xlu0
      %v1346 = vpop.trf.xlu0
      %v1347 = vpop.trf.xlu0
      %v1348 = vpop.trf.xlu0
      %v1349 = vpop.trf.xlu0
      %v1350 = vpop.trf.xlu0
      %v1351 = vpop.trf.xlu0
      %v1352 = vpop.trf.xlu0
      %v1353 = vpop.trf.xlu0
      %v1354 = vpop.trf.xlu0
      %1357 = vrot.lane.b32.xlu0 %v1339, 4
      %v1358 = vpop.permute.xlu0 %1357
      %1359 = vrot.lane.b32.xlu0 %v1340, 4
      %v1360 = vpop.permute.xlu0 %1359
      %s1363 = scalar_lea.vmem [#allocation2], 240
      %1364 = vst.msk [vmem:[%s1363 + $0x1] sm:$0xff] %vm905, %v1358
      %1365 = vst.msk [vmem:[%s1363 + $0x9] sm:$0xff] %vm905, %v1360
      %v1366 = vrot.slane %v740, 2
      %v1367 = vrot.slane %v772, 1
      %v1368 = vsel %vm856, %v1367, %v1366
      %v1369 = vsel %vm859, %v804, %v1368
      %v1370 = vrot.slane %v836, 7
      %v1371 = vsel %vm862, %v1370, %v1369
      %1373 = vxpose.xlu0.b32.start [1/16] %v1371, 128
      %1374 = vxpose.xlu0.b32.cont [2/16] 0.0, 128
      %1375 = vxpose.xlu0.b32.cont [3/16] 0.0, 128
      %1376 = vxpose.xlu0.b32.cont [4/16] 0.0, 128
      %1377 = vxpose.xlu0.b32.cont [5/16] 0.0, 128
      %1378 = vxpose.xlu0.b32.cont [6/16] 0.0, 128
      %1379 = vxpose.xlu0.b32.cont [7/16] 0.0, 128
      %1380 = vxpose.xlu0.b32.cont [8/16] 0.0, 128
      %1381 = vxpose.xlu0.b32.cont [9/16] 0.0, 128
      %1382 = vxpose.xlu0.b32.cont [10/16] 0.0, 128
      %1383 = vxpose.xlu0.b32.cont [11/16] 0.0, 128
      %1384 = vxpose.xlu0.b32.cont [12/16] 0.0, 128
      %1385 = vxpose.xlu0.b32.cont [13/16] 0.0, 128
      %1386 = vxpose.xlu0.b32.cont [14/16] 0.0, 128
      %1387 = vxpose.xlu0.b32.cont [15/16] 0.0, 128
      %1388 = vxpose.xlu0.b32.end [16/16] 0.0, 128
      %v1389 = vpop.trf.xlu0
      %v1390 = vpop.trf.xlu0
      %v1391 = vpop.trf.xlu0
      %v1392 = vpop.trf.xlu0
      %v1393 = vpop.trf.xlu0
      %v1394 = vpop.trf.xlu0
      %v1395 = vpop.trf.xlu0
      %v1396 = vpop.trf.xlu0
      %v1397 = vpop.trf.xlu0
      %v1398 = vpop.trf.xlu0
      %v1399 = vpop.trf.xlu0
      %v1400 = vpop.trf.xlu0
      %v1401 = vpop.trf.xlu0
      %v1402 = vpop.trf.xlu0
      %v1403 = vpop.trf.xlu0
      %v1404 = vpop.trf.xlu0
      %1407 = vrot.lane.b32.xlu0 %v1389, 4
      %v1408 = vpop.permute.xlu0 %1407
      %1409 = vrot.lane.b32.xlu0 %v1390, 4
      %v1410 = vpop.permute.xlu0 %1409
      %s1413 = scalar_lea.vmem [#allocation2], 264
      %1414 = vst.msk [vmem:[%s1413 + $0x1] sm:$0xff] %vm905, %v1408
      %1415 = vst.msk [vmem:[%s1413 + $0x9] sm:$0xff] %vm905, %v1410
      %v1416 = vrot.slane %v740, 3
      %v1417 = vrot.slane %v772, 2
      %v1418 = vsel %vm856, %v1417, %v1416
      %v1419 = vrot.slane %v804, 1
      %v1420 = vsel %vm859, %v1419, %v1418
      %v1421 = vsel %vm862, %v836, %v1420
      %1423 = vxpose.xlu0.b32.start [1/16] %v1421, 128
      %1424 = vxpose.xlu0.b32.cont [2/16] 0.0, 128
      %1425 = vxpose.xlu0.b32.cont [3/16] 0.0, 128
      %1426 = vxpose.xlu0.b32.cont [4/16] 0.0, 128
      %1427 = vxpose.xlu0.b32.cont [5/16] 0.0, 128
      %1428 = vxpose.xlu0.b32.cont [6/16] 0.0, 128
      %1429 = vxpose.xlu0.b32.cont [7/16] 0.0, 128
      %1430 = vxpose.xlu0.b32.cont [8/16] 0.0, 128
      %1431 = vxpose.xlu0.b32.cont [9/16] 0.0, 128
      %1432 = vxpose.xlu0.b32.cont [10/16] 0.0, 128
      %1433 = vxpose.xlu0.b32.cont [11/16] 0.0, 128
      %1434 = vxpose.xlu0.b32.cont [12/16] 0.0, 128
      %1435 = vxpose.xlu0.b32.cont [13/16] 0.0, 128
      %1436 = vxpose.xlu0.b32.cont [14/16] 0.0, 128
      %1437 = vxpose.xlu0.b32.cont [15/16] 0.0, 128
      %1438 = vxpose.xlu0.b32.end [16/16] 0.0, 128
      %v1439 = vpop.trf.xlu0
      %v1440 = vpop.trf.xlu0
      %v1441 = vpop.trf.xlu0
      %v1442 = vpop.trf.xlu0
      %v1443 = vpop.trf.xlu0
      %v1444 = vpop.trf.xlu0
      %v1445 = vpop.trf.xlu0
      %v1446 = vpop.trf.xlu0
      %v1447 = vpop.trf.xlu0
      %v1448 = vpop.trf.xlu0
      %v1449 = vpop.trf.xlu0
      %v1450 = vpop.trf.xlu0
      %v1451 = vpop.trf.xlu0
      %v1452 = vpop.trf.xlu0
      %v1453 = vpop.trf.xlu0
      %v1454 = vpop.trf.xlu0
      %1457 = vrot.lane.b32.xlu0 %v1439, 4
      %v1458 = vpop.permute.xlu0 %1457
      %1459 = vrot.lane.b32.xlu0 %v1440, 4
      %v1460 = vpop.permute.xlu0 %1459
      %s1463 = scalar_lea.vmem [#allocation2], 288
      %1464 = vst.msk [vmem:[%s1463 + $0x1] sm:$0xff] %vm905, %v1458
      %1465 = vst.msk [vmem:[%s1463 + $0x9] sm:$0xff] %vm905, %v1460
      %v1466 = vrot.slane %v740, 4
      %v1467 = vrot.slane %v772, 3
      %v1468 = vsel %vm856, %v1467, %v1466
      %v1469 = vrot.slane %v804, 2
      %v1470 = vsel %vm859, %v1469, %v1468
      %v1471 = vrot.slane %v836, 1
      %v1472 = vsel %vm862, %v1471, %v1470
      %1474 = vxpose.xlu0.b32.start [1/16] %v1472, 128
      %1475 = vxpose.xlu0.b32.cont [2/16] 0.0, 128
      %1476 = vxpose.xlu0.b32.cont [3/16] 0.0, 128
      %1477 = vxpose.xlu0.b32.cont [4/16] 0.0, 128
      %1478 = vxpose.xlu0.b32.cont [5/16] 0.0, 128
      %1479 = vxpose.xlu0.b32.cont [6/16] 0.0, 128
      %1480 = vxpose.xlu0.b32.cont [7/16] 0.0, 128
      %1481 = vxpose.xlu0.b32.cont [8/16] 0.0, 128
      %1482 = vxpose.xlu0.b32.cont [9/16] 0.0, 128
      %1483 = vxpose.xlu0.b32.cont [10/16] 0.0, 128
      %1484 = vxpose.xlu0.b32.cont [11/16] 0.0, 128
      %1485 = vxpose.xlu0.b32.cont [12/16] 0.0, 128
      %1486 = vxpose.xlu0.b32.cont [13/16] 0.0, 128
      %1487 = vxpose.xlu0.b32.cont [14/16] 0.0, 128
      %1488 = vxpose.xlu0.b32.cont [15/16] 0.0, 128
      %1489 = vxpose.xlu0.b32.end [16/16] 0.0, 128
      %v1490 = vpop.trf.xlu0
      %v1491 = vpop.trf.xlu0
      %v1492 = vpop.trf.xlu0
      %v1493 = vpop.trf.xlu0
      %v1494 = vpop.trf.xlu0
      %v1495 = vpop.trf.xlu0
      %v1496 = vpop.trf.xlu0
      %v1497 = vpop.trf.xlu0
      %v1498 = vpop.trf.xlu0
      %v1499 = vpop.trf.xlu0
      %v1500 = vpop.trf.xlu0
      %v1501 = vpop.trf.xlu0
      %v1502 = vpop.trf.xlu0
      %v1503 = vpop.trf.xlu0
      %v1504 = vpop.trf.xlu0
      %v1505 = vpop.trf.xlu0
      %1508 = vrot.lane.b32.xlu0 %v1490, 4
      %v1509 = vpop.permute.xlu0 %1508
      %1510 = vrot.lane.b32.xlu0 %v1491, 4
      %v1511 = vpop.permute.xlu0 %1510
      %s1514 = scalar_lea.vmem [#allocation2], 312
      %1515 = vst.msk [vmem:[%s1514 + $0x1] sm:$0xff] %vm905, %v1509
      %1516 = vst.msk [vmem:[%s1514 + $0x9] sm:$0xff] %vm905, %v1511
      %v1517 = vrot.slane %v740, 5
      %v1518 = vrot.slane %v772, 4
      %v1519 = vsel %vm856, %v1518, %v1517
      %v1520 = vrot.slane %v804, 3
      %v1521 = vsel %vm859, %v1520, %v1519
      %v1522 = vrot.slane %v836, 2
      %v1523 = vsel %vm862, %v1522, %v1521
      %1525 = vxpose.xlu0.b32.start [1/16] %v1523, 128
      %1526 = vxpose.xlu0.b32.cont [2/16] 0.0, 128
      %1527 = vxpose.xlu0.b32.cont [3/16] 0.0, 128
      %1528 = vxpose.xlu0.b32.cont [4/16] 0.0, 128
      %1529 = vxpose.xlu0.b32.cont [5/16] 0.0, 128
      %1530 = vxpose.xlu0.b32.cont [6/16] 0.0, 128
      %1531 = vxpose.xlu0.b32.cont [7/16] 0.0, 128
      %1532 = vxpose.xlu0.b32.cont [8/16] 0.0, 128
      %1533 = vxpose.xlu0.b32.cont [9/16] 0.0, 128
      %1534 = vxpose.xlu0.b32.cont [10/16] 0.0, 128
      %1535 = vxpose.xlu0.b32.cont [11/16] 0.0, 128
      %1536 = vxpose.xlu0.b32.cont [12/16] 0.0, 128
      %1537 = vxpose.xlu0.b32.cont [13/16] 0.0, 128
      %1538 = vxpose.xlu0.b32.cont [14/16] 0.0, 128
      %1539 = vxpose.xlu0.b32.cont [15/16] 0.0, 128
      %1540 = vxpose.xlu0.b32.end [16/16] 0.0, 128
      %v1541 = vpop.trf.xlu0
      %v1542 = vpop.trf.xlu0
      %v1543 = vpop.trf.xlu0
      %v1544 = vpop.trf.xlu0
      %v1545 = vpop.trf.xlu0
      %v1546 = vpop.trf.xlu0
      %v1547 = vpop.trf.xlu0
      %v1548 = vpop.trf.xlu0
      %v1549 = vpop.trf.xlu0
      %v1550 = vpop.trf.xlu0
      %v1551 = vpop.trf.xlu0
      %v1552 = vpop.trf.xlu0
      %v1553 = vpop.trf.xlu0
      %v1554 = vpop.trf.xlu0
      %v1555 = vpop.trf.xlu0
      %v1556 = vpop.trf.xlu0
      %1559 = vrot.lane.b32.xlu0 %v1541, 4
      %v1560 = vpop.permute.xlu0 %1559
      %1561 = vrot.lane.b32.xlu0 %v1542, 4
      %v1562 = vpop.permute.xlu0 %1561
      %s1565 = scalar_lea.vmem [#allocation2], 336
      %1566 = vst.msk [vmem:[%s1565 + $0x1] sm:$0xff] %vm905, %v1560
      %1567 = vst.msk [vmem:[%s1565 + $0x9] sm:$0xff] %vm905, %v1562
      %v1568 = vrot.slane %v740, 6
      %v1569 = vrot.slane %v772, 5
      %v1570 = vsel %vm856, %v1569, %v1568
      %v1571 = vrot.slane %v804, 4
      %v1572 = vsel %vm859, %v1571, %v1570
      %v1573 = vrot.slane %v836, 3
      %v1574 = vsel %vm862, %v1573, %v1572
      %1576 = vxpose.xlu0.b32.start [1/16] %v1574, 128
      %1577 = vxpose.xlu0.b32.cont [2/16] 0.0, 128
      %1578 = vxpose.xlu0.b32.cont [3/16] 0.0, 128
      %1579 = vxpose.xlu0.b32.cont [4/16] 0.0, 128
      %1580 = vxpose.xlu0.b32.cont [5/16] 0.0, 128
      %1581 = vxpose.xlu0.b32.cont [6/16] 0.0, 128
      %1582 = vxpose.xlu0.b32.cont [7/16] 0.0, 128
      %1583 = vxpose.xlu0.b32.cont [8/16] 0.0, 128
      %1584 = vxpose.xlu0.b32.cont [9/16] 0.0, 128
      %1585 = vxpose.xlu0.b32.cont [10/16] 0.0, 128
      %1586 = vxpose.xlu0.b32.cont [11/16] 0.0, 128
      %1587 = vxpose.xlu0.b32.cont [12/16] 0.0, 128
      %1588 = vxpose.xlu0.b32.cont [13/16] 0.0, 128
      %1589 = vxpose.xlu0.b32.cont [14/16] 0.0, 128
      %1590 = vxpose.xlu0.b32.cont [15/16] 0.0, 128
      %1591 = vxpose.xlu0.b32.end [16/16] 0.0, 128
      %v1592 = vpop.trf.xlu0
      %v1593 = vpop.trf.xlu0
      %v1594 = vpop.trf.xlu0
      %v1595 = vpop.trf.xlu0
      %v1596 = vpop.trf.xlu0
      %v1597 = vpop.trf.xlu0
      %v1598 = vpop.trf.xlu0
      %v1599 = vpop.trf.xlu0
      %v1600 = vpop.trf.xlu0
      %v1601 = vpop.trf.xlu0
      %v1602 = vpop.trf.xlu0
      %v1603 = vpop.trf.xlu0
      %v1604 = vpop.trf.xlu0
      %v1605 = vpop.trf.xlu0
      %v1606 = vpop.trf.xlu0
      %v1607 = vpop.trf.xlu0
      %1610 = vrot.lane.b32.xlu0 %v1592, 4
      %v1611 = vpop.permute.xlu0 %1610
      %1612 = vrot.lane.b32.xlu0 %v1593, 4
      %v1613 = vpop.permute.xlu0 %1612
      %s1616 = scalar_lea.vmem [#allocation2], 360
      %1617 = vst.msk [vmem:[%s1616 + $0x1] sm:$0xff] %vm905, %v1611
      %1618 = vst.msk [vmem:[%s1616 + $0x9] sm:$0xff] %vm905, %v1613
      %v1619 = vrot.slane %v740, 7
      %v1620 = vrot.slane %v772, 6
      %v1621 = vsel %vm856, %v1620, %v1619
      %v1622 = vrot.slane %v804, 5
      %v1623 = vsel %vm859, %v1622, %v1621
      %v1624 = vrot.slane %v836, 4
      %v1625 = vsel %vm862, %v1624, %v1623
      %1627 = vxpose.xlu0.b32.start [1/16] %v1625, 128
      %1628 = vxpose.xlu0.b32.cont [2/16] 0.0, 128
      %1629 = vxpose.xlu0.b32.cont [3/16] 0.0, 128
      %1630 = vxpose.xlu0.b32.cont [4/16] 0.0, 128
      %1631 = vxpose.xlu0.b32.cont [5/16] 0.0, 128
      %1632 = vxpose.xlu0.b32.cont [6/16] 0.0, 128
      %1633 = vxpose.xlu0.b32.cont [7/16] 0.0, 128
      %1634 = vxpose.xlu0.b32.cont [8/16] 0.0, 128
      %1635 = vxpose.xlu0.b32.cont [9/16] 0.0, 128
      %1636 = vxpose.xlu0.b32.cont [10/16] 0.0, 128
      %1637 = vxpose.xlu0.b32.cont [11/16] 0.0, 128
      %1638 = vxpose.xlu0.b32.cont [12/16] 0.0, 128
      %1639 = vxpose.xlu0.b32.cont [13/16] 0.0, 128
      %1640 = vxpose.xlu0.b32.cont [14/16] 0.0, 128
      %1641 = vxpose.xlu0.b32.cont [15/16] 0.0, 128
      %1642 = vxpose.xlu0.b32.end [16/16] 0.0, 128
      %v1643 = vpop.trf.xlu0
      %v1644 = vpop.trf.xlu0
      %v1645 = vpop.trf.xlu0
      %v1646 = vpop.trf.xlu0
      %v1647 = vpop.trf.xlu0
      %v1648 = vpop.trf.xlu0
      %v1649 = vpop.trf.xlu0
      %v1650 = vpop.trf.xlu0
      %v1651 = vpop.trf.xlu0
      %v1652 = vpop.trf.xlu0
      %v1653 = vpop.trf.xlu0
      %v1654 = vpop.trf.xlu0
      %v1655 = vpop.trf.xlu0
      %v1656 = vpop.trf.xlu0
      %v1657 = vpop.trf.xlu0
      %v1658 = vpop.trf.xlu0
      %1661 = vrot.lane.b32.xlu0 %v1643, 4
      %v1662 = vpop.permute.xlu0 %1661
      %1663 = vrot.lane.b32.xlu0 %v1644, 4
      %v1664 = vpop.permute.xlu0 %1663
      %s1667 = scalar_lea.vmem [#allocation2], 384
      %1668 = vst.msk [vmem:[%s1667 + $0x1] sm:$0xff] %vm905, %v1662
      %1669 = vst.msk [vmem:[%s1667 + $0x9] sm:$0xff] %vm905, %v1664
      %v1670 = vld [vmem:[#allocation2] sm:$0xff]
      %v1671 = vld [vmem:[#allocation2 + $0x8] sm:$0xff]
      %v1672 = vld [vmem:[#allocation2 + $0x18] sm:$0xff]
      %v1673 = vld [vmem:[#allocation2 + $0x20] sm:$0xff]
      %v1674 = vld [vmem:[#allocation2 + $0x30] sm:$0xff]
      %v1675 = vld [vmem:[#allocation2 + $0x38] sm:$0xff]
      %v1676 = vld [vmem:[#allocation2 + $0x48] sm:$0xff]
      %v1677 = vld [vmem:[#allocation2 + $0x50] sm:$0xff]
      %v1678 = vld [vmem:[#allocation2 + $0x60] sm:$0xff]
      %v1679 = vld [vmem:[#allocation2 + $0x68] sm:$0xff]
      %v1680 = vld [vmem:[#allocation2 + $0x78] sm:$0xff]
      %v1681 = vld [vmem:[#allocation2 + $0x80] sm:$0xff]
      %v1682 = vld [vmem:[#allocation2 + $0x90] sm:$0xff]
      %v1683 = vld [vmem:[#allocation2 + $0x98] sm:$0xff]
      %v1684 = vld [vmem:[#allocation2 + $0xa8] sm:$0xff]
      %v1685 = vld [vmem:[#allocation2 + $0xb0] sm:$0xff]
      %v1686 = vld [vmem:[#allocation2 + $0xc0] sm:$0xff]
      %v1687 = vld [vmem:[#allocation2 + $0xc8] sm:$0xff]
      %v1688 = vld [vmem:[#allocation2 + $0xd8] sm:$0xff]
      %v1689 = vld [vmem:[#allocation2 + $0xe0] sm:$0xff]
      %v1690 = vld [vmem:[#allocation2 + $0xf0] sm:$0xff]
      %v1691 = vld [vmem:[#allocation2 + $0xf8] sm:$0xff]
      %v1692 = vld [vmem:[#allocation2 + $0x108] sm:$0xff]
      %v1693 = vld [vmem:[#allocation2 + $0x110] sm:$0xff]
      %v1694 = vld [vmem:[#allocation2 + $0x120] sm:$0xff]
      %v1695 = vld [vmem:[#allocation2 + $0x128] sm:$0xff]
      %v1696 = vld [vmem:[#allocation2 + $0x138] sm:$0xff]
      %v1697 = vld [vmem:[#allocation2 + $0x140] sm:$0xff]
      %v1698 = vld [vmem:[#allocation2 + $0x150] sm:$0xff]
      %v1699 = vld [vmem:[#allocation2 + $0x158] sm:$0xff]
      %v1700 = vld [vmem:[#allocation2 + $0x168] sm:$0xff]
      %v1701 = vld [vmem:[#allocation2 + $0x170] sm:$0xff]
      %v1702 = vld [vmem:[%s4] sm:$0xff]
      %v1703 = vld [vmem:[#allocation2 + $0x1] sm:$0xff]
      %v1704 = vld [vmem:[#allocation2 + $0x9] sm:$0xff]
      %v1705 = vld [vmem:[#allocation2 + $0x19] sm:$0xff]
      %v1706 = vld [vmem:[#allocation2 + $0x21] sm:$0xff]
      %v1707 = vld [vmem:[#allocation2 + $0x31] sm:$0xff]
      %v1708 = vld [vmem:[#allocation2 + $0x39] sm:$0xff]
      %v1709 = vld [vmem:[#allocation2 + $0x49] sm:$0xff]
      %v1710 = vld [vmem:[#allocation2 + $0x51] sm:$0xff]
      %v1711 = vld [vmem:[#allocation2 + $0x61] sm:$0xff]
      %v1712 = vld [vmem:[#allocation2 + $0x69] sm:$0xff]
      %v1713 = vld [vmem:[#allocation2 + $0x79] sm:$0xff]
      %v1714 = vld [vmem:[#allocation2 + $0x81] sm:$0xff]
      %v1715 = vld [vmem:[#allocation2 + $0x91] sm:$0xff]
      %v1716 = vld [vmem:[#allocation2 + $0x99] sm:$0xff]
      %v1717 = vld [vmem:[#allocation2 + $0xa9] sm:$0xff]
      %v1718 = vld [vmem:[#allocation2 + $0xb1] sm:$0xff]
      %v1719 = vld [vmem:[#allocation2 + $0xc1] sm:$0xff]
      %v1720 = vld [vmem:[#allocation2 + $0xc9] sm:$0xff]
      %v1721 = vld [vmem:[#allocation2 + $0xd9] sm:$0xff]
      %v1722 = vld [vmem:[#allocation2 + $0xe1] sm:$0xff]
      %v1723 = vld [vmem:[#allocation2 + $0xf1] sm:$0xff]
      %v1724 = vld [vmem:[#allocation2 + $0xf9] sm:$0xff]
      %v1725 = vld [vmem:[#allocation2 + $0x109] sm:$0xff]
      %v1726 = vld [vmem:[#allocation2 + $0x111] sm:$0xff]
      %v1727 = vld [vmem:[#allocation2 + $0x121] sm:$0xff]
      %v1728 = vld [vmem:[#allocation2 + $0x129] sm:$0xff]
      %v1729 = vld [vmem:[#allocation2 + $0x139] sm:$0xff]
      %v1730 = vld [vmem:[#allocation2 + $0x141] sm:$0xff]
      %v1731 = vld [vmem:[#allocation2 + $0x151] sm:$0xff]
      %v1732 = vld [vmem:[#allocation2 + $0x159] sm:$0xff]
      %v1733 = vld [vmem:[#allocation2 + $0x169] sm:$0xff]
      %v1734 = vld [vmem:[#allocation2 + $0x171] sm:$0xff]
      %s1735 = scalar_lea.vmem %s4, 8
      %v1736 = vld [vmem:[%s1735] sm:$0xff]
      %v1738 = vsel %vm326, %v1703, 0
      %v1741 = vsel %vm326, %v1704, 0
      %v1744 = vsel %vm326, %v1705, 0
      %v1747 = vsel %vm326, %v1706, 0
      %v1750 = vsel %vm326, %v1707, 0
      %v1753 = vsel %vm326, %v1708, 0
      %v1756 = vsel %vm326, %v1709, 0
      %v1759 = vsel %vm326, %v1710, 0
      %v1762 = vsel %vm326, %v1711, 0
      %v1765 = vsel %vm326, %v1712, 0
      %v1768 = vsel %vm326, %v1713, 0
      %v1771 = vsel %vm326, %v1714, 0
      %v1774 = vsel %vm326, %v1715, 0
      %v1777 = vsel %vm326, %v1716, 0
      %v1780 = vsel %vm326, %v1717, 0
      %v1783 = vsel %vm326, %v1718, 0
      %v1786 = vsel %vm326, %v1719, 0
      %v1789 = vsel %vm326, %v1720, 0
      %v1792 = vsel %vm326, %v1721, 0
      %v1795 = vsel %vm326, %v1722, 0
      %v1798 = vsel %vm326, %v1723, 0
      %v1801 = vsel %vm326, %v1724, 0
      %v1804 = vsel %vm326, %v1725, 0
      %v1807 = vsel %vm326, %v1726, 0
      %v1810 = vsel %vm326, %v1727, 0
      %v1813 = vsel %vm326, %v1728, 0
      %v1816 = vsel %vm326, %v1729, 0
      %v1819 = vsel %vm326, %v1730, 0
      %v1822 = vsel %vm326, %v1731, 0
      %v1825 = vsel %vm326, %v1732, 0
      %v1828 = vsel %vm326, %v1733, 0
      %v1831 = vsel %vm326, %v1734, 0
      %1833 = vmatpush.msra.mxu0 0.0
      %1834 = vmatpush.msra.mxu0 0.0
      %1835 = vmatpush.msra.mxu0 0.0
      %1836 = vmatpush.msra.mxu0 0.0
      %1837 = vmatpush.msra.mxu0 0.0
      %1838 = vmatpush.msra.mxu0 0.0
      %1839 = vmatpush.msra.mxu0 0.0
      %1840 = vmatpush.msra.mxu0 0.0
      %1841 = vmatpush.msra.mxu0 0.0
      %1842 = vmatpush.msra.mxu0 0.0
      %1843 = vmatpush.msra.mxu0 0.0
      %1844 = vmatpush.msra.mxu0 0.0
      %1845 = vmatpush.msra.mxu0 0.0
      %1846 = vmatpush.msra.mxu0 0.0
      %1847 = vmatpush.msra.mxu0 0.0
      %1848 = vmatpush.msra.mxu0 %v1736
      %1849 = vmatmul.f32.gmra.mxu0 %v1738
      %v1850 = vpop.f32.mrf.mxu0
      %v1851 = vadd.f32 0.0, %v1850
      %1852 = vmatmul.f32.gmra.mxu0 %v1741
      %v1853 = vpop.f32.mrf.mxu0
      %v1854 = vadd.f32 0.0, %v1853
      %1855 = vmatmul.f32.gmra.mxu0 %v1744
      %v1856 = vpop.f32.mrf.mxu0
      %v1857 = vadd.f32 0.0, %v1856
      %1858 = vmatmul.f32.gmra.mxu0 %v1747
      %v1859 = vpop.f32.mrf.mxu0
      %v1860 = vadd.f32 0.0, %v1859
      %1861 = vmatmul.f32.gmra.mxu0 %v1750
      %v1862 = vpop.f32.mrf.mxu0
      %v1863 = vadd.f32 0.0, %v1862
      %1864 = vmatmul.f32.gmra.mxu0 %v1753
      %v1865 = vpop.f32.mrf.mxu0
      %v1866 = vadd.f32 0.0, %v1865
      %1867 = vmatmul.f32.gmra.mxu0 %v1756
      %v1868 = vpop.f32.mrf.mxu0
      %v1869 = vadd.f32 0.0, %v1868
      %1870 = vmatmul.f32.gmra.mxu0 %v1759
      %v1871 = vpop.f32.mrf.mxu0
      %v1872 = vadd.f32 0.0, %v1871
      %1873 = vmatmul.f32.gmra.mxu0 %v1762
      %v1874 = vpop.f32.mrf.mxu0
      %v1875 = vadd.f32 0.0, %v1874
      %1876 = vmatmul.f32.gmra.mxu0 %v1765
      %v1877 = vpop.f32.mrf.mxu0
      %v1878 = vadd.f32 0.0, %v1877
      %1879 = vmatmul.f32.gmra.mxu0 %v1768
      %v1880 = vpop.f32.mrf.mxu0
      %v1881 = vadd.f32 0.0, %v1880
      %1882 = vmatmul.f32.gmra.mxu0 %v1771
      %v1883 = vpop.f32.mrf.mxu0
      %v1884 = vadd.f32 0.0, %v1883
      %1885 = vmatmul.f32.gmra.mxu0 %v1774
      %v1886 = vpop.f32.mrf.mxu0
      %v1887 = vadd.f32 0.0, %v1886
      %1888 = vmatmul.f32.gmra.mxu0 %v1777
      %v1889 = vpop.f32.mrf.mxu0
      %v1890 = vadd.f32 0.0, %v1889
      %1891 = vmatmul.f32.gmra.mxu0 %v1780
      %v1892 = vpop.f32.mrf.mxu0
      %v1893 = vadd.f32 0.0, %v1892
      %1894 = vmatmul.f32.gmra.mxu0 %v1783
      %v1895 = vpop.f32.mrf.mxu0
      %v1896 = vadd.f32 0.0, %v1895
      %1897 = vmatmul.f32.gmra.mxu0 %v1786
      %v1898 = vpop.f32.mrf.mxu0
      %v1899 = vadd.f32 0.0, %v1898
      %1900 = vmatmul.f32.gmra.mxu0 %v1789
      %v1901 = vpop.f32.mrf.mxu0
      %v1902 = vadd.f32 0.0, %v1901
      %1903 = vmatmul.f32.gmra.mxu0 %v1792
      %v1904 = vpop.f32.mrf.mxu0
      %v1905 = vadd.f32 0.0, %v1904
      %1906 = vmatmul.f32.gmra.mxu0 %v1795
      %v1907 = vpop.f32.mrf.mxu0
      %v1908 = vadd.f32 0.0, %v1907
      %1909 = vmatmul.f32.gmra.mxu0 %v1798
      %v1910 = vpop.f32.mrf.mxu0
      %v1911 = vadd.f32 0.0, %v1910
      %1912 = vmatmul.f32.gmra.mxu0 %v1801
      %v1913 = vpop.f32.mrf.mxu0
      %v1914 = vadd.f32 0.0, %v1913
      %1915 = vmatmul.f32.gmra.mxu0 %v1804
      %v1916 = vpop.f32.mrf.mxu0
      %v1917 = vadd.f32 0.0, %v1916
      %1918 = vmatmul.f32.gmra.mxu0 %v1807
      %v1919 = vpop.f32.mrf.mxu0
      %v1920 = vadd.f32 0.0, %v1919
      %1921 = vmatmul.f32.gmra.mxu0 %v1810
      %v1922 = vpop.f32.mrf.mxu0
      %v1923 = vadd.f32 0.0, %v1922
      %1924 = vmatmul.f32.gmra.mxu0 %v1813
      %v1925 = vpop.f32.mrf.mxu0
      %v1926 = vadd.f32 0.0, %v1925
      %1927 = vmatmul.f32.gmra.mxu0 %v1816
      %v1928 = vpop.f32.mrf.mxu0
      %v1929 = vadd.f32 0.0, %v1928
      %1930 = vmatmul.f32.gmra.mxu0 %v1819
      %v1931 = vpop.f32.mrf.mxu0
      %v1932 = vadd.f32 0.0, %v1931
      %1933 = vmatmul.f32.gmra.mxu0 %v1822
      %v1934 = vpop.f32.mrf.mxu0
      %v1935 = vadd.f32 0.0, %v1934
      %1936 = vmatmul.f32.gmra.mxu0 %v1825
      %v1937 = vpop.f32.mrf.mxu0
      %v1938 = vadd.f32 0.0, %v1937
      %1939 = vmatmul.f32.gmra.mxu0 %v1828
      %v1940 = vpop.f32.mrf.mxu0
      %v1941 = vadd.f32 0.0, %v1940
      %1942 = vmatmul.f32.gmra.mxu0 %v1831
      %v1943 = vpop.f32.mrf.mxu0
      %v1944 = vadd.f32 0.0, %v1943
      %1945 = vdwg.mxu0
      %v1947 = vsel %vm326, %v1670, 0
      %v1950 = vsel %vm326, %v1671, 0
      %v1953 = vsel %vm326, %v1672, 0
      %v1956 = vsel %vm326, %v1673, 0
      %v1959 = vsel %vm326, %v1674, 0
      %v1962 = vsel %vm326, %v1675, 0
      %v1965 = vsel %vm326, %v1676, 0
      %v1968 = vsel %vm326, %v1677, 0
      %v1971 = vsel %vm326, %v1678, 0
      %v1974 = vsel %vm326, %v1679, 0
      %v1977 = vsel %vm326, %v1680, 0
      %v1980 = vsel %vm326, %v1681, 0
      %v1983 = vsel %vm326, %v1682, 0
      %v1986 = vsel %vm326, %v1683, 0
      %v1989 = vsel %vm326, %v1684, 0
      %v1992 = vsel %vm326, %v1685, 0
      %v1995 = vsel %vm326, %v1686, 0
      %v1998 = vsel %vm326, %v1687, 0
      %v2001 = vsel %vm326, %v1688, 0
      %v2004 = vsel %vm326, %v1689, 0
      %v2007 = vsel %vm326, %v1690, 0
      %v2010 = vsel %vm326, %v1691, 0
      %v2013 = vsel %vm326, %v1692, 0
      %v2016 = vsel %vm326, %v1693, 0
      %v2019 = vsel %vm326, %v1694, 0
      %v2022 = vsel %vm326, %v1695, 0
      %v2025 = vsel %vm326, %v1696, 0
      %v2028 = vsel %vm326, %v1697, 0
      %v2031 = vsel %vm326, %v1698, 0
      %v2034 = vsel %vm326, %v1699, 0
      %v2037 = vsel %vm326, %v1700, 0
      %v2040 = vsel %vm326, %v1701, 0
      %2042 = vmatpush.msra.mxu0 0.0
      %2043 = vmatpush.msra.mxu0 0.0
      %2044 = vmatpush.msra.mxu0 0.0
      %2045 = vmatpush.msra.mxu0 0.0
      %2046 = vmatpush.msra.mxu0 0.0
      %2047 = vmatpush.msra.mxu0 0.0
      %2048 = vmatpush.msra.mxu0 0.0
      %2049 = vmatpush.msra.mxu0 0.0
      %2050 = vmatpush.msra.mxu0 0.0
      %2051 = vmatpush.msra.mxu0 0.0
      %2052 = vmatpush.msra.mxu0 0.0
      %2053 = vmatpush.msra.mxu0 0.0
      %2054 = vmatpush.msra.mxu0 0.0
      %2055 = vmatpush.msra.mxu0 0.0
      %2056 = vmatpush.msra.mxu0 0.0
      %2057 = vmatpush.msra.mxu0 %v1702
      %2058 = vmatmul.f32.gmra.mxu0 %v1947
      %v2059 = vpop.f32.mrf.mxu0
      %v2060 = vadd.f32 %v1851, %v2059
      %2061 = vmatmul.f32.gmra.mxu0 %v1950
      %v2062 = vpop.f32.mrf.mxu0
      %v2063 = vadd.f32 %v1854, %v2062
      %2064 = vmatmul.f32.gmra.mxu0 %v1953
      %v2065 = vpop.f32.mrf.mxu0
      %v2066 = vadd.f32 %v1857, %v2065
      %2067 = vmatmul.f32.gmra.mxu0 %v1956
      %v2068 = vpop.f32.mrf.mxu0
      %v2069 = vadd.f32 %v1860, %v2068
      %2070 = vmatmul.f32.gmra.mxu0 %v1959
      %v2071 = vpop.f32.mrf.mxu0
      %v2072 = vadd.f32 %v1863, %v2071
      %2073 = vmatmul.f32.gmra.mxu0 %v1962
      %v2074 = vpop.f32.mrf.mxu0
      %v2075 = vadd.f32 %v1866, %v2074
      %2076 = vmatmul.f32.gmra.mxu0 %v1965
      %v2077 = vpop.f32.mrf.mxu0
      %v2078 = vadd.f32 %v1869, %v2077
      %2079 = vmatmul.f32.gmra.mxu0 %v1968
      %v2080 = vpop.f32.mrf.mxu0
      %v2081 = vadd.f32 %v1872, %v2080
      %2082 = vmatmul.f32.gmra.mxu0 %v1971
      %v2083 = vpop.f32.mrf.mxu0
      %v2084 = vadd.f32 %v1875, %v2083
      %2085 = vmatmul.f32.gmra.mxu0 %v1974
      %v2086 = vpop.f32.mrf.mxu0
      %v2087 = vadd.f32 %v1878, %v2086
      %2088 = vmatmul.f32.gmra.mxu0 %v1977
      %v2089 = vpop.f32.mrf.mxu0
      %v2090 = vadd.f32 %v1881, %v2089
      %2091 = vmatmul.f32.gmra.mxu0 %v1980
      %v2092 = vpop.f32.mrf.mxu0
      %v2093 = vadd.f32 %v1884, %v2092
      %2094 = vmatmul.f32.gmra.mxu0 %v1983
      %v2095 = vpop.f32.mrf.mxu0
      %v2096 = vadd.f32 %v1887, %v2095
      %2097 = vmatmul.f32.gmra.mxu0 %v1986
      %v2098 = vpop.f32.mrf.mxu0
      %v2099 = vadd.f32 %v1890, %v2098
      %2100 = vmatmul.f32.gmra.mxu0 %v1989
      %v2101 = vpop.f32.mrf.mxu0
      %v2102 = vadd.f32 %v1893, %v2101
      %2103 = vmatmul.f32.gmra.mxu0 %v1992
      %v2104 = vpop.f32.mrf.mxu0
      %v2105 = vadd.f32 %v1896, %v2104
      %2106 = vmatmul.f32.gmra.mxu0 %v1995
      %v2107 = vpop.f32.mrf.mxu0
      %v2108 = vadd.f32 %v1899, %v2107
      %2109 = vmatmul.f32.gmra.mxu0 %v1998
      %v2110 = vpop.f32.mrf.mxu0
      %v2111 = vadd.f32 %v1902, %v2110
      %2112 = vmatmul.f32.gmra.mxu0 %v2001
      %v2113 = vpop.f32.mrf.mxu0
      %v2114 = vadd.f32 %v1905, %v2113
      %2115 = vmatmul.f32.gmra.mxu0 %v2004
      %v2116 = vpop.f32.mrf.mxu0
      %v2117 = vadd.f32 %v1908, %v2116
      %2118 = vmatmul.f32.gmra.mxu0 %v2007
      %v2119 = vpop.f32.mrf.mxu0
      %v2120 = vadd.f32 %v1911, %v2119
      %2121 = vmatmul.f32.gmra.mxu0 %v2010
      %v2122 = vpop.f32.mrf.mxu0
      %v2123 = vadd.f32 %v1914, %v2122
      %2124 = vmatmul.f32.gmra.mxu0 %v2013
      %v2125 = vpop.f32.mrf.mxu0
      %v2126 = vadd.f32 %v1917, %v2125
      %2127 = vmatmul.f32.gmra.mxu0 %v2016
      %v2128 = vpop.f32.mrf.mxu0
      %v2129 = vadd.f32 %v1920, %v2128
      %2130 = vmatmul.f32.gmra.mxu0 %v2019
      %v2131 = vpop.f32.mrf.mxu0
      %v2132 = vadd.f32 %v1923, %v2131
      %2133 = vmatmul.f32.gmra.mxu0 %v2022
      %v2134 = vpop.f32.mrf.mxu0
      %v2135 = vadd.f32 %v1926, %v2134
      %2136 = vmatmul.f32.gmra.mxu0 %v2025
      %v2137 = vpop.f32.mrf.mxu0
      %v2138 = vadd.f32 %v1929, %v2137
      %2139 = vmatmul.f32.gmra.mxu0 %v2028
      %v2140 = vpop.f32.mrf.mxu0
      %v2141 = vadd.f32 %v1932, %v2140
      %2142 = vmatmul.f32.gmra.mxu0 %v2031
      %v2143 = vpop.f32.mrf.mxu0
      %v2144 = vadd.f32 %v1935, %v2143
      %2145 = vmatmul.f32.gmra.mxu0 %v2034
      %v2146 = vpop.f32.mrf.mxu0
      %v2147 = vadd.f32 %v1938, %v2146
      %2148 = vmatmul.f32.gmra.mxu0 %v2037
      %v2149 = vpop.f32.mrf.mxu0
      %v2150 = vadd.f32 %v1941, %v2149
      %2151 = vmatmul.f32.gmra.mxu0 %v2040
      %v2152 = vpop.f32.mrf.mxu0
      %v2153 = vadd.f32 %v1944, %v2152
      %2154 = vdwg.mxu0
      %v2155 = vld [vmem:[#allocation2 + $0x2] sm:$0xff]
      %v2156 = vld [vmem:[#allocation2 + $0xa] sm:$0xff]
      %v2157 = vld [vmem:[#allocation2 + $0x1a] sm:$0xff]
      %v2158 = vld [vmem:[#allocation2 + $0x22] sm:$0xff]
      %v2159 = vld [vmem:[#allocation2 + $0x32] sm:$0xff]
      %v2160 = vld [vmem:[#allocation2 + $0x3a] sm:$0xff]
      %v2161 = vld [vmem:[#allocation2 + $0x4a] sm:$0xff]
      %v2162 = vld [vmem:[#allocation2 + $0x52] sm:$0xff]
      %v2163 = vld [vmem:[#allocation2 + $0x62] sm:$0xff]
      %v2164 = vld [vmem:[#allocation2 + $0x6a] sm:$0xff]
      %v2165 = vld [vmem:[#allocation2 + $0x7a] sm:$0xff]
      %v2166 = vld [vmem:[#allocation2 + $0x82] sm:$0xff]
      %v2167 = vld [vmem:[#allocation2 + $0x92] sm:$0xff]
      %v2168 = vld [vmem:[#allocation2 + $0x9a] sm:$0xff]
      %v2169 = vld [vmem:[#allocation2 + $0xaa] sm:$0xff]
      %v2170 = vld [vmem:[#allocation2 + $0xb2] sm:$0xff]
      %v2171 = vld [vmem:[#allocation2 + $0xc2] sm:$0xff]
      %v2172 = vld [vmem:[#allocation2 + $0xca] sm:$0xff]
      %v2173 = vld [vmem:[#allocation2 + $0xda] sm:$0xff]
      %v2174 = vld [vmem:[#allocation2 + $0xe2] sm:$0xff]
      %v2175 = vld [vmem:[#allocation2 + $0xf2] sm:$0xff]
      %v2176 = vld [vmem:[#allocation2 + $0xfa] sm:$0xff]
      %v2177 = vld [vmem:[#allocation2 + $0x10a] sm:$0xff]
      %v2178 = vld [vmem:[#allocation2 + $0x112] sm:$0xff]
      %v2179 = vld [vmem:[#allocation2 + $0x122] sm:$0xff]
      %v2180 = vld [vmem:[#allocation2 + $0x12a] sm:$0xff]
      %v2181 = vld [vmem:[#allocation2 + $0x13a] sm:$0xff]
      %v2182 = vld [vmem:[#allocation2 + $0x142] sm:$0xff]
      %v2183 = vld [vmem:[#allocation2 + $0x152] sm:$0xff]
      %v2184 = vld [vmem:[#allocation2 + $0x15a] sm:$0xff]
      %v2185 = vld [vmem:[#allocation2 + $0x16a] sm:$0xff]
      %v2186 = vld [vmem:[#allocation2 + $0x172] sm:$0xff]
      %s2187 = scalar_lea.vmem %s4, 16
      %v2188 = vld [vmem:[%s2187] sm:$0xff]
      %v2190 = vsel %vm326, %v2155, 0
      %v2193 = vsel %vm326, %v2156, 0
      %v2196 = vsel %vm326, %v2157, 0
      %v2199 = vsel %vm326, %v2158, 0
      %v2202 = vsel %vm326, %v2159, 0
      %v2205 = vsel %vm326, %v2160, 0
      %v2208 = vsel %vm326, %v2161, 0
      %v2211 = vsel %vm326, %v2162, 0
      %v2214 = vsel %vm326, %v2163, 0
      %v2217 = vsel %vm326, %v2164, 0
      %v2220 = vsel %vm326, %v2165, 0
      %v2223 = vsel %vm326, %v2166, 0
      %v2226 = vsel %vm326, %v2167, 0
      %v2229 = vsel %vm326, %v2168, 0
      %v2232 = vsel %vm326, %v2169, 0
      %v2235 = vsel %vm326, %v2170, 0
      %v2238 = vsel %vm326, %v2171, 0
      %v2241 = vsel %vm326, %v2172, 0
      %v2244 = vsel %vm326, %v2173, 0
      %v2247 = vsel %vm326, %v2174, 0
      %v2250 = vsel %vm326, %v2175, 0
      %v2253 = vsel %vm326, %v2176, 0
      %v2256 = vsel %vm326, %v2177, 0
      %v2259 = vsel %vm326, %v2178, 0
      %v2262 = vsel %vm326, %v2179, 0
      %v2265 = vsel %vm326, %v2180, 0
      %v2268 = vsel %vm326, %v2181, 0
      %v2271 = vsel %vm326, %v2182, 0
      %v2274 = vsel %vm326, %v2183, 0
      %v2277 = vsel %vm326, %v2184, 0
      %v2280 = vsel %vm326, %v2185, 0
      %v2283 = vsel %vm326, %v2186, 0
      %2285 = vmatpush.msra.mxu0 0.0
      %2286 = vmatpush.msra.mxu0 0.0
      %2287 = vmatpush.msra.mxu0 0.0
      %2288 = vmatpush.msra.mxu0 0.0
      %2289 = vmatpush.msra.mxu0 0.0
      %2290 = vmatpush.msra.mxu0 0.0
      %2291 = vmatpush.msra.mxu0 0.0
      %2292 = vmatpush.msra.mxu0 0.0
      %2293 = vmatpush.msra.mxu0 0.0
      %2294 = vmatpush.msra.mxu0 0.0
      %2295 = vmatpush.msra.mxu0 0.0
      %2296 = vmatpush.msra.mxu0 0.0
      %2297 = vmatpush.msra.mxu0 0.0
      %2298 = vmatpush.msra.mxu0 0.0
      %2299 = vmatpush.msra.mxu0 0.0
      %2300 = vmatpush.msra.mxu0 %v2188
      %2301 = vmatmul.f32.gmra.mxu0 %v2190
      %v2302 = vpop.f32.mrf.mxu0
      %v2303 = vadd.f32 0.0, %v2302
      %2304 = vmatmul.f32.gmra.mxu0 %v2193
      %v2305 = vpop.f32.mrf.mxu0
      %v2306 = vadd.f32 0.0, %v2305
      %2307 = vmatmul.f32.gmra.mxu0 %v2196
      %v2308 = vpop.f32.mrf.mxu0
      %v2309 = vadd.f32 0.0, %v2308
      %2310 = vmatmul.f32.gmra.mxu0 %v2199
      %v2311 = vpop.f32.mrf.mxu0
      %v2312 = vadd.f32 0.0, %v2311
      %2313 = vmatmul.f32.gmra.mxu0 %v2202
      %v2314 = vpop.f32.mrf.mxu0
      %v2315 = vadd.f32 0.0, %v2314
      %2316 = vmatmul.f32.gmra.mxu0 %v2205
      %v2317 = vpop.f32.mrf.mxu0
      %v2318 = vadd.f32 0.0, %v2317
      %2319 = vmatmul.f32.gmra.mxu0 %v2208
      %v2320 = vpop.f32.mrf.mxu0
      %v2321 = vadd.f32 0.0, %v2320
      %2322 = vmatmul.f32.gmra.mxu0 %v2211
      %v2323 = vpop.f32.mrf.mxu0
      %v2324 = vadd.f32 0.0, %v2323
      %2325 = vmatmul.f32.gmra.mxu0 %v2214
      %v2326 = vpop.f32.mrf.mxu0
      %v2327 = vadd.f32 0.0, %v2326
      %2328 = vmatmul.f32.gmra.mxu0 %v2217
      %v2329 = vpop.f32.mrf.mxu0
      %v2330 = vadd.f32 0.0, %v2329
      %2331 = vmatmul.f32.gmra.mxu0 %v2220
      %v2332 = vpop.f32.mrf.mxu0
      %v2333 = vadd.f32 0.0, %v2332
      %2334 = vmatmul.f32.gmra.mxu0 %v2223
      %v2335 = vpop.f32.mrf.mxu0
      %v2336 = vadd.f32 0.0, %v2335
      %2337 = vmatmul.f32.gmra.mxu0 %v2226
      %v2338 = vpop.f32.mrf.mxu0
      %v2339 = vadd.f32 0.0, %v2338
      %2340 = vmatmul.f32.gmra.mxu0 %v2229
      %v2341 = vpop.f32.mrf.mxu0
      %v2342 = vadd.f32 0.0, %v2341
      %2343 = vmatmul.f32.gmra.mxu0 %v2232
      %v2344 = vpop.f32.mrf.mxu0
      %v2345 = vadd.f32 0.0, %v2344
      %2346 = vmatmul.f32.gmra.mxu0 %v2235
      %v2347 = vpop.f32.mrf.mxu0
      %v2348 = vadd.f32 0.0, %v2347
      %2349 = vmatmul.f32.gmra.mxu0 %v2238
      %v2350 = vpop.f32.mrf.mxu0
      %v2351 = vadd.f32 0.0, %v2350
      %2352 = vmatmul.f32.gmra.mxu0 %v2241
      %v2353 = vpop.f32.mrf.mxu0
      %v2354 = vadd.f32 0.0, %v2353
      %2355 = vmatmul.f32.gmra.mxu0 %v2244
      %v2356 = vpop.f32.mrf.mxu0
      %v2357 = vadd.f32 0.0, %v2356
      %2358 = vmatmul.f32.gmra.mxu0 %v2247
      %v2359 = vpop.f32.mrf.mxu0
      %v2360 = vadd.f32 0.0, %v2359
      %2361 = vmatmul.f32.gmra.mxu0 %v2250
      %v2362 = vpop.f32.mrf.mxu0
      %v2363 = vadd.f32 0.0, %v2362
      %2364 = vmatmul.f32.gmra.mxu0 %v2253
      %v2365 = vpop.f32.mrf.mxu0
      %v2366 = vadd.f32 0.0, %v2365
      %2367 = vmatmul.f32.gmra.mxu0 %v2256
      %v2368 = vpop.f32.mrf.mxu0
      %v2369 = vadd.f32 0.0, %v2368
      %2370 = vmatmul.f32.gmra.mxu0 %v2259
      %v2371 = vpop.f32.mrf.mxu0
      %v2372 = vadd.f32 0.0, %v2371
      %2373 = vmatmul.f32.gmra.mxu0 %v2262
      %v2374 = vpop.f32.mrf.mxu0
      %v2375 = vadd.f32 0.0, %v2374
      %2376 = vmatmul.f32.gmra.mxu0 %v2265
      %v2377 = vpop.f32.mrf.mxu0
      %v2378 = vadd.f32 0.0, %v2377
      %2379 = vmatmul.f32.gmra.mxu0 %v2268
      %v2380 = vpop.f32.mrf.mxu0
      %v2381 = vadd.f32 0.0, %v2380
      %2382 = vmatmul.f32.gmra.mxu0 %v2271
      %v2383 = vpop.f32.mrf.mxu0
      %v2384 = vadd.f32 0.0, %v2383
      %2385 = vmatmul.f32.gmra.mxu0 %v2274
      %v2386 = vpop.f32.mrf.mxu0
      %v2387 = vadd.f32 0.0, %v2386
      %2388 = vmatmul.f32.gmra.mxu0 %v2277
      %v2389 = vpop.f32.mrf.mxu0
      %v2390 = vadd.f32 0.0, %v2389
      %2391 = vmatmul.f32.gmra.mxu0 %v2280
      %v2392 = vpop.f32.mrf.mxu0
      %v2393 = vadd.f32 0.0, %v2392
      %2394 = vmatmul.f32.gmra.mxu0 %v2283
      %v2395 = vpop.f32.mrf.mxu0
      %v2396 = vadd.f32 0.0, %v2395
      %2397 = vdwg.mxu0
      %v2398 = vadd.f32 %v2060, %v2303
      %v2399 = vadd.f32 %v2063, %v2306
      %v2400 = vadd.f32 %v2066, %v2309
      %v2401 = vadd.f32 %v2069, %v2312
      %v2402 = vadd.f32 %v2072, %v2315
      %v2403 = vadd.f32 %v2075, %v2318
      %v2404 = vadd.f32 %v2078, %v2321
      %v2405 = vadd.f32 %v2081, %v2324
      %v2406 = vadd.f32 %v2084, %v2327
      %v2407 = vadd.f32 %v2087, %v2330
      %v2408 = vadd.f32 %v2090, %v2333
      %v2409 = vadd.f32 %v2093, %v2336
      %v2410 = vadd.f32 %v2096, %v2339
      %v2411 = vadd.f32 %v2099, %v2342
      %v2412 = vadd.f32 %v2102, %v2345
      %v2413 = vadd.f32 %v2105, %v2348
      %v2414 = vadd.f32 %v2108, %v2351
      %v2415 = vadd.f32 %v2111, %v2354
      %v2416 = vadd.f32 %v2114, %v2357
      %v2417 = vadd.f32 %v2117, %v2360
      %v2418 = vadd.f32 %v2120, %v2363
      %v2419 = vadd.f32 %v2123, %v2366
      %v2420 = vadd.f32 %v2126, %v2369
      %v2421 = vadd.f32 %v2129, %v2372
      %v2422 = vadd.f32 %v2132, %v2375
      %v2423 = vadd.f32 %v2135, %v2378
      %v2424 = vadd.f32 %v2138, %v2381
      %v2425 = vadd.f32 %v2141, %v2384
      %v2426 = vadd.f32 %v2144, %v2387
      %v2427 = vadd.f32 %v2147, %v2390
      %v2428 = vadd.f32 %v2150, %v2393
      %v2429 = vadd.f32 %v2153, %v2396
      %v2430 = vld [vmem:[%s450] sm:$0xff]
      %v2431 = vld [vmem:[%s450 + $0x8] sm:$0xff]
      %v2432 = vld [vmem:[%s450 + $0x18] sm:$0xff]
      %v2433 = vld [vmem:[%s450 + $0x20] sm:$0xff]
      %v2434 = vld [vmem:[%s450 + $0x30] sm:$0xff]
      %v2435 = vld [vmem:[%s450 + $0x38] sm:$0xff]
      %v2436 = vld [vmem:[%s450 + $0x48] sm:$0xff]
      %v2437 = vld [vmem:[%s450 + $0x50] sm:$0xff]
      %v2438 = vld [vmem:[%s450 + $0x60] sm:$0xff]
      %v2439 = vld [vmem:[%s450 + $0x68] sm:$0xff]
      %v2440 = vld [vmem:[%s450 + $0x78] sm:$0xff]
      %v2441 = vld [vmem:[%s450 + $0x80] sm:$0xff]
      %v2442 = vld [vmem:[%s450 + $0x90] sm:$0xff]
      %v2443 = vld [vmem:[%s450 + $0x98] sm:$0xff]
      %v2444 = vld [vmem:[%s450 + $0xa8] sm:$0xff]
      %v2445 = vld [vmem:[%s450 + $0xb0] sm:$0xff]
      %v2446 = vld [vmem:[%s450 + $0xc0] sm:$0xff]
      %v2447 = vld [vmem:[%s450 + $0xc8] sm:$0xff]
      %v2448 = vld [vmem:[%s450 + $0xd8] sm:$0xff]
      %v2449 = vld [vmem:[%s450 + $0xe0] sm:$0xff]
      %v2450 = vld [vmem:[%s450 + $0xf0] sm:$0xff]
      %v2451 = vld [vmem:[%s450 + $0xf8] sm:$0xff]
      %v2452 = vld [vmem:[%s450 + $0x108] sm:$0xff]
      %v2453 = vld [vmem:[%s450 + $0x110] sm:$0xff]
      %v2454 = vld [vmem:[%s450 + $0x120] sm:$0xff]
      %v2455 = vld [vmem:[%s450 + $0x128] sm:$0xff]
      %v2456 = vld [vmem:[%s450 + $0x138] sm:$0xff]
      %v2457 = vld [vmem:[%s450 + $0x140] sm:$0xff]
      %v2458 = vld [vmem:[%s450 + $0x150] sm:$0xff]
      %v2459 = vld [vmem:[%s450 + $0x158] sm:$0xff]
      %v2460 = vld [vmem:[%s450 + $0x168] sm:$0xff]
      %v2461 = vld [vmem:[%s450 + $0x170] sm:$0xff]
      %s2462 = scalar_lea.vmem %s4, 24
      %v2463 = vld [vmem:[%s2462] sm:$0xff]
      %v2465 = vsel %vm326, %v2430, 0
      %v2468 = vsel %vm326, %v2431, 0
      %v2471 = vsel %vm326, %v2432, 0
      %v2474 = vsel %vm326, %v2433, 0
      %v2477 = vsel %vm326, %v2434, 0
      %v2480 = vsel %vm326, %v2435, 0
      %v2483 = vsel %vm326, %v2436, 0
      %v2486 = vsel %vm326, %v2437, 0
      %v2489 = vsel %vm326, %v2438, 0
      %v2492 = vsel %vm326, %v2439, 0
      %v2495 = vsel %vm326, %v2440, 0
      %v2498 = vsel %vm326, %v2441, 0
      %v2501 = vsel %vm326, %v2442, 0
      %v2504 = vsel %vm326, %v2443, 0
      %v2507 = vsel %vm326, %v2444, 0
      %v2510 = vsel %vm326, %v2445, 0
      %v2513 = vsel %vm326, %v2446, 0
      %v2516 = vsel %vm326, %v2447, 0
      %v2519 = vsel %vm326, %v2448, 0
      %v2522 = vsel %vm326, %v2449, 0
      %v2525 = vsel %vm326, %v2450, 0
      %v2528 = vsel %vm326, %v2451, 0
      %v2531 = vsel %vm326, %v2452, 0
      %v2534 = vsel %vm326, %v2453, 0
      %v2537 = vsel %vm326, %v2454, 0
      %v2540 = vsel %vm326, %v2455, 0
      %v2543 = vsel %vm326, %v2456, 0
      %v2546 = vsel %vm326, %v2457, 0
      %v2549 = vsel %vm326, %v2458, 0
      %v2552 = vsel %vm326, %v2459, 0
      %v2555 = vsel %vm326, %v2460, 0
      %v2558 = vsel %vm326, %v2461, 0
      %2560 = vmatpush.msra.mxu0 0.0
      %2561 = vmatpush.msra.mxu0 0.0
      %2562 = vmatpush.msra.mxu0 0.0
      %2563 = vmatpush.msra.mxu0 0.0
      %2564 = vmatpush.msra.mxu0 0.0
      %2565 = vmatpush.msra.mxu0 0.0
      %2566 = vmatpush.msra.mxu0 0.0
      %2567 = vmatpush.msra.mxu0 0.0
      %2568 = vmatpush.msra.mxu0 0.0
      %2569 = vmatpush.msra.mxu0 0.0
      %2570 = vmatpush.msra.mxu0 0.0
      %2571 = vmatpush.msra.mxu0 0.0
      %2572 = vmatpush.msra.mxu0 0.0
      %2573 = vmatpush.msra.mxu0 0.0
      %2574 = vmatpush.msra.mxu0 0.0
      %2575 = vmatpush.msra.mxu0 %v2463
      %2576 = vmatmul.f32.gmra.mxu0 %v2465
      %v2577 = vpop.f32.mrf.mxu0
      %v2578 = vadd.f32 0.0, %v2577
      %2579 = vmatmul.f32.gmra.mxu0 %v2468
      %v2580 = vpop.f32.mrf.mxu0
      %v2581 = vadd.f32 0.0, %v2580
      %2582 = vmatmul.f32.gmra.mxu0 %v2471
      %v2583 = vpop.f32.mrf.mxu0
      %v2584 = vadd.f32 0.0, %v2583
      %2585 = vmatmul.f32.gmra.mxu0 %v2474
      %v2586 = vpop.f32.mrf.mxu0
      %v2587 = vadd.f32 0.0, %v2586
      %2588 = vmatmul.f32.gmra.mxu0 %v2477
      %v2589 = vpop.f32.mrf.mxu0
      %v2590 = vadd.f32 0.0, %v2589
      %2591 = vmatmul.f32.gmra.mxu0 %v2480
      %v2592 = vpop.f32.mrf.mxu0
      %v2593 = vadd.f32 0.0, %v2592
      %2594 = vmatmul.f32.gmra.mxu0 %v2483
      %v2595 = vpop.f32.mrf.mxu0
      %v2596 = vadd.f32 0.0, %v2595
      %2597 = vmatmul.f32.gmra.mxu0 %v2486
      %v2598 = vpop.f32.mrf.mxu0
      %v2599 = vadd.f32 0.0, %v2598
      %2600 = vmatmul.f32.gmra.mxu0 %v2489
      %v2601 = vpop.f32.mrf.mxu0
      %v2602 = vadd.f32 0.0, %v2601
      %2603 = vmatmul.f32.gmra.mxu0 %v2492
      %v2604 = vpop.f32.mrf.mxu0
      %v2605 = vadd.f32 0.0, %v2604
      %2606 = vmatmul.f32.gmra.mxu0 %v2495
      %v2607 = vpop.f32.mrf.mxu0
      %v2608 = vadd.f32 0.0, %v2607
      %2609 = vmatmul.f32.gmra.mxu0 %v2498
      %v2610 = vpop.f32.mrf.mxu0
      %v2611 = vadd.f32 0.0, %v2610
      %2612 = vmatmul.f32.gmra.mxu0 %v2501
      %v2613 = vpop.f32.mrf.mxu0
      %v2614 = vadd.f32 0.0, %v2613
      %2615 = vmatmul.f32.gmra.mxu0 %v2504
      %v2616 = vpop.f32.mrf.mxu0
      %v2617 = vadd.f32 0.0, %v2616
      %2618 = vmatmul.f32.gmra.mxu0 %v2507
      %v2619 = vpop.f32.mrf.mxu0
      %v2620 = vadd.f32 0.0, %v2619
      %2621 = vmatmul.f32.gmra.mxu0 %v2510
      %v2622 = vpop.f32.mrf.mxu0
      %v2623 = vadd.f32 0.0, %v2622
      %2624 = vmatmul.f32.gmra.mxu0 %v2513
      %v2625 = vpop.f32.mrf.mxu0
      %v2626 = vadd.f32 0.0, %v2625
      %2627 = vmatmul.f32.gmra.mxu0 %v2516
      %v2628 = vpop.f32.mrf.mxu0
      %v2629 = vadd.f32 0.0, %v2628
      %2630 = vmatmul.f32.gmra.mxu0 %v2519
      %v2631 = vpop.f32.mrf.mxu0
      %v2632 = vadd.f32 0.0, %v2631
      %2633 = vmatmul.f32.gmra.mxu0 %v2522
      %v2634 = vpop.f32.mrf.mxu0
      %v2635 = vadd.f32 0.0, %v2634
      %2636 = vmatmul.f32.gmra.mxu0 %v2525
      %v2637 = vpop.f32.mrf.mxu0
      %v2638 = vadd.f32 0.0, %v2637
      %2639 = vmatmul.f32.gmra.mxu0 %v2528
      %v2640 = vpop.f32.mrf.mxu0
      %v2641 = vadd.f32 0.0, %v2640
      %2642 = vmatmul.f32.gmra.mxu0 %v2531
      %v2643 = vpop.f32.mrf.mxu0
      %v2644 = vadd.f32 0.0, %v2643
      %2645 = vmatmul.f32.gmra.mxu0 %v2534
      %v2646 = vpop.f32.mrf.mxu0
      %v2647 = vadd.f32 0.0, %v2646
      %2648 = vmatmul.f32.gmra.mxu0 %v2537
      %v2649 = vpop.f32.mrf.mxu0
      %v2650 = vadd.f32 0.0, %v2649
      %2651 = vmatmul.f32.gmra.mxu0 %v2540
      %v2652 = vpop.f32.mrf.mxu0
      %v2653 = vadd.f32 0.0, %v2652
      %2654 = vmatmul.f32.gmra.mxu0 %v2543
      %v2655 = vpop.f32.mrf.mxu0
      %v2656 = vadd.f32 0.0, %v2655
      %2657 = vmatmul.f32.gmra.mxu0 %v2546
      %v2658 = vpop.f32.mrf.mxu0
      %v2659 = vadd.f32 0.0, %v2658
      %2660 = vmatmul.f32.gmra.mxu0 %v2549
      %v2661 = vpop.f32.mrf.mxu0
      %v2662 = vadd.f32 0.0, %v2661
      %2663 = vmatmul.f32.gmra.mxu0 %v2552
      %v2664 = vpop.f32.mrf.mxu0
      %v2665 = vadd.f32 0.0, %v2664
      %2666 = vmatmul.f32.gmra.mxu0 %v2555
      %v2667 = vpop.f32.mrf.mxu0
      %v2668 = vadd.f32 0.0, %v2667
      %2669 = vmatmul.f32.gmra.mxu0 %v2558
      %v2670 = vpop.f32.mrf.mxu0
      %v2671 = vadd.f32 0.0, %v2670
      %2672 = vdwg.mxu0
      %v2673 = vadd.f32 %v2398, %v2578
      %v2674 = vadd.f32 %v2399, %v2581
      %v2675 = vadd.f32 %v2400, %v2584
      %v2676 = vadd.f32 %v2401, %v2587
      %v2677 = vadd.f32 %v2402, %v2590
      %v2678 = vadd.f32 %v2403, %v2593
      %v2679 = vadd.f32 %v2404, %v2596
      %v2680 = vadd.f32 %v2405, %v2599
      %v2681 = vadd.f32 %v2406, %v2602
      %v2682 = vadd.f32 %v2407, %v2605
      %v2683 = vadd.f32 %v2408, %v2608
      %v2684 = vadd.f32 %v2409, %v2611
      %v2685 = vadd.f32 %v2410, %v2614
      %v2686 = vadd.f32 %v2411, %v2617
      %v2687 = vadd.f32 %v2412, %v2620
      %v2688 = vadd.f32 %v2413, %v2623
      %v2689 = vadd.f32 %v2414, %v2626
      %v2690 = vadd.f32 %v2415, %v2629
      %v2691 = vadd.f32 %v2416, %v2632
      %v2692 = vadd.f32 %v2417, %v2635
      %v2693 = vadd.f32 %v2418, %v2638
      %v2694 = vadd.f32 %v2419, %v2641
      %v2695 = vadd.f32 %v2420, %v2644
      %v2696 = vadd.f32 %v2421, %v2647
      %v2697 = vadd.f32 %v2422, %v2650
      %v2698 = vadd.f32 %v2423, %v2653
      %v2699 = vadd.f32 %v2424, %v2656
      %v2700 = vadd.f32 %v2425, %v2659
      %v2701 = vadd.f32 %v2426, %v2662
      %v2702 = vadd.f32 %v2427, %v2665
      %v2703 = vadd.f32 %v2428, %v2668
      %v2704 = vadd.f32 %v2429, %v2671
      %v2705 = vld [vmem:[%s450 + $0x1] sm:$0xff]
      %v2706 = vld [vmem:[%s450 + $0x9] sm:$0xff]
      %v2707 = vld [vmem:[%s450 + $0x19] sm:$0xff]
      %v2708 = vld [vmem:[%s450 + $0x21] sm:$0xff]
      %v2709 = vld [vmem:[%s450 + $0x31] sm:$0xff]
      %v2710 = vld [vmem:[%s450 + $0x39] sm:$0xff]
      %v2711 = vld [vmem:[%s450 + $0x49] sm:$0xff]
      %v2712 = vld [vmem:[%s450 + $0x51] sm:$0xff]
      %v2713 = vld [vmem:[%s450 + $0x61] sm:$0xff]
      %v2714 = vld [vmem:[%s450 + $0x69] sm:$0xff]
      %v2715 = vld [vmem:[%s450 + $0x79] sm:$0xff]
      %v2716 = vld [vmem:[%s450 + $0x81] sm:$0xff]
      %v2717 = vld [vmem:[%s450 + $0x91] sm:$0xff]
      %v2718 = vld [vmem:[%s450 + $0x99] sm:$0xff]
      %v2719 = vld [vmem:[%s450 + $0xa9] sm:$0xff]
      %v2720 = vld [vmem:[%s450 + $0xb1] sm:$0xff]
      %v2721 = vld [vmem:[%s450 + $0xc1] sm:$0xff]
      %v2722 = vld [vmem:[%s450 + $0xc9] sm:$0xff]
      %v2723 = vld [vmem:[%s450 + $0xd9] sm:$0xff]
      %v2724 = vld [vmem:[%s450 + $0xe1] sm:$0xff]
      %v2725 = vld [vmem:[%s450 + $0xf1] sm:$0xff]
      %v2726 = vld [vmem:[%s450 + $0xf9] sm:$0xff]
      %v2727 = vld [vmem:[%s450 + $0x109] sm:$0xff]
      %v2728 = vld [vmem:[%s450 + $0x111] sm:$0xff]
      %v2729 = vld [vmem:[%s450 + $0x121] sm:$0xff]
      %v2730 = vld [vmem:[%s450 + $0x129] sm:$0xff]
      %v2731 = vld [vmem:[%s450 + $0x139] sm:$0xff]
      %v2732 = vld [vmem:[%s450 + $0x141] sm:$0xff]
      %v2733 = vld [vmem:[%s450 + $0x151] sm:$0xff]
      %v2734 = vld [vmem:[%s450 + $0x159] sm:$0xff]
      %v2735 = vld [vmem:[%s450 + $0x169] sm:$0xff]
      %v2736 = vld [vmem:[%s450 + $0x171] sm:$0xff]
      %s2737 = scalar_lea.vmem %s4, 32
      %v2738 = vld [vmem:[%s2737] sm:$0xff]
      %v2740 = vsel %vm326, %v2705, 0
      %v2743 = vsel %vm326, %v2706, 0
      %v2746 = vsel %vm326, %v2707, 0
      %v2749 = vsel %vm326, %v2708, 0
      %v2752 = vsel %vm326, %v2709, 0
      %v2755 = vsel %vm326, %v2710, 0
      %v2758 = vsel %vm326, %v2711, 0
      %v2761 = vsel %vm326, %v2712, 0
      %v2764 = vsel %vm326, %v2713, 0
      %v2767 = vsel %vm326, %v2714, 0
      %v2770 = vsel %vm326, %v2715, 0
      %v2773 = vsel %vm326, %v2716, 0
      %v2776 = vsel %vm326, %v2717, 0
      %v2779 = vsel %vm326, %v2718, 0
      %v2782 = vsel %vm326, %v2719, 0
      %v2785 = vsel %vm326, %v2720, 0
      %v2788 = vsel %vm326, %v2721, 0
      %v2791 = vsel %vm326, %v2722, 0
      %v2794 = vsel %vm326, %v2723, 0
      %v2797 = vsel %vm326, %v2724, 0
      %v2800 = vsel %vm326, %v2725, 0
      %v2803 = vsel %vm326, %v2726, 0
      %v2806 = vsel %vm326, %v2727, 0
      %v2809 = vsel %vm326, %v2728, 0
      %v2812 = vsel %vm326, %v2729, 0
      %v2815 = vsel %vm326, %v2730, 0
      %v2818 = vsel %vm326, %v2731, 0
      %v2821 = vsel %vm326, %v2732, 0
      %v2824 = vsel %vm326, %v2733, 0
      %v2827 = vsel %vm326, %v2734, 0
      %v2830 = vsel %vm326, %v2735, 0
      %v2833 = vsel %vm326, %v2736, 0
      %2835 = vmatpush.msra.mxu0 0.0
      %2836 = vmatpush.msra.mxu0 0.0
      %2837 = vmatpush.msra.mxu0 0.0
      %2838 = vmatpush.msra.mxu0 0.0
      %2839 = vmatpush.msra.mxu0 0.0
      %2840 = vmatpush.msra.mxu0 0.0
      %2841 = vmatpush.msra.mxu0 0.0
      %2842 = vmatpush.msra.mxu0 0.0
      %2843 = vmatpush.msra.mxu0 0.0
      %2844 = vmatpush.msra.mxu0 0.0
      %2845 = vmatpush.msra.mxu0 0.0
      %2846 = vmatpush.msra.mxu0 0.0
      %2847 = vmatpush.msra.mxu0 0.0
      %2848 = vmatpush.msra.mxu0 0.0
      %2849 = vmatpush.msra.mxu0 0.0
      %2850 = vmatpush.msra.mxu0 %v2738
      %2851 = vmatmul.f32.gmra.mxu0 %v2740
      %v2852 = vpop.f32.mrf.mxu0
      %v2853 = vadd.f32 0.0, %v2852
      %2854 = vmatmul.f32.gmra.mxu0 %v2743
      %v2855 = vpop.f32.mrf.mxu0
      %v2856 = vadd.f32 0.0, %v2855
      %2857 = vmatmul.f32.gmra.mxu0 %v2746
      %v2858 = vpop.f32.mrf.mxu0
      %v2859 = vadd.f32 0.0, %v2858
      %2860 = vmatmul.f32.gmra.mxu0 %v2749
      %v2861 = vpop.f32.mrf.mxu0
      %v2862 = vadd.f32 0.0, %v2861
      %2863 = vmatmul.f32.gmra.mxu0 %v2752
      %v2864 = vpop.f32.mrf.mxu0
      %v2865 = vadd.f32 0.0, %v2864
      %2866 = vmatmul.f32.gmra.mxu0 %v2755
      %v2867 = vpop.f32.mrf.mxu0
      %v2868 = vadd.f32 0.0, %v2867
      %2869 = vmatmul.f32.gmra.mxu0 %v2758
      %v2870 = vpop.f32.mrf.mxu0
      %v2871 = vadd.f32 0.0, %v2870
      %2872 = vmatmul.f32.gmra.mxu0 %v2761
      %v2873 = vpop.f32.mrf.mxu0
      %v2874 = vadd.f32 0.0, %v2873
      %2875 = vmatmul.f32.gmra.mxu0 %v2764
      %v2876 = vpop.f32.mrf.mxu0
      %v2877 = vadd.f32 0.0, %v2876
      %2878 = vmatmul.f32.gmra.mxu0 %v2767
      %v2879 = vpop.f32.mrf.mxu0
      %v2880 = vadd.f32 0.0, %v2879
      %2881 = vmatmul.f32.gmra.mxu0 %v2770
      %v2882 = vpop.f32.mrf.mxu0
      %v2883 = vadd.f32 0.0, %v2882
      %2884 = vmatmul.f32.gmra.mxu0 %v2773
      %v2885 = vpop.f32.mrf.mxu0
      %v2886 = vadd.f32 0.0, %v2885
      %2887 = vmatmul.f32.gmra.mxu0 %v2776
      %v2888 = vpop.f32.mrf.mxu0
      %v2889 = vadd.f32 0.0, %v2888
      %2890 = vmatmul.f32.gmra.mxu0 %v2779
      %v2891 = vpop.f32.mrf.mxu0
      %v2892 = vadd.f32 0.0, %v2891
      %2893 = vmatmul.f32.gmra.mxu0 %v2782
      %v2894 = vpop.f32.mrf.mxu0
      %v2895 = vadd.f32 0.0, %v2894
      %2896 = vmatmul.f32.gmra.mxu0 %v2785
      %v2897 = vpop.f32.mrf.mxu0
      %v2898 = vadd.f32 0.0, %v2897
      %2899 = vmatmul.f32.gmra.mxu0 %v2788
      %v2900 = vpop.f32.mrf.mxu0
      %v2901 = vadd.f32 0.0, %v2900
      %2902 = vmatmul.f32.gmra.mxu0 %v2791
      %v2903 = vpop.f32.mrf.mxu0
      %v2904 = vadd.f32 0.0, %v2903
      %2905 = vmatmul.f32.gmra.mxu0 %v2794
      %v2906 = vpop.f32.mrf.mxu0
      %v2907 = vadd.f32 0.0, %v2906
      %2908 = vmatmul.f32.gmra.mxu0 %v2797
      %v2909 = vpop.f32.mrf.mxu0
      %v2910 = vadd.f32 0.0, %v2909
      %2911 = vmatmul.f32.gmra.mxu0 %v2800
      %v2912 = vpop.f32.mrf.mxu0
      %v2913 = vadd.f32 0.0, %v2912
      %2914 = vmatmul.f32.gmra.mxu0 %v2803
      %v2915 = vpop.f32.mrf.mxu0
      %v2916 = vadd.f32 0.0, %v2915
      %2917 = vmatmul.f32.gmra.mxu0 %v2806
      %v2918 = vpop.f32.mrf.mxu0
      %v2919 = vadd.f32 0.0, %v2918
      %2920 = vmatmul.f32.gmra.mxu0 %v2809
      %v2921 = vpop.f32.mrf.mxu0
      %v2922 = vadd.f32 0.0, %v2921
      %2923 = vmatmul.f32.gmra.mxu0 %v2812
      %v2924 = vpop.f32.mrf.mxu0
      %v2925 = vadd.f32 0.0, %v2924
      %2926 = vmatmul.f32.gmra.mxu0 %v2815
      %v2927 = vpop.f32.mrf.mxu0
      %v2928 = vadd.f32 0.0, %v2927
      %2929 = vmatmul.f32.gmra.mxu0 %v2818
      %v2930 = vpop.f32.mrf.mxu0
      %v2931 = vadd.f32 0.0, %v2930
      %2932 = vmatmul.f32.gmra.mxu0 %v2821
      %v2933 = vpop.f32.mrf.mxu0
      %v2934 = vadd.f32 0.0, %v2933
      %2935 = vmatmul.f32.gmra.mxu0 %v2824
      %v2936 = vpop.f32.mrf.mxu0
      %v2937 = vadd.f32 0.0, %v2936
      %2938 = vmatmul.f32.gmra.mxu0 %v2827
      %v2939 = vpop.f32.mrf.mxu0
      %v2940 = vadd.f32 0.0, %v2939
      %2941 = vmatmul.f32.gmra.mxu0 %v2830
      %v2942 = vpop.f32.mrf.mxu0
      %v2943 = vadd.f32 0.0, %v2942
      %2944 = vmatmul.f32.gmra.mxu0 %v2833
      %v2945 = vpop.f32.mrf.mxu0
      %v2946 = vadd.f32 0.0, %v2945
      %2947 = vdwg.mxu0
      %v2948 = vadd.f32 %v2673, %v2853
      %v2949 = vadd.f32 %v2674, %v2856
      %v2950 = vadd.f32 %v2675, %v2859
      %v2951 = vadd.f32 %v2676, %v2862
      %v2952 = vadd.f32 %v2677, %v2865
      %v2953 = vadd.f32 %v2678, %v2868
      %v2954 = vadd.f32 %v2679, %v2871
      %v2955 = vadd.f32 %v2680, %v2874
      %v2956 = vadd.f32 %v2681, %v2877
      %v2957 = vadd.f32 %v2682, %v2880
      %v2958 = vadd.f32 %v2683, %v2883
      %v2959 = vadd.f32 %v2684, %v2886
      %v2960 = vadd.f32 %v2685, %v2889
      %v2961 = vadd.f32 %v2686, %v2892
      %v2962 = vadd.f32 %v2687, %v2895
      %v2963 = vadd.f32 %v2688, %v2898
      %v2964 = vadd.f32 %v2689, %v2901
      %v2965 = vadd.f32 %v2690, %v2904
      %v2966 = vadd.f32 %v2691, %v2907
      %v2967 = vadd.f32 %v2692, %v2910
      %v2968 = vadd.f32 %v2693, %v2913
      %v2969 = vadd.f32 %v2694, %v2916
      %v2970 = vadd.f32 %v2695, %v2919
      %v2971 = vadd.f32 %v2696, %v2922
      %v2972 = vadd.f32 %v2697, %v2925
      %v2973 = vadd.f32 %v2698, %v2928
      %v2974 = vadd.f32 %v2699, %v2931
      %v2975 = vadd.f32 %v2700, %v2934
      %v2976 = vadd.f32 %v2701, %v2937
      %v2977 = vadd.f32 %v2702, %v2940
      %v2978 = vadd.f32 %v2703, %v2943
      %v2979 = vadd.f32 %v2704, %v2946
      %v2980 = vld [vmem:[%s450 + $0x2] sm:$0xff]
      %v2981 = vld [vmem:[%s450 + $0xa] sm:$0xff]
      %v2982 = vld [vmem:[%s450 + $0x1a] sm:$0xff]
      %v2983 = vld [vmem:[%s450 + $0x22] sm:$0xff]
      %v2984 = vld [vmem:[%s450 + $0x32] sm:$0xff]
      %v2985 = vld [vmem:[%s450 + $0x3a] sm:$0xff]
      %v2986 = vld [vmem:[%s450 + $0x4a] sm:$0xff]
      %v2987 = vld [vmem:[%s450 + $0x52] sm:$0xff]
      %v2988 = vld [vmem:[%s450 + $0x62] sm:$0xff]
      %v2989 = vld [vmem:[%s450 + $0x6a] sm:$0xff]
      %v2990 = vld [vmem:[%s450 + $0x7a] sm:$0xff]
      %v2991 = vld [vmem:[%s450 + $0x82] sm:$0xff]
      %v2992 = vld [vmem:[%s450 + $0x92] sm:$0xff]
      %v2993 = vld [vmem:[%s450 + $0x9a] sm:$0xff]
      %v2994 = vld [vmem:[%s450 + $0xaa] sm:$0xff]
      %v2995 = vld [vmem:[%s450 + $0xb2] sm:$0xff]
      %v2996 = vld [vmem:[%s450 + $0xc2] sm:$0xff]
      %v2997 = vld [vmem:[%s450 + $0xca] sm:$0xff]
      %v2998 = vld [vmem:[%s450 + $0xda] sm:$0xff]
      %v2999 = vld [vmem:[%s450 + $0xe2] sm:$0xff]
      %v3000 = vld [vmem:[%s450 + $0xf2] sm:$0xff]
      %v3001 = vld [vmem:[%s450 + $0xfa] sm:$0xff]
      %v3002 = vld [vmem:[%s450 + $0x10a] sm:$0xff]
      %v3003 = vld [vmem:[%s450 + $0x112] sm:$0xff]
      %v3004 = vld [vmem:[%s450 + $0x122] sm:$0xff]
      %v3005 = vld [vmem:[%s450 + $0x12a] sm:$0xff]
      %v3006 = vld [vmem:[%s450 + $0x13a] sm:$0xff]
      %v3007 = vld [vmem:[%s450 + $0x142] sm:$0xff]
      %v3008 = vld [vmem:[%s450 + $0x152] sm:$0xff]
      %v3009 = vld [vmem:[%s450 + $0x15a] sm:$0xff]
      %v3010 = vld [vmem:[%s450 + $0x16a] sm:$0xff]
      %v3011 = vld [vmem:[%s450 + $0x172] sm:$0xff]
      %s3012 = scalar_lea.vmem %s4, 40
      %v3013 = vld [vmem:[%s3012] sm:$0xff]
      %v3015 = vsel %vm326, %v2980, 0
      %v3018 = vsel %vm326, %v2981, 0
      %v3021 = vsel %vm326, %v2982, 0
      %v3024 = vsel %vm326, %v2983, 0
      %v3027 = vsel %vm326, %v2984, 0
      %v3030 = vsel %vm326, %v2985, 0
      %v3033 = vsel %vm326, %v2986, 0
      %v3036 = vsel %vm326, %v2987, 0
      %v3039 = vsel %vm326, %v2988, 0
      %v3042 = vsel %vm326, %v2989, 0
      %v3045 = vsel %vm326, %v2990, 0
      %v3048 = vsel %vm326, %v2991, 0
      %v3051 = vsel %vm326, %v2992, 0
      %v3054 = vsel %vm326, %v2993, 0
      %v3057 = vsel %vm326, %v2994, 0
      %v3060 = vsel %vm326, %v2995, 0
      %v3063 = vsel %vm326, %v2996, 0
      %v3066 = vsel %vm326, %v2997, 0
      %v3069 = vsel %vm326, %v2998, 0
      %v3072 = vsel %vm326, %v2999, 0
      %v3075 = vsel %vm326, %v3000, 0
      %v3078 = vsel %vm326, %v3001, 0
      %v3081 = vsel %vm326, %v3002, 0
      %v3084 = vsel %vm326, %v3003, 0
      %v3087 = vsel %vm326, %v3004, 0
      %v3090 = vsel %vm326, %v3005, 0
      %v3093 = vsel %vm326, %v3006, 0
      %v3096 = vsel %vm326, %v3007, 0
      %v3099 = vsel %vm326, %v3008, 0
      %v3102 = vsel %vm326, %v3009, 0
      %v3105 = vsel %vm326, %v3010, 0
      %v3108 = vsel %vm326, %v3011, 0
      %3110 = vmatpush.msra.mxu0 0.0
      %3111 = vmatpush.msra.mxu0 0.0
      %3112 = vmatpush.msra.mxu0 0.0
      %3113 = vmatpush.msra.mxu0 0.0
      %3114 = vmatpush.msra.mxu0 0.0
      %3115 = vmatpush.msra.mxu0 0.0
      %3116 = vmatpush.msra.mxu0 0.0
      %3117 = vmatpush.msra.mxu0 0.0
      %3118 = vmatpush.msra.mxu0 0.0
      %3119 = vmatpush.msra.mxu0 0.0
      %3120 = vmatpush.msra.mxu0 0.0
      %3121 = vmatpush.msra.mxu0 0.0
      %3122 = vmatpush.msra.mxu0 0.0
      %3123 = vmatpush.msra.mxu0 0.0
      %3124 = vmatpush.msra.mxu0 0.0
      %3125 = vmatpush.msra.mxu0 %v3013
      %3126 = vmatmul.f32.gmra.mxu0 %v3015
      %v3127 = vpop.f32.mrf.mxu0
      %v3128 = vadd.f32 0.0, %v3127
      %3129 = vmatmul.f32.gmra.mxu0 %v3018
      %v3130 = vpop.f32.mrf.mxu0
      %v3131 = vadd.f32 0.0, %v3130
      %3132 = vmatmul.f32.gmra.mxu0 %v3021
      %v3133 = vpop.f32.mrf.mxu0
      %v3134 = vadd.f32 0.0, %v3133
      %3135 = vmatmul.f32.gmra.mxu0 %v3024
      %v3136 = vpop.f32.mrf.mxu0
      %v3137 = vadd.f32 0.0, %v3136
      %3138 = vmatmul.f32.gmra.mxu0 %v3027
      %v3139 = vpop.f32.mrf.mxu0
      %v3140 = vadd.f32 0.0, %v3139
      %3141 = vmatmul.f32.gmra.mxu0 %v3030
      %v3142 = vpop.f32.mrf.mxu0
      %v3143 = vadd.f32 0.0, %v3142
      %3144 = vmatmul.f32.gmra.mxu0 %v3033
      %v3145 = vpop.f32.mrf.mxu0
      %v3146 = vadd.f32 0.0, %v3145
      %3147 = vmatmul.f32.gmra.mxu0 %v3036
      %v3148 = vpop.f32.mrf.mxu0
      %v3149 = vadd.f32 0.0, %v3148
      %3150 = vmatmul.f32.gmra.mxu0 %v3039
      %v3151 = vpop.f32.mrf.mxu0
      %v3152 = vadd.f32 0.0, %v3151
      %3153 = vmatmul.f32.gmra.mxu0 %v3042
      %v3154 = vpop.f32.mrf.mxu0
      %v3155 = vadd.f32 0.0, %v3154
      %3156 = vmatmul.f32.gmra.mxu0 %v3045
      %v3157 = vpop.f32.mrf.mxu0
      %v3158 = vadd.f32 0.0, %v3157
      %3159 = vmatmul.f32.gmra.mxu0 %v3048
      %v3160 = vpop.f32.mrf.mxu0
      %v3161 = vadd.f32 0.0, %v3160
      %3162 = vmatmul.f32.gmra.mxu0 %v3051
      %v3163 = vpop.f32.mrf.mxu0
      %v3164 = vadd.f32 0.0, %v3163
      %3165 = vmatmul.f32.gmra.mxu0 %v3054
      %v3166 = vpop.f32.mrf.mxu0
      %v3167 = vadd.f32 0.0, %v3166
      %3168 = vmatmul.f32.gmra.mxu0 %v3057
      %v3169 = vpop.f32.mrf.mxu0
      %v3170 = vadd.f32 0.0, %v3169
      %3171 = vmatmul.f32.gmra.mxu0 %v3060
      %v3172 = vpop.f32.mrf.mxu0
      %v3173 = vadd.f32 0.0, %v3172
      %3174 = vmatmul.f32.gmra.mxu0 %v3063
      %v3175 = vpop.f32.mrf.mxu0
      %v3176 = vadd.f32 0.0, %v3175
      %3177 = vmatmul.f32.gmra.mxu0 %v3066
      %v3178 = vpop.f32.mrf.mxu0
      %v3179 = vadd.f32 0.0, %v3178
      %3180 = vmatmul.f32.gmra.mxu0 %v3069
      %v3181 = vpop.f32.mrf.mxu0
      %v3182 = vadd.f32 0.0, %v3181
      %3183 = vmatmul.f32.gmra.mxu0 %v3072
      %v3184 = vpop.f32.mrf.mxu0
      %v3185 = vadd.f32 0.0, %v3184
      %3186 = vmatmul.f32.gmra.mxu0 %v3075
      %v3187 = vpop.f32.mrf.mxu0
      %v3188 = vadd.f32 0.0, %v3187
      %3189 = vmatmul.f32.gmra.mxu0 %v3078
      %v3190 = vpop.f32.mrf.mxu0
      %v3191 = vadd.f32 0.0, %v3190
      %3192 = vmatmul.f32.gmra.mxu0 %v3081
      %v3193 = vpop.f32.mrf.mxu0
      %v3194 = vadd.f32 0.0, %v3193
      %3195 = vmatmul.f32.gmra.mxu0 %v3084
      %v3196 = vpop.f32.mrf.mxu0
      %v3197 = vadd.f32 0.0, %v3196
      %3198 = vmatmul.f32.gmra.mxu0 %v3087
      %v3199 = vpop.f32.mrf.mxu0
      %v3200 = vadd.f32 0.0, %v3199
      %3201 = vmatmul.f32.gmra.mxu0 %v3090
      %v3202 = vpop.f32.mrf.mxu0
      %v3203 = vadd.f32 0.0, %v3202
      %3204 = vmatmul.f32.gmra.mxu0 %v3093
      %v3205 = vpop.f32.mrf.mxu0
      %v3206 = vadd.f32 0.0, %v3205
      %3207 = vmatmul.f32.gmra.mxu0 %v3096
      %v3208 = vpop.f32.mrf.mxu0
      %v3209 = vadd.f32 0.0, %v3208
      %3210 = vmatmul.f32.gmra.mxu0 %v3099
      %v3211 = vpop.f32.mrf.mxu0
      %v3212 = vadd.f32 0.0, %v3211
      %3213 = vmatmul.f32.gmra.mxu0 %v3102
      %v3214 = vpop.f32.mrf.mxu0
      %v3215 = vadd.f32 0.0, %v3214
      %3216 = vmatmul.f32.gmra.mxu0 %v3105
      %v3217 = vpop.f32.mrf.mxu0
      %v3218 = vadd.f32 0.0, %v3217
      %3219 = vmatmul.f32.gmra.mxu0 %v3108
      %v3220 = vpop.f32.mrf.mxu0
      %v3221 = vadd.f32 0.0, %v3220
      %3222 = vdwg.mxu0
      %v3223 = vadd.f32 %v2948, %v3128
      %v3224 = vadd.f32 %v2949, %v3131
      %v3225 = vadd.f32 %v2950, %v3134
      %v3226 = vadd.f32 %v2951, %v3137
      %v3227 = vadd.f32 %v2952, %v3140
      %v3228 = vadd.f32 %v2953, %v3143
      %v3229 = vadd.f32 %v2954, %v3146
      %v3230 = vadd.f32 %v2955, %v3149
      %v3231 = vadd.f32 %v2956, %v3152
      %v3232 = vadd.f32 %v2957, %v3155
      %v3233 = vadd.f32 %v2958, %v3158
      %v3234 = vadd.f32 %v2959, %v3161
      %v3235 = vadd.f32 %v2960, %v3164
      %v3236 = vadd.f32 %v2961, %v3167
      %v3237 = vadd.f32 %v2962, %v3170
      %v3238 = vadd.f32 %v2963, %v3173
      %v3239 = vadd.f32 %v2964, %v3176
      %v3240 = vadd.f32 %v2965, %v3179
      %v3241 = vadd.f32 %v2966, %v3182
      %v3242 = vadd.f32 %v2967, %v3185
      %v3243 = vadd.f32 %v2968, %v3188
      %v3244 = vadd.f32 %v2969, %v3191
      %v3245 = vadd.f32 %v2970, %v3194
      %v3246 = vadd.f32 %v2971, %v3197
      %v3247 = vadd.f32 %v2972, %v3200
      %v3248 = vadd.f32 %v2973, %v3203
      %v3249 = vadd.f32 %v2974, %v3206
      %v3250 = vadd.f32 %v2975, %v3209
      %v3251 = vadd.f32 %v2976, %v3212
      %v3252 = vadd.f32 %v2977, %v3215
      %v3253 = vadd.f32 %v2978, %v3218
      %v3254 = vadd.f32 %v2979, %v3221
      %v3255 = vld [vmem:[%s955] sm:$0xff]
      %v3256 = vld [vmem:[%s955 + $0x8] sm:$0xff]
      %v3257 = vld [vmem:[%s955 + $0x18] sm:$0xff]
      %v3258 = vld [vmem:[%s955 + $0x20] sm:$0xff]
      %v3259 = vld [vmem:[%s955 + $0x30] sm:$0xff]
      %v3260 = vld [vmem:[%s955 + $0x38] sm:$0xff]
      %v3261 = vld [vmem:[%s955 + $0x48] sm:$0xff]
      %v3262 = vld [vmem:[%s955 + $0x50] sm:$0xff]
      %v3263 = vld [vmem:[%s955 + $0x60] sm:$0xff]
      %v3264 = vld [vmem:[%s955 + $0x68] sm:$0xff]
      %v3265 = vld [vmem:[%s955 + $0x78] sm:$0xff]
      %v3266 = vld [vmem:[%s955 + $0x80] sm:$0xff]
      %v3267 = vld [vmem:[%s955 + $0x90] sm:$0xff]
      %v3268 = vld [vmem:[%s955 + $0x98] sm:$0xff]
      %v3269 = vld [vmem:[%s955 + $0xa8] sm:$0xff]
      %v3270 = vld [vmem:[%s955 + $0xb0] sm:$0xff]
      %v3271 = vld [vmem:[%s955 + $0xc0] sm:$0xff]
      %v3272 = vld [vmem:[%s955 + $0xc8] sm:$0xff]
      %v3273 = vld [vmem:[%s955 + $0xd8] sm:$0xff]
      %v3274 = vld [vmem:[%s955 + $0xe0] sm:$0xff]
      %v3275 = vld [vmem:[%s955 + $0xf0] sm:$0xff]
      %v3276 = vld [vmem:[%s955 + $0xf8] sm:$0xff]
      %v3277 = vld [vmem:[%s955 + $0x108] sm:$0xff]
      %v3278 = vld [vmem:[%s955 + $0x110] sm:$0xff]
      %v3279 = vld [vmem:[%s955 + $0x120] sm:$0xff]
      %v3280 = vld [vmem:[%s955 + $0x128] sm:$0xff]
      %v3281 = vld [vmem:[%s955 + $0x138] sm:$0xff]
      %v3282 = vld [vmem:[%s955 + $0x140] sm:$0xff]
      %v3283 = vld [vmem:[%s955 + $0x150] sm:$0xff]
      %v3284 = vld [vmem:[%s955 + $0x158] sm:$0xff]
      %v3285 = vld [vmem:[%s955 + $0x168] sm:$0xff]
      %v3286 = vld [vmem:[%s955 + $0x170] sm:$0xff]
      %s3287 = scalar_lea.vmem %s4, 48
      %v3288 = vld [vmem:[%s3287] sm:$0xff]
      %v3290 = vsel %vm326, %v3255, 0
      %v3293 = vsel %vm326, %v3256, 0
      %v3296 = vsel %vm326, %v3257, 0
      %v3299 = vsel %vm326, %v3258, 0
      %v3302 = vsel %vm326, %v3259, 0
      %v3305 = vsel %vm326, %v3260, 0
      %v3308 = vsel %vm326, %v3261, 0
      %v3311 = vsel %vm326, %v3262, 0
      %v3314 = vsel %vm326, %v3263, 0
      %v3317 = vsel %vm326, %v3264, 0
      %v3320 = vsel %vm326, %v3265, 0
      %v3323 = vsel %vm326, %v3266, 0
      %v3326 = vsel %vm326, %v3267, 0
      %v3329 = vsel %vm326, %v3268, 0
      %v3332 = vsel %vm326, %v3269, 0
      %v3335 = vsel %vm326, %v3270, 0
      %v3338 = vsel %vm326, %v3271, 0
      %v3341 = vsel %vm326, %v3272, 0
      %v3344 = vsel %vm326, %v3273, 0
      %v3347 = vsel %vm326, %v3274, 0
      %v3350 = vsel %vm326, %v3275, 0
      %v3353 = vsel %vm326, %v3276, 0
      %v3356 = vsel %vm326, %v3277, 0
      %v3359 = vsel %vm326, %v3278, 0
      %v3362 = vsel %vm326, %v3279, 0
      %v3365 = vsel %vm326, %v3280, 0
      %v3368 = vsel %vm326, %v3281, 0
      %v3371 = vsel %vm326, %v3282, 0
      %v3374 = vsel %vm326, %v3283, 0
      %v3377 = vsel %vm326, %v3284, 0
      %v3380 = vsel %vm326, %v3285, 0
      %v3383 = vsel %vm326, %v3286, 0
      %3385 = vmatpush.msra.mxu0 0.0
      %3386 = vmatpush.msra.mxu0 0.0
      %3387 = vmatpush.msra.mxu0 0.0
      %3388 = vmatpush.msra.mxu0 0.0
      %3389 = vmatpush.msra.mxu0 0.0
      %3390 = vmatpush.msra.mxu0 0.0
      %3391 = vmatpush.msra.mxu0 0.0
      %3392 = vmatpush.msra.mxu0 0.0
      %3393 = vmatpush.msra.mxu0 0.0
      %3394 = vmatpush.msra.mxu0 0.0
      %3395 = vmatpush.msra.mxu0 0.0
      %3396 = vmatpush.msra.mxu0 0.0
      %3397 = vmatpush.msra.mxu0 0.0
      %3398 = vmatpush.msra.mxu0 0.0
      %3399 = vmatpush.msra.mxu0 0.0
      %3400 = vmatpush.msra.mxu0 %v3288
      %3401 = vmatmul.f32.gmra.mxu0 %v3290
      %v3402 = vpop.f32.mrf.mxu0
      %v3403 = vadd.f32 0.0, %v3402
      %3404 = vmatmul.f32.gmra.mxu0 %v3293
      %v3405 = vpop.f32.mrf.mxu0
      %v3406 = vadd.f32 0.0, %v3405
      %3407 = vmatmul.f32.gmra.mxu0 %v3296
      %v3408 = vpop.f32.mrf.mxu0
      %v3409 = vadd.f32 0.0, %v3408
      %3410 = vmatmul.f32.gmra.mxu0 %v3299
      %v3411 = vpop.f32.mrf.mxu0
      %v3412 = vadd.f32 0.0, %v3411
      %3413 = vmatmul.f32.gmra.mxu0 %v3302
      %v3414 = vpop.f32.mrf.mxu0
      %v3415 = vadd.f32 0.0, %v3414
      %3416 = vmatmul.f32.gmra.mxu0 %v3305
      %v3417 = vpop.f32.mrf.mxu0
      %v3418 = vadd.f32 0.0, %v3417
      %3419 = vmatmul.f32.gmra.mxu0 %v3308
      %v3420 = vpop.f32.mrf.mxu0
      %v3421 = vadd.f32 0.0, %v3420
      %3422 = vmatmul.f32.gmra.mxu0 %v3311
      %v3423 = vpop.f32.mrf.mxu0
      %v3424 = vadd.f32 0.0, %v3423
      %3425 = vmatmul.f32.gmra.mxu0 %v3314
      %v3426 = vpop.f32.mrf.mxu0
      %v3427 = vadd.f32 0.0, %v3426
      %3428 = vmatmul.f32.gmra.mxu0 %v3317
      %v3429 = vpop.f32.mrf.mxu0
      %v3430 = vadd.f32 0.0, %v3429
      %3431 = vmatmul.f32.gmra.mxu0 %v3320
      %v3432 = vpop.f32.mrf.mxu0
      %v3433 = vadd.f32 0.0, %v3432
      %3434 = vmatmul.f32.gmra.mxu0 %v3323
      %v3435 = vpop.f32.mrf.mxu0
      %v3436 = vadd.f32 0.0, %v3435
      %3437 = vmatmul.f32.gmra.mxu0 %v3326
      %v3438 = vpop.f32.mrf.mxu0
      %v3439 = vadd.f32 0.0, %v3438
      %3440 = vmatmul.f32.gmra.mxu0 %v3329
      %v3441 = vpop.f32.mrf.mxu0
      %v3442 = vadd.f32 0.0, %v3441
      %3443 = vmatmul.f32.gmra.mxu0 %v3332
      %v3444 = vpop.f32.mrf.mxu0
      %v3445 = vadd.f32 0.0, %v3444
      %3446 = vmatmul.f32.gmra.mxu0 %v3335
      %v3447 = vpop.f32.mrf.mxu0
      %v3448 = vadd.f32 0.0, %v3447
      %3449 = vmatmul.f32.gmra.mxu0 %v3338
      %v3450 = vpop.f32.mrf.mxu0
      %v3451 = vadd.f32 0.0, %v3450
      %3452 = vmatmul.f32.gmra.mxu0 %v3341
      %v3453 = vpop.f32.mrf.mxu0
      %v3454 = vadd.f32 0.0, %v3453
      %3455 = vmatmul.f32.gmra.mxu0 %v3344
      %v3456 = vpop.f32.mrf.mxu0
      %v3457 = vadd.f32 0.0, %v3456
      %3458 = vmatmul.f32.gmra.mxu0 %v3347
      %v3459 = vpop.f32.mrf.mxu0
      %v3460 = vadd.f32 0.0, %v3459
      %3461 = vmatmul.f32.gmra.mxu0 %v3350
      %v3462 = vpop.f32.mrf.mxu0
      %v3463 = vadd.f32 0.0, %v3462
      %3464 = vmatmul.f32.gmra.mxu0 %v3353
      %v3465 = vpop.f32.mrf.mxu0
      %v3466 = vadd.f32 0.0, %v3465
      %3467 = vmatmul.f32.gmra.mxu0 %v3356
      %v3468 = vpop.f32.mrf.mxu0
      %v3469 = vadd.f32 0.0, %v3468
      %3470 = vmatmul.f32.gmra.mxu0 %v3359
      %v3471 = vpop.f32.mrf.mxu0
      %v3472 = vadd.f32 0.0, %v3471
      %3473 = vmatmul.f32.gmra.mxu0 %v3362
      %v3474 = vpop.f32.mrf.mxu0
      %v3475 = vadd.f32 0.0, %v3474
      %3476 = vmatmul.f32.gmra.mxu0 %v3365
      %v3477 = vpop.f32.mrf.mxu0
      %v3478 = vadd.f32 0.0, %v3477
      %3479 = vmatmul.f32.gmra.mxu0 %v3368
      %v3480 = vpop.f32.mrf.mxu0
      %v3481 = vadd.f32 0.0, %v3480
      %3482 = vmatmul.f32.gmra.mxu0 %v3371
      %v3483 = vpop.f32.mrf.mxu0
      %v3484 = vadd.f32 0.0, %v3483
      %3485 = vmatmul.f32.gmra.mxu0 %v3374
      %v3486 = vpop.f32.mrf.mxu0
      %v3487 = vadd.f32 0.0, %v3486
      %3488 = vmatmul.f32.gmra.mxu0 %v3377
      %v3489 = vpop.f32.mrf.mxu0
      %v3490 = vadd.f32 0.0, %v3489
      %3491 = vmatmul.f32.gmra.mxu0 %v3380
      %v3492 = vpop.f32.mrf.mxu0
      %v3493 = vadd.f32 0.0, %v3492
      %3494 = vmatmul.f32.gmra.mxu0 %v3383
      %v3495 = vpop.f32.mrf.mxu0
      %v3496 = vadd.f32 0.0, %v3495
      %3497 = vdwg.mxu0
      %v3498 = vadd.f32 %v3223, %v3403
      %v3499 = vadd.f32 %v3224, %v3406
      %v3500 = vadd.f32 %v3225, %v3409
      %v3501 = vadd.f32 %v3226, %v3412
      %v3502 = vadd.f32 %v3227, %v3415
      %v3503 = vadd.f32 %v3228, %v3418
      %v3504 = vadd.f32 %v3229, %v3421
      %v3505 = vadd.f32 %v3230, %v3424
      %v3506 = vadd.f32 %v3231, %v3427
      %v3507 = vadd.f32 %v3232, %v3430
      %v3508 = vadd.f32 %v3233, %v3433
      %v3509 = vadd.f32 %v3234, %v3436
      %v3510 = vadd.f32 %v3235, %v3439
      %v3511 = vadd.f32 %v3236, %v3442
      %v3512 = vadd.f32 %v3237, %v3445
      %v3513 = vadd.f32 %v3238, %v3448
      %v3514 = vadd.f32 %v3239, %v3451
      %v3515 = vadd.f32 %v3240, %v3454
      %v3516 = vadd.f32 %v3241, %v3457
      %v3517 = vadd.f32 %v3242, %v3460
      %v3518 = vadd.f32 %v3243, %v3463
      %v3519 = vadd.f32 %v3244, %v3466
      %v3520 = vadd.f32 %v3245, %v3469
      %v3521 = vadd.f32 %v3246, %v3472
      %v3522 = vadd.f32 %v3247, %v3475
      %v3523 = vadd.f32 %v3248, %v3478
      %v3524 = vadd.f32 %v3249, %v3481
      %v3525 = vadd.f32 %v3250, %v3484
      %v3526 = vadd.f32 %v3251, %v3487
      %v3527 = vadd.f32 %v3252, %v3490
      %v3528 = vadd.f32 %v3253, %v3493
      %v3529 = vadd.f32 %v3254, %v3496
      %v3530 = vld [vmem:[%s955 + $0x1] sm:$0xff]
      %v3531 = vld [vmem:[%s955 + $0x9] sm:$0xff]
      %v3532 = vld [vmem:[%s955 + $0x19] sm:$0xff]
      %v3533 = vld [vmem:[%s955 + $0x21] sm:$0xff]
      %v3534 = vld [vmem:[%s955 + $0x31] sm:$0xff]
      %v3535 = vld [vmem:[%s955 + $0x39] sm:$0xff]
      %v3536 = vld [vmem:[%s955 + $0x49] sm:$0xff]
      %v3537 = vld [vmem:[%s955 + $0x51] sm:$0xff]
      %v3538 = vld [vmem:[%s955 + $0x61] sm:$0xff]
      %v3539 = vld [vmem:[%s955 + $0x69] sm:$0xff]
      %v3540 = vld [vmem:[%s955 + $0x79] sm:$0xff]
      %v3541 = vld [vmem:[%s955 + $0x81] sm:$0xff]
      %v3542 = vld [vmem:[%s955 + $0x91] sm:$0xff]
      %v3543 = vld [vmem:[%s955 + $0x99] sm:$0xff]
      %v3544 = vld [vmem:[%s955 + $0xa9] sm:$0xff]
      %v3545 = vld [vmem:[%s955 + $0xb1] sm:$0xff]
      %v3546 = vld [vmem:[%s955 + $0xc1] sm:$0xff]
      %v3547 = vld [vmem:[%s955 + $0xc9] sm:$0xff]
      %v3548 = vld [vmem:[%s955 + $0xd9] sm:$0xff]
      %v3549 = vld [vmem:[%s955 + $0xe1] sm:$0xff]
      %v3550 = vld [vmem:[%s955 + $0xf1] sm:$0xff]
      %v3551 = vld [vmem:[%s955 + $0xf9] sm:$0xff]
      %v3552 = vld [vmem:[%s955 + $0x109] sm:$0xff]
      %v3553 = vld [vmem:[%s955 + $0x111] sm:$0xff]
      %v3554 = vld [vmem:[%s955 + $0x121] sm:$0xff]
      %v3555 = vld [vmem:[%s955 + $0x129] sm:$0xff]
      %v3556 = vld [vmem:[%s955 + $0x139] sm:$0xff]
      %v3557 = vld [vmem:[%s955 + $0x141] sm:$0xff]
      %v3558 = vld [vmem:[%s955 + $0x151] sm:$0xff]
      %v3559 = vld [vmem:[%s955 + $0x159] sm:$0xff]
      %v3560 = vld [vmem:[%s955 + $0x169] sm:$0xff]
      %v3561 = vld [vmem:[%s955 + $0x171] sm:$0xff]
      %s3562 = scalar_lea.vmem %s4, 56
      %v3563 = vld [vmem:[%s3562] sm:$0xff]
      %v3565 = vsel %vm326, %v3530, 0
      %v3568 = vsel %vm326, %v3531, 0
      %v3571 = vsel %vm326, %v3532, 0
      %v3574 = vsel %vm326, %v3533, 0
      %v3577 = vsel %vm326, %v3534, 0
      %v3580 = vsel %vm326, %v3535, 0
      %v3583 = vsel %vm326, %v3536, 0
      %v3586 = vsel %vm326, %v3537, 0
      %v3589 = vsel %vm326, %v3538, 0
      %v3592 = vsel %vm326, %v3539, 0
      %v3595 = vsel %vm326, %v3540, 0
      %v3598 = vsel %vm326, %v3541, 0
      %v3601 = vsel %vm326, %v3542, 0
      %v3604 = vsel %vm326, %v3543, 0
      %v3607 = vsel %vm326, %v3544, 0
      %v3610 = vsel %vm326, %v3545, 0
      %v3613 = vsel %vm326, %v3546, 0
      %v3616 = vsel %vm326, %v3547, 0
      %v3619 = vsel %vm326, %v3548, 0
      %v3622 = vsel %vm326, %v3549, 0
      %v3625 = vsel %vm326, %v3550, 0
      %v3628 = vsel %vm326, %v3551, 0
      %v3631 = vsel %vm326, %v3552, 0
      %v3634 = vsel %vm326, %v3553, 0
      %v3637 = vsel %vm326, %v3554, 0
      %v3640 = vsel %vm326, %v3555, 0
      %v3643 = vsel %vm326, %v3556, 0
      %v3646 = vsel %vm326, %v3557, 0
      %v3649 = vsel %vm326, %v3558, 0
      %v3652 = vsel %vm326, %v3559, 0
      %v3655 = vsel %vm326, %v3560, 0
      %v3658 = vsel %vm326, %v3561, 0
      %3660 = vmatpush.msra.mxu0 0.0
      %3661 = vmatpush.msra.mxu0 0.0
      %3662 = vmatpush.msra.mxu0 0.0
      %3663 = vmatpush.msra.mxu0 0.0
      %3664 = vmatpush.msra.mxu0 0.0
      %3665 = vmatpush.msra.mxu0 0.0
      %3666 = vmatpush.msra.mxu0 0.0
      %3667 = vmatpush.msra.mxu0 0.0
      %3668 = vmatpush.msra.mxu0 0.0
      %3669 = vmatpush.msra.mxu0 0.0
      %3670 = vmatpush.msra.mxu0 0.0
      %3671 = vmatpush.msra.mxu0 0.0
      %3672 = vmatpush.msra.mxu0 0.0
      %3673 = vmatpush.msra.mxu0 0.0
      %3674 = vmatpush.msra.mxu0 0.0
      %3675 = vmatpush.msra.mxu0 %v3563
      %3676 = vmatmul.f32.gmra.mxu0 %v3565
      %v3677 = vpop.f32.mrf.mxu0
      %v3678 = vadd.f32 0.0, %v3677
      %3679 = vmatmul.f32.gmra.mxu0 %v3568
      %v3680 = vpop.f32.mrf.mxu0
      %v3681 = vadd.f32 0.0, %v3680
      %3682 = vmatmul.f32.gmra.mxu0 %v3571
      %v3683 = vpop.f32.mrf.mxu0
      %v3684 = vadd.f32 0.0, %v3683
      %3685 = vmatmul.f32.gmra.mxu0 %v3574
      %v3686 = vpop.f32.mrf.mxu0
      %v3687 = vadd.f32 0.0, %v3686
      %3688 = vmatmul.f32.gmra.mxu0 %v3577
      %v3689 = vpop.f32.mrf.mxu0
      %v3690 = vadd.f32 0.0, %v3689
      %3691 = vmatmul.f32.gmra.mxu0 %v3580
      %v3692 = vpop.f32.mrf.mxu0
      %v3693 = vadd.f32 0.0, %v3692
      %3694 = vmatmul.f32.gmra.mxu0 %v3583
      %v3695 = vpop.f32.mrf.mxu0
      %v3696 = vadd.f32 0.0, %v3695
      %3697 = vmatmul.f32.gmra.mxu0 %v3586
      %v3698 = vpop.f32.mrf.mxu0
      %v3699 = vadd.f32 0.0, %v3698
      %3700 = vmatmul.f32.gmra.mxu0 %v3589
      %v3701 = vpop.f32.mrf.mxu0
      %v3702 = vadd.f32 0.0, %v3701
      %3703 = vmatmul.f32.gmra.mxu0 %v3592
      %v3704 = vpop.f32.mrf.mxu0
      %v3705 = vadd.f32 0.0, %v3704
      %3706 = vmatmul.f32.gmra.mxu0 %v3595
      %v3707 = vpop.f32.mrf.mxu0
      %v3708 = vadd.f32 0.0, %v3707
      %3709 = vmatmul.f32.gmra.mxu0 %v3598
      %v3710 = vpop.f32.mrf.mxu0
      %v3711 = vadd.f32 0.0, %v3710
      %3712 = vmatmul.f32.gmra.mxu0 %v3601
      %v3713 = vpop.f32.mrf.mxu0
      %v3714 = vadd.f32 0.0, %v3713
      %3715 = vmatmul.f32.gmra.mxu0 %v3604
      %v3716 = vpop.f32.mrf.mxu0
      %v3717 = vadd.f32 0.0, %v3716
      %3718 = vmatmul.f32.gmra.mxu0 %v3607
      %v3719 = vpop.f32.mrf.mxu0
      %v3720 = vadd.f32 0.0, %v3719
      %3721 = vmatmul.f32.gmra.mxu0 %v3610
      %v3722 = vpop.f32.mrf.mxu0
      %v3723 = vadd.f32 0.0, %v3722
      %3724 = vmatmul.f32.gmra.mxu0 %v3613
      %v3725 = vpop.f32.mrf.mxu0
      %v3726 = vadd.f32 0.0, %v3725
      %3727 = vmatmul.f32.gmra.mxu0 %v3616
      %v3728 = vpop.f32.mrf.mxu0
      %v3729 = vadd.f32 0.0, %v3728
      %3730 = vmatmul.f32.gmra.mxu0 %v3619
      %v3731 = vpop.f32.mrf.mxu0
      %v3732 = vadd.f32 0.0, %v3731
      %3733 = vmatmul.f32.gmra.mxu0 %v3622
      %v3734 = vpop.f32.mrf.mxu0
      %v3735 = vadd.f32 0.0, %v3734
      %3736 = vmatmul.f32.gmra.mxu0 %v3625
      %v3737 = vpop.f32.mrf.mxu0
      %v3738 = vadd.f32 0.0, %v3737
      %3739 = vmatmul.f32.gmra.mxu0 %v3628
      %v3740 = vpop.f32.mrf.mxu0
      %v3741 = vadd.f32 0.0, %v3740
      %3742 = vmatmul.f32.gmra.mxu0 %v3631
      %v3743 = vpop.f32.mrf.mxu0
      %v3744 = vadd.f32 0.0, %v3743
      %3745 = vmatmul.f32.gmra.mxu0 %v3634
      %v3746 = vpop.f32.mrf.mxu0
      %v3747 = vadd.f32 0.0, %v3746
      %3748 = vmatmul.f32.gmra.mxu0 %v3637
      %v3749 = vpop.f32.mrf.mxu0
      %v3750 = vadd.f32 0.0, %v3749
      %3751 = vmatmul.f32.gmra.mxu0 %v3640
      %v3752 = vpop.f32.mrf.mxu0
      %v3753 = vadd.f32 0.0, %v3752
      %3754 = vmatmul.f32.gmra.mxu0 %v3643
      %v3755 = vpop.f32.mrf.mxu0
      %v3756 = vadd.f32 0.0, %v3755
      %3757 = vmatmul.f32.gmra.mxu0 %v3646
      %v3758 = vpop.f32.mrf.mxu0
      %v3759 = vadd.f32 0.0, %v3758
      %3760 = vmatmul.f32.gmra.mxu0 %v3649
      %v3761 = vpop.f32.mrf.mxu0
      %v3762 = vadd.f32 0.0, %v3761
      %3763 = vmatmul.f32.gmra.mxu0 %v3652
      %v3764 = vpop.f32.mrf.mxu0
      %v3765 = vadd.f32 0.0, %v3764
      %3766 = vmatmul.f32.gmra.mxu0 %v3655
      %v3767 = vpop.f32.mrf.mxu0
      %v3768 = vadd.f32 0.0, %v3767
      %3769 = vmatmul.f32.gmra.mxu0 %v3658
      %v3770 = vpop.f32.mrf.mxu0
      %v3771 = vadd.f32 0.0, %v3770
      %3772 = vdwg.mxu0
      %v3773 = vadd.f32 %v3498, %v3678
      %v3774 = vadd.f32 %v3499, %v3681
      %v3775 = vadd.f32 %v3500, %v3684
      %v3776 = vadd.f32 %v3501, %v3687
      %v3777 = vadd.f32 %v3502, %v3690
      %v3778 = vadd.f32 %v3503, %v3693
      %v3779 = vadd.f32 %v3504, %v3696
      %v3780 = vadd.f32 %v3505, %v3699
      %v3781 = vadd.f32 %v3506, %v3702
      %v3782 = vadd.f32 %v3507, %v3705
      %v3783 = vadd.f32 %v3508, %v3708
      %v3784 = vadd.f32 %v3509, %v3711
      %v3785 = vadd.f32 %v3510, %v3714
      %v3786 = vadd.f32 %v3511, %v3717
      %v3787 = vadd.f32 %v3512, %v3720
      %v3788 = vadd.f32 %v3513, %v3723
      %v3789 = vadd.f32 %v3514, %v3726
      %v3790 = vadd.f32 %v3515, %v3729
      %v3791 = vadd.f32 %v3516, %v3732
      %v3792 = vadd.f32 %v3517, %v3735
      %v3793 = vadd.f32 %v3518, %v3738
      %v3794 = vadd.f32 %v3519, %v3741
      %v3795 = vadd.f32 %v3520, %v3744
      %v3796 = vadd.f32 %v3521, %v3747
      %v3797 = vadd.f32 %v3522, %v3750
      %v3798 = vadd.f32 %v3523, %v3753
      %v3799 = vadd.f32 %v3524, %v3756
      %v3800 = vadd.f32 %v3525, %v3759
      %v3801 = vadd.f32 %v3526, %v3762
      %v3802 = vadd.f32 %v3527, %v3765
      %v3803 = vadd.f32 %v3528, %v3768
      %v3804 = vadd.f32 %v3529, %v3771
      %v3805 = vld [vmem:[%s955 + $0x2] sm:$0xff]
      %v3806 = vld [vmem:[%s955 + $0xa] sm:$0xff]
      %v3807 = vld [vmem:[%s955 + $0x1a] sm:$0xff]
      %v3808 = vld [vmem:[%s955 + $0x22] sm:$0xff]
      %v3809 = vld [vmem:[%s955 + $0x32] sm:$0xff]
      %v3810 = vld [vmem:[%s955 + $0x3a] sm:$0xff]
      %v3811 = vld [vmem:[%s955 + $0x4a] sm:$0xff]
      %v3812 = vld [vmem:[%s955 + $0x52] sm:$0xff]
      %v3813 = vld [vmem:[%s955 + $0x62] sm:$0xff]
      %v3814 = vld [vmem:[%s955 + $0x6a] sm:$0xff]
      %v3815 = vld [vmem:[%s955 + $0x7a] sm:$0xff]
      %v3816 = vld [vmem:[%s955 + $0x82] sm:$0xff]
      %v3817 = vld [vmem:[%s955 + $0x92] sm:$0xff]
      %v3818 = vld [vmem:[%s955 + $0x9a] sm:$0xff]
      %v3819 = vld [vmem:[%s955 + $0xaa] sm:$0xff]
      %v3820 = vld [vmem:[%s955 + $0xb2] sm:$0xff]
      %v3821 = vld [vmem:[%s955 + $0xc2] sm:$0xff]
      %v3822 = vld [vmem:[%s955 + $0xca] sm:$0xff]
      %v3823 = vld [vmem:[%s955 + $0xda] sm:$0xff]
      %v3824 = vld [vmem:[%s955 + $0xe2] sm:$0xff]
      %v3825 = vld [vmem:[%s955 + $0xf2] sm:$0xff]
      %v3826 = vld [vmem:[%s955 + $0xfa] sm:$0xff]
      %v3827 = vld [vmem:[%s955 + $0x10a] sm:$0xff]
      %v3828 = vld [vmem:[%s955 + $0x112] sm:$0xff]
      %v3829 = vld [vmem:[%s955 + $0x122] sm:$0xff]
      %v3830 = vld [vmem:[%s955 + $0x12a] sm:$0xff]
      %v3831 = vld [vmem:[%s955 + $0x13a] sm:$0xff]
      %v3832 = vld [vmem:[%s955 + $0x142] sm:$0xff]
      %v3833 = vld [vmem:[%s955 + $0x152] sm:$0xff]
      %v3834 = vld [vmem:[%s955 + $0x15a] sm:$0xff]
      %v3835 = vld [vmem:[%s955 + $0x16a] sm:$0xff]
      %v3836 = vld [vmem:[%s955 + $0x172] sm:$0xff]
      %s3837 = scalar_lea.vmem %s4, 64
      %v3838 = vld [vmem:[%s3837] sm:$0xff]
      %v3840 = vsel %vm326, %v3805, 0
      %v3843 = vsel %vm326, %v3806, 0
      %v3846 = vsel %vm326, %v3807, 0
      %v3849 = vsel %vm326, %v3808, 0
      %v3852 = vsel %vm326, %v3809, 0
      %v3855 = vsel %vm326, %v3810, 0
      %v3858 = vsel %vm326, %v3811, 0
      %v3861 = vsel %vm326, %v3812, 0
      %v3864 = vsel %vm326, %v3813, 0
      %v3867 = vsel %vm326, %v3814, 0
      %v3870 = vsel %vm326, %v3815, 0
      %v3873 = vsel %vm326, %v3816, 0
      %v3876 = vsel %vm326, %v3817, 0
      %v3879 = vsel %vm326, %v3818, 0
      %v3882 = vsel %vm326, %v3819, 0
      %v3885 = vsel %vm326, %v3820, 0
      %v3888 = vsel %vm326, %v3821, 0
      %v3891 = vsel %vm326, %v3822, 0
      %v3894 = vsel %vm326, %v3823, 0
      %v3897 = vsel %vm326, %v3824, 0
      %v3900 = vsel %vm326, %v3825, 0
      %v3903 = vsel %vm326, %v3826, 0
      %v3906 = vsel %vm326, %v3827, 0
      %v3909 = vsel %vm326, %v3828, 0
      %v3912 = vsel %vm326, %v3829, 0
      %v3915 = vsel %vm326, %v3830, 0
      %v3918 = vsel %vm326, %v3831, 0
      %v3921 = vsel %vm326, %v3832, 0
      %v3924 = vsel %vm326, %v3833, 0
      %v3927 = vsel %vm326, %v3834, 0
      %v3930 = vsel %vm326, %v3835, 0
      %v3933 = vsel %vm326, %v3836, 0
      %3935 = vmatpush.msra.mxu0 0.0
      %3936 = vmatpush.msra.mxu0 0.0
      %3937 = vmatpush.msra.mxu0 0.0
      %3938 = vmatpush.msra.mxu0 0.0
      %3939 = vmatpush.msra.mxu0 0.0
      %3940 = vmatpush.msra.mxu0 0.0
      %3941 = vmatpush.msra.mxu0 0.0
      %3942 = vmatpush.msra.mxu0 0.0
      %3943 = vmatpush.msra.mxu0 0.0
      %3944 = vmatpush.msra.mxu0 0.0
      %3945 = vmatpush.msra.mxu0 0.0
      %3946 = vmatpush.msra.mxu0 0.0
      %3947 = vmatpush.msra.mxu0 0.0
      %3948 = vmatpush.msra.mxu0 0.0
      %3949 = vmatpush.msra.mxu0 0.0
      %3950 = vmatpush.msra.mxu0 %v3838
      %3951 = vmatmul.f32.gmra.mxu0 %v3840
      %v3952 = vpop.f32.mrf.mxu0
      %v3953 = vadd.f32 0.0, %v3952
      %3954 = vmatmul.f32.gmra.mxu0 %v3843
      %v3955 = vpop.f32.mrf.mxu0
      %v3956 = vadd.f32 0.0, %v3955
      %3957 = vmatmul.f32.gmra.mxu0 %v3846
      %v3958 = vpop.f32.mrf.mxu0
      %v3959 = vadd.f32 0.0, %v3958
      %3960 = vmatmul.f32.gmra.mxu0 %v3849
      %v3961 = vpop.f32.mrf.mxu0
      %v3962 = vadd.f32 0.0, %v3961
      %3963 = vmatmul.f32.gmra.mxu0 %v3852
      %v3964 = vpop.f32.mrf.mxu0
      %v3965 = vadd.f32 0.0, %v3964
      %3966 = vmatmul.f32.gmra.mxu0 %v3855
      %v3967 = vpop.f32.mrf.mxu0
      %v3968 = vadd.f32 0.0, %v3967
      %3969 = vmatmul.f32.gmra.mxu0 %v3858
      %v3970 = vpop.f32.mrf.mxu0
      %v3971 = vadd.f32 0.0, %v3970
      %3972 = vmatmul.f32.gmra.mxu0 %v3861
      %v3973 = vpop.f32.mrf.mxu0
      %v3974 = vadd.f32 0.0, %v3973
      %3975 = vmatmul.f32.gmra.mxu0 %v3864
      %v3976 = vpop.f32.mrf.mxu0
      %v3977 = vadd.f32 0.0, %v3976
      %3978 = vmatmul.f32.gmra.mxu0 %v3867
      %v3979 = vpop.f32.mrf.mxu0
      %v3980 = vadd.f32 0.0, %v3979
      %3981 = vmatmul.f32.gmra.mxu0 %v3870
      %v3982 = vpop.f32.mrf.mxu0
      %v3983 = vadd.f32 0.0, %v3982
      %3984 = vmatmul.f32.gmra.mxu0 %v3873
      %v3985 = vpop.f32.mrf.mxu0
      %v3986 = vadd.f32 0.0, %v3985
      %3987 = vmatmul.f32.gmra.mxu0 %v3876
      %v3988 = vpop.f32.mrf.mxu0
      %v3989 = vadd.f32 0.0, %v3988
      %3990 = vmatmul.f32.gmra.mxu0 %v3879
      %v3991 = vpop.f32.mrf.mxu0
      %v3992 = vadd.f32 0.0, %v3991
      %3993 = vmatmul.f32.gmra.mxu0 %v3882
      %v3994 = vpop.f32.mrf.mxu0
      %v3995 = vadd.f32 0.0, %v3994
      %3996 = vmatmul.f32.gmra.mxu0 %v3885
      %v3997 = vpop.f32.mrf.mxu0
      %v3998 = vadd.f32 0.0, %v3997
      %3999 = vmatmul.f32.gmra.mxu0 %v3888
      %v4000 = vpop.f32.mrf.mxu0
      %v4001 = vadd.f32 0.0, %v4000
      %4002 = vmatmul.f32.gmra.mxu0 %v3891
      %v4003 = vpop.f32.mrf.mxu0
      %v4004 = vadd.f32 0.0, %v4003
      %4005 = vmatmul.f32.gmra.mxu0 %v3894
      %v4006 = vpop.f32.mrf.mxu0
      %v4007 = vadd.f32 0.0, %v4006
      %4008 = vmatmul.f32.gmra.mxu0 %v3897
      %v4009 = vpop.f32.mrf.mxu0
      %v4010 = vadd.f32 0.0, %v4009
      %4011 = vmatmul.f32.gmra.mxu0 %v3900
      %v4012 = vpop.f32.mrf.mxu0
      %v4013 = vadd.f32 0.0, %v4012
      %4014 = vmatmul.f32.gmra.mxu0 %v3903
      %v4015 = vpop.f32.mrf.mxu0
      %v4016 = vadd.f32 0.0, %v4015
      %4017 = vmatmul.f32.gmra.mxu0 %v3906
      %v4018 = vpop.f32.mrf.mxu0
      %v4019 = vadd.f32 0.0, %v4018
      %4020 = vmatmul.f32.gmra.mxu0 %v3909
      %v4021 = vpop.f32.mrf.mxu0
      %v4022 = vadd.f32 0.0, %v4021
      %4023 = vmatmul.f32.gmra.mxu0 %v3912
      %v4024 = vpop.f32.mrf.mxu0
      %v4025 = vadd.f32 0.0, %v4024
      %4026 = vmatmul.f32.gmra.mxu0 %v3915
      %v4027 = vpop.f32.mrf.mxu0
      %v4028 = vadd.f32 0.0, %v4027
      %4029 = vmatmul.f32.gmra.mxu0 %v3918
      %v4030 = vpop.f32.mrf.mxu0
      %v4031 = vadd.f32 0.0, %v4030
      %4032 = vmatmul.f32.gmra.mxu0 %v3921
      %v4033 = vpop.f32.mrf.mxu0
      %v4034 = vadd.f32 0.0, %v4033
      %4035 = vmatmul.f32.gmra.mxu0 %v3924
      %v4036 = vpop.f32.mrf.mxu0
      %v4037 = vadd.f32 0.0, %v4036
      %4038 = vmatmul.f32.gmra.mxu0 %v3927
      %v4039 = vpop.f32.mrf.mxu0
      %v4040 = vadd.f32 0.0, %v4039
      %4041 = vmatmul.f32.gmra.mxu0 %v3930
      %v4042 = vpop.f32.mrf.mxu0
      %v4043 = vadd.f32 0.0, %v4042
      %4044 = vmatmul.f32.gmra.mxu0 %v3933
      %v4045 = vpop.f32.mrf.mxu0
      %v4046 = vadd.f32 0.0, %v4045
      %4047 = vdwg.mxu0
      %v4048 = vadd.f32 %v3773, %v3953
      %v4049 = vadd.f32 %v3774, %v3956
      %v4050 = vadd.f32 %v3775, %v3959
      %v4051 = vadd.f32 %v3776, %v3962
      %v4052 = vadd.f32 %v3777, %v3965
      %v4053 = vadd.f32 %v3778, %v3968
      %v4054 = vadd.f32 %v3779, %v3971
      %v4055 = vadd.f32 %v3780, %v3974
      %v4056 = vadd.f32 %v3781, %v3977
      %v4057 = vadd.f32 %v3782, %v3980
      %v4058 = vadd.f32 %v3783, %v3983
      %v4059 = vadd.f32 %v3784, %v3986
      %v4060 = vadd.f32 %v3785, %v3989
      %v4061 = vadd.f32 %v3786, %v3992
      %v4062 = vadd.f32 %v3787, %v3995
      %v4063 = vadd.f32 %v3788, %v3998
      %v4064 = vadd.f32 %v3789, %v4001
      %v4065 = vadd.f32 %v3790, %v4004
      %v4066 = vadd.f32 %v3791, %v4007
      %v4067 = vadd.f32 %v3792, %v4010
      %v4068 = vadd.f32 %v3793, %v4013
      %v4069 = vadd.f32 %v3794, %v4016
      %v4070 = vadd.f32 %v3795, %v4019
      %v4071 = vadd.f32 %v3796, %v4022
      %v4072 = vadd.f32 %v3797, %v4025
      %v4073 = vadd.f32 %v3798, %v4028
      %v4074 = vadd.f32 %v3799, %v4031
      %v4075 = vadd.f32 %v3800, %v4034
      %v4076 = vadd.f32 %v3801, %v4037
      %v4077 = vadd.f32 %v3802, %v4040
      %v4078 = vadd.f32 %v3803, %v4043
      %v4079 = vadd.f32 %v3804, %v4046
      %v4080 = vld [vmem:[%s5] sm:$0x1]
      %v4082 = vperm.slane %v4080, 0
      %v4084 = vadd.f32 %v4048, %v4082
      %v4085 = vadd.f32 %v4049, %v4082
      %v4086 = vadd.f32 %v4050, %v4082
      %v4087 = vadd.f32 %v4051, %v4082
      %v4088 = vadd.f32 %v4052, %v4082
      %v4089 = vadd.f32 %v4053, %v4082
      %v4090 = vadd.f32 %v4054, %v4082
      %v4091 = vadd.f32 %v4055, %v4082
      %v4092 = vadd.f32 %v4056, %v4082
      %v4093 = vadd.f32 %v4057, %v4082
      %v4094 = vadd.f32 %v4058, %v4082
      %v4095 = vadd.f32 %v4059, %v4082
      %v4096 = vadd.f32 %v4060, %v4082
      %v4097 = vadd.f32 %v4061, %v4082
      %v4098 = vadd.f32 %v4062, %v4082
      %v4099 = vadd.f32 %v4063, %v4082
      %v4100 = vadd.f32 %v4064, %v4082
      %v4101 = vadd.f32 %v4065, %v4082
      %v4102 = vadd.f32 %v4066, %v4082
      %v4103 = vadd.f32 %v4067, %v4082
      %v4104 = vadd.f32 %v4068, %v4082
      %v4105 = vadd.f32 %v4069, %v4082
      %v4106 = vadd.f32 %v4070, %v4082
      %v4107 = vadd.f32 %v4071, %v4082
      %v4108 = vadd.f32 %v4072, %v4082
      %v4109 = vadd.f32 %v4073, %v4082
      %v4110 = vadd.f32 %v4074, %v4082
      %v4111 = vadd.f32 %v4075, %v4082
      %v4112 = vadd.f32 %v4076, %v4082
      %v4113 = vadd.f32 %v4077, %v4082
      %v4114 = vadd.f32 %v4078, %v4082
      %v4115 = vadd.f32 %v4079, %v4082
      %v4116 = vmax.f32 %v4084, 0.0
      %v4117 = vmax.f32 %v4085, 0.0
      %v4118 = vmax.f32 %v4086, 0.0
      %v4119 = vmax.f32 %v4087, 0.0
      %v4120 = vmax.f32 %v4088, 0.0
      %v4121 = vmax.f32 %v4089, 0.0
      %v4122 = vmax.f32 %v4090, 0.0
      %v4123 = vmax.f32 %v4091, 0.0
      %v4124 = vmax.f32 %v4092, 0.0
      %v4125 = vmax.f32 %v4093, 0.0
      %v4126 = vmax.f32 %v4094, 0.0
      %v4127 = vmax.f32 %v4095, 0.0
      %v4128 = vmax.f32 %v4096, 0.0
      %v4129 = vmax.f32 %v4097, 0.0
      %v4130 = vmax.f32 %v4098, 0.0
      %v4131 = vmax.f32 %v4099, 0.0
      %v4132 = vmax.f32 %v4100, 0.0
      %v4133 = vmax.f32 %v4101, 0.0
      %v4134 = vmax.f32 %v4102, 0.0
      %v4135 = vmax.f32 %v4103, 0.0
      %v4136 = vmax.f32 %v4104, 0.0
      %v4137 = vmax.f32 %v4105, 0.0
      %v4138 = vmax.f32 %v4106, 0.0
      %v4139 = vmax.f32 %v4107, 0.0
      %v4140 = vmax.f32 %v4108, 0.0
      %v4141 = vmax.f32 %v4109, 0.0
      %v4142 = vmax.f32 %v4110, 0.0
      %v4143 = vmax.f32 %v4111, 0.0
      %v4144 = vmax.f32 %v4112, 0.0
      %v4145 = vmax.f32 %v4113, 0.0
      %v4146 = vmax.f32 %v4114, 0.0
      %v4147 = vmax.f32 %v4115, 0.0
      %s4148 = scalar_lea.vmem [#allocation3], 24
      %4149 = vst.msk [vmem:[%s4148 + $0x1] sm:$0xff] %vm372, %v4116
      %4150 = vst.msk [vmem:[%s4148 + $0x9] sm:$0xff] %vm372, %v4117
      %4151 = vst.msk [vmem:[%s4148 + $0x19] sm:$0xff] %vm372, %v4118
      %4152 = vst.msk [vmem:[%s4148 + $0x21] sm:$0xff] %vm372, %v4119
      %4153 = vst.msk [vmem:[%s4148 + $0x31] sm:$0xff] %vm372, %v4120
      %4154 = vst.msk [vmem:[%s4148 + $0x39] sm:$0xff] %vm372, %v4121
      %4155 = vst.msk [vmem:[%s4148 + $0x49] sm:$0xff] %vm372, %v4122
      %4156 = vst.msk [vmem:[%s4148 + $0x51] sm:$0xff] %vm372, %v4123
      %4157 = vst.msk [vmem:[%s4148 + $0x61] sm:$0xff] %vm372, %v4124
      %4158 = vst.msk [vmem:[%s4148 + $0x69] sm:$0xff] %vm372, %v4125
      %4159 = vst.msk [vmem:[%s4148 + $0x79] sm:$0xff] %vm372, %v4126
      %4160 = vst.msk [vmem:[%s4148 + $0x81] sm:$0xff] %vm372, %v4127
      %4161 = vst.msk [vmem:[%s4148 + $0x91] sm:$0xff] %vm372, %v4128
      %4162 = vst.msk [vmem:[%s4148 + $0x99] sm:$0xff] %vm372, %v4129
      %4163 = vst.msk [vmem:[%s4148 + $0xa9] sm:$0xff] %vm372, %v4130
      %4164 = vst.msk [vmem:[%s4148 + $0xb1] sm:$0xff] %vm372, %v4131
      %4165 = vst.msk [vmem:[%s4148 + $0xc1] sm:$0xff] %vm372, %v4132
      %4166 = vst.msk [vmem:[%s4148 + $0xc9] sm:$0xff] %vm372, %v4133
      %4167 = vst.msk [vmem:[%s4148 + $0xd9] sm:$0xff] %vm372, %v4134
      %4168 = vst.msk [vmem:[%s4148 + $0xe1] sm:$0xff] %vm372, %v4135
      %4169 = vst.msk [vmem:[%s4148 + $0xf1] sm:$0xff] %vm372, %v4136
      %4170 = vst.msk [vmem:[%s4148 + $0xf9] sm:$0xff] %vm372, %v4137
      %4171 = vst.msk [vmem:[%s4148 + $0x109] sm:$0xff] %vm372, %v4138
      %4172 = vst.msk [vmem:[%s4148 + $0x111] sm:$0xff] %vm372, %v4139
      %4173 = vst.msk [vmem:[%s4148 + $0x121] sm:$0xff] %vm372, %v4140
      %4174 = vst.msk [vmem:[%s4148 + $0x129] sm:$0xff] %vm372, %v4141
      %4175 = vst.msk [vmem:[%s4148 + $0x139] sm:$0xff] %vm372, %v4142
      %4176 = vst.msk [vmem:[%s4148 + $0x141] sm:$0xff] %vm372, %v4143
      %4177 = vst.msk [vmem:[%s4148 + $0x151] sm:$0xff] %vm372, %v4144
      %4178 = vst.msk [vmem:[%s4148 + $0x159] sm:$0xff] %vm372, %v4145
      %4179 = vst.msk [vmem:[%s4148 + $0x169] sm:$0xff] %vm372, %v4146
      %4180 = vst.msk [vmem:[%s4148 + $0x171] sm:$0xff] %vm372, %v4147
      %v4181 = vld [vmem:[#allocation3] sm:$0xff]
      %v4182 = vld [vmem:[#allocation3 + $0x8] sm:$0xff]
      %v4183 = vld [vmem:[#allocation3 + $0x18] sm:$0xff]
      %v4184 = vld [vmem:[#allocation3 + $0x20] sm:$0xff]
      %v4185 = vld [vmem:[#allocation3 + $0x30] sm:$0xff]
      %v4186 = vld [vmem:[#allocation3 + $0x38] sm:$0xff]
      %v4187 = vld [vmem:[#allocation3 + $0x48] sm:$0xff]
      %v4188 = vld [vmem:[#allocation3 + $0x50] sm:$0xff]
      %v4189 = vld [vmem:[#allocation3 + $0x60] sm:$0xff]
      %v4190 = vld [vmem:[#allocation3 + $0x68] sm:$0xff]
      %v4191 = vld [vmem:[#allocation3 + $0x78] sm:$0xff]
      %v4192 = vld [vmem:[#allocation3 + $0x80] sm:$0xff]
      %v4193 = vld [vmem:[#allocation3 + $0x90] sm:$0xff]
      %v4194 = vld [vmem:[#allocation3 + $0x98] sm:$0xff]
      %v4195 = vld [vmem:[#allocation3 + $0xa8] sm:$0xff]
      %v4196 = vld [vmem:[#allocation3 + $0xb0] sm:$0xff]
      %v4197 = vld [vmem:[#allocation3 + $0xc0] sm:$0xff]
      %v4198 = vld [vmem:[#allocation3 + $0xc8] sm:$0xff]
      %v4199 = vld [vmem:[#allocation3 + $0xd8] sm:$0xff]
      %v4200 = vld [vmem:[#allocation3 + $0xe0] sm:$0xff]
      %v4201 = vld [vmem:[#allocation3 + $0xf0] sm:$0xff]
      %v4202 = vld [vmem:[#allocation3 + $0xf8] sm:$0xff]
      %v4203 = vld [vmem:[#allocation3 + $0x108] sm:$0xff]
      %v4204 = vld [vmem:[#allocation3 + $0x110] sm:$0xff]
      %v4205 = vld [vmem:[#allocation3 + $0x120] sm:$0xff]
      %v4206 = vld [vmem:[#allocation3 + $0x128] sm:$0xff]
      %v4207 = vld [vmem:[#allocation3 + $0x138] sm:$0xff]
      %v4208 = vld [vmem:[#allocation3 + $0x140] sm:$0xff]
      %v4209 = vld [vmem:[#allocation3 + $0x150] sm:$0xff]
      %v4210 = vld [vmem:[#allocation3 + $0x158] sm:$0xff]
      %v4211 = vld [vmem:[#allocation3 + $0x168] sm:$0xff]
      %v4212 = vld [vmem:[#allocation3 + $0x170] sm:$0xff]
      %v4213 = vld [vmem:[%s6] sm:$0xf]
      %v4214 = vld [vmem:[#allocation3 + $0x1] sm:$0xff]
      %v4215 = vld [vmem:[#allocation3 + $0x9] sm:$0xff]
      %v4216 = vld [vmem:[#allocation3 + $0x19] sm:$0xff]
      %v4217 = vld [vmem:[#allocation3 + $0x21] sm:$0xff]
      %v4218 = vld [vmem:[#allocation3 + $0x31] sm:$0xff]
      %v4219 = vld [vmem:[#allocation3 + $0x39] sm:$0xff]
      %v4220 = vld [vmem:[#allocation3 + $0x49] sm:$0xff]
      %v4221 = vld [vmem:[#allocation3 + $0x51] sm:$0xff]
      %v4222 = vld [vmem:[#allocation3 + $0x61] sm:$0xff]
      %v4223 = vld [vmem:[#allocation3 + $0x69] sm:$0xff]
      %v4224 = vld [vmem:[#allocation3 + $0x79] sm:$0xff]
      %v4225 = vld [vmem:[#allocation3 + $0x81] sm:$0xff]
      %v4226 = vld [vmem:[#allocation3 + $0x91] sm:$0xff]
      %v4227 = vld [vmem:[#allocation3 + $0x99] sm:$0xff]
      %v4228 = vld [vmem:[#allocation3 + $0xa9] sm:$0xff]
      %v4229 = vld [vmem:[#allocation3 + $0xb1] sm:$0xff]
      %v4230 = vld [vmem:[#allocation3 + $0xc1] sm:$0xff]
      %v4231 = vld [vmem:[#allocation3 + $0xc9] sm:$0xff]
      %v4232 = vld [vmem:[#allocation3 + $0xd9] sm:$0xff]
      %v4233 = vld [vmem:[#allocation3 + $0xe1] sm:$0xff]
      %v4234 = vld [vmem:[#allocation3 + $0xf1] sm:$0xff]
      %v4235 = vld [vmem:[#allocation3 + $0xf9] sm:$0xff]
      %v4236 = vld [vmem:[#allocation3 + $0x109] sm:$0xff]
      %v4237 = vld [vmem:[#allocation3 + $0x111] sm:$0xff]
      %v4238 = vld [vmem:[#allocation3 + $0x121] sm:$0xff]
      %v4239 = vld [vmem:[#allocation3 + $0x129] sm:$0xff]
      %v4240 = vld [vmem:[#allocation3 + $0x139] sm:$0xff]
      %v4241 = vld [vmem:[#allocation3 + $0x141] sm:$0xff]
      %v4242 = vld [vmem:[#allocation3 + $0x151] sm:$0xff]
      %v4243 = vld [vmem:[#allocation3 + $0x159] sm:$0xff]
      %v4244 = vld [vmem:[#allocation3 + $0x169] sm:$0xff]
      %v4245 = vld [vmem:[#allocation3 + $0x171] sm:$0xff]
      %s4246 = scalar_lea.vmem %s6, 4
      %v4247 = vld [vmem:[%s4246] sm:$0xf]
      %v4249 = vsel %vm372, %v4214, 0
      %v4252 = vsel %vm372, %v4215, 0
      %v4255 = vsel %vm372, %v4216, 0
      %v4258 = vsel %vm372, %v4217, 0
      %v4261 = vsel %vm372, %v4218, 0
      %v4264 = vsel %vm372, %v4219, 0
      %v4267 = vsel %vm372, %v4220, 0
      %v4270 = vsel %vm372, %v4221, 0
      %v4273 = vsel %vm372, %v4222, 0
      %v4276 = vsel %vm372, %v4223, 0
      %v4279 = vsel %vm372, %v4224, 0
      %v4282 = vsel %vm372, %v4225, 0
      %v4285 = vsel %vm372, %v4226, 0
      %v4288 = vsel %vm372, %v4227, 0
      %v4291 = vsel %vm372, %v4228, 0
      %v4294 = vsel %vm372, %v4229, 0
      %v4297 = vsel %vm372, %v4230, 0
      %v4300 = vsel %vm372, %v4231, 0
      %v4303 = vsel %vm372, %v4232, 0
      %v4306 = vsel %vm372, %v4233, 0
      %v4309 = vsel %vm372, %v4234, 0
      %v4312 = vsel %vm372, %v4235, 0
      %v4315 = vsel %vm372, %v4236, 0
      %v4318 = vsel %vm372, %v4237, 0
      %v4321 = vsel %vm372, %v4238, 0
      %v4324 = vsel %vm372, %v4239, 0
      %v4327 = vsel %vm372, %v4240, 0
      %v4330 = vsel %vm372, %v4241, 0
      %v4333 = vsel %vm372, %v4242, 0
      %v4336 = vsel %vm372, %v4243, 0
      %v4339 = vsel %vm372, %v4244, 0
      %v4342 = vsel %vm372, %v4245, 0
      %vm4344 = vcmask 1043456
      %v4346 = vsel %vm4344, %v4247, 0
      %4348 = vmatpush.msra.mxu0 0.0
      %4349 = vmatpush.msra.mxu0 0.0
      %4350 = vmatpush.msra.mxu0 0.0
      %4351 = vmatpush.msra.mxu0 0.0
      %4352 = vmatpush.msra.mxu0 0.0
      %4353 = vmatpush.msra.mxu0 0.0
      %4354 = vmatpush.msra.mxu0 0.0
      %4355 = vmatpush.msra.mxu0 0.0
      %4356 = vmatpush.msra.mxu0 0.0
      %4357 = vmatpush.msra.mxu0 0.0
      %4358 = vmatpush.msra.mxu0 0.0
      %4359 = vmatpush.msra.mxu0 0.0
      %4360 = vmatpush.msra.mxu0 0.0
      %4361 = vmatpush.msra.mxu0 0.0
      %4362 = vmatpush.msra.mxu0 0.0
      %4363 = vmatpush.msra.mxu0 %v4346
      %4364 = vmatmul.f32.gmra.mxu0 %v4249
      %v4365 = vpop.f32.mrf.mxu0
      %v4366 = vadd.f32 0.0, %v4365
      %4367 = vmatmul.f32.gmra.mxu0 %v4252
      %v4368 = vpop.f32.mrf.mxu0
      %v4369 = vadd.f32 0.0, %v4368
      %4370 = vmatmul.f32.gmra.mxu0 %v4255
      %v4371 = vpop.f32.mrf.mxu0
      %v4372 = vadd.f32 0.0, %v4371
      %4373 = vmatmul.f32.gmra.mxu0 %v4258
      %v4374 = vpop.f32.mrf.mxu0
      %v4375 = vadd.f32 0.0, %v4374
      %4376 = vmatmul.f32.gmra.mxu0 %v4261
      %v4377 = vpop.f32.mrf.mxu0
      %v4378 = vadd.f32 0.0, %v4377
      %4379 = vmatmul.f32.gmra.mxu0 %v4264
      %v4380 = vpop.f32.mrf.mxu0
      %v4381 = vadd.f32 0.0, %v4380
      %4382 = vmatmul.f32.gmra.mxu0 %v4267
      %v4383 = vpop.f32.mrf.mxu0
      %v4384 = vadd.f32 0.0, %v4383
      %4385 = vmatmul.f32.gmra.mxu0 %v4270
      %v4386 = vpop.f32.mrf.mxu0
      %v4387 = vadd.f32 0.0, %v4386
      %4388 = vmatmul.f32.gmra.mxu0 %v4273
      %v4389 = vpop.f32.mrf.mxu0
      %v4390 = vadd.f32 0.0, %v4389
      %4391 = vmatmul.f32.gmra.mxu0 %v4276
      %v4392 = vpop.f32.mrf.mxu0
      %v4393 = vadd.f32 0.0, %v4392
      %4394 = vmatmul.f32.gmra.mxu0 %v4279
      %v4395 = vpop.f32.mrf.mxu0
      %v4396 = vadd.f32 0.0, %v4395
      %4397 = vmatmul.f32.gmra.mxu0 %v4282
      %v4398 = vpop.f32.mrf.mxu0
      %v4399 = vadd.f32 0.0, %v4398
      %4400 = vmatmul.f32.gmra.mxu0 %v4285
      %v4401 = vpop.f32.mrf.mxu0
      %v4402 = vadd.f32 0.0, %v4401
      %4403 = vmatmul.f32.gmra.mxu0 %v4288
      %v4404 = vpop.f32.mrf.mxu0
      %v4405 = vadd.f32 0.0, %v4404
      %4406 = vmatmul.f32.gmra.mxu0 %v4291
      %v4407 = vpop.f32.mrf.mxu0
      %v4408 = vadd.f32 0.0, %v4407
      %4409 = vmatmul.f32.gmra.mxu0 %v4294
      %v4410 = vpop.f32.mrf.mxu0
      %v4411 = vadd.f32 0.0, %v4410
      %4412 = vmatmul.f32.gmra.mxu0 %v4297
      %v4413 = vpop.f32.mrf.mxu0
      %v4414 = vadd.f32 0.0, %v4413
      %4415 = vmatmul.f32.gmra.mxu0 %v4300
      %v4416 = vpop.f32.mrf.mxu0
      %v4417 = vadd.f32 0.0, %v4416
      %4418 = vmatmul.f32.gmra.mxu0 %v4303
      %v4419 = vpop.f32.mrf.mxu0
      %v4420 = vadd.f32 0.0, %v4419
      %4421 = vmatmul.f32.gmra.mxu0 %v4306
      %v4422 = vpop.f32.mrf.mxu0
      %v4423 = vadd.f32 0.0, %v4422
      %4424 = vmatmul.f32.gmra.mxu0 %v4309
      %v4425 = vpop.f32.mrf.mxu0
      %v4426 = vadd.f32 0.0, %v4425
      %4427 = vmatmul.f32.gmra.mxu0 %v4312
      %v4428 = vpop.f32.mrf.mxu0
      %v4429 = vadd.f32 0.0, %v4428
      %4430 = vmatmul.f32.gmra.mxu0 %v4315
      %v4431 = vpop.f32.mrf.mxu0
      %v4432 = vadd.f32 0.0, %v4431
      %4433 = vmatmul.f32.gmra.mxu0 %v4318
      %v4434 = vpop.f32.mrf.mxu0
      %v4435 = vadd.f32 0.0, %v4434
      %4436 = vmatmul.f32.gmra.mxu0 %v4321
      %v4437 = vpop.f32.mrf.mxu0
      %v4438 = vadd.f32 0.0, %v4437
      %4439 = vmatmul.f32.gmra.mxu0 %v4324
      %v4440 = vpop.f32.mrf.mxu0
      %v4441 = vadd.f32 0.0, %v4440
      %4442 = vmatmul.f32.gmra.mxu0 %v4327
      %v4443 = vpop.f32.mrf.mxu0
      %v4444 = vadd.f32 0.0, %v4443
      %4445 = vmatmul.f32.gmra.mxu0 %v4330
      %v4446 = vpop.f32.mrf.mxu0
      %v4447 = vadd.f32 0.0, %v4446
      %4448 = vmatmul.f32.gmra.mxu0 %v4333
      %v4449 = vpop.f32.mrf.mxu0
      %v4450 = vadd.f32 0.0, %v4449
      %4451 = vmatmul.f32.gmra.mxu0 %v4336
      %v4452 = vpop.f32.mrf.mxu0
      %v4453 = vadd.f32 0.0, %v4452
      %4454 = vmatmul.f32.gmra.mxu0 %v4339
      %v4455 = vpop.f32.mrf.mxu0
      %v4456 = vadd.f32 0.0, %v4455
      %4457 = vmatmul.f32.gmra.mxu0 %v4342
      %v4458 = vpop.f32.mrf.mxu0
      %v4459 = vadd.f32 0.0, %v4458
      %4460 = vdwg.mxu0
      %v4462 = vsel %vm372, %v4181, 0
      %v4465 = vsel %vm372, %v4182, 0
      %v4468 = vsel %vm372, %v4183, 0
      %v4471 = vsel %vm372, %v4184, 0
      %v4474 = vsel %vm372, %v4185, 0
      %v4477 = vsel %vm372, %v4186, 0
      %v4480 = vsel %vm372, %v4187, 0
      %v4483 = vsel %vm372, %v4188, 0
      %v4486 = vsel %vm372, %v4189, 0
      %v4489 = vsel %vm372, %v4190, 0
      %v4492 = vsel %vm372, %v4191, 0
      %v4495 = vsel %vm372, %v4192, 0
      %v4498 = vsel %vm372, %v4193, 0
      %v4501 = vsel %vm372, %v4194, 0
      %v4504 = vsel %vm372, %v4195, 0
      %v4507 = vsel %vm372, %v4196, 0
      %v4510 = vsel %vm372, %v4197, 0
      %v4513 = vsel %vm372, %v4198, 0
      %v4516 = vsel %vm372, %v4199, 0
      %v4519 = vsel %vm372, %v4200, 0
      %v4522 = vsel %vm372, %v4201, 0
      %v4525 = vsel %vm372, %v4202, 0
      %v4528 = vsel %vm372, %v4203, 0
      %v4531 = vsel %vm372, %v4204, 0
      %v4534 = vsel %vm372, %v4205, 0
      %v4537 = vsel %vm372, %v4206, 0
      %v4540 = vsel %vm372, %v4207, 0
      %v4543 = vsel %vm372, %v4208, 0
      %v4546 = vsel %vm372, %v4209, 0
      %v4549 = vsel %vm372, %v4210, 0
      %v4552 = vsel %vm372, %v4211, 0
      %v4555 = vsel %vm372, %v4212, 0
      %v4558 = vsel %vm4344, %v4213, 0
      %4560 = vmatpush.msra.mxu0 0.0
      %4561 = vmatpush.msra.mxu0 0.0
      %4562 = vmatpush.msra.mxu0 0.0
      %4563 = vmatpush.msra.mxu0 0.0
      %4564 = vmatpush.msra.mxu0 0.0
      %4565 = vmatpush.msra.mxu0 0.0
      %4566 = vmatpush.msra.mxu0 0.0
      %4567 = vmatpush.msra.mxu0 0.0
      %4568 = vmatpush.msra.mxu0 0.0
      %4569 = vmatpush.msra.mxu0 0.0
      %4570 = vmatpush.msra.mxu0 0.0
      %4571 = vmatpush.msra.mxu0 0.0
      %4572 = vmatpush.msra.mxu0 0.0
      %4573 = vmatpush.msra.mxu0 0.0
      %4574 = vmatpush.msra.mxu0 0.0
      %4575 = vmatpush.msra.mxu0 %v4558
      %4576 = vmatmul.f32.gmra.mxu0 %v4462
      %v4577 = vpop.f32.mrf.mxu0
      %v4578 = vadd.f32 %v4366, %v4577
      %4579 = vmatmul.f32.gmra.mxu0 %v4465
      %v4580 = vpop.f32.mrf.mxu0
      %v4581 = vadd.f32 %v4369, %v4580
      %4582 = vmatmul.f32.gmra.mxu0 %v4468
      %v4583 = vpop.f32.mrf.mxu0
      %v4584 = vadd.f32 %v4372, %v4583
      %4585 = vmatmul.f32.gmra.mxu0 %v4471
      %v4586 = vpop.f32.mrf.mxu0
      %v4587 = vadd.f32 %v4375, %v4586
      %4588 = vmatmul.f32.gmra.mxu0 %v4474
      %v4589 = vpop.f32.mrf.mxu0
      %v4590 = vadd.f32 %v4378, %v4589
      %4591 = vmatmul.f32.gmra.mxu0 %v4477
      %v4592 = vpop.f32.mrf.mxu0
      %v4593 = vadd.f32 %v4381, %v4592
      %4594 = vmatmul.f32.gmra.mxu0 %v4480
      %v4595 = vpop.f32.mrf.mxu0
      %v4596 = vadd.f32 %v4384, %v4595
      %4597 = vmatmul.f32.gmra.mxu0 %v4483
      %v4598 = vpop.f32.mrf.mxu0
      %v4599 = vadd.f32 %v4387, %v4598
      %4600 = vmatmul.f32.gmra.mxu0 %v4486
      %v4601 = vpop.f32.mrf.mxu0
      %v4602 = vadd.f32 %v4390, %v4601
      %4603 = vmatmul.f32.gmra.mxu0 %v4489
      %v4604 = vpop.f32.mrf.mxu0
      %v4605 = vadd.f32 %v4393, %v4604
      %4606 = vmatmul.f32.gmra.mxu0 %v4492
      %v4607 = vpop.f32.mrf.mxu0
      %v4608 = vadd.f32 %v4396, %v4607
      %4609 = vmatmul.f32.gmra.mxu0 %v4495
      %v4610 = vpop.f32.mrf.mxu0
      %v4611 = vadd.f32 %v4399, %v4610
      %4612 = vmatmul.f32.gmra.mxu0 %v4498
      %v4613 = vpop.f32.mrf.mxu0
      %v4614 = vadd.f32 %v4402, %v4613
      %4615 = vmatmul.f32.gmra.mxu0 %v4501
      %v4616 = vpop.f32.mrf.mxu0
      %v4617 = vadd.f32 %v4405, %v4616
      %4618 = vmatmul.f32.gmra.mxu0 %v4504
      %v4619 = vpop.f32.mrf.mxu0
      %v4620 = vadd.f32 %v4408, %v4619
      %4621 = vmatmul.f32.gmra.mxu0 %v4507
      %v4622 = vpop.f32.mrf.mxu0
      %v4623 = vadd.f32 %v4411, %v4622
      %4624 = vmatmul.f32.gmra.mxu0 %v4510
      %v4625 = vpop.f32.mrf.mxu0
      %v4626 = vadd.f32 %v4414, %v4625
      %4627 = vmatmul.f32.gmra.mxu0 %v4513
      %v4628 = vpop.f32.mrf.mxu0
      %v4629 = vadd.f32 %v4417, %v4628
      %4630 = vmatmul.f32.gmra.mxu0 %v4516
      %v4631 = vpop.f32.mrf.mxu0
      %v4632 = vadd.f32 %v4420, %v4631
      %4633 = vmatmul.f32.gmra.mxu0 %v4519
      %v4634 = vpop.f32.mrf.mxu0
      %v4635 = vadd.f32 %v4423, %v4634
      %4636 = vmatmul.f32.gmra.mxu0 %v4522
      %v4637 = vpop.f32.mrf.mxu0
      %v4638 = vadd.f32 %v4426, %v4637
      %4639 = vmatmul.f32.gmra.mxu0 %v4525
      %v4640 = vpop.f32.mrf.mxu0
      %v4641 = vadd.f32 %v4429, %v4640
      %4642 = vmatmul.f32.gmra.mxu0 %v4528
      %v4643 = vpop.f32.mrf.mxu0
      %v4644 = vadd.f32 %v4432, %v4643
      %4645 = vmatmul.f32.gmra.mxu0 %v4531
      %v4646 = vpop.f32.mrf.mxu0
      %v4647 = vadd.f32 %v4435, %v4646
      %4648 = vmatmul.f32.gmra.mxu0 %v4534
      %v4649 = vpop.f32.mrf.mxu0
      %v4650 = vadd.f32 %v4438, %v4649
      %4651 = vmatmul.f32.gmra.mxu0 %v4537
      %v4652 = vpop.f32.mrf.mxu0
      %v4653 = vadd.f32 %v4441, %v4652
      %4654 = vmatmul.f32.gmra.mxu0 %v4540
      %v4655 = vpop.f32.mrf.mxu0
      %v4656 = vadd.f32 %v4444, %v4655
      %4657 = vmatmul.f32.gmra.mxu0 %v4543
      %v4658 = vpop.f32.mrf.mxu0
      %v4659 = vadd.f32 %v4447, %v4658
      %4660 = vmatmul.f32.gmra.mxu0 %v4546
      %v4661 = vpop.f32.mrf.mxu0
      %v4662 = vadd.f32 %v4450, %v4661
      %4663 = vmatmul.f32.gmra.mxu0 %v4549
      %v4664 = vpop.f32.mrf.mxu0
      %v4665 = vadd.f32 %v4453, %v4664
      %4666 = vmatmul.f32.gmra.mxu0 %v4552
      %v4667 = vpop.f32.mrf.mxu0
      %v4668 = vadd.f32 %v4456, %v4667
      %4669 = vmatmul.f32.gmra.mxu0 %v4555
      %v4670 = vpop.f32.mrf.mxu0
      %v4671 = vadd.f32 %v4459, %v4670
      %4672 = vdwg.mxu0
      %v4673 = vld [vmem:[#allocation3 + $0x2] sm:$0xff]
      %v4674 = vld [vmem:[#allocation3 + $0xa] sm:$0xff]
      %v4675 = vld [vmem:[#allocation3 + $0x1a] sm:$0xff]
      %v4676 = vld [vmem:[#allocation3 + $0x22] sm:$0xff]
      %v4677 = vld [vmem:[#allocation3 + $0x32] sm:$0xff]
      %v4678 = vld [vmem:[#allocation3 + $0x3a] sm:$0xff]
      %v4679 = vld [vmem:[#allocation3 + $0x4a] sm:$0xff]
      %v4680 = vld [vmem:[#allocation3 + $0x52] sm:$0xff]
      %v4681 = vld [vmem:[#allocation3 + $0x62] sm:$0xff]
      %v4682 = vld [vmem:[#allocation3 + $0x6a] sm:$0xff]
      %v4683 = vld [vmem:[#allocation3 + $0x7a] sm:$0xff]
      %v4684 = vld [vmem:[#allocation3 + $0x82] sm:$0xff]
      %v4685 = vld [vmem:[#allocation3 + $0x92] sm:$0xff]
      %v4686 = vld [vmem:[#allocation3 + $0x9a] sm:$0xff]
      %v4687 = vld [vmem:[#allocation3 + $0xaa] sm:$0xff]
      %v4688 = vld [vmem:[#allocation3 + $0xb2] sm:$0xff]
      %v4689 = vld [vmem:[#allocation3 + $0xc2] sm:$0xff]
      %v4690 = vld [vmem:[#allocation3 + $0xca] sm:$0xff]
      %v4691 = vld [vmem:[#allocation3 + $0xda] sm:$0xff]
      %v4692 = vld [vmem:[#allocation3 + $0xe2] sm:$0xff]
      %v4693 = vld [vmem:[#allocation3 + $0xf2] sm:$0xff]
      %v4694 = vld [vmem:[#allocation3 + $0xfa] sm:$0xff]
      %v4695 = vld [vmem:[#allocation3 + $0x10a] sm:$0xff]
      %v4696 = vld [vmem:[#allocation3 + $0x112] sm:$0xff]
      %v4697 = vld [vmem:[#allocation3 + $0x122] sm:$0xff]
      %v4698 = vld [vmem:[#allocation3 + $0x12a] sm:$0xff]
      %v4699 = vld [vmem:[#allocation3 + $0x13a] sm:$0xff]
      %v4700 = vld [vmem:[#allocation3 + $0x142] sm:$0xff]
      %v4701 = vld [vmem:[#allocation3 + $0x152] sm:$0xff]
      %v4702 = vld [vmem:[#allocation3 + $0x15a] sm:$0xff]
      %v4703 = vld [vmem:[#allocation3 + $0x16a] sm:$0xff]
      %v4704 = vld [vmem:[#allocation3 + $0x172] sm:$0xff]
      %s4705 = scalar_lea.vmem %s6, 8
      %v4706 = vld [vmem:[%s4705] sm:$0xf]
      %v4708 = vsel %vm372, %v4673, 0
      %v4711 = vsel %vm372, %v4674, 0
      %v4714 = vsel %vm372, %v4675, 0
      %v4717 = vsel %vm372, %v4676, 0
      %v4720 = vsel %vm372, %v4677, 0
      %v4723 = vsel %vm372, %v4678, 0
      %v4726 = vsel %vm372, %v4679, 0
      %v4729 = vsel %vm372, %v4680, 0
      %v4732 = vsel %vm372, %v4681, 0
      %v4735 = vsel %vm372, %v4682, 0
      %v4738 = vsel %vm372, %v4683, 0
      %v4741 = vsel %vm372, %v4684, 0
      %v4744 = vsel %vm372, %v4685, 0
      %v4747 = vsel %vm372, %v4686, 0
      %v4750 = vsel %vm372, %v4687, 0
      %v4753 = vsel %vm372, %v4688, 0
      %v4756 = vsel %vm372, %v4689, 0
      %v4759 = vsel %vm372, %v4690, 0
      %v4762 = vsel %vm372, %v4691, 0
      %v4765 = vsel %vm372, %v4692, 0
      %v4768 = vsel %vm372, %v4693, 0
      %v4771 = vsel %vm372, %v4694, 0
      %v4774 = vsel %vm372, %v4695, 0
      %v4777 = vsel %vm372, %v4696, 0
      %v4780 = vsel %vm372, %v4697, 0
      %v4783 = vsel %vm372, %v4698, 0
      %v4786 = vsel %vm372, %v4699, 0
      %v4789 = vsel %vm372, %v4700, 0
      %v4792 = vsel %vm372, %v4701, 0
      %v4795 = vsel %vm372, %v4702, 0
      %v4798 = vsel %vm372, %v4703, 0
      %v4801 = vsel %vm372, %v4704, 0
      %v4804 = vsel %vm4344, %v4706, 0
      %4806 = vmatpush.msra.mxu0 0.0
      %4807 = vmatpush.msra.mxu0 0.0
      %4808 = vmatpush.msra.mxu0 0.0
      %4809 = vmatpush.msra.mxu0 0.0
      %4810 = vmatpush.msra.mxu0 0.0
      %4811 = vmatpush.msra.mxu0 0.0
      %4812 = vmatpush.msra.mxu0 0.0
      %4813 = vmatpush.msra.mxu0 0.0
      %4814 = vmatpush.msra.mxu0 0.0
      %4815 = vmatpush.msra.mxu0 0.0
      %4816 = vmatpush.msra.mxu0 0.0
      %4817 = vmatpush.msra.mxu0 0.0
      %4818 = vmatpush.msra.mxu0 0.0
      %4819 = vmatpush.msra.mxu0 0.0
      %4820 = vmatpush.msra.mxu0 0.0
      %4821 = vmatpush.msra.mxu0 %v4804
      %4822 = vmatmul.f32.gmra.mxu0 %v4708
      %v4823 = vpop.f32.mrf.mxu0
      %v4824 = vadd.f32 0.0, %v4823
      %4825 = vmatmul.f32.gmra.mxu0 %v4711
      %v4826 = vpop.f32.mrf.mxu0
      %v4827 = vadd.f32 0.0, %v4826
      %4828 = vmatmul.f32.gmra.mxu0 %v4714
      %v4829 = vpop.f32.mrf.mxu0
      %v4830 = vadd.f32 0.0, %v4829
      %4831 = vmatmul.f32.gmra.mxu0 %v4717
      %v4832 = vpop.f32.mrf.mxu0
      %v4833 = vadd.f32 0.0, %v4832
      %4834 = vmatmul.f32.gmra.mxu0 %v4720
      %v4835 = vpop.f32.mrf.mxu0
      %v4836 = vadd.f32 0.0, %v4835
      %4837 = vmatmul.f32.gmra.mxu0 %v4723
      %v4838 = vpop.f32.mrf.mxu0
      %v4839 = vadd.f32 0.0, %v4838
      %4840 = vmatmul.f32.gmra.mxu0 %v4726
      %v4841 = vpop.f32.mrf.mxu0
      %v4842 = vadd.f32 0.0, %v4841
      %4843 = vmatmul.f32.gmra.mxu0 %v4729
      %v4844 = vpop.f32.mrf.mxu0
      %v4845 = vadd.f32 0.0, %v4844
      %4846 = vmatmul.f32.gmra.mxu0 %v4732
      %v4847 = vpop.f32.mrf.mxu0
      %v4848 = vadd.f32 0.0, %v4847
      %4849 = vmatmul.f32.gmra.mxu0 %v4735
      %v4850 = vpop.f32.mrf.mxu0
      %v4851 = vadd.f32 0.0, %v4850
      %4852 = vmatmul.f32.gmra.mxu0 %v4738
      %v4853 = vpop.f32.mrf.mxu0
      %v4854 = vadd.f32 0.0, %v4853
      %4855 = vmatmul.f32.gmra.mxu0 %v4741
      %v4856 = vpop.f32.mrf.mxu0
      %v4857 = vadd.f32 0.0, %v4856
      %4858 = vmatmul.f32.gmra.mxu0 %v4744
      %v4859 = vpop.f32.mrf.mxu0
      %v4860 = vadd.f32 0.0, %v4859
      %4861 = vmatmul.f32.gmra.mxu0 %v4747
      %v4862 = vpop.f32.mrf.mxu0
      %v4863 = vadd.f32 0.0, %v4862
      %4864 = vmatmul.f32.gmra.mxu0 %v4750
      %v4865 = vpop.f32.mrf.mxu0
      %v4866 = vadd.f32 0.0, %v4865
      %4867 = vmatmul.f32.gmra.mxu0 %v4753
      %v4868 = vpop.f32.mrf.mxu0
      %v4869 = vadd.f32 0.0, %v4868
      %4870 = vmatmul.f32.gmra.mxu0 %v4756
      %v4871 = vpop.f32.mrf.mxu0
      %v4872 = vadd.f32 0.0, %v4871
      %4873 = vmatmul.f32.gmra.mxu0 %v4759
      %v4874 = vpop.f32.mrf.mxu0
      %v4875 = vadd.f32 0.0, %v4874
      %4876 = vmatmul.f32.gmra.mxu0 %v4762
      %v4877 = vpop.f32.mrf.mxu0
      %v4878 = vadd.f32 0.0, %v4877
      %4879 = vmatmul.f32.gmra.mxu0 %v4765
      %v4880 = vpop.f32.mrf.mxu0
      %v4881 = vadd.f32 0.0, %v4880
      %4882 = vmatmul.f32.gmra.mxu0 %v4768
      %v4883 = vpop.f32.mrf.mxu0
      %v4884 = vadd.f32 0.0, %v4883
      %4885 = vmatmul.f32.gmra.mxu0 %v4771
      %v4886 = vpop.f32.mrf.mxu0
      %v4887 = vadd.f32 0.0, %v4886
      %4888 = vmatmul.f32.gmra.mxu0 %v4774
      %v4889 = vpop.f32.mrf.mxu0
      %v4890 = vadd.f32 0.0, %v4889
      %4891 = vmatmul.f32.gmra.mxu0 %v4777
      %v4892 = vpop.f32.mrf.mxu0
      %v4893 = vadd.f32 0.0, %v4892
      %4894 = vmatmul.f32.gmra.mxu0 %v4780
      %v4895 = vpop.f32.mrf.mxu0
      %v4896 = vadd.f32 0.0, %v4895
      %4897 = vmatmul.f32.gmra.mxu0 %v4783
      %v4898 = vpop.f32.mrf.mxu0
      %v4899 = vadd.f32 0.0, %v4898
      %4900 = vmatmul.f32.gmra.mxu0 %v4786
      %v4901 = vpop.f32.mrf.mxu0
      %v4902 = vadd.f32 0.0, %v4901
      %4903 = vmatmul.f32.gmra.mxu0 %v4789
      %v4904 = vpop.f32.mrf.mxu0
      %v4905 = vadd.f32 0.0, %v4904
      %4906 = vmatmul.f32.gmra.mxu0 %v4792
      %v4907 = vpop.f32.mrf.mxu0
      %v4908 = vadd.f32 0.0, %v4907
      %4909 = vmatmul.f32.gmra.mxu0 %v4795
      %v4910 = vpop.f32.mrf.mxu0
      %v4911 = vadd.f32 0.0, %v4910
      %4912 = vmatmul.f32.gmra.mxu0 %v4798
      %v4913 = vpop.f32.mrf.mxu0
      %v4914 = vadd.f32 0.0, %v4913
      %4915 = vmatmul.f32.gmra.mxu0 %v4801
      %v4916 = vpop.f32.mrf.mxu0
      %v4917 = vadd.f32 0.0, %v4916
      %4918 = vdwg.mxu0
      %v4919 = vadd.f32 %v4578, %v4824
      %v4920 = vadd.f32 %v4581, %v4827
      %v4921 = vadd.f32 %v4584, %v4830
      %v4922 = vadd.f32 %v4587, %v4833
      %v4923 = vadd.f32 %v4590, %v4836
      %v4924 = vadd.f32 %v4593, %v4839
      %v4925 = vadd.f32 %v4596, %v4842
      %v4926 = vadd.f32 %v4599, %v4845
      %v4927 = vadd.f32 %v4602, %v4848
      %v4928 = vadd.f32 %v4605, %v4851
      %v4929 = vadd.f32 %v4608, %v4854
      %v4930 = vadd.f32 %v4611, %v4857
      %v4931 = vadd.f32 %v4614, %v4860
      %v4932 = vadd.f32 %v4617, %v4863
      %v4933 = vadd.f32 %v4620, %v4866
      %v4934 = vadd.f32 %v4623, %v4869
      %v4935 = vadd.f32 %v4626, %v4872
      %v4936 = vadd.f32 %v4629, %v4875
      %v4937 = vadd.f32 %v4632, %v4878
      %v4938 = vadd.f32 %v4635, %v4881
      %v4939 = vadd.f32 %v4638, %v4884
      %v4940 = vadd.f32 %v4641, %v4887
      %v4941 = vadd.f32 %v4644, %v4890
      %v4942 = vadd.f32 %v4647, %v4893
      %v4943 = vadd.f32 %v4650, %v4896
      %v4944 = vadd.f32 %v4653, %v4899
      %v4945 = vadd.f32 %v4656, %v4902
      %v4946 = vadd.f32 %v4659, %v4905
      %v4947 = vadd.f32 %v4662, %v4908
      %v4948 = vadd.f32 %v4665, %v4911
      %v4949 = vadd.f32 %v4668, %v4914
      %v4950 = vadd.f32 %v4671, %v4917
      %v4951 = vld [vmem:[%s4148] sm:$0xff]
      %v4952 = vld [vmem:[%s4148 + $0x8] sm:$0xff]
      %v4953 = vld [vmem:[%s4148 + $0x18] sm:$0xff]
      %v4954 = vld [vmem:[%s4148 + $0x20] sm:$0xff]
      %v4955 = vld [vmem:[%s4148 + $0x30] sm:$0xff]
      %v4956 = vld [vmem:[%s4148 + $0x38] sm:$0xff]
      %v4957 = vld [vmem:[%s4148 + $0x48] sm:$0xff]
      %v4958 = vld [vmem:[%s4148 + $0x50] sm:$0xff]
      %v4959 = vld [vmem:[%s4148 + $0x60] sm:$0xff]
      %v4960 = vld [vmem:[%s4148 + $0x68] sm:$0xff]
      %v4961 = vld [vmem:[%s4148 + $0x78] sm:$0xff]
      %v4962 = vld [vmem:[%s4148 + $0x80] sm:$0xff]
      %v4963 = vld [vmem:[%s4148 + $0x90] sm:$0xff]
      %v4964 = vld [vmem:[%s4148 + $0x98] sm:$0xff]
      %v4965 = vld [vmem:[%s4148 + $0xa8] sm:$0xff]
      %v4966 = vld [vmem:[%s4148 + $0xb0] sm:$0xff]
      %v4967 = vld [vmem:[%s4148 + $0xc0] sm:$0xff]
      %v4968 = vld [vmem:[%s4148 + $0xc8] sm:$0xff]
      %v4969 = vld [vmem:[%s4148 + $0xd8] sm:$0xff]
      %v4970 = vld [vmem:[%s4148 + $0xe0] sm:$0xff]
      %v4971 = vld [vmem:[%s4148 + $0xf0] sm:$0xff]
      %v4972 = vld [vmem:[%s4148 + $0xf8] sm:$0xff]
      %v4973 = vld [vmem:[%s4148 + $0x108] sm:$0xff]
      %v4974 = vld [vmem:[%s4148 + $0x110] sm:$0xff]
      %v4975 = vld [vmem:[%s4148 + $0x120] sm:$0xff]
      %v4976 = vld [vmem:[%s4148 + $0x128] sm:$0xff]
      %v4977 = vld [vmem:[%s4148 + $0x138] sm:$0xff]
      %v4978 = vld [vmem:[%s4148 + $0x140] sm:$0xff]
      %v4979 = vld [vmem:[%s4148 + $0x150] sm:$0xff]
      %v4980 = vld [vmem:[%s4148 + $0x158] sm:$0xff]
      %v4981 = vld [vmem:[%s4148 + $0x168] sm:$0xff]
      %v4982 = vld [vmem:[%s4148 + $0x170] sm:$0xff]
      %s4983 = scalar_lea.vmem %s6, 12
      %v4984 = vld [vmem:[%s4983] sm:$0xf]
      %v4986 = vsel %vm372, %v4951, 0
      %v4989 = vsel %vm372, %v4952, 0
      %v4992 = vsel %vm372, %v4953, 0
      %v4995 = vsel %vm372, %v4954, 0
      %v4998 = vsel %vm372, %v4955, 0
      %v5001 = vsel %vm372, %v4956, 0
      %v5004 = vsel %vm372, %v4957, 0
      %v5007 = vsel %vm372, %v4958, 0
      %v5010 = vsel %vm372, %v4959, 0
      %v5013 = vsel %vm372, %v4960, 0
      %v5016 = vsel %vm372, %v4961, 0
      %v5019 = vsel %vm372, %v4962, 0
      %v5022 = vsel %vm372, %v4963, 0
      %v5025 = vsel %vm372, %v4964, 0
      %v5028 = vsel %vm372, %v4965, 0
      %v5031 = vsel %vm372, %v4966, 0
      %v5034 = vsel %vm372, %v4967, 0
      %v5037 = vsel %vm372, %v4968, 0
      %v5040 = vsel %vm372, %v4969, 0
      %v5043 = vsel %vm372, %v4970, 0
      %v5046 = vsel %vm372, %v4971, 0
      %v5049 = vsel %vm372, %v4972, 0
      %v5052 = vsel %vm372, %v4973, 0
      %v5055 = vsel %vm372, %v4974, 0
      %v5058 = vsel %vm372, %v4975, 0
      %v5061 = vsel %vm372, %v4976, 0
      %v5064 = vsel %vm372, %v4977, 0
      %v5067 = vsel %vm372, %v4978, 0
      %v5070 = vsel %vm372, %v4979, 0
      %v5073 = vsel %vm372, %v4980, 0
      %v5076 = vsel %vm372, %v4981, 0
      %v5079 = vsel %vm372, %v4982, 0
      %v5082 = vsel %vm4344, %v4984, 0
      %5084 = vmatpush.msra.mxu0 0.0
      %5085 = vmatpush.msra.mxu0 0.0
      %5086 = vmatpush.msra.mxu0 0.0
      %5087 = vmatpush.msra.mxu0 0.0
      %5088 = vmatpush.msra.mxu0 0.0
      %5089 = vmatpush.msra.mxu0 0.0
      %5090 = vmatpush.msra.mxu0 0.0
      %5091 = vmatpush.msra.mxu0 0.0
      %5092 = vmatpush.msra.mxu0 0.0
      %5093 = vmatpush.msra.mxu0 0.0
      %5094 = vmatpush.msra.mxu0 0.0
      %5095 = vmatpush.msra.mxu0 0.0
      %5096 = vmatpush.msra.mxu0 0.0
      %5097 = vmatpush.msra.mxu0 0.0
      %5098 = vmatpush.msra.mxu0 0.0
      %5099 = vmatpush.msra.mxu0 %v5082
      %5100 = vmatmul.f32.gmra.mxu0 %v4986
      %v5101 = vpop.f32.mrf.mxu0
      %v5102 = vadd.f32 0.0, %v5101
      %5103 = vmatmul.f32.gmra.mxu0 %v4989
      %v5104 = vpop.f32.mrf.mxu0
      %v5105 = vadd.f32 0.0, %v5104
      %5106 = vmatmul.f32.gmra.mxu0 %v4992
      %v5107 = vpop.f32.mrf.mxu0
      %v5108 = vadd.f32 0.0, %v5107
      %5109 = vmatmul.f32.gmra.mxu0 %v4995
      %v5110 = vpop.f32.mrf.mxu0
      %v5111 = vadd.f32 0.0, %v5110
      %5112 = vmatmul.f32.gmra.mxu0 %v4998
      %v5113 = vpop.f32.mrf.mxu0
      %v5114 = vadd.f32 0.0, %v5113
      %5115 = vmatmul.f32.gmra.mxu0 %v5001
      %v5116 = vpop.f32.mrf.mxu0
      %v5117 = vadd.f32 0.0, %v5116
      %5118 = vmatmul.f32.gmra.mxu0 %v5004
      %v5119 = vpop.f32.mrf.mxu0
      %v5120 = vadd.f32 0.0, %v5119
      %5121 = vmatmul.f32.gmra.mxu0 %v5007
      %v5122 = vpop.f32.mrf.mxu0
      %v5123 = vadd.f32 0.0, %v5122
      %5124 = vmatmul.f32.gmra.mxu0 %v5010
      %v5125 = vpop.f32.mrf.mxu0
      %v5126 = vadd.f32 0.0, %v5125
      %5127 = vmatmul.f32.gmra.mxu0 %v5013
      %v5128 = vpop.f32.mrf.mxu0
      %v5129 = vadd.f32 0.0, %v5128
      %5130 = vmatmul.f32.gmra.mxu0 %v5016
      %v5131 = vpop.f32.mrf.mxu0
      %v5132 = vadd.f32 0.0, %v5131
      %5133 = vmatmul.f32.gmra.mxu0 %v5019
      %v5134 = vpop.f32.mrf.mxu0
      %v5135 = vadd.f32 0.0, %v5134
      %5136 = vmatmul.f32.gmra.mxu0 %v5022
      %v5137 = vpop.f32.mrf.mxu0
      %v5138 = vadd.f32 0.0, %v5137
      %5139 = vmatmul.f32.gmra.mxu0 %v5025
      %v5140 = vpop.f32.mrf.mxu0
      %v5141 = vadd.f32 0.0, %v5140
      %5142 = vmatmul.f32.gmra.mxu0 %v5028
      %v5143 = vpop.f32.mrf.mxu0
      %v5144 = vadd.f32 0.0, %v5143
      %5145 = vmatmul.f32.gmra.mxu0 %v5031
      %v5146 = vpop.f32.mrf.mxu0
      %v5147 = vadd.f32 0.0, %v5146
      %5148 = vmatmul.f32.gmra.mxu0 %v5034
      %v5149 = vpop.f32.mrf.mxu0
      %v5150 = vadd.f32 0.0, %v5149
      %5151 = vmatmul.f32.gmra.mxu0 %v5037
      %v5152 = vpop.f32.mrf.mxu0
      %v5153 = vadd.f32 0.0, %v5152
      %5154 = vmatmul.f32.gmra.mxu0 %v5040
      %v5155 = vpop.f32.mrf.mxu0
      %v5156 = vadd.f32 0.0, %v5155
      %5157 = vmatmul.f32.gmra.mxu0 %v5043
      %v5158 = vpop.f32.mrf.mxu0
      %v5159 = vadd.f32 0.0, %v5158
      %5160 = vmatmul.f32.gmra.mxu0 %v5046
      %v5161 = vpop.f32.mrf.mxu0
      %v5162 = vadd.f32 0.0, %v5161
      %5163 = vmatmul.f32.gmra.mxu0 %v5049
      %v5164 = vpop.f32.mrf.mxu0
      %v5165 = vadd.f32 0.0, %v5164
      %5166 = vmatmul.f32.gmra.mxu0 %v5052
      %v5167 = vpop.f32.mrf.mxu0
      %v5168 = vadd.f32 0.0, %v5167
      %5169 = vmatmul.f32.gmra.mxu0 %v5055
      %v5170 = vpop.f32.mrf.mxu0
      %v5171 = vadd.f32 0.0, %v5170
      %5172 = vmatmul.f32.gmra.mxu0 %v5058
      %v5173 = vpop.f32.mrf.mxu0
      %v5174 = vadd.f32 0.0, %v5173
      %5175 = vmatmul.f32.gmra.mxu0 %v5061
      %v5176 = vpop.f32.mrf.mxu0
      %v5177 = vadd.f32 0.0, %v5176
      %5178 = vmatmul.f32.gmra.mxu0 %v5064
      %v5179 = vpop.f32.mrf.mxu0
      %v5180 = vadd.f32 0.0, %v5179
      %5181 = vmatmul.f32.gmra.mxu0 %v5067
      %v5182 = vpop.f32.mrf.mxu0
      %v5183 = vadd.f32 0.0, %v5182
      %5184 = vmatmul.f32.gmra.mxu0 %v5070
      %v5185 = vpop.f32.mrf.mxu0
      %v5186 = vadd.f32 0.0, %v5185
      %5187 = vmatmul.f32.gmra.mxu0 %v5073
      %v5188 = vpop.f32.mrf.mxu0
      %v5189 = vadd.f32 0.0, %v5188
      %5190 = vmatmul.f32.gmra.mxu0 %v5076
      %v5191 = vpop.f32.mrf.mxu0
      %v5192 = vadd.f32 0.0, %v5191
      %5193 = vmatmul.f32.gmra.mxu0 %v5079
      %v5194 = vpop.f32.mrf.mxu0
      %v5195 = vadd.f32 0.0, %v5194
      %5196 = vdwg.mxu0
      %v5197 = vadd.f32 %v4919, %v5102
      %v5198 = vadd.f32 %v4920, %v5105
      %v5199 = vadd.f32 %v4921, %v5108
      %v5200 = vadd.f32 %v4922, %v5111
      %v5201 = vadd.f32 %v4923, %v5114
      %v5202 = vadd.f32 %v4924, %v5117
      %v5203 = vadd.f32 %v4925, %v5120
      %v5204 = vadd.f32 %v4926, %v5123
      %v5205 = vadd.f32 %v4927, %v5126
      %v5206 = vadd.f32 %v4928, %v5129
      %v5207 = vadd.f32 %v4929, %v5132
      %v5208 = vadd.f32 %v4930, %v5135
      %v5209 = vadd.f32 %v4931, %v5138
      %v5210 = vadd.f32 %v4932, %v5141
      %v5211 = vadd.f32 %v4933, %v5144
      %v5212 = vadd.f32 %v4934, %v5147
      %v5213 = vadd.f32 %v4935, %v5150
      %v5214 = vadd.f32 %v4936, %v5153
      %v5215 = vadd.f32 %v4937, %v5156
      %v5216 = vadd.f32 %v4938, %v5159
      %v5217 = vadd.f32 %v4939, %v5162
      %v5218 = vadd.f32 %v4940, %v5165
      %v5219 = vadd.f32 %v4941, %v5168
      %v5220 = vadd.f32 %v4942, %v5171
      %v5221 = vadd.f32 %v4943, %v5174
      %v5222 = vadd.f32 %v4944, %v5177
      %v5223 = vadd.f32 %v4945, %v5180
      %v5224 = vadd.f32 %v4946, %v5183
      %v5225 = vadd.f32 %v4947, %v5186
      %v5226 = vadd.f32 %v4948, %v5189
      %v5227 = vadd.f32 %v4949, %v5192
      %v5228 = vadd.f32 %v4950, %v5195
      %v5229 = vld [vmem:[%s4148 + $0x1] sm:$0xff]
      %v5230 = vld [vmem:[%s4148 + $0x9] sm:$0xff]
      %v5231 = vld [vmem:[%s4148 + $0x19] sm:$0xff]
      %v5232 = vld [vmem:[%s4148 + $0x21] sm:$0xff]
      %v5233 = vld [vmem:[%s4148 + $0x31] sm:$0xff]
      %v5234 = vld [vmem:[%s4148 + $0x39] sm:$0xff]
      %v5235 = vld [vmem:[%s4148 + $0x49] sm:$0xff]
      %v5236 = vld [vmem:[%s4148 + $0x51] sm:$0xff]
      %v5237 = vld [vmem:[%s4148 + $0x61] sm:$0xff]
      %v5238 = vld [vmem:[%s4148 + $0x69] sm:$0xff]
      %v5239 = vld [vmem:[%s4148 + $0x79] sm:$0xff]
      %v5240 = vld [vmem:[%s4148 + $0x81] sm:$0xff]
      %v5241 = vld [vmem:[%s4148 + $0x91] sm:$0xff]
      %v5242 = vld [vmem:[%s4148 + $0x99] sm:$0xff]
      %v5243 = vld [vmem:[%s4148 + $0xa9] sm:$0xff]
      %v5244 = vld [vmem:[%s4148 + $0xb1] sm:$0xff]
      %v5245 = vld [vmem:[%s4148 + $0xc1] sm:$0xff]
      %v5246 = vld [vmem:[%s4148 + $0xc9] sm:$0xff]
      %v5247 = vld [vmem:[%s4148 + $0xd9] sm:$0xff]
      %v5248 = vld [vmem:[%s4148 + $0xe1] sm:$0xff]
      %v5249 = vld [vmem:[%s4148 + $0xf1] sm:$0xff]
      %v5250 = vld [vmem:[%s4148 + $0xf9] sm:$0xff]
      %v5251 = vld [vmem:[%s4148 + $0x109] sm:$0xff]
      %v5252 = vld [vmem:[%s4148 + $0x111] sm:$0xff]
      %v5253 = vld [vmem:[%s4148 + $0x121] sm:$0xff]
      %v5254 = vld [vmem:[%s4148 + $0x129] sm:$0xff]
      %v5255 = vld [vmem:[%s4148 + $0x139] sm:$0xff]
      %v5256 = vld [vmem:[%s4148 + $0x141] sm:$0xff]
      %v5257 = vld [vmem:[%s4148 + $0x151] sm:$0xff]
      %v5258 = vld [vmem:[%s4148 + $0x159] sm:$0xff]
      %v5259 = vld [vmem:[%s4148 + $0x169] sm:$0xff]
      %v5260 = vld [vmem:[%s4148 + $0x171] sm:$0xff]
      %s5261 = scalar_lea.vmem %s6, 16
      %v5262 = vld [vmem:[%s5261] sm:$0xf]
      %v5264 = vsel %vm372, %v5229, 0
      %v5267 = vsel %vm372, %v5230, 0
      %v5270 = vsel %vm372, %v5231, 0
      %v5273 = vsel %vm372, %v5232, 0
      %v5276 = vsel %vm372, %v5233, 0
      %v5279 = vsel %vm372, %v5234, 0
      %v5282 = vsel %vm372, %v5235, 0
      %v5285 = vsel %vm372, %v5236, 0
      %v5288 = vsel %vm372, %v5237, 0
      %v5291 = vsel %vm372, %v5238, 0
      %v5294 = vsel %vm372, %v5239, 0
      %v5297 = vsel %vm372, %v5240, 0
      %v5300 = vsel %vm372, %v5241, 0
      %v5303 = vsel %vm372, %v5242, 0
      %v5306 = vsel %vm372, %v5243, 0
      %v5309 = vsel %vm372, %v5244, 0
      %v5312 = vsel %vm372, %v5245, 0
      %v5315 = vsel %vm372, %v5246, 0
      %v5318 = vsel %vm372, %v5247, 0
      %v5321 = vsel %vm372, %v5248, 0
      %v5324 = vsel %vm372, %v5249, 0
      %v5327 = vsel %vm372, %v5250, 0
      %v5330 = vsel %vm372, %v5251, 0
      %v5333 = vsel %vm372, %v5252, 0
      %v5336 = vsel %vm372, %v5253, 0
      %v5339 = vsel %vm372, %v5254, 0
      %v5342 = vsel %vm372, %v5255, 0
      %v5345 = vsel %vm372, %v5256, 0
      %v5348 = vsel %vm372, %v5257, 0
      %v5351 = vsel %vm372, %v5258, 0
      %v5354 = vsel %vm372, %v5259, 0
      %v5357 = vsel %vm372, %v5260, 0
      %v5360 = vsel %vm4344, %v5262, 0
      %5362 = vmatpush.msra.mxu0 0.0
      %5363 = vmatpush.msra.mxu0 0.0
      %5364 = vmatpush.msra.mxu0 0.0
      %5365 = vmatpush.msra.mxu0 0.0
      %5366 = vmatpush.msra.mxu0 0.0
      %5367 = vmatpush.msra.mxu0 0.0
      %5368 = vmatpush.msra.mxu0 0.0
      %5369 = vmatpush.msra.mxu0 0.0
      %5370 = vmatpush.msra.mxu0 0.0
      %5371 = vmatpush.msra.mxu0 0.0
      %5372 = vmatpush.msra.mxu0 0.0
      %5373 = vmatpush.msra.mxu0 0.0
      %5374 = vmatpush.msra.mxu0 0.0
      %5375 = vmatpush.msra.mxu0 0.0
      %5376 = vmatpush.msra.mxu0 0.0
      %5377 = vmatpush.msra.mxu0 %v5360
      %5378 = vmatmul.f32.gmra.mxu0 %v5264
      %v5379 = vpop.f32.mrf.mxu0
      %v5380 = vadd.f32 0.0, %v5379
      %5381 = vmatmul.f32.gmra.mxu0 %v5267
      %v5382 = vpop.f32.mrf.mxu0
      %v5383 = vadd.f32 0.0, %v5382
      %5384 = vmatmul.f32.gmra.mxu0 %v5270
      %v5385 = vpop.f32.mrf.mxu0
      %v5386 = vadd.f32 0.0, %v5385
      %5387 = vmatmul.f32.gmra.mxu0 %v5273
      %v5388 = vpop.f32.mrf.mxu0
      %v5389 = vadd.f32 0.0, %v5388
      %5390 = vmatmul.f32.gmra.mxu0 %v5276
      %v5391 = vpop.f32.mrf.mxu0
      %v5392 = vadd.f32 0.0, %v5391
      %5393 = vmatmul.f32.gmra.mxu0 %v5279
      %v5394 = vpop.f32.mrf.mxu0
      %v5395 = vadd.f32 0.0, %v5394
      %5396 = vmatmul.f32.gmra.mxu0 %v5282
      %v5397 = vpop.f32.mrf.mxu0
      %v5398 = vadd.f32 0.0, %v5397
      %5399 = vmatmul.f32.gmra.mxu0 %v5285
      %v5400 = vpop.f32.mrf.mxu0
      %v5401 = vadd.f32 0.0, %v5400
      %5402 = vmatmul.f32.gmra.mxu0 %v5288
      %v5403 = vpop.f32.mrf.mxu0
      %v5404 = vadd.f32 0.0, %v5403
      %5405 = vmatmul.f32.gmra.mxu0 %v5291
      %v5406 = vpop.f32.mrf.mxu0
      %v5407 = vadd.f32 0.0, %v5406
      %5408 = vmatmul.f32.gmra.mxu0 %v5294
      %v5409 = vpop.f32.mrf.mxu0
      %v5410 = vadd.f32 0.0, %v5409
      %5411 = vmatmul.f32.gmra.mxu0 %v5297
      %v5412 = vpop.f32.mrf.mxu0
      %v5413 = vadd.f32 0.0, %v5412
      %5414 = vmatmul.f32.gmra.mxu0 %v5300
      %v5415 = vpop.f32.mrf.mxu0
      %v5416 = vadd.f32 0.0, %v5415
      %5417 = vmatmul.f32.gmra.mxu0 %v5303
      %v5418 = vpop.f32.mrf.mxu0
      %v5419 = vadd.f32 0.0, %v5418
      %5420 = vmatmul.f32.gmra.mxu0 %v5306
      %v5421 = vpop.f32.mrf.mxu0
      %v5422 = vadd.f32 0.0, %v5421
      %5423 = vmatmul.f32.gmra.mxu0 %v5309
      %v5424 = vpop.f32.mrf.mxu0
      %v5425 = vadd.f32 0.0, %v5424
      %5426 = vmatmul.f32.gmra.mxu0 %v5312
      %v5427 = vpop.f32.mrf.mxu0
      %v5428 = vadd.f32 0.0, %v5427
      %5429 = vmatmul.f32.gmra.mxu0 %v5315
      %v5430 = vpop.f32.mrf.mxu0
      %v5431 = vadd.f32 0.0, %v5430
      %5432 = vmatmul.f32.gmra.mxu0 %v5318
      %v5433 = vpop.f32.mrf.mxu0
      %v5434 = vadd.f32 0.0, %v5433
      %5435 = vmatmul.f32.gmra.mxu0 %v5321
      %v5436 = vpop.f32.mrf.mxu0
      %v5437 = vadd.f32 0.0, %v5436
      %5438 = vmatmul.f32.gmra.mxu0 %v5324
      %v5439 = vpop.f32.mrf.mxu0
      %v5440 = vadd.f32 0.0, %v5439
      %5441 = vmatmul.f32.gmra.mxu0 %v5327
      %v5442 = vpop.f32.mrf.mxu0
      %v5443 = vadd.f32 0.0, %v5442
      %5444 = vmatmul.f32.gmra.mxu0 %v5330
      %v5445 = vpop.f32.mrf.mxu0
      %v5446 = vadd.f32 0.0, %v5445
      %5447 = vmatmul.f32.gmra.mxu0 %v5333
      %v5448 = vpop.f32.mrf.mxu0
      %v5449 = vadd.f32 0.0, %v5448
      %5450 = vmatmul.f32.gmra.mxu0 %v5336
      %v5451 = vpop.f32.mrf.mxu0
      %v5452 = vadd.f32 0.0, %v5451
      %5453 = vmatmul.f32.gmra.mxu0 %v5339
      %v5454 = vpop.f32.mrf.mxu0
      %v5455 = vadd.f32 0.0, %v5454
      %5456 = vmatmul.f32.gmra.mxu0 %v5342
      %v5457 = vpop.f32.mrf.mxu0
      %v5458 = vadd.f32 0.0, %v5457
      %5459 = vmatmul.f32.gmra.mxu0 %v5345
      %v5460 = vpop.f32.mrf.mxu0
      %v5461 = vadd.f32 0.0, %v5460
      %5462 = vmatmul.f32.gmra.mxu0 %v5348
      %v5463 = vpop.f32.mrf.mxu0
      %v5464 = vadd.f32 0.0, %v5463
      %5465 = vmatmul.f32.gmra.mxu0 %v5351
      %v5466 = vpop.f32.mrf.mxu0
      %v5467 = vadd.f32 0.0, %v5466
      %5468 = vmatmul.f32.gmra.mxu0 %v5354
      %v5469 = vpop.f32.mrf.mxu0
      %v5470 = vadd.f32 0.0, %v5469
      %5471 = vmatmul.f32.gmra.mxu0 %v5357
      %v5472 = vpop.f32.mrf.mxu0
      %v5473 = vadd.f32 0.0, %v5472
      %5474 = vdwg.mxu0
      %v5475 = vadd.f32 %v5197, %v5380
      %v5476 = vadd.f32 %v5198, %v5383
      %v5477 = vadd.f32 %v5199, %v5386
      %v5478 = vadd.f32 %v5200, %v5389
      %v5479 = vadd.f32 %v5201, %v5392
      %v5480 = vadd.f32 %v5202, %v5395
      %v5481 = vadd.f32 %v5203, %v5398
      %v5482 = vadd.f32 %v5204, %v5401
      %v5483 = vadd.f32 %v5205, %v5404
      %v5484 = vadd.f32 %v5206, %v5407
      %v5485 = vadd.f32 %v5207, %v5410
      %v5486 = vadd.f32 %v5208, %v5413
      %v5487 = vadd.f32 %v5209, %v5416
      %v5488 = vadd.f32 %v5210, %v5419
      %v5489 = vadd.f32 %v5211, %v5422
      %v5490 = vadd.f32 %v5212, %v5425
      %v5491 = vadd.f32 %v5213, %v5428
      %v5492 = vadd.f32 %v5214, %v5431
      %v5493 = vadd.f32 %v5215, %v5434
      %v5494 = vadd.f32 %v5216, %v5437
      %v5495 = vadd.f32 %v5217, %v5440
      %v5496 = vadd.f32 %v5218, %v5443
      %v5497 = vadd.f32 %v5219, %v5446
      %v5498 = vadd.f32 %v5220, %v5449
      %v5499 = vadd.f32 %v5221, %v5452
      %v5500 = vadd.f32 %v5222, %v5455
      %v5501 = vadd.f32 %v5223, %v5458
      %v5502 = vadd.f32 %v5224, %v5461
      %v5503 = vadd.f32 %v5225, %v5464
      %v5504 = vadd.f32 %v5226, %v5467
      %v5505 = vadd.f32 %v5227, %v5470
      %v5506 = vadd.f32 %v5228, %v5473
      %v5507 = vld [vmem:[%s4148 + $0x2] sm:$0xff]
      %v5508 = vld [vmem:[%s4148 + $0xa] sm:$0xff]
      %v5509 = vld [vmem:[%s4148 + $0x1a] sm:$0xff]
      %v5510 = vld [vmem:[%s4148 + $0x22] sm:$0xff]
      %v5511 = vld [vmem:[%s4148 + $0x32] sm:$0xff]
      %v5512 = vld [vmem:[%s4148 + $0x3a] sm:$0xff]
      %v5513 = vld [vmem:[%s4148 + $0x4a] sm:$0xff]
      %v5514 = vld [vmem:[%s4148 + $0x52] sm:$0xff]
      %v5515 = vld [vmem:[%s4148 + $0x62] sm:$0xff]
      %v5516 = vld [vmem:[%s4148 + $0x6a] sm:$0xff]
      %v5517 = vld [vmem:[%s4148 + $0x7a] sm:$0xff]
      %v5518 = vld [vmem:[%s4148 + $0x82] sm:$0xff]
      %v5519 = vld [vmem:[%s4148 + $0x92] sm:$0xff]
      %v5520 = vld [vmem:[%s4148 + $0x9a] sm:$0xff]
      %v5521 = vld [vmem:[%s4148 + $0xaa] sm:$0xff]
      %v5522 = vld [vmem:[%s4148 + $0xb2] sm:$0xff]
      %v5523 = vld [vmem:[%s4148 + $0xc2] sm:$0xff]
      %v5524 = vld [vmem:[%s4148 + $0xca] sm:$0xff]
      %v5525 = vld [vmem:[%s4148 + $0xda] sm:$0xff]
      %v5526 = vld [vmem:[%s4148 + $0xe2] sm:$0xff]
      %v5527 = vld [vmem:[%s4148 + $0xf2] sm:$0xff]
      %v5528 = vld [vmem:[%s4148 + $0xfa] sm:$0xff]
      %v5529 = vld [vmem:[%s4148 + $0x10a] sm:$0xff]
      %v5530 = vld [vmem:[%s4148 + $0x112] sm:$0xff]
      %v5531 = vld [vmem:[%s4148 + $0x122] sm:$0xff]
      %v5532 = vld [vmem:[%s4148 + $0x12a] sm:$0xff]
      %v5533 = vld [vmem:[%s4148 + $0x13a] sm:$0xff]
      %v5534 = vld [vmem:[%s4148 + $0x142] sm:$0xff]
      %v5535 = vld [vmem:[%s4148 + $0x152] sm:$0xff]
      %v5536 = vld [vmem:[%s4148 + $0x15a] sm:$0xff]
      %v5537 = vld [vmem:[%s4148 + $0x16a] sm:$0xff]
      %v5538 = vld [vmem:[%s4148 + $0x172] sm:$0xff]
      %s5539 = scalar_lea.vmem %s6, 20
      %v5540 = vld [vmem:[%s5539] sm:$0xf]
      %v5542 = vsel %vm372, %v5507, 0
      %v5545 = vsel %vm372, %v5508, 0
      %v5548 = vsel %vm372, %v5509, 0
      %v5551 = vsel %vm372, %v5510, 0
      %v5554 = vsel %vm372, %v5511, 0
      %v5557 = vsel %vm372, %v5512, 0
      %v5560 = vsel %vm372, %v5513, 0
      %v5563 = vsel %vm372, %v5514, 0
      %v5566 = vsel %vm372, %v5515, 0
      %v5569 = vsel %vm372, %v5516, 0
      %v5572 = vsel %vm372, %v5517, 0
      %v5575 = vsel %vm372, %v5518, 0
      %v5578 = vsel %vm372, %v5519, 0
      %v5581 = vsel %vm372, %v5520, 0
      %v5584 = vsel %vm372, %v5521, 0
      %v5587 = vsel %vm372, %v5522, 0
      %v5590 = vsel %vm372, %v5523, 0
      %v5593 = vsel %vm372, %v5524, 0
      %v5596 = vsel %vm372, %v5525, 0
      %v5599 = vsel %vm372, %v5526, 0
      %v5602 = vsel %vm372, %v5527, 0
      %v5605 = vsel %vm372, %v5528, 0
      %v5608 = vsel %vm372, %v5529, 0
      %v5611 = vsel %vm372, %v5530, 0
      %v5614 = vsel %vm372, %v5531, 0
      %v5617 = vsel %vm372, %v5532, 0
      %v5620 = vsel %vm372, %v5533, 0
      %v5623 = vsel %vm372, %v5534, 0
      %v5626 = vsel %vm372, %v5535, 0
      %v5629 = vsel %vm372, %v5536, 0
      %v5632 = vsel %vm372, %v5537, 0
      %v5635 = vsel %vm372, %v5538, 0
      %v5638 = vsel %vm4344, %v5540, 0
      %5640 = vmatpush.msra.mxu0 0.0
      %5641 = vmatpush.msra.mxu0 0.0
      %5642 = vmatpush.msra.mxu0 0.0
      %5643 = vmatpush.msra.mxu0 0.0
      %5644 = vmatpush.msra.mxu0 0.0
      %5645 = vmatpush.msra.mxu0 0.0
      %5646 = vmatpush.msra.mxu0 0.0
      %5647 = vmatpush.msra.mxu0 0.0
      %5648 = vmatpush.msra.mxu0 0.0
      %5649 = vmatpush.msra.mxu0 0.0
      %5650 = vmatpush.msra.mxu0 0.0
      %5651 = vmatpush.msra.mxu0 0.0
      %5652 = vmatpush.msra.mxu0 0.0
      %5653 = vmatpush.msra.mxu0 0.0
      %5654 = vmatpush.msra.mxu0 0.0
      %5655 = vmatpush.msra.mxu0 %v5638
      %5656 = vmatmul.f32.gmra.mxu0 %v5542
      %v5657 = vpop.f32.mrf.mxu0
      %v5658 = vadd.f32 0.0, %v5657
      %5659 = vmatmul.f32.gmra.mxu0 %v5545
      %v5660 = vpop.f32.mrf.mxu0
      %v5661 = vadd.f32 0.0, %v5660
      %5662 = vmatmul.f32.gmra.mxu0 %v5548
      %v5663 = vpop.f32.mrf.mxu0
      %v5664 = vadd.f32 0.0, %v5663
      %5665 = vmatmul.f32.gmra.mxu0 %v5551
      %v5666 = vpop.f32.mrf.mxu0
      %v5667 = vadd.f32 0.0, %v5666
      %5668 = vmatmul.f32.gmra.mxu0 %v5554
      %v5669 = vpop.f32.mrf.mxu0
      %v5670 = vadd.f32 0.0, %v5669
      %5671 = vmatmul.f32.gmra.mxu0 %v5557
      %v5672 = vpop.f32.mrf.mxu0
      %v5673 = vadd.f32 0.0, %v5672
      %5674 = vmatmul.f32.gmra.mxu0 %v5560
      %v5675 = vpop.f32.mrf.mxu0
      %v5676 = vadd.f32 0.0, %v5675
      %5677 = vmatmul.f32.gmra.mxu0 %v5563
      %v5678 = vpop.f32.mrf.mxu0
      %v5679 = vadd.f32 0.0, %v5678
      %5680 = vmatmul.f32.gmra.mxu0 %v5566
      %v5681 = vpop.f32.mrf.mxu0
      %v5682 = vadd.f32 0.0, %v5681
      %5683 = vmatmul.f32.gmra.mxu0 %v5569
      %v5684 = vpop.f32.mrf.mxu0
      %v5685 = vadd.f32 0.0, %v5684
      %5686 = vmatmul.f32.gmra.mxu0 %v5572
      %v5687 = vpop.f32.mrf.mxu0
      %v5688 = vadd.f32 0.0, %v5687
      %5689 = vmatmul.f32.gmra.mxu0 %v5575
      %v5690 = vpop.f32.mrf.mxu0
      %v5691 = vadd.f32 0.0, %v5690
      %5692 = vmatmul.f32.gmra.mxu0 %v5578
      %v5693 = vpop.f32.mrf.mxu0
      %v5694 = vadd.f32 0.0, %v5693
      %5695 = vmatmul.f32.gmra.mxu0 %v5581
      %v5696 = vpop.f32.mrf.mxu0
      %v5697 = vadd.f32 0.0, %v5696
      %5698 = vmatmul.f32.gmra.mxu0 %v5584
      %v5699 = vpop.f32.mrf.mxu0
      %v5700 = vadd.f32 0.0, %v5699
      %5701 = vmatmul.f32.gmra.mxu0 %v5587
      %v5702 = vpop.f32.mrf.mxu0
      %v5703 = vadd.f32 0.0, %v5702
      %5704 = vmatmul.f32.gmra.mxu0 %v5590
      %v5705 = vpop.f32.mrf.mxu0
      %v5706 = vadd.f32 0.0, %v5705
      %5707 = vmatmul.f32.gmra.mxu0 %v5593
      %v5708 = vpop.f32.mrf.mxu0
      %v5709 = vadd.f32 0.0, %v5708
      %5710 = vmatmul.f32.gmra.mxu0 %v5596
      %v5711 = vpop.f32.mrf.mxu0
      %v5712 = vadd.f32 0.0, %v5711
      %5713 = vmatmul.f32.gmra.mxu0 %v5599
      %v5714 = vpop.f32.mrf.mxu0
      %v5715 = vadd.f32 0.0, %v5714
      %5716 = vmatmul.f32.gmra.mxu0 %v5602
      %v5717 = vpop.f32.mrf.mxu0
      %v5718 = vadd.f32 0.0, %v5717
      %5719 = vmatmul.f32.gmra.mxu0 %v5605
      %v5720 = vpop.f32.mrf.mxu0
      %v5721 = vadd.f32 0.0, %v5720
      %5722 = vmatmul.f32.gmra.mxu0 %v5608
      %v5723 = vpop.f32.mrf.mxu0
      %v5724 = vadd.f32 0.0, %v5723
      %5725 = vmatmul.f32.gmra.mxu0 %v5611
      %v5726 = vpop.f32.mrf.mxu0
      %v5727 = vadd.f32 0.0, %v5726
      %5728 = vmatmul.f32.gmra.mxu0 %v5614
      %v5729 = vpop.f32.mrf.mxu0
      %v5730 = vadd.f32 0.0, %v5729
      %5731 = vmatmul.f32.gmra.mxu0 %v5617
      %v5732 = vpop.f32.mrf.mxu0
      %v5733 = vadd.f32 0.0, %v5732
      %5734 = vmatmul.f32.gmra.mxu0 %v5620
      %v5735 = vpop.f32.mrf.mxu0
      %v5736 = vadd.f32 0.0, %v5735
      %5737 = vmatmul.f32.gmra.mxu0 %v5623
      %v5738 = vpop.f32.mrf.mxu0
      %v5739 = vadd.f32 0.0, %v5738
      %5740 = vmatmul.f32.gmra.mxu0 %v5626
      %v5741 = vpop.f32.mrf.mxu0
      %v5742 = vadd.f32 0.0, %v5741
      %5743 = vmatmul.f32.gmra.mxu0 %v5629
      %v5744 = vpop.f32.mrf.mxu0
      %v5745 = vadd.f32 0.0, %v5744
      %5746 = vmatmul.f32.gmra.mxu0 %v5632
      %v5747 = vpop.f32.mrf.mxu0
      %v5748 = vadd.f32 0.0, %v5747
      %5749 = vmatmul.f32.gmra.mxu0 %v5635
      %v5750 = vpop.f32.mrf.mxu0
      %v5751 = vadd.f32 0.0, %v5750
      %5752 = vdwg.mxu0
      %v5753 = vadd.f32 %v5475, %v5658
      %v5754 = vadd.f32 %v5476, %v5661
      %v5755 = vadd.f32 %v5477, %v5664
      %v5756 = vadd.f32 %v5478, %v5667
      %v5757 = vadd.f32 %v5479, %v5670
      %v5758 = vadd.f32 %v5480, %v5673
      %v5759 = vadd.f32 %v5481, %v5676
      %v5760 = vadd.f32 %v5482, %v5679
      %v5761 = vadd.f32 %v5483, %v5682
      %v5762 = vadd.f32 %v5484, %v5685
      %v5763 = vadd.f32 %v5485, %v5688
      %v5764 = vadd.f32 %v5486, %v5691
      %v5765 = vadd.f32 %v5487, %v5694
      %v5766 = vadd.f32 %v5488, %v5697
      %v5767 = vadd.f32 %v5489, %v5700
      %v5768 = vadd.f32 %v5490, %v5703
      %v5769 = vadd.f32 %v5491, %v5706
      %v5770 = vadd.f32 %v5492, %v5709
      %v5771 = vadd.f32 %v5493, %v5712
      %v5772 = vadd.f32 %v5494, %v5715
      %v5773 = vadd.f32 %v5495, %v5718
      %v5774 = vadd.f32 %v5496, %v5721
      %v5775 = vadd.f32 %v5497, %v5724
      %v5776 = vadd.f32 %v5498, %v5727
      %v5777 = vadd.f32 %v5499, %v5730
      %v5778 = vadd.f32 %v5500, %v5733
      %v5779 = vadd.f32 %v5501, %v5736
      %v5780 = vadd.f32 %v5502, %v5739
      %v5781 = vadd.f32 %v5503, %v5742
      %v5782 = vadd.f32 %v5504, %v5745
      %v5783 = vadd.f32 %v5505, %v5748
      %v5784 = vadd.f32 %v5506, %v5751
      %s5785 = scalar_lea.vmem [#allocation3], 48
      %v5786 = vld [vmem:[%s5785] sm:$0xff]
      %v5787 = vld [vmem:[%s5785 + $0x8] sm:$0xff]
      %v5788 = vld [vmem:[%s5785 + $0x18] sm:$0xff]
      %v5789 = vld [vmem:[%s5785 + $0x20] sm:$0xff]
      %v5790 = vld [vmem:[%s5785 + $0x30] sm:$0xff]
      %v5791 = vld [vmem:[%s5785 + $0x38] sm:$0xff]
      %v5792 = vld [vmem:[%s5785 + $0x48] sm:$0xff]
      %v5793 = vld [vmem:[%s5785 + $0x50] sm:$0xff]
      %v5794 = vld [vmem:[%s5785 + $0x60] sm:$0xff]
      %v5795 = vld [vmem:[%s5785 + $0x68] sm:$0xff]
      %v5796 = vld [vmem:[%s5785 + $0x78] sm:$0xff]
      %v5797 = vld [vmem:[%s5785 + $0x80] sm:$0xff]
      %v5798 = vld [vmem:[%s5785 + $0x90] sm:$0xff]
      %v5799 = vld [vmem:[%s5785 + $0x98] sm:$0xff]
      %v5800 = vld [vmem:[%s5785 + $0xa8] sm:$0xff]
      %v5801 = vld [vmem:[%s5785 + $0xb0] sm:$0xff]
      %v5802 = vld [vmem:[%s5785 + $0xc0] sm:$0xff]
      %v5803 = vld [vmem:[%s5785 + $0xc8] sm:$0xff]
      %v5804 = vld [vmem:[%s5785 + $0xd8] sm:$0xff]
      %v5805 = vld [vmem:[%s5785 + $0xe0] sm:$0xff]
      %v5806 = vld [vmem:[%s5785 + $0xf0] sm:$0xff]
      %v5807 = vld [vmem:[%s5785 + $0xf8] sm:$0xff]
      %v5808 = vld [vmem:[%s5785 + $0x108] sm:$0xff]
      %v5809 = vld [vmem:[%s5785 + $0x110] sm:$0xff]
      %v5810 = vld [vmem:[%s5785 + $0x120] sm:$0xff]
      %v5811 = vld [vmem:[%s5785 + $0x128] sm:$0xff]
      %v5812 = vld [vmem:[%s5785 + $0x138] sm:$0xff]
      %v5813 = vld [vmem:[%s5785 + $0x140] sm:$0xff]
      %v5814 = vld [vmem:[%s5785 + $0x150] sm:$0xff]
      %v5815 = vld [vmem:[%s5785 + $0x158] sm:$0xff]
      %v5816 = vld [vmem:[%s5785 + $0x168] sm:$0xff]
      %v5817 = vld [vmem:[%s5785 + $0x170] sm:$0xff]
      %s5818 = scalar_lea.vmem %s6, 24
      %v5819 = vld [vmem:[%s5818] sm:$0xf]
      %v5821 = vsel %vm372, %v5786, 0
      %v5824 = vsel %vm372, %v5787, 0
      %v5827 = vsel %vm372, %v5788, 0
      %v5830 = vsel %vm372, %v5789, 0
      %v5833 = vsel %vm372, %v5790, 0
      %v5836 = vsel %vm372, %v5791, 0
      %v5839 = vsel %vm372, %v5792, 0
      %v5842 = vsel %vm372, %v5793, 0
      %v5845 = vsel %vm372, %v5794, 0
      %v5848 = vsel %vm372, %v5795, 0
      %v5851 = vsel %vm372, %v5796, 0
      %v5854 = vsel %vm372, %v5797, 0
      %v5857 = vsel %vm372, %v5798, 0
      %v5860 = vsel %vm372, %v5799, 0
      %v5863 = vsel %vm372, %v5800, 0
      %v5866 = vsel %vm372, %v5801, 0
      %v5869 = vsel %vm372, %v5802, 0
      %v5872 = vsel %vm372, %v5803, 0
      %v5875 = vsel %vm372, %v5804, 0
      %v5878 = vsel %vm372, %v5805, 0
      %v5881 = vsel %vm372, %v5806, 0
      %v5884 = vsel %vm372, %v5807, 0
      %v5887 = vsel %vm372, %v5808, 0
      %v5890 = vsel %vm372, %v5809, 0
      %v5893 = vsel %vm372, %v5810, 0
      %v5896 = vsel %vm372, %v5811, 0
      %v5899 = vsel %vm372, %v5812, 0
      %v5902 = vsel %vm372, %v5813, 0
      %v5905 = vsel %vm372, %v5814, 0
      %v5908 = vsel %vm372, %v5815, 0
      %v5911 = vsel %vm372, %v5816, 0
      %v5914 = vsel %vm372, %v5817, 0
      %v5917 = vsel %vm4344, %v5819, 0
      %5919 = vmatpush.msra.mxu0 0.0
      %5920 = vmatpush.msra.mxu0 0.0
      %5921 = vmatpush.msra.mxu0 0.0
      %5922 = vmatpush.msra.mxu0 0.0
      %5923 = vmatpush.msra.mxu0 0.0
      %5924 = vmatpush.msra.mxu0 0.0
      %5925 = vmatpush.msra.mxu0 0.0
      %5926 = vmatpush.msra.mxu0 0.0
      %5927 = vmatpush.msra.mxu0 0.0
      %5928 = vmatpush.msra.mxu0 0.0
      %5929 = vmatpush.msra.mxu0 0.0
      %5930 = vmatpush.msra.mxu0 0.0
      %5931 = vmatpush.msra.mxu0 0.0
      %5932 = vmatpush.msra.mxu0 0.0
      %5933 = vmatpush.msra.mxu0 0.0
      %5934 = vmatpush.msra.mxu0 %v5917
      %5935 = vmatmul.f32.gmra.mxu0 %v5821
      %v5936 = vpop.f32.mrf.mxu0
      %v5937 = vadd.f32 0.0, %v5936
      %5938 = vmatmul.f32.gmra.mxu0 %v5824
      %v5939 = vpop.f32.mrf.mxu0
      %v5940 = vadd.f32 0.0, %v5939
      %5941 = vmatmul.f32.gmra.mxu0 %v5827
      %v5942 = vpop.f32.mrf.mxu0
      %v5943 = vadd.f32 0.0, %v5942
      %5944 = vmatmul.f32.gmra.mxu0 %v5830
      %v5945 = vpop.f32.mrf.mxu0
      %v5946 = vadd.f32 0.0, %v5945
      %5947 = vmatmul.f32.gmra.mxu0 %v5833
      %v5948 = vpop.f32.mrf.mxu0
      %v5949 = vadd.f32 0.0, %v5948
      %5950 = vmatmul.f32.gmra.mxu0 %v5836
      %v5951 = vpop.f32.mrf.mxu0
      %v5952 = vadd.f32 0.0, %v5951
      %5953 = vmatmul.f32.gmra.mxu0 %v5839
      %v5954 = vpop.f32.mrf.mxu0
      %v5955 = vadd.f32 0.0, %v5954
      %5956 = vmatmul.f32.gmra.mxu0 %v5842
      %v5957 = vpop.f32.mrf.mxu0
      %v5958 = vadd.f32 0.0, %v5957
      %5959 = vmatmul.f32.gmra.mxu0 %v5845
      %v5960 = vpop.f32.mrf.mxu0
      %v5961 = vadd.f32 0.0, %v5960
      %5962 = vmatmul.f32.gmra.mxu0 %v5848
      %v5963 = vpop.f32.mrf.mxu0
      %v5964 = vadd.f32 0.0, %v5963
      %5965 = vmatmul.f32.gmra.mxu0 %v5851
      %v5966 = vpop.f32.mrf.mxu0
      %v5967 = vadd.f32 0.0, %v5966
      %5968 = vmatmul.f32.gmra.mxu0 %v5854
      %v5969 = vpop.f32.mrf.mxu0
      %v5970 = vadd.f32 0.0, %v5969
      %5971 = vmatmul.f32.gmra.mxu0 %v5857
      %v5972 = vpop.f32.mrf.mxu0
      %v5973 = vadd.f32 0.0, %v5972
      %5974 = vmatmul.f32.gmra.mxu0 %v5860
      %v5975 = vpop.f32.mrf.mxu0
      %v5976 = vadd.f32 0.0, %v5975
      %5977 = vmatmul.f32.gmra.mxu0 %v5863
      %v5978 = vpop.f32.mrf.mxu0
      %v5979 = vadd.f32 0.0, %v5978
      %5980 = vmatmul.f32.gmra.mxu0 %v5866
      %v5981 = vpop.f32.mrf.mxu0
      %v5982 = vadd.f32 0.0, %v5981
      %5983 = vmatmul.f32.gmra.mxu0 %v5869
      %v5984 = vpop.f32.mrf.mxu0
      %v5985 = vadd.f32 0.0, %v5984
      %5986 = vmatmul.f32.gmra.mxu0 %v5872
      %v5987 = vpop.f32.mrf.mxu0
      %v5988 = vadd.f32 0.0, %v5987
      %5989 = vmatmul.f32.gmra.mxu0 %v5875
      %v5990 = vpop.f32.mrf.mxu0
      %v5991 = vadd.f32 0.0, %v5990
      %5992 = vmatmul.f32.gmra.mxu0 %v5878
      %v5993 = vpop.f32.mrf.mxu0
      %v5994 = vadd.f32 0.0, %v5993
      %5995 = vmatmul.f32.gmra.mxu0 %v5881
      %v5996 = vpop.f32.mrf.mxu0
      %v5997 = vadd.f32 0.0, %v5996
      %5998 = vmatmul.f32.gmra.mxu0 %v5884
      %v5999 = vpop.f32.mrf.mxu0
      %v6000 = vadd.f32 0.0, %v5999
      %6001 = vmatmul.f32.gmra.mxu0 %v5887
      %v6002 = vpop.f32.mrf.mxu0
      %v6003 = vadd.f32 0.0, %v6002
      %6004 = vmatmul.f32.gmra.mxu0 %v5890
      %v6005 = vpop.f32.mrf.mxu0
      %v6006 = vadd.f32 0.0, %v6005
      %6007 = vmatmul.f32.gmra.mxu0 %v5893
      %v6008 = vpop.f32.mrf.mxu0
      %v6009 = vadd.f32 0.0, %v6008
      %6010 = vmatmul.f32.gmra.mxu0 %v5896
      %v6011 = vpop.f32.mrf.mxu0
      %v6012 = vadd.f32 0.0, %v6011
      %6013 = vmatmul.f32.gmra.mxu0 %v5899
      %v6014 = vpop.f32.mrf.mxu0
      %v6015 = vadd.f32 0.0, %v6014
      %6016 = vmatmul.f32.gmra.mxu0 %v5902
      %v6017 = vpop.f32.mrf.mxu0
      %v6018 = vadd.f32 0.0, %v6017
      %6019 = vmatmul.f32.gmra.mxu0 %v5905
      %v6020 = vpop.f32.mrf.mxu0
      %v6021 = vadd.f32 0.0, %v6020
      %6022 = vmatmul.f32.gmra.mxu0 %v5908
      %v6023 = vpop.f32.mrf.mxu0
      %v6024 = vadd.f32 0.0, %v6023
      %6025 = vmatmul.f32.gmra.mxu0 %v5911
      %v6026 = vpop.f32.mrf.mxu0
      %v6027 = vadd.f32 0.0, %v6026
      %6028 = vmatmul.f32.gmra.mxu0 %v5914
      %v6029 = vpop.f32.mrf.mxu0
      %v6030 = vadd.f32 0.0, %v6029
      %6031 = vdwg.mxu0
      %v6032 = vadd.f32 %v5753, %v5937
      %v6033 = vadd.f32 %v5754, %v5940
      %v6034 = vadd.f32 %v5755, %v5943
      %v6035 = vadd.f32 %v5756, %v5946
      %v6036 = vadd.f32 %v5757, %v5949
      %v6037 = vadd.f32 %v5758, %v5952
      %v6038 = vadd.f32 %v5759, %v5955
      %v6039 = vadd.f32 %v5760, %v5958
      %v6040 = vadd.f32 %v5761, %v5961
      %v6041 = vadd.f32 %v5762, %v5964
      %v6042 = vadd.f32 %v5763, %v5967
      %v6043 = vadd.f32 %v5764, %v5970
      %v6044 = vadd.f32 %v5765, %v5973
      %v6045 = vadd.f32 %v5766, %v5976
      %v6046 = vadd.f32 %v5767, %v5979
      %v6047 = vadd.f32 %v5768, %v5982
      %v6048 = vadd.f32 %v5769, %v5985
      %v6049 = vadd.f32 %v5770, %v5988
      %v6050 = vadd.f32 %v5771, %v5991
      %v6051 = vadd.f32 %v5772, %v5994
      %v6052 = vadd.f32 %v5773, %v5997
      %v6053 = vadd.f32 %v5774, %v6000
      %v6054 = vadd.f32 %v5775, %v6003
      %v6055 = vadd.f32 %v5776, %v6006
      %v6056 = vadd.f32 %v5777, %v6009
      %v6057 = vadd.f32 %v5778, %v6012
      %v6058 = vadd.f32 %v5779, %v6015
      %v6059 = vadd.f32 %v5780, %v6018
      %v6060 = vadd.f32 %v5781, %v6021
      %v6061 = vadd.f32 %v5782, %v6024
      %v6062 = vadd.f32 %v5783, %v6027
      %v6063 = vadd.f32 %v5784, %v6030
      %v6064 = vld [vmem:[%s5785 + $0x1] sm:$0xff]
      %v6065 = vld [vmem:[%s5785 + $0x9] sm:$0xff]
      %v6066 = vld [vmem:[%s5785 + $0x19] sm:$0xff]
      %v6067 = vld [vmem:[%s5785 + $0x21] sm:$0xff]
      %v6068 = vld [vmem:[%s5785 + $0x31] sm:$0xff]
      %v6069 = vld [vmem:[%s5785 + $0x39] sm:$0xff]
      %v6070 = vld [vmem:[%s5785 + $0x49] sm:$0xff]
      %v6071 = vld [vmem:[%s5785 + $0x51] sm:$0xff]
      %v6072 = vld [vmem:[%s5785 + $0x61] sm:$0xff]
      %v6073 = vld [vmem:[%s5785 + $0x69] sm:$0xff]
      %v6074 = vld [vmem:[%s5785 + $0x79] sm:$0xff]
      %v6075 = vld [vmem:[%s5785 + $0x81] sm:$0xff]
      %v6076 = vld [vmem:[%s5785 + $0x91] sm:$0xff]
      %v6077 = vld [vmem:[%s5785 + $0x99] sm:$0xff]
      %v6078 = vld [vmem:[%s5785 + $0xa9] sm:$0xff]
      %v6079 = vld [vmem:[%s5785 + $0xb1] sm:$0xff]
      %v6080 = vld [vmem:[%s5785 + $0xc1] sm:$0xff]
      %v6081 = vld [vmem:[%s5785 + $0xc9] sm:$0xff]
      %v6082 = vld [vmem:[%s5785 + $0xd9] sm:$0xff]
      %v6083 = vld [vmem:[%s5785 + $0xe1] sm:$0xff]
      %v6084 = vld [vmem:[%s5785 + $0xf1] sm:$0xff]
      %v6085 = vld [vmem:[%s5785 + $0xf9] sm:$0xff]
      %v6086 = vld [vmem:[%s5785 + $0x109] sm:$0xff]
      %v6087 = vld [vmem:[%s5785 + $0x111] sm:$0xff]
      %v6088 = vld [vmem:[%s5785 + $0x121] sm:$0xff]
      %v6089 = vld [vmem:[%s5785 + $0x129] sm:$0xff]
      %v6090 = vld [vmem:[%s5785 + $0x139] sm:$0xff]
      %v6091 = vld [vmem:[%s5785 + $0x141] sm:$0xff]
      %v6092 = vld [vmem:[%s5785 + $0x151] sm:$0xff]
      %v6093 = vld [vmem:[%s5785 + $0x159] sm:$0xff]
      %v6094 = vld [vmem:[%s5785 + $0x169] sm:$0xff]
      %v6095 = vld [vmem:[%s5785 + $0x171] sm:$0xff]
      %s6096 = scalar_lea.vmem %s6, 28
      %v6097 = vld [vmem:[%s6096] sm:$0xf]
      %v6099 = vsel %vm372, %v6064, 0
      %v6102 = vsel %vm372, %v6065, 0
      %v6105 = vsel %vm372, %v6066, 0
      %v6108 = vsel %vm372, %v6067, 0
      %v6111 = vsel %vm372, %v6068, 0
      %v6114 = vsel %vm372, %v6069, 0
      %v6117 = vsel %vm372, %v6070, 0
      %v6120 = vsel %vm372, %v6071, 0
      %v6123 = vsel %vm372, %v6072, 0
      %v6126 = vsel %vm372, %v6073, 0
      %v6129 = vsel %vm372, %v6074, 0
      %v6132 = vsel %vm372, %v6075, 0
      %v6135 = vsel %vm372, %v6076, 0
      %v6138 = vsel %vm372, %v6077, 0
      %v6141 = vsel %vm372, %v6078, 0
      %v6144 = vsel %vm372, %v6079, 0
      %v6147 = vsel %vm372, %v6080, 0
      %v6150 = vsel %vm372, %v6081, 0
      %v6153 = vsel %vm372, %v6082, 0
      %v6156 = vsel %vm372, %v6083, 0
      %v6159 = vsel %vm372, %v6084, 0
      %v6162 = vsel %vm372, %v6085, 0
      %v6165 = vsel %vm372, %v6086, 0
      %v6168 = vsel %vm372, %v6087, 0
      %v6171 = vsel %vm372, %v6088, 0
      %v6174 = vsel %vm372, %v6089, 0
      %v6177 = vsel %vm372, %v6090, 0
      %v6180 = vsel %vm372, %v6091, 0
      %v6183 = vsel %vm372, %v6092, 0
      %v6186 = vsel %vm372, %v6093, 0
      %v6189 = vsel %vm372, %v6094, 0
      %v6192 = vsel %vm372, %v6095, 0
      %v6195 = vsel %vm4344, %v6097, 0
      %6197 = vmatpush.msra.mxu0 0.0
      %6198 = vmatpush.msra.mxu0 0.0
      %6199 = vmatpush.msra.mxu0 0.0
      %6200 = vmatpush.msra.mxu0 0.0
      %6201 = vmatpush.msra.mxu0 0.0
      %6202 = vmatpush.msra.mxu0 0.0
      %6203 = vmatpush.msra.mxu0 0.0
      %6204 = vmatpush.msra.mxu0 0.0
      %6205 = vmatpush.msra.mxu0 0.0
      %6206 = vmatpush.msra.mxu0 0.0
      %6207 = vmatpush.msra.mxu0 0.0
      %6208 = vmatpush.msra.mxu0 0.0
      %6209 = vmatpush.msra.mxu0 0.0
      %6210 = vmatpush.msra.mxu0 0.0
      %6211 = vmatpush.msra.mxu0 0.0
      %6212 = vmatpush.msra.mxu0 %v6195
      %6213 = vmatmul.f32.gmra.mxu0 %v6099
      %v6214 = vpop.f32.mrf.mxu0
      %v6215 = vadd.f32 0.0, %v6214
      %6216 = vmatmul.f32.gmra.mxu0 %v6102
      %v6217 = vpop.f32.mrf.mxu0
      %v6218 = vadd.f32 0.0, %v6217
      %6219 = vmatmul.f32.gmra.mxu0 %v6105
      %v6220 = vpop.f32.mrf.mxu0
      %v6221 = vadd.f32 0.0, %v6220
      %6222 = vmatmul.f32.gmra.mxu0 %v6108
      %v6223 = vpop.f32.mrf.mxu0
      %v6224 = vadd.f32 0.0, %v6223
      %6225 = vmatmul.f32.gmra.mxu0 %v6111
      %v6226 = vpop.f32.mrf.mxu0
      %v6227 = vadd.f32 0.0, %v6226
      %6228 = vmatmul.f32.gmra.mxu0 %v6114
      %v6229 = vpop.f32.mrf.mxu0
      %v6230 = vadd.f32 0.0, %v6229
      %6231 = vmatmul.f32.gmra.mxu0 %v6117
      %v6232 = vpop.f32.mrf.mxu0
      %v6233 = vadd.f32 0.0, %v6232
      %6234 = vmatmul.f32.gmra.mxu0 %v6120
      %v6235 = vpop.f32.mrf.mxu0
      %v6236 = vadd.f32 0.0, %v6235
      %6237 = vmatmul.f32.gmra.mxu0 %v6123
      %v6238 = vpop.f32.mrf.mxu0
      %v6239 = vadd.f32 0.0, %v6238
      %6240 = vmatmul.f32.gmra.mxu0 %v6126
      %v6241 = vpop.f32.mrf.mxu0
      %v6242 = vadd.f32 0.0, %v6241
      %6243 = vmatmul.f32.gmra.mxu0 %v6129
      %v6244 = vpop.f32.mrf.mxu0
      %v6245 = vadd.f32 0.0, %v6244
      %6246 = vmatmul.f32.gmra.mxu0 %v6132
      %v6247 = vpop.f32.mrf.mxu0
      %v6248 = vadd.f32 0.0, %v6247
      %6249 = vmatmul.f32.gmra.mxu0 %v6135
      %v6250 = vpop.f32.mrf.mxu0
      %v6251 = vadd.f32 0.0, %v6250
      %6252 = vmatmul.f32.gmra.mxu0 %v6138
      %v6253 = vpop.f32.mrf.mxu0
      %v6254 = vadd.f32 0.0, %v6253
      %6255 = vmatmul.f32.gmra.mxu0 %v6141
      %v6256 = vpop.f32.mrf.mxu0
      %v6257 = vadd.f32 0.0, %v6256
      %6258 = vmatmul.f32.gmra.mxu0 %v6144
      %v6259 = vpop.f32.mrf.mxu0
      %v6260 = vadd.f32 0.0, %v6259
      %6261 = vmatmul.f32.gmra.mxu0 %v6147
      %v6262 = vpop.f32.mrf.mxu0
      %v6263 = vadd.f32 0.0, %v6262
      %6264 = vmatmul.f32.gmra.mxu0 %v6150
      %v6265 = vpop.f32.mrf.mxu0
      %v6266 = vadd.f32 0.0, %v6265
      %6267 = vmatmul.f32.gmra.mxu0 %v6153
      %v6268 = vpop.f32.mrf.mxu0
      %v6269 = vadd.f32 0.0, %v6268
      %6270 = vmatmul.f32.gmra.mxu0 %v6156
      %v6271 = vpop.f32.mrf.mxu0
      %v6272 = vadd.f32 0.0, %v6271
      %6273 = vmatmul.f32.gmra.mxu0 %v6159
      %v6274 = vpop.f32.mrf.mxu0
      %v6275 = vadd.f32 0.0, %v6274
      %6276 = vmatmul.f32.gmra.mxu0 %v6162
      %v6277 = vpop.f32.mrf.mxu0
      %v6278 = vadd.f32 0.0, %v6277
      %6279 = vmatmul.f32.gmra.mxu0 %v6165
      %v6280 = vpop.f32.mrf.mxu0
      %v6281 = vadd.f32 0.0, %v6280
      %6282 = vmatmul.f32.gmra.mxu0 %v6168
      %v6283 = vpop.f32.mrf.mxu0
      %v6284 = vadd.f32 0.0, %v6283
      %6285 = vmatmul.f32.gmra.mxu0 %v6171
      %v6286 = vpop.f32.mrf.mxu0
      %v6287 = vadd.f32 0.0, %v6286
      %6288 = vmatmul.f32.gmra.mxu0 %v6174
      %v6289 = vpop.f32.mrf.mxu0
      %v6290 = vadd.f32 0.0, %v6289
      %6291 = vmatmul.f32.gmra.mxu0 %v6177
      %v6292 = vpop.f32.mrf.mxu0
      %v6293 = vadd.f32 0.0, %v6292
      %6294 = vmatmul.f32.gmra.mxu0 %v6180
      %v6295 = vpop.f32.mrf.mxu0
      %v6296 = vadd.f32 0.0, %v6295
      %6297 = vmatmul.f32.gmra.mxu0 %v6183
      %v6298 = vpop.f32.mrf.mxu0
      %v6299 = vadd.f32 0.0, %v6298
      %6300 = vmatmul.f32.gmra.mxu0 %v6186
      %v6301 = vpop.f32.mrf.mxu0
      %v6302 = vadd.f32 0.0, %v6301
      %6303 = vmatmul.f32.gmra.mxu0 %v6189
      %v6304 = vpop.f32.mrf.mxu0
      %v6305 = vadd.f32 0.0, %v6304
      %6306 = vmatmul.f32.gmra.mxu0 %v6192
      %v6307 = vpop.f32.mrf.mxu0
      %v6308 = vadd.f32 0.0, %v6307
      %6309 = vdwg.mxu0
      %v6310 = vadd.f32 %v6032, %v6215
      %v6311 = vadd.f32 %v6033, %v6218
      %v6312 = vadd.f32 %v6034, %v6221
      %v6313 = vadd.f32 %v6035, %v6224
      %v6314 = vadd.f32 %v6036, %v6227
      %v6315 = vadd.f32 %v6037, %v6230
      %v6316 = vadd.f32 %v6038, %v6233
      %v6317 = vadd.f32 %v6039, %v6236
      %v6318 = vadd.f32 %v6040, %v6239
      %v6319 = vadd.f32 %v6041, %v6242
      %v6320 = vadd.f32 %v6042, %v6245
      %v6321 = vadd.f32 %v6043, %v6248
      %v6322 = vadd.f32 %v6044, %v6251
      %v6323 = vadd.f32 %v6045, %v6254
      %v6324 = vadd.f32 %v6046, %v6257
      %v6325 = vadd.f32 %v6047, %v6260
      %v6326 = vadd.f32 %v6048, %v6263
      %v6327 = vadd.f32 %v6049, %v6266
      %v6328 = vadd.f32 %v6050, %v6269
      %v6329 = vadd.f32 %v6051, %v6272
      %v6330 = vadd.f32 %v6052, %v6275
      %v6331 = vadd.f32 %v6053, %v6278
      %v6332 = vadd.f32 %v6054, %v6281
      %v6333 = vadd.f32 %v6055, %v6284
      %v6334 = vadd.f32 %v6056, %v6287
      %v6335 = vadd.f32 %v6057, %v6290
      %v6336 = vadd.f32 %v6058, %v6293
      %v6337 = vadd.f32 %v6059, %v6296
      %v6338 = vadd.f32 %v6060, %v6299
      %v6339 = vadd.f32 %v6061, %v6302
      %v6340 = vadd.f32 %v6062, %v6305
      %v6341 = vadd.f32 %v6063, %v6308
      %v6342 = vld [vmem:[%s5785 + $0x2] sm:$0xff]
      %v6343 = vld [vmem:[%s5785 + $0xa] sm:$0xff]
      %v6344 = vld [vmem:[%s5785 + $0x1a] sm:$0xff]
      %v6345 = vld [vmem:[%s5785 + $0x22] sm:$0xff]
      %v6346 = vld [vmem:[%s5785 + $0x32] sm:$0xff]
      %v6347 = vld [vmem:[%s5785 + $0x3a] sm:$0xff]
      %v6348 = vld [vmem:[%s5785 + $0x4a] sm:$0xff]
      %v6349 = vld [vmem:[%s5785 + $0x52] sm:$0xff]
      %v6350 = vld [vmem:[%s5785 + $0x62] sm:$0xff]
      %v6351 = vld [vmem:[%s5785 + $0x6a] sm:$0xff]
      %v6352 = vld [vmem:[%s5785 + $0x7a] sm:$0xff]
      %v6353 = vld [vmem:[%s5785 + $0x82] sm:$0xff]
      %v6354 = vld [vmem:[%s5785 + $0x92] sm:$0xff]
      %v6355 = vld [vmem:[%s5785 + $0x9a] sm:$0xff]
      %v6356 = vld [vmem:[%s5785 + $0xaa] sm:$0xff]
      %v6357 = vld [vmem:[%s5785 + $0xb2] sm:$0xff]
      %v6358 = vld [vmem:[%s5785 + $0xc2] sm:$0xff]
      %v6359 = vld [vmem:[%s5785 + $0xca] sm:$0xff]
      %v6360 = vld [vmem:[%s5785 + $0xda] sm:$0xff]
      %v6361 = vld [vmem:[%s5785 + $0xe2] sm:$0xff]
      %v6362 = vld [vmem:[%s5785 + $0xf2] sm:$0xff]
      %v6363 = vld [vmem:[%s5785 + $0xfa] sm:$0xff]
      %v6364 = vld [vmem:[%s5785 + $0x10a] sm:$0xff]
      %v6365 = vld [vmem:[%s5785 + $0x112] sm:$0xff]
      %v6366 = vld [vmem:[%s5785 + $0x122] sm:$0xff]
      %v6367 = vld [vmem:[%s5785 + $0x12a] sm:$0xff]
      %v6368 = vld [vmem:[%s5785 + $0x13a] sm:$0xff]
      %v6369 = vld [vmem:[%s5785 + $0x142] sm:$0xff]
      %v6370 = vld [vmem:[%s5785 + $0x152] sm:$0xff]
      %v6371 = vld [vmem:[%s5785 + $0x15a] sm:$0xff]
      %v6372 = vld [vmem:[%s5785 + $0x16a] sm:$0xff]
      %v6373 = vld [vmem:[%s5785 + $0x172] sm:$0xff]
      %s6374 = scalar_lea.vmem %s6, 32
      %v6375 = vld [vmem:[%s6374] sm:$0xf]
      %v6377 = vsel %vm372, %v6342, 0
      %v6380 = vsel %vm372, %v6343, 0
      %v6383 = vsel %vm372, %v6344, 0
      %v6386 = vsel %vm372, %v6345, 0
      %v6389 = vsel %vm372, %v6346, 0
      %v6392 = vsel %vm372, %v6347, 0
      %v6395 = vsel %vm372, %v6348, 0
      %v6398 = vsel %vm372, %v6349, 0
      %v6401 = vsel %vm372, %v6350, 0
      %v6404 = vsel %vm372, %v6351, 0
      %v6407 = vsel %vm372, %v6352, 0
      %v6410 = vsel %vm372, %v6353, 0
      %v6413 = vsel %vm372, %v6354, 0
      %v6416 = vsel %vm372, %v6355, 0
      %v6419 = vsel %vm372, %v6356, 0
      %v6422 = vsel %vm372, %v6357, 0
      %v6425 = vsel %vm372, %v6358, 0
      %v6428 = vsel %vm372, %v6359, 0
      %v6431 = vsel %vm372, %v6360, 0
      %v6434 = vsel %vm372, %v6361, 0
      %v6437 = vsel %vm372, %v6362, 0
      %v6440 = vsel %vm372, %v6363, 0
      %v6443 = vsel %vm372, %v6364, 0
      %v6446 = vsel %vm372, %v6365, 0
      %v6449 = vsel %vm372, %v6366, 0
      %v6452 = vsel %vm372, %v6367, 0
      %v6455 = vsel %vm372, %v6368, 0
      %v6458 = vsel %vm372, %v6369, 0
      %v6461 = vsel %vm372, %v6370, 0
      %v6464 = vsel %vm372, %v6371, 0
      %v6467 = vsel %vm372, %v6372, 0
      %v6470 = vsel %vm372, %v6373, 0
      %v6473 = vsel %vm4344, %v6375, 0
      %6475 = vmatpush.msra.mxu0 0.0
      %6476 = vmatpush.msra.mxu0 0.0
      %6477 = vmatpush.msra.mxu0 0.0
      %6478 = vmatpush.msra.mxu0 0.0
      %6479 = vmatpush.msra.mxu0 0.0
      %6480 = vmatpush.msra.mxu0 0.0
      %6481 = vmatpush.msra.mxu0 0.0
      %6482 = vmatpush.msra.mxu0 0.0
      %6483 = vmatpush.msra.mxu0 0.0
      %6484 = vmatpush.msra.mxu0 0.0
      %6485 = vmatpush.msra.mxu0 0.0
      %6486 = vmatpush.msra.mxu0 0.0
      %6487 = vmatpush.msra.mxu0 0.0
      %6488 = vmatpush.msra.mxu0 0.0
      %6489 = vmatpush.msra.mxu0 0.0
      %6490 = vmatpush.msra.mxu0 %v6473
      %6491 = vmatmul.f32.gmra.mxu0 %v6377
      %v6492 = vpop.f32.mrf.mxu0
      %v6493 = vadd.f32 0.0, %v6492
      %6494 = vmatmul.f32.gmra.mxu0 %v6380
      %v6495 = vpop.f32.mrf.mxu0
      %v6496 = vadd.f32 0.0, %v6495
      %6497 = vmatmul.f32.gmra.mxu0 %v6383
      %v6498 = vpop.f32.mrf.mxu0
      %v6499 = vadd.f32 0.0, %v6498
      %6500 = vmatmul.f32.gmra.mxu0 %v6386
      %v6501 = vpop.f32.mrf.mxu0
      %v6502 = vadd.f32 0.0, %v6501
      %6503 = vmatmul.f32.gmra.mxu0 %v6389
      %v6504 = vpop.f32.mrf.mxu0
      %v6505 = vadd.f32 0.0, %v6504
      %6506 = vmatmul.f32.gmra.mxu0 %v6392
      %v6507 = vpop.f32.mrf.mxu0
      %v6508 = vadd.f32 0.0, %v6507
      %6509 = vmatmul.f32.gmra.mxu0 %v6395
      %v6510 = vpop.f32.mrf.mxu0
      %v6511 = vadd.f32 0.0, %v6510
      %6512 = vmatmul.f32.gmra.mxu0 %v6398
      %v6513 = vpop.f32.mrf.mxu0
      %v6514 = vadd.f32 0.0, %v6513
      %6515 = vmatmul.f32.gmra.mxu0 %v6401
      %v6516 = vpop.f32.mrf.mxu0
      %v6517 = vadd.f32 0.0, %v6516
      %6518 = vmatmul.f32.gmra.mxu0 %v6404
      %v6519 = vpop.f32.mrf.mxu0
      %v6520 = vadd.f32 0.0, %v6519
      %6521 = vmatmul.f32.gmra.mxu0 %v6407
      %v6522 = vpop.f32.mrf.mxu0
      %v6523 = vadd.f32 0.0, %v6522
      %6524 = vmatmul.f32.gmra.mxu0 %v6410
      %v6525 = vpop.f32.mrf.mxu0
      %v6526 = vadd.f32 0.0, %v6525
      %6527 = vmatmul.f32.gmra.mxu0 %v6413
      %v6528 = vpop.f32.mrf.mxu0
      %v6529 = vadd.f32 0.0, %v6528
      %6530 = vmatmul.f32.gmra.mxu0 %v6416
      %v6531 = vpop.f32.mrf.mxu0
      %v6532 = vadd.f32 0.0, %v6531
      %6533 = vmatmul.f32.gmra.mxu0 %v6419
      %v6534 = vpop.f32.mrf.mxu0
      %v6535 = vadd.f32 0.0, %v6534
      %6536 = vmatmul.f32.gmra.mxu0 %v6422
      %v6537 = vpop.f32.mrf.mxu0
      %v6538 = vadd.f32 0.0, %v6537
      %6539 = vmatmul.f32.gmra.mxu0 %v6425
      %v6540 = vpop.f32.mrf.mxu0
      %v6541 = vadd.f32 0.0, %v6540
      %6542 = vmatmul.f32.gmra.mxu0 %v6428
      %v6543 = vpop.f32.mrf.mxu0
      %v6544 = vadd.f32 0.0, %v6543
      %6545 = vmatmul.f32.gmra.mxu0 %v6431
      %v6546 = vpop.f32.mrf.mxu0
      %v6547 = vadd.f32 0.0, %v6546
      %6548 = vmatmul.f32.gmra.mxu0 %v6434
      %v6549 = vpop.f32.mrf.mxu0
      %v6550 = vadd.f32 0.0, %v6549
      %6551 = vmatmul.f32.gmra.mxu0 %v6437
      %v6552 = vpop.f32.mrf.mxu0
      %v6553 = vadd.f32 0.0, %v6552
      %6554 = vmatmul.f32.gmra.mxu0 %v6440
      %v6555 = vpop.f32.mrf.mxu0
      %v6556 = vadd.f32 0.0, %v6555
      %6557 = vmatmul.f32.gmra.mxu0 %v6443
      %v6558 = vpop.f32.mrf.mxu0
      %v6559 = vadd.f32 0.0, %v6558
      %6560 = vmatmul.f32.gmra.mxu0 %v6446
      %v6561 = vpop.f32.mrf.mxu0
      %v6562 = vadd.f32 0.0, %v6561
      %6563 = vmatmul.f32.gmra.mxu0 %v6449
      %v6564 = vpop.f32.mrf.mxu0
      %v6565 = vadd.f32 0.0, %v6564
      %6566 = vmatmul.f32.gmra.mxu0 %v6452
      %v6567 = vpop.f32.mrf.mxu0
      %v6568 = vadd.f32 0.0, %v6567
      %6569 = vmatmul.f32.gmra.mxu0 %v6455
      %v6570 = vpop.f32.mrf.mxu0
      %v6571 = vadd.f32 0.0, %v6570
      %6572 = vmatmul.f32.gmra.mxu0 %v6458
      %v6573 = vpop.f32.mrf.mxu0
      %v6574 = vadd.f32 0.0, %v6573
      %6575 = vmatmul.f32.gmra.mxu0 %v6461
      %v6576 = vpop.f32.mrf.mxu0
      %v6577 = vadd.f32 0.0, %v6576
      %6578 = vmatmul.f32.gmra.mxu0 %v6464
      %v6579 = vpop.f32.mrf.mxu0
      %v6580 = vadd.f32 0.0, %v6579
      %6581 = vmatmul.f32.gmra.mxu0 %v6467
      %v6582 = vpop.f32.mrf.mxu0
      %v6583 = vadd.f32 0.0, %v6582
      %6584 = vmatmul.f32.gmra.mxu0 %v6470
      %v6585 = vpop.f32.mrf.mxu0
      %v6586 = vadd.f32 0.0, %v6585
      %6587 = vdwg.mxu0
      %v6588 = vadd.f32 %v6310, %v6493
      %v6589 = vadd.f32 %v6311, %v6496
      %v6590 = vadd.f32 %v6312, %v6499
      %v6591 = vadd.f32 %v6313, %v6502
      %v6592 = vadd.f32 %v6314, %v6505
      %v6593 = vadd.f32 %v6315, %v6508
      %v6594 = vadd.f32 %v6316, %v6511
      %v6595 = vadd.f32 %v6317, %v6514
      %v6596 = vadd.f32 %v6318, %v6517
      %v6597 = vadd.f32 %v6319, %v6520
      %v6598 = vadd.f32 %v6320, %v6523
      %v6599 = vadd.f32 %v6321, %v6526
      %v6600 = vadd.f32 %v6322, %v6529
      %v6601 = vadd.f32 %v6323, %v6532
      %v6602 = vadd.f32 %v6324, %v6535
      %v6603 = vadd.f32 %v6325, %v6538
      %v6604 = vadd.f32 %v6326, %v6541
      %v6605 = vadd.f32 %v6327, %v6544
      %v6606 = vadd.f32 %v6328, %v6547
      %v6607 = vadd.f32 %v6329, %v6550
      %v6608 = vadd.f32 %v6330, %v6553
      %v6609 = vadd.f32 %v6331, %v6556
      %v6610 = vadd.f32 %v6332, %v6559
      %v6611 = vadd.f32 %v6333, %v6562
      %v6612 = vadd.f32 %v6334, %v6565
      %v6613 = vadd.f32 %v6335, %v6568
      %v6614 = vadd.f32 %v6336, %v6571
      %v6615 = vadd.f32 %v6337, %v6574
      %v6616 = vadd.f32 %v6338, %v6577
      %v6617 = vadd.f32 %v6339, %v6580
      %v6618 = vadd.f32 %v6340, %v6583
      %v6619 = vadd.f32 %v6341, %v6586
      %v6620 = vld [vmem:[%s7] sm:$0x1]
      %v6622 = vperm.slane %v6620, 0
      %v6624 = vadd.f32 %v6588, %v6622
      %v6625 = vadd.f32 %v6589, %v6622
      %v6626 = vadd.f32 %v6590, %v6622
      %v6627 = vadd.f32 %v6591, %v6622
      %v6628 = vadd.f32 %v6592, %v6622
      %v6629 = vadd.f32 %v6593, %v6622
      %v6630 = vadd.f32 %v6594, %v6622
      %v6631 = vadd.f32 %v6595, %v6622
      %v6632 = vadd.f32 %v6596, %v6622
      %v6633 = vadd.f32 %v6597, %v6622
      %v6634 = vadd.f32 %v6598, %v6622
      %v6635 = vadd.f32 %v6599, %v6622
      %v6636 = vadd.f32 %v6600, %v6622
      %v6637 = vadd.f32 %v6601, %v6622
      %v6638 = vadd.f32 %v6602, %v6622
      %v6639 = vadd.f32 %v6603, %v6622
      %v6640 = vadd.f32 %v6604, %v6622
      %v6641 = vadd.f32 %v6605, %v6622
      %v6642 = vadd.f32 %v6606, %v6622
      %v6643 = vadd.f32 %v6607, %v6622
      %v6644 = vadd.f32 %v6608, %v6622
      %v6645 = vadd.f32 %v6609, %v6622
      %v6646 = vadd.f32 %v6610, %v6622
      %v6647 = vadd.f32 %v6611, %v6622
      %v6648 = vadd.f32 %v6612, %v6622
      %v6649 = vadd.f32 %v6613, %v6622
      %v6650 = vadd.f32 %v6614, %v6622
      %v6651 = vadd.f32 %v6615, %v6622
      %v6652 = vadd.f32 %v6616, %v6622
      %v6653 = vadd.f32 %v6617, %v6622
      %v6654 = vadd.f32 %v6618, %v6622
      %v6655 = vadd.f32 %v6619, %v6622
      %v6656 = vmax.f32 %v6624, 0.0
      %v6657 = vmax.f32 %v6625, 0.0
      %v6658 = vmax.f32 %v6626, 0.0
      %v6659 = vmax.f32 %v6627, 0.0
      %v6660 = vmax.f32 %v6628, 0.0
      %v6661 = vmax.f32 %v6629, 0.0
      %v6662 = vmax.f32 %v6630, 0.0
      %v6663 = vmax.f32 %v6631, 0.0
      %v6664 = vmax.f32 %v6632, 0.0
      %v6665 = vmax.f32 %v6633, 0.0
      %v6666 = vmax.f32 %v6634, 0.0
      %v6667 = vmax.f32 %v6635, 0.0
      %v6668 = vmax.f32 %v6636, 0.0
      %v6669 = vmax.f32 %v6637, 0.0
      %v6670 = vmax.f32 %v6638, 0.0
      %v6671 = vmax.f32 %v6639, 0.0
      %v6672 = vmax.f32 %v6640, 0.0
      %v6673 = vmax.f32 %v6641, 0.0
      %v6674 = vmax.f32 %v6642, 0.0
      %v6675 = vmax.f32 %v6643, 0.0
      %v6676 = vmax.f32 %v6644, 0.0
      %v6677 = vmax.f32 %v6645, 0.0
      %v6678 = vmax.f32 %v6646, 0.0
      %v6679 = vmax.f32 %v6647, 0.0
      %v6680 = vmax.f32 %v6648, 0.0
      %v6681 = vmax.f32 %v6649, 0.0
      %v6682 = vmax.f32 %v6650, 0.0
      %v6683 = vmax.f32 %v6651, 0.0
      %v6684 = vmax.f32 %v6652, 0.0
      %v6685 = vmax.f32 %v6653, 0.0
      %v6686 = vmax.f32 %v6654, 0.0
      %v6687 = vmax.f32 %v6655, 0.0
      %6688 = vst.msk [vmem:[%s325] sm:$0xff] %vm372, %v6656
      %6689 = vst.msk [vmem:[%s325 + $0x8] sm:$0xff] %vm372, %v6657
      %6690 = vst.msk [vmem:[%s325 + $0x10] sm:$0xff] %vm372, %v6658
      %6691 = vst.msk [vmem:[%s325 + $0x18] sm:$0xff] %vm372, %v6659
      %6692 = vst.msk [vmem:[%s325 + $0x20] sm:$0xff] %vm372, %v6660
      %6693 = vst.msk [vmem:[%s325 + $0x28] sm:$0xff] %vm372, %v6661
      %6694 = vst.msk [vmem:[%s325 + $0x30] sm:$0xff] %vm372, %v6662
      %6695 = vst.msk [vmem:[%s325 + $0x38] sm:$0xff] %vm372, %v6663
      %6696 = vst.msk [vmem:[%s325 + $0x40] sm:$0xff] %vm372, %v6664
      %6697 = vst.msk [vmem:[%s325 + $0x48] sm:$0xff] %vm372, %v6665
      %6698 = vst.msk [vmem:[%s325 + $0x50] sm:$0xff] %vm372, %v6666
      %6699 = vst.msk [vmem:[%s325 + $0x58] sm:$0xff] %vm372, %v6667
      %6700 = vst.msk [vmem:[%s325 + $0x60] sm:$0xff] %vm372, %v6668
      %6701 = vst.msk [vmem:[%s325 + $0x68] sm:$0xff] %vm372, %v6669
      %6702 = vst.msk [vmem:[%s325 + $0x70] sm:$0xff] %vm372, %v6670
      %6703 = vst.msk [vmem:[%s325 + $0x78] sm:$0xff] %vm372, %v6671
      %6704 = vst.msk [vmem:[%s325 + $0x80] sm:$0xff] %vm372, %v6672
      %6705 = vst.msk [vmem:[%s325 + $0x88] sm:$0xff] %vm372, %v6673
      %6706 = vst.msk [vmem:[%s325 + $0x90] sm:$0xff] %vm372, %v6674
      %6707 = vst.msk [vmem:[%s325 + $0x98] sm:$0xff] %vm372, %v6675
      %6708 = vst.msk [vmem:[%s325 + $0xa0] sm:$0xff] %vm372, %v6676
      %6709 = vst.msk [vmem:[%s325 + $0xa8] sm:$0xff] %vm372, %v6677
      %6710 = vst.msk [vmem:[%s325 + $0xb0] sm:$0xff] %vm372, %v6678
      %6711 = vst.msk [vmem:[%s325 + $0xb8] sm:$0xff] %vm372, %v6679
      %6712 = vst.msk [vmem:[%s325 + $0xc0] sm:$0xff] %vm372, %v6680
      %6713 = vst.msk [vmem:[%s325 + $0xc8] sm:$0xff] %vm372, %v6681
      %6714 = vst.msk [vmem:[%s325 + $0xd0] sm:$0xff] %vm372, %v6682
      %6715 = vst.msk [vmem:[%s325 + $0xd8] sm:$0xff] %vm372, %v6683
      %6716 = vst.msk [vmem:[%s325 + $0xe0] sm:$0xff] %vm372, %v6684
      %6717 = vst.msk [vmem:[%s325 + $0xe8] sm:$0xff] %vm372, %v6685
      %6718 = vst.msk [vmem:[%s325 + $0xf0] sm:$0xff] %vm372, %v6686
      %6719 = vst.msk [vmem:[%s325 + $0xf8] sm:$0xff] %vm372, %v6687
      %p6720 = scmp.lt.s32.totalorder %s19, 1
      %s6721 = scalar_select %p6720, %s19, 1
      %s6722 = smul.addr %s6721, 32
      %s6723 = smul.addr %s6722, 8
      %s6724 = scalar_lea.vmem %s8, %s6723
      // Predicated region
      $region53: #{up_forward.1} parent=51 // pred_check
        %p6725 = pneg %p215
      $region54: #{up_forward.1} parent=51 // pred_check_branch
        %6727 = sbr.rel (%p6725) target = $region56
      $region55: #{up_forward.1} parent=51 // pred_region
        _
      $region56: #{up_forward.1} parent=51 // pred_fallthru
        _
    $region52: #{up_forward.1} parent=5 // pred_fallthru
      _
    %p6728 = scmp.le.s32.totalorder 2, %s14
    // Predicated region
    $region57: #{up_forward.1} parent=5 // pred_check
      %p6729 = pneg %p6728
    $region58: #{up_forward.1} parent=5 // pred_check_branch
      %6731 = sbr.rel (%p6729) target = $region60
    $region59: #{up_forward.1} parent=5 // pred_region
      %s6732 = ssub.s32 %s14, 2
      // Predicated region
      $region61: #{up_forward.1} parent=59 // pred_check
        %p6733 = pneg %p221
      $region62: #{up_forward.1} parent=59 // pred_check_branch
        %6735 = sbr.rel (%p6733) target = $region64
      $region63: #{up_forward.1} parent=59 // pred_region
        %p6736 = scmp.lt.s32.totalorder %s20, 1
        %s6737 = scalar_select %p6736, %s20, 1
        %s6738 = smul.addr %s6737, 32
        %s6739 = smul.addr %s6738, 8
        %s6740 = scalar_lea.vmem %s8, %s6739
      $region64: #{up_forward.1} parent=59 // pred_fallthru
        _
    $region60: #{up_forward.1} parent=5 // pred_fallthru
      _
  $region6: #{up_forward.1} parent=0 // loop_footer
    %s18 = sadd.s32 1, %s14
  $region7: #{up_forward.1} parent=0 // loop_footer_branch
    %13 = sbr.rel target = $region3
  $region8: #{up_forward.1} parent=0 // loop_exit
    _

</llo_original>
